<compile_context>
chip_gen: v7x
topology: tpu7x:2x2x1
jax: 0.10.0
libtpu: 0.0.40
codegen_flags: <defaults>
</compile_context>

<pallas_src>
import numpy as np
import jax
import jax.numpy as jnp
from jax import lax
from jax.experimental import pallas as pl
from jax.experimental.pallas import tpu as pltpu

H = W = 7
HW = H * W            # 49 spatial positions
LANES = 128           # padded lane width used for the conv matmul output
PAD = 8               # lane offset of the image inside the padded buffer
CIN = 128
COUT = 32
N_MID = 11            # x320 .. x390
C_TOTAL = 928         # 512 + 11*32 + 32 (conv out) + 32
EPS = 1e-5


def _make_tap_masks():
    """mask[t, 7h+w] = 1.0 iff conv tap t = 3*kh+kw lands inside the 7x7 image
    at output position (h, w) (i.e. 0 <= h+kh-1 < 7 and 0 <= w+kw-1 < 7)."""
    m = np.zeros((9, HW), np.float32)
    for kh in range(3):
        for kw in range(3):
            t = 3 * kh + kw
            for h in range(H):
                for w in range(W):
                    if 0 <= h + kh - 1 < H and 0 <= w + kw - 1 < W:
                        m[t, h * W + w] = 1.0
    return m


_TAP_MASKS = _make_tap_masks()


# ---------------------------------------------------------------------------
# Single fused kernel: conv + concat + batchnorm, everything VMEM-resident.
# ---------------------------------------------------------------------------
def fused_kernel(*refs):
    (w_ref,      # (288, 128)  tap-major conv weights: row = (3*kh+kw)*32 + cout
     mask_ref,   # (9, 49)     0/1 border masks per tap
     g_ref,      # (928, 1)    BN gamma (per channel)
     b_ref,      # (928, 1)    BN beta
     x396_ref,   # (128, 49)   conv input
     x313_hbm,   # (512, 49)   pass-through piece, left in HBM (pl.ANY)
     ) = refs[:6]
    mid_refs = refs[6:6 + N_MID]        # 11 x (32, 49)
    x404_ref = refs[6 + N_MID]          # (32, 49)
    o_ref = refs[7 + N_MID]             # (928, 49) output
    xpad_ref = refs[8 + N_MID]          # (128, 128) VMEM scratch
    x313_vmem = refs[9 + N_MID]         # (512, 49)  VMEM scratch
    dma_sem = refs[10 + N_MID]          # DMA semaphore

    # Kick off the x313 HBM->VMEM copy so it streams in behind the conv stage.
    x313_cp = pltpu.make_async_copy(x313_hbm, x313_vmem, dma_sem)
    x313_cp.start()

    # ---- Conv2d: zero-pad the input to 128 lanes at offset PAD, one MXU matmul
    #      for all 9 taps, then recombine taps with static lane-shifted window
    #      slices * constant border masks (no per-tap matmuls, no add chain).
    xpad_ref[...] = jnp.zeros((CIN, LANES), jnp.float32)
    xpad_ref[:, PAD:PAD + HW] = x396_ref[...]
    y = jnp.dot(w_ref[...], xpad_ref[...],
                preferred_element_type=jnp.float32)            # (288, 128)

    terms = []
    for t in range(9):
        kh, kw = divmod(t, 3)
        off = W * (kh - 1) + (kw - 1)                          # lane shift of tap t
        win = y[t * COUT:(t + 1) * COUT, PAD + off:PAD + off + HW]   # (32, 49)
        terms.append(win * mask_ref[t:t + 1, :])               # (32,49) * (1,49)
    while len(terms) > 1:                                      # balanced tree sum
        nxt = [terms[i] + terms[i + 1] for i in range(0, len(terms) - 1, 2)]
        if len(terms) % 2:
            nxt.append(terms[-1])
        terms = nxt
    conv = terms[0]                                            # (32, 49)

    # ---- BatchNorm (batch statistics, biased variance) fused with the concat.
    #      Row sums go through the MXU (vals @ ones) so the XLU is not the
    #      bottleneck and the moments arrive already broadcast across lanes.
    ones_k = jnp.ones((HW, HW), jnp.float32)
    inv_hw = jnp.float32(1.0 / HW)

    def bn_write(vals, row0):
        n = vals.shape[0]
        s1 = jnp.dot(vals, ones_k, preferred_element_type=jnp.float32)   # (n,49)
        mean = s1 * inv_hw
        cent = vals - mean
        s2 = jnp.dot(cent * cent, ones_k, preferred_element_type=jnp.float32)
        scale = lax.rsqrt(s2 * inv_hw + EPS) * g_ref[row0:row0 + n, :]
        o_ref[row0:row0 + n, :] = cent * scale + b_ref[row0:row0 + n, :]

    # Pieces that are already in VMEM first (overlaps the x313 DMA).
    bn_write(conv, 864)                             # conv result, channels [864, 896)
    for i in range(N_MID):                          # channels [512, 864)
        bn_write(mid_refs[i][...], 512 + 32 * i)
    bn_write(x404_ref[...], 896)                    # channels [896, 928)

    # Now the 512-channel piece, in 128-row chunks (bounded vreg live-set).
    x313_cp.wait()
    for r0 in range(0, 512, 128):                   # channels [0, 512)
        bn_write(x313_vmem[r0:r0 + 128, :], r0)


# ---------------------------------------------------------------------------
# Wrapper
# ---------------------------------------------------------------------------
def forward(params, x396, x313, others, x404):
    """others: list of 11 tensors, each (1, 32, 7, 7). Returns (1, 928, 7, 7)."""
    conv_w, gamma, beta = params            # conv_w in PyTorch OIHW (32,128,3,3)

    # Tap-major weight layout for the single MXU matmul (tiny, param-only op).
    w_all = jnp.transpose(conv_w, (2, 3, 0, 1)).reshape(9 * COUT, CIN)
    masks = jnp.asarray(_TAP_MASKS)         # (9, 49) constant border masks
    g = gamma.reshape(C_TOTAL, 1)
    b = beta.reshape(C_TOTAL, 1)

    # NCHW -> channel-major (C, H*W): pure reshape, no data movement.
    cm = lambda x: x.reshape(x.shape[1], HW)
    inputs = ([w_all, masks, g, b, cm(x396), cm(x313)]
              + [cm(t) for t in others] + [cm(x404)])

    vmem = pl.BlockSpec(memory_space=pltpu.MemorySpace.VMEM)
    in_specs = ([vmem] * 5
                + [pl.BlockSpec(memory_space=pl.ANY)]    # x313: manual DMA
                + [vmem] * (N_MID + 1))

    out = pl.pallas_call(
        fused_kernel,
        out_shape=jax.ShapeDtypeStruct((C_TOTAL, HW), jnp.float32),
        in_specs=in_specs,
        out_specs=pl.BlockSpec(memory_space=pltpu.MemorySpace.VMEM),
        scratch_shapes=[
            pltpu.VMEM((CIN, LANES), jnp.float32),   # lane-padded conv input
            pltpu.VMEM((512, HW), jnp.float32),      # x313 landing buffer
            pltpu.SemaphoreType.DMA(()),             # x313 copy completion
        ],
    )(*inputs)

    return out.reshape(1, C_TOTAL, H, W)    # already NCHW memory order


def init_params(key):
    # Conv2d(128,32,3,3) weight, PyTorch layout (Cout,Cin,kH,kW); deterministic init.
    fan_in = CIN * 9
    bound = fan_in ** -0.5
    conv_w = jax.random.uniform(key, (COUT, CIN, 3, 3), jnp.float32,
                                minval=-bound, maxval=bound)
    # BatchNorm2d(928) affine params: weight=1, bias=0 (PyTorch default init).
    gamma = jnp.ones((C_TOTAL,), jnp.float32)
    beta = jnp.zeros((C_TOTAL,), jnp.float32)
    return conv_w, gamma, beta


# Pure-JAX reference (same semantics as the PyTorch module forward).
def reference(params, x396, x313, others, x404):
    conv_w, gamma, beta = params
    x397 = lax.conv_general_dilated(
        x396, conv_w, window_strides=(1, 1), padding=((1, 1), (1, 1)),
        dimension_numbers=('NCHW', 'OIHW', 'NCHW'))
    y = jnp.concatenate([x313] + list(others) + [x397, x404], axis=1)
    mean = jnp.mean(y, axis=(0, 2, 3), keepdims=True)
    var = jnp.mean((y - mean) ** 2, axis=(0, 2, 3), keepdims=True)
    yn = (y - mean) * lax.rsqrt(var + EPS)
    return yn * gamma.reshape(1, -1, 1, 1) + beta.reshape(1, -1, 1, 1)


if __name__ == "__main__":
    key = jax.random.PRNGKey(0)
    keys = jax.random.split(key, 16)

    params = init_params(keys[0])
    x313 = jax.random.normal(keys[1], (1, 512, H, W), jnp.float32)
    x396 = jax.random.normal(keys[2], (1, CIN, H, W), jnp.float32)
    x404 = jax.random.normal(keys[3], (1, 32, H, W), jnp.float32)
    others = [jax.random.normal(keys[4 + i], (1, 32, H, W), jnp.float32)
              for i in range(N_MID)]

    out = jax.jit(forward)(params, x396, x313, others, x404)
    out = jax.block_until_ready(out)

    assert out.shape == (1, C_TOTAL, H, W), out.shape
    assert out.dtype == jnp.float32

    ref = jax.block_until_ready(reference(params, x396, x313, others, x404))
    np.testing.assert_allclose(np.asarray(out), np.asarray(ref),
                               rtol=2e-3, atol=2e-3)
    print("KERNEL_OK")
</pallas_src>

<mosaic_0001>
module attributes {stable_mosaic.version = 11 : i64} {
  func.func @fused_kernel(%arg0: memref<288x128xf32, #tpu.memory_space<vmem>>, %arg1: memref<9x49xf32, #tpu.memory_space<vmem>>, %arg2: memref<928x1xf32, #tpu.memory_space<vmem>>, %arg3: memref<928x1xf32, #tpu.memory_space<vmem>>, %arg4: memref<128x49xf32, #tpu.memory_space<vmem>>, %arg5: memref<512x49xf32, #tpu.memory_space<any>>, %arg6: memref<32x49xf32, #tpu.memory_space<vmem>>, %arg7: memref<32x49xf32, #tpu.memory_space<vmem>>, %arg8: memref<32x49xf32, #tpu.memory_space<vmem>>, %arg9: memref<32x49xf32, #tpu.memory_space<vmem>>, %arg10: memref<32x49xf32, #tpu.memory_space<vmem>>, %arg11: memref<32x49xf32, #tpu.memory_space<vmem>>, %arg12: memref<32x49xf32, #tpu.memory_space<vmem>>, %arg13: memref<32x49xf32, #tpu.memory_space<vmem>>, %arg14: memref<32x49xf32, #tpu.memory_space<vmem>>, %arg15: memref<32x49xf32, #tpu.memory_space<vmem>>, %arg16: memref<32x49xf32, #tpu.memory_space<vmem>>, %arg17: memref<32x49xf32, #tpu.memory_space<vmem>>, %arg18: memref<928x49xf32, #tpu.memory_space<vmem>>, %arg19: memref<128x128xf32, #tpu.memory_space<vmem>>, %arg20: memref<512x49xf32, #tpu.memory_space<vmem>>, %arg21: memref<!tpu.dma_semaphore, #tpu.memory_space<semaphore_mem>>) attributes {dimension_semantics = [], scalar_prefetch = 0 : i64, scratch_operands = 3 : i64, tpu.core_type = #tpu.core_type<tc>} {
    tpu.enqueue_dma source(%arg5 : memref<512x49xf32, #tpu.memory_space<any>>) target(%arg20 : memref<512x49xf32, #tpu.memory_space<vmem>>) target_semaphore(%arg21 : memref<!tpu.dma_semaphore, #tpu.memory_space<semaphore_mem>>)
    %cst = arith.constant 0.000000e+00 : f32
    %0 = vector.broadcast %cst : f32 to vector<128x128xf32>
    %c0 = arith.constant 0 : index
    %c0_0 = arith.constant 0 : index
    %1 = vector.load %arg19[%c0, %c0_0] : memref<128x128xf32, #tpu.memory_space<vmem>>, vector<128x128xf32>
    tpu.vector_store %arg19[%c0, %c0_0], %0 {strides = array<i32>} : memref<128x128xf32, #tpu.memory_space<vmem>>, vector<128x128xf32>,
    %c0_1 = arith.constant 0 : index
    %c0_2 = arith.constant 0 : index
    %2 = vector.load %arg4[%c0_1, %c0_2] : memref<128x49xf32, #tpu.memory_space<vmem>>, vector<128x49xf32>
    %c0_3 = arith.constant 0 : index
    %c8 = arith.constant 8 : index
    %3 = vector.load %arg19[%c0_3, %c8] : memref<128x128xf32, #tpu.memory_space<vmem>>, vector<128x49xf32>
    tpu.vector_store %arg19[%c0_3, %c8], %2 {strides = array<i32>} : memref<128x128xf32, #tpu.memory_space<vmem>>, vector<128x49xf32>,
    %c0_4 = arith.constant 0 : index
    %c0_5 = arith.constant 0 : index
    %4 = vector.load %arg0[%c0_4, %c0_5] : memref<288x128xf32, #tpu.memory_space<vmem>>, vector<288x128xf32>
    %c0_6 = arith.constant 0 : index
    %c0_7 = arith.constant 0 : index
    %5 = vector.load %arg19[%c0_6, %c0_7] : memref<128x128xf32, #tpu.memory_space<vmem>>, vector<128x128xf32>
    %cst_8 = arith.constant dense<0.000000e+00> : vector<288x128xf32>
    %6 = tpu.matmul %4, %5, %cst_8 {dimension_numbers = #tpu.dot_dimension_numbers<[1], [0], [0], [1], [0, 0, 1, 1], [], []>} : vector<288x128xf32>, vector<128x128xf32>, vector<288x128xf32> -> vector<288x128xf32>
    %7 = vector.extract_strided_slice %6 {offsets = [0, 0], sizes = [32, 49], strides = [1, 1]} : vector<288x128xf32> to vector<32x49xf32>
    %c0_9 = arith.constant 0 : index
    %c0_10 = arith.constant 0 : index
    %8 = vector.load %arg1[%c0_9, %c0_10] : memref<9x49xf32, #tpu.memory_space<vmem>>, vector<1x49xf32>
    %9 = vector.broadcast %8 : vector<1x49xf32> to vector<32x49xf32>
    %10 = arith.mulf %7, %9 : vector<32x49xf32>
    %11 = vector.extract_strided_slice %6 {offsets = [32, 1], sizes = [32, 49], strides = [1, 1]} : vector<288x128xf32> to vector<32x49xf32>
    %c1 = arith.constant 1 : index
    %c0_11 = arith.constant 0 : index
    %12 = vector.load %arg1[%c1, %c0_11] : memref<9x49xf32, #tpu.memory_space<vmem>>, vector<1x49xf32>
    %13 = vector.broadcast %12 : vector<1x49xf32> to vector<32x49xf32>
    %14 = arith.mulf %11, %13 : vector<32x49xf32>
    %15 = vector.extract_strided_slice %6 {offsets = [64, 2], sizes = [32, 49], strides = [1, 1]} : vector<288x128xf32> to vector<32x49xf32>
    %c2 = arith.constant 2 : index
    %c0_12 = arith.constant 0 : index
    %16 = vector.load %arg1[%c2, %c0_12] : memref<9x49xf32, #tpu.memory_space<vmem>>, vector<1x49xf32>
    %17 = vector.broadcast %16 : vector<1x49xf32> to vector<32x49xf32>
    %18 = arith.mulf %15, %17 : vector<32x49xf32>
    %19 = vector.extract_strided_slice %6 {offsets = [96, 7], sizes = [32, 49], strides = [1, 1]} : vector<288x128xf32> to vector<32x49xf32>
    %c3 = arith.constant 3 : index
    %c0_13 = arith.constant 0 : index
    %20 = vector.load %arg1[%c3, %c0_13] : memref<9x49xf32, #tpu.memory_space<vmem>>, vector<1x49xf32>
    %21 = vector.broadcast %20 : vector<1x49xf32> to vector<32x49xf32>
    %22 = arith.mulf %19, %21 : vector<32x49xf32>
    %23 = vector.extract_strided_slice %6 {offsets = [128, 8], sizes = [32, 49], strides = [1, 1]} : vector<288x128xf32> to vector<32x49xf32>
    %c4 = arith.constant 4 : index
    %c0_14 = arith.constant 0 : index
    %24 = vector.load %arg1[%c4, %c0_14] : memref<9x49xf32, #tpu.memory_space<vmem>>, vector<1x49xf32>
    %25 = vector.broadcast %24 : vector<1x49xf32> to vector<32x49xf32>
    %26 = arith.mulf %23, %25 : vector<32x49xf32>
    %27 = vector.extract_strided_slice %6 {offsets = [160, 9], sizes = [32, 49], strides = [1, 1]} : vector<288x128xf32> to vector<32x49xf32>
    %c5 = arith.constant 5 : index
    %c0_15 = arith.constant 0 : index
    %28 = vector.load %arg1[%c5, %c0_15] : memref<9x49xf32, #tpu.memory_space<vmem>>, vector<1x49xf32>
    %29 = vector.broadcast %28 : vector<1x49xf32> to vector<32x49xf32>
    %30 = arith.mulf %27, %29 : vector<32x49xf32>
    %31 = vector.extract_strided_slice %6 {offsets = [192, 14], sizes = [32, 49], strides = [1, 1]} : vector<288x128xf32> to vector<32x49xf32>
    %c6 = arith.constant 6 : index
    %c0_16 = arith.constant 0 : index
    %32 = vector.load %arg1[%c6, %c0_16] : memref<9x49xf32, #tpu.memory_space<vmem>>, vector<1x49xf32>
    %33 = vector.broadcast %32 : vector<1x49xf32> to vector<32x49xf32>
    %34 = arith.mulf %31, %33 : vector<32x49xf32>
    %35 = vector.extract_strided_slice %6 {offsets = [224, 15], sizes = [32, 49], strides = [1, 1]} : vector<288x128xf32> to vector<32x49xf32>
    %c7 = arith.constant 7 : index
    %c0_17 = arith.constant 0 : index
    %36 = vector.load %arg1[%c7, %c0_17] : memref<9x49xf32, #tpu.memory_space<vmem>>, vector<1x49xf32>
    %37 = vector.broadcast %36 : vector<1x49xf32> to vector<32x49xf32>
    %38 = arith.mulf %35, %37 : vector<32x49xf32>
    %39 = vector.extract_strided_slice %6 {offsets = [256, 16], sizes = [32, 49], strides = [1, 1]} : vector<288x128xf32> to vector<32x49xf32>
    %c8_18 = arith.constant 8 : index
    %c0_19 = arith.constant 0 : index
    %40 = vector.load %arg1[%c8_18, %c0_19] : memref<9x49xf32, #tpu.memory_space<vmem>>, vector<1x49xf32>
    %41 = vector.broadcast %40 : vector<1x49xf32> to vector<32x49xf32>
    %42 = arith.mulf %39, %41 : vector<32x49xf32>
    %43 = arith.addf %10, %14 : vector<32x49xf32>
    %44 = arith.addf %18, %22 : vector<32x49xf32>
    %45 = arith.addf %26, %30 : vector<32x49xf32>
    %46 = arith.addf %34, %38 : vector<32x49xf32>
    %47 = arith.addf %43, %44 : vector<32x49xf32>
    %48 = arith.addf %45, %46 : vector<32x49xf32>
    %49 = arith.addf %47, %48 : vector<32x49xf32>
    %50 = arith.addf %49, %42 : vector<32x49xf32>
    %cst_20 = arith.constant 1.000000e+00 : f32
    %51 = vector.broadcast %cst_20 : f32 to vector<49x49xf32>
    %cst_21 = arith.constant dense<0.000000e+00> : vector<32x49xf32>
    %52 = tpu.matmul %50, %51, %cst_21 {dimension_numbers = #tpu.dot_dimension_numbers<[1], [0], [0], [1], [0, 0, 1, 1], [], []>} : vector<32x49xf32>, vector<49x49xf32>, vector<32x49xf32> -> vector<32x49xf32>
    %cst_22 = arith.constant 0.0204081628 : f32
    %53 = vector.broadcast %cst_22 : f32 to vector<32x49xf32>
    %54 = arith.mulf %52, %53 : vector<32x49xf32>
    %55 = arith.subf %50, %54 : vector<32x49xf32>
    %56 = arith.mulf %55, %55 : vector<32x49xf32>
    %cst_23 = arith.constant dense<0.000000e+00> : vector<32x49xf32>
    %57 = tpu.matmul %56, %51, %cst_23 {dimension_numbers = #tpu.dot_dimension_numbers<[1], [0], [0], [1], [0, 0, 1, 1], [], []>} : vector<32x49xf32>, vector<49x49xf32>, vector<32x49xf32> -> vector<32x49xf32>
    %cst_24 = arith.constant 0.0204081628 : f32
    %58 = vector.broadcast %cst_24 : f32 to vector<32x49xf32>
    %59 = arith.mulf %57, %58 : vector<32x49xf32>
    %cst_25 = arith.constant 9.99999974E-6 : f32
    %60 = vector.broadcast %cst_25 : f32 to vector<32x49xf32>
    %61 = arith.addf %59, %60 : vector<32x49xf32>
    %62 = math.rsqrt %61 : vector<32x49xf32>
    %c864 = arith.constant 864 : index
    %c0_26 = arith.constant 0 : index
    %63 = vector.load %arg2[%c864, %c0_26] : memref<928x1xf32, #tpu.memory_space<vmem>>, vector<32x1xf32>
    %64 = vector.broadcast %63 : vector<32x1xf32> to vector<32x49xf32>
    %65 = arith.mulf %62, %64 : vector<32x49xf32>
    %66 = arith.mulf %55, %65 : vector<32x49xf32>
    %c864_27 = arith.constant 864 : index
    %c0_28 = arith.constant 0 : index
    %67 = vector.load %arg3[%c864_27, %c0_28] : memref<928x1xf32, #tpu.memory_space<vmem>>, vector<32x1xf32>
    %68 = vector.broadcast %67 : vector<32x1xf32> to vector<32x49xf32>
    %69 = arith.addf %66, %68 : vector<32x49xf32>
    %c864_29 = arith.constant 864 : index
    %c0_30 = arith.constant 0 : index
    %70 = vector.load %arg18[%c864_29, %c0_30] : memref<928x49xf32, #tpu.memory_space<vmem>>, vector<32x49xf32>
    tpu.vector_store %arg18[%c864_29, %c0_30], %69 {strides = array<i32>} : memref<928x49xf32, #tpu.memory_space<vmem>>, vector<32x49xf32>,
    %c0_31 = arith.constant 0 : index
    %c0_32 = arith.constant 0 : index
    %71 = vector.load %arg6[%c0_31, %c0_32] : memref<32x49xf32, #tpu.memory_space<vmem>>, vector<32x49xf32>
    %cst_33 = arith.constant dense<0.000000e+00> : vector<32x49xf32>
    %72 = tpu.matmul %71, %51, %cst_33 {dimension_numbers = #tpu.dot_dimension_numbers<[1], [0], [0], [1], [0, 0, 1, 1], [], []>} : vector<32x49xf32>, vector<49x49xf32>, vector<32x49xf32> -> vector<32x49xf32>
    %cst_34 = arith.constant 0.0204081628 : f32
    %73 = vector.broadcast %cst_34 : f32 to vector<32x49xf32>
    %74 = arith.mulf %72, %73 : vector<32x49xf32>
    %75 = arith.subf %71, %74 : vector<32x49xf32>
    %76 = arith.mulf %75, %75 : vector<32x49xf32>
    %cst_35 = arith.constant dense<0.000000e+00> : vector<32x49xf32>
    %77 = tpu.matmul %76, %51, %cst_35 {dimension_numbers = #tpu.dot_dimension_numbers<[1], [0], [0], [1], [0, 0, 1, 1], [], []>} : vector<32x49xf32>, vector<49x49xf32>, vector<32x49xf32> -> vector<32x49xf32>
    %cst_36 = arith.constant 0.0204081628 : f32
    %78 = vector.broadcast %cst_36 : f32 to vector<32x49xf32>
    %79 = arith.mulf %77, %78 : vector<32x49xf32>
    %cst_37 = arith.constant 9.99999974E-6 : f32
    %80 = vector.broadcast %cst_37 : f32 to vector<32x49xf32>
    %81 = arith.addf %79, %80 : vector<32x49xf32>
    %82 = math.rsqrt %81 : vector<32x49xf32>
    %c512 = arith.constant 512 : index
    %c0_38 = arith.constant 0 : index
    %83 = vector.load %arg2[%c512, %c0_38] : memref<928x1xf32, #tpu.memory_space<vmem>>, vector<32x1xf32>
    %84 = vector.broadcast %83 : vector<32x1xf32> to vector<32x49xf32>
    %85 = arith.mulf %82, %84 : vector<32x49xf32>
    %86 = arith.mulf %75, %85 : vector<32x49xf32>
    %c512_39 = arith.constant 512 : index
    %c0_40 = arith.constant 0 : index
    %87 = vector.load %arg3[%c512_39, %c0_40] : memref<928x1xf32, #tpu.memory_space<vmem>>, vector<32x1xf32>
    %88 = vector.broadcast %87 : vector<32x1xf32> to vector<32x49xf32>
    %89 = arith.addf %86, %88 : vector<32x49xf32>
    %c512_41 = arith.constant 512 : index
    %c0_42 = arith.constant 0 : index
    %90 = vector.load %arg18[%c512_41, %c0_42] : memref<928x49xf32, #tpu.memory_space<vmem>>, vector<32x49xf32>
    tpu.vector_store %arg18[%c512_41, %c0_42], %89 {strides = array<i32>} : memref<928x49xf32, #tpu.memory_space<vmem>>, vector<32x49xf32>,
    %c0_43 = arith.constant 0 : index
    %c0_44 = arith.constant 0 : index
    %91 = vector.load %arg7[%c0_43, %c0_44] : memref<32x49xf32, #tpu.memory_space<vmem>>, vector<32x49xf32>
    %cst_45 = arith.constant dense<0.000000e+00> : vector<32x49xf32>
    %92 = tpu.matmul %91, %51, %cst_45 {dimension_numbers = #tpu.dot_dimension_numbers<[1], [0], [0], [1], [0, 0, 1, 1], [], []>} : vector<32x49xf32>, vector<49x49xf32>, vector<32x49xf32> -> vector<32x49xf32>
    %cst_46 = arith.constant 0.0204081628 : f32
    %93 = vector.broadcast %cst_46 : f32 to vector<32x49xf32>
    %94 = arith.mulf %92, %93 : vector<32x49xf32>
    %95 = arith.subf %91, %94 : vector<32x49xf32>
    %96 = arith.mulf %95, %95 : vector<32x49xf32>
    %cst_47 = arith.constant dense<0.000000e+00> : vector<32x49xf32>
    %97 = tpu.matmul %96, %51, %cst_47 {dimension_numbers = #tpu.dot_dimension_numbers<[1], [0], [0], [1], [0, 0, 1, 1], [], []>} : vector<32x49xf32>, vector<49x49xf32>, vector<32x49xf32> -> vector<32x49xf32>
    %cst_48 = arith.constant 0.0204081628 : f32
    %98 = vector.broadcast %cst_48 : f32 to vector<32x49xf32>
    %99 = arith.mulf %97, %98 : vector<32x49xf32>
    %cst_49 = arith.constant 9.99999974E-6 : f32
    %100 = vector.broadcast %cst_49 : f32 to vector<32x49xf32>
    %101 = arith.addf %99, %100 : vector<32x49xf32>
    %102 = math.rsqrt %101 : vector<32x49xf32>
    %c544 = arith.constant 544 : index
    %c0_50 = arith.constant 0 : index
    %103 = vector.load %arg2[%c544, %c0_50] : memref<928x1xf32, #tpu.memory_space<vmem>>, vector<32x1xf32>
    %104 = vector.broadcast %103 : vector<32x1xf32> to vector<32x49xf32>
    %105 = arith.mulf %102, %104 : vector<32x49xf32>
    %106 = arith.mulf %95, %105 : vector<32x49xf32>
    %c544_51 = arith.constant 544 : index
    %c0_52 = arith.constant 0 : index
    %107 = vector.load %arg3[%c544_51, %c0_52] : memref<928x1xf32, #tpu.memory_space<vmem>>, vector<32x1xf32>
    %108 = vector.broadcast %107 : vector<32x1xf32> to vector<32x49xf32>
    %109 = arith.addf %106, %108 : vector<32x49xf32>
    %c544_53 = arith.constant 544 : index
    %c0_54 = arith.constant 0 : index
    %110 = vector.load %arg18[%c544_53, %c0_54] : memref<928x49xf32, #tpu.memory_space<vmem>>, vector<32x49xf32>
    tpu.vector_store %arg18[%c544_53, %c0_54], %109 {strides = array<i32>} : memref<928x49xf32, #tpu.memory_space<vmem>>, vector<32x49xf32>,
    %c0_55 = arith.constant 0 : index
    %c0_56 = arith.constant 0 : index
    %111 = vector.load %arg8[%c0_55, %c0_56] : memref<32x49xf32, #tpu.memory_space<vmem>>, vector<32x49xf32>
    %cst_57 = arith.constant dense<0.000000e+00> : vector<32x49xf32>
    %112 = tpu.matmul %111, %51, %cst_57 {dimension_numbers = #tpu.dot_dimension_numbers<[1], [0], [0], [1], [0, 0, 1, 1], [], []>} : vector<32x49xf32>, vector<49x49xf32>, vector<32x49xf32> -> vector<32x49xf32>
    %cst_58 = arith.constant 0.0204081628 : f32
    %113 = vector.broadcast %cst_58 : f32 to vector<32x49xf32>
    %114 = arith.mulf %112, %113 : vector<32x49xf32>
    %115 = arith.subf %111, %114 : vector<32x49xf32>
    %116 = arith.mulf %115, %115 : vector<32x49xf32>
    %cst_59 = arith.constant dense<0.000000e+00> : vector<32x49xf32>
    %117 = tpu.matmul %116, %51, %cst_59 {dimension_numbers = #tpu.dot_dimension_numbers<[1], [0], [0], [1], [0, 0, 1, 1], [], []>} : vector<32x49xf32>, vector<49x49xf32>, vector<32x49xf32> -> vector<32x49xf32>
    %cst_60 = arith.constant 0.0204081628 : f32
    %118 = vector.broadcast %cst_60 : f32 to vector<32x49xf32>
    %119 = arith.mulf %117, %118 : vector<32x49xf32>
    %cst_61 = arith.constant 9.99999974E-6 : f32
    %120 = vector.broadcast %cst_61 : f32 to vector<32x49xf32>
    %121 = arith.addf %119, %120 : vector<32x49xf32>
    %122 = math.rsqrt %121 : vector<32x49xf32>
    %c576 = arith.constant 576 : index
    %c0_62 = arith.constant 0 : index
    %123 = vector.load %arg2[%c576, %c0_62] : memref<928x1xf32, #tpu.memory_space<vmem>>, vector<32x1xf32>
    %124 = vector.broadcast %123 : vector<32x1xf32> to vector<32x49xf32>
    %125 = arith.mulf %122, %124 : vector<32x49xf32>
    %126 = arith.mulf %115, %125 : vector<32x49xf32>
    %c576_63 = arith.constant 576 : index
    %c0_64 = arith.constant 0 : index
    %127 = vector.load %arg3[%c576_63, %c0_64] : memref<928x1xf32, #tpu.memory_space<vmem>>, vector<32x1xf32>
    %128 = vector.broadcast %127 : vector<32x1xf32> to vector<32x49xf32>
    %129 = arith.addf %126, %128 : vector<32x49xf32>
    %c576_65 = arith.constant 576 : index
    %c0_66 = arith.constant 0 : index
    %130 = vector.load %arg18[%c576_65, %c0_66] : memref<928x49xf32, #tpu.memory_space<vmem>>, vector<32x49xf32>
    tpu.vector_store %arg18[%c576_65, %c0_66], %129 {strides = array<i32>} : memref<928x49xf32, #tpu.memory_space<vmem>>, vector<32x49xf32>,
    %c0_67 = arith.constant 0 : index
    %c0_68 = arith.constant 0 : index
    %131 = vector.load %arg9[%c0_67, %c0_68] : memref<32x49xf32, #tpu.memory_space<vmem>>, vector<32x49xf32>
    %cst_69 = arith.constant dense<0.000000e+00> : vector<32x49xf32>
    %132 = tpu.matmul %131, %51, %cst_69 {dimension_numbers = #tpu.dot_dimension_numbers<[1], [0], [0], [1], [0, 0, 1, 1], [], []>} : vector<32x49xf32>, vector<49x49xf32>, vector<32x49xf32> -> vector<32x49xf32>
    %cst_70 = arith.constant 0.0204081628 : f32
    %133 = vector.broadcast %cst_70 : f32 to vector<32x49xf32>
    %134 = arith.mulf %132, %133 : vector<32x49xf32>
    %135 = arith.subf %131, %134 : vector<32x49xf32>
    %136 = arith.mulf %135, %135 : vector<32x49xf32>
    %cst_71 = arith.constant dense<0.000000e+00> : vector<32x49xf32>
    %137 = tpu.matmul %136, %51, %cst_71 {dimension_numbers = #tpu.dot_dimension_numbers<[1], [0], [0], [1], [0, 0, 1, 1], [], []>} : vector<32x49xf32>, vector<49x49xf32>, vector<32x49xf32> -> vector<32x49xf32>
    %cst_72 = arith.constant 0.0204081628 : f32
    %138 = vector.broadcast %cst_72 : f32 to vector<32x49xf32>
    %139 = arith.mulf %137, %138 : vector<32x49xf32>
    %cst_73 = arith.constant 9.99999974E-6 : f32
    %140 = vector.broadcast %cst_73 : f32 to vector<32x49xf32>
    %141 = arith.addf %139, %140 : vector<32x49xf32>
    %142 = math.rsqrt %141 : vector<32x49xf32>
    %c608 = arith.constant 608 : index
    %c0_74 = arith.constant 0 : index
    %143 = vector.load %arg2[%c608, %c0_74] : memref<928x1xf32, #tpu.memory_space<vmem>>, vector<32x1xf32>
    %144 = vector.broadcast %143 : vector<32x1xf32> to vector<32x49xf32>
    %145 = arith.mulf %142, %144 : vector<32x49xf32>
    %146 = arith.mulf %135, %145 : vector<32x49xf32>
    %c608_75 = arith.constant 608 : index
    %c0_76 = arith.constant 0 : index
    %147 = vector.load %arg3[%c608_75, %c0_76] : memref<928x1xf32, #tpu.memory_space<vmem>>, vector<32x1xf32>
    %148 = vector.broadcast %147 : vector<32x1xf32> to vector<32x49xf32>
    %149 = arith.addf %146, %148 : vector<32x49xf32>
    %c608_77 = arith.constant 608 : index
    %c0_78 = arith.constant 0 : index
    %150 = vector.load %arg18[%c608_77, %c0_78] : memref<928x49xf32, #tpu.memory_space<vmem>>, vector<32x49xf32>
    tpu.vector_store %arg18[%c608_77, %c0_78], %149 {strides = array<i32>} : memref<928x49xf32, #tpu.memory_space<vmem>>, vector<32x49xf32>,
    %c0_79 = arith.constant 0 : index
    %c0_80 = arith.constant 0 : index
    %151 = vector.load %arg10[%c0_79, %c0_80] : memref<32x49xf32, #tpu.memory_space<vmem>>, vector<32x49xf32>
    %cst_81 = arith.constant dense<0.000000e+00> : vector<32x49xf32>
    %152 = tpu.matmul %151, %51, %cst_81 {dimension_numbers = #tpu.dot_dimension_numbers<[1], [0], [0], [1], [0, 0, 1, 1], [], []>} : vector<32x49xf32>, vector<49x49xf32>, vector<32x49xf32> -> vector<32x49xf32>
    %cst_82 = arith.constant 0.0204081628 : f32
    %153 = vector.broadcast %cst_82 : f32 to vector<32x49xf32>
    %154 = arith.mulf %152, %153 : vector<32x49xf32>
    %155 = arith.subf %151, %154 : vector<32x49xf32>
    %156 = arith.mulf %155, %155 : vector<32x49xf32>
    %cst_83 = arith.constant dense<0.000000e+00> : vector<32x49xf32>
    %157 = tpu.matmul %156, %51, %cst_83 {dimension_numbers = #tpu.dot_dimension_numbers<[1], [0], [0], [1], [0, 0, 1, 1], [], []>} : vector<32x49xf32>, vector<49x49xf32>, vector<32x49xf32> -> vector<32x49xf32>
    %cst_84 = arith.constant 0.0204081628 : f32
    %158 = vector.broadcast %cst_84 : f32 to vector<32x49xf32>
    %159 = arith.mulf %157, %158 : vector<32x49xf32>
    %cst_85 = arith.constant 9.99999974E-6 : f32
    %160 = vector.broadcast %cst_85 : f32 to vector<32x49xf32>
    %161 = arith.addf %159, %160 : vector<32x49xf32>
    %162 = math.rsqrt %161 : vector<32x49xf32>
    %c640 = arith.constant 640 : index
    %c0_86 = arith.constant 0 : index
    %163 = vector.load %arg2[%c640, %c0_86] : memref<928x1xf32, #tpu.memory_space<vmem>>, vector<32x1xf32>
    %164 = vector.broadcast %163 : vector<32x1xf32> to vector<32x49xf32>
    %165 = arith.mulf %162, %164 : vector<32x49xf32>
    %166 = arith.mulf %155, %165 : vector<32x49xf32>
    %c640_87 = arith.constant 640 : index
    %c0_88 = arith.constant 0 : index
    %167 = vector.load %arg3[%c640_87, %c0_88] : memref<928x1xf32, #tpu.memory_space<vmem>>, vector<32x1xf32>
    %168 = vector.broadcast %167 : vector<32x1xf32> to vector<32x49xf32>
    %169 = arith.addf %166, %168 : vector<32x49xf32>
    %c640_89 = arith.constant 640 : index
    %c0_90 = arith.constant 0 : index
    %170 = vector.load %arg18[%c640_89, %c0_90] : memref<928x49xf32, #tpu.memory_space<vmem>>, vector<32x49xf32>
    tpu.vector_store %arg18[%c640_89, %c0_90], %169 {strides = array<i32>} : memref<928x49xf32, #tpu.memory_space<vmem>>, vector<32x49xf32>,
    %c0_91 = arith.constant 0 : index
    %c0_92 = arith.constant 0 : index
    %171 = vector.load %arg11[%c0_91, %c0_92] : memref<32x49xf32, #tpu.memory_space<vmem>>, vector<32x49xf32>
    %cst_93 = arith.constant dense<0.000000e+00> : vector<32x49xf32>
    %172 = tpu.matmul %171, %51, %cst_93 {dimension_numbers = #tpu.dot_dimension_numbers<[1], [0], [0], [1], [0, 0, 1, 1], [], []>} : vector<32x49xf32>, vector<49x49xf32>, vector<32x49xf32> -> vector<32x49xf32>
    %cst_94 = arith.constant 0.0204081628 : f32
    %173 = vector.broadcast %cst_94 : f32 to vector<32x49xf32>
    %174 = arith.mulf %172, %173 : vector<32x49xf32>
    %175 = arith.subf %171, %174 : vector<32x49xf32>
    %176 = arith.mulf %175, %175 : vector<32x49xf32>
    %cst_95 = arith.constant dense<0.000000e+00> : vector<32x49xf32>
    %177 = tpu.matmul %176, %51, %cst_95 {dimension_numbers = #tpu.dot_dimension_numbers<[1], [0], [0], [1], [0, 0, 1, 1], [], []>} : vector<32x49xf32>, vector<49x49xf32>, vector<32x49xf32> -> vector<32x49xf32>
    %cst_96 = arith.constant 0.0204081628 : f32
    %178 = vector.broadcast %cst_96 : f32 to vector<32x49xf32>
    %179 = arith.mulf %177, %178 : vector<32x49xf32>
    %cst_97 = arith.constant 9.99999974E-6 : f32
    %180 = vector.broadcast %cst_97 : f32 to vector<32x49xf32>
    %181 = arith.addf %179, %180 : vector<32x49xf32>
    %182 = math.rsqrt %181 : vector<32x49xf32>
    %c672 = arith.constant 672 : index
    %c0_98 = arith.constant 0 : index
    %183 = vector.load %arg2[%c672, %c0_98] : memref<928x1xf32, #tpu.memory_space<vmem>>, vector<32x1xf32>
    %184 = vector.broadcast %183 : vector<32x1xf32> to vector<32x49xf32>
    %185 = arith.mulf %182, %184 : vector<32x49xf32>
    %186 = arith.mulf %175, %185 : vector<32x49xf32>
    %c672_99 = arith.constant 672 : index
    %c0_100 = arith.constant 0 : index
    %187 = vector.load %arg3[%c672_99, %c0_100] : memref<928x1xf32, #tpu.memory_space<vmem>>, vector<32x1xf32>
    %188 = vector.broadcast %187 : vector<32x1xf32> to vector<32x49xf32>
    %189 = arith.addf %186, %188 : vector<32x49xf32>
    %c672_101 = arith.constant 672 : index
    %c0_102 = arith.constant 0 : index
    %190 = vector.load %arg18[%c672_101, %c0_102] : memref<928x49xf32, #tpu.memory_space<vmem>>, vector<32x49xf32>
    tpu.vector_store %arg18[%c672_101, %c0_102], %189 {strides = array<i32>} : memref<928x49xf32, #tpu.memory_space<vmem>>, vector<32x49xf32>,
    %c0_103 = arith.constant 0 : index
    %c0_104 = arith.constant 0 : index
    %191 = vector.load %arg12[%c0_103, %c0_104] : memref<32x49xf32, #tpu.memory_space<vmem>>, vector<32x49xf32>
    %cst_105 = arith.constant dense<0.000000e+00> : vector<32x49xf32>
    %192 = tpu.matmul %191, %51, %cst_105 {dimension_numbers = #tpu.dot_dimension_numbers<[1], [0], [0], [1], [0, 0, 1, 1], [], []>} : vector<32x49xf32>, vector<49x49xf32>, vector<32x49xf32> -> vector<32x49xf32>
    %cst_106 = arith.constant 0.0204081628 : f32
    %193 = vector.broadcast %cst_106 : f32 to vector<32x49xf32>
    %194 = arith.mulf %192, %193 : vector<32x49xf32>
    %195 = arith.subf %191, %194 : vector<32x49xf32>
    %196 = arith.mulf %195, %195 : vector<32x49xf32>
    %cst_107 = arith.constant dense<0.000000e+00> : vector<32x49xf32>
    %197 = tpu.matmul %196, %51, %cst_107 {dimension_numbers = #tpu.dot_dimension_numbers<[1], [0], [0], [1], [0, 0, 1, 1], [], []>} : vector<32x49xf32>, vector<49x49xf32>, vector<32x49xf32> -> vector<32x49xf32>
    %cst_108 = arith.constant 0.0204081628 : f32
    %198 = vector.broadcast %cst_108 : f32 to vector<32x49xf32>
    %199 = arith.mulf %197, %198 : vector<32x49xf32>
    %cst_109 = arith.constant 9.99999974E-6 : f32
    %200 = vector.broadcast %cst_109 : f32 to vector<32x49xf32>
    %201 = arith.addf %199, %200 : vector<32x49xf32>
    %202 = math.rsqrt %201 : vector<32x49xf32>
    %c704 = arith.constant 704 : index
    %c0_110 = arith.constant 0 : index
    %203 = vector.load %arg2[%c704, %c0_110] : memref<928x1xf32, #tpu.memory_space<vmem>>, vector<32x1xf32>
    %204 = vector.broadcast %203 : vector<32x1xf32> to vector<32x49xf32>
    %205 = arith.mulf %202, %204 : vector<32x49xf32>
    %206 = arith.mulf %195, %205 : vector<32x49xf32>
    %c704_111 = arith.constant 704 : index
    %c0_112 = arith.constant 0 : index
    %207 = vector.load %arg3[%c704_111, %c0_112] : memref<928x1xf32, #tpu.memory_space<vmem>>, vector<32x1xf32>
    %208 = vector.broadcast %207 : vector<32x1xf32> to vector<32x49xf32>
    %209 = arith.addf %206, %208 : vector<32x49xf32>
    %c704_113 = arith.constant 704 : index
    %c0_114 = arith.constant 0 : index
    %210 = vector.load %arg18[%c704_113, %c0_114] : memref<928x49xf32, #tpu.memory_space<vmem>>, vector<32x49xf32>
    tpu.vector_store %arg18[%c704_113, %c0_114], %209 {strides = array<i32>} : memref<928x49xf32, #tpu.memory_space<vmem>>, vector<32x49xf32>,
    %c0_115 = arith.constant 0 : index
    %c0_116 = arith.constant 0 : index
    %211 = vector.load %arg13[%c0_115, %c0_116] : memref<32x49xf32, #tpu.memory_space<vmem>>, vector<32x49xf32>
    %cst_117 = arith.constant dense<0.000000e+00> : vector<32x49xf32>
    %212 = tpu.matmul %211, %51, %cst_117 {dimension_numbers = #tpu.dot_dimension_numbers<[1], [0], [0], [1], [0, 0, 1, 1], [], []>} : vector<32x49xf32>, vector<49x49xf32>, vector<32x49xf32> -> vector<32x49xf32>
    %cst_118 = arith.constant 0.0204081628 : f32
    %213 = vector.broadcast %cst_118 : f32 to vector<32x49xf32>
    %214 = arith.mulf %212, %213 : vector<32x49xf32>
    %215 = arith.subf %211, %214 : vector<32x49xf32>
    %216 = arith.mulf %215, %215 : vector<32x49xf32>
    %cst_119 = arith.constant dense<0.000000e+00> : vector<32x49xf32>
    %217 = tpu.matmul %216, %51, %cst_119 {dimension_numbers = #tpu.dot_dimension_numbers<[1], [0], [0], [1], [0, 0, 1, 1], [], []>} : vector<32x49xf32>, vector<49x49xf32>, vector<32x49xf32> -> vector<32x49xf32>
    %cst_120 = arith.constant 0.0204081628 : f32
    %218 = vector.broadcast %cst_120 : f32 to vector<32x49xf32>
    %219 = arith.mulf %217, %218 : vector<32x49xf32>
    %cst_121 = arith.constant 9.99999974E-6 : f32
    %220 = vector.broadcast %cst_121 : f32 to vector<32x49xf32>
    %221 = arith.addf %219, %220 : vector<32x49xf32>
    %222 = math.rsqrt %221 : vector<32x49xf32>
    %c736 = arith.constant 736 : index
    %c0_122 = arith.constant 0 : index
    %223 = vector.load %arg2[%c736, %c0_122] : memref<928x1xf32, #tpu.memory_space<vmem>>, vector<32x1xf32>
    %224 = vector.broadcast %223 : vector<32x1xf32> to vector<32x49xf32>
    %225 = arith.mulf %222, %224 : vector<32x49xf32>
    %226 = arith.mulf %215, %225 : vector<32x49xf32>
    %c736_123 = arith.constant 736 : index
    %c0_124 = arith.constant 0 : index
    %227 = vector.load %arg3[%c736_123, %c0_124] : memref<928x1xf32, #tpu.memory_space<vmem>>, vector<32x1xf32>
    %228 = vector.broadcast %227 : vector<32x1xf32> to vector<32x49xf32>
    %229 = arith.addf %226, %228 : vector<32x49xf32>
    %c736_125 = arith.constant 736 : index
    %c0_126 = arith.constant 0 : index
    %230 = vector.load %arg18[%c736_125, %c0_126] : memref<928x49xf32, #tpu.memory_space<vmem>>, vector<32x49xf32>
    tpu.vector_store %arg18[%c736_125, %c0_126], %229 {strides = array<i32>} : memref<928x49xf32, #tpu.memory_space<vmem>>, vector<32x49xf32>,
    %c0_127 = arith.constant 0 : index
    %c0_128 = arith.constant 0 : index
    %231 = vector.load %arg14[%c0_127, %c0_128] : memref<32x49xf32, #tpu.memory_space<vmem>>, vector<32x49xf32>
    %cst_129 = arith.constant dense<0.000000e+00> : vector<32x49xf32>
    %232 = tpu.matmul %231, %51, %cst_129 {dimension_numbers = #tpu.dot_dimension_numbers<[1], [0], [0], [1], [0, 0, 1, 1], [], []>} : vector<32x49xf32>, vector<49x49xf32>, vector<32x49xf32> -> vector<32x49xf32>
    %cst_130 = arith.constant 0.0204081628 : f32
    %233 = vector.broadcast %cst_130 : f32 to vector<32x49xf32>
    %234 = arith.mulf %232, %233 : vector<32x49xf32>
    %235 = arith.subf %231, %234 : vector<32x49xf32>
    %236 = arith.mulf %235, %235 : vector<32x49xf32>
    %cst_131 = arith.constant dense<0.000000e+00> : vector<32x49xf32>
    %237 = tpu.matmul %236, %51, %cst_131 {dimension_numbers = #tpu.dot_dimension_numbers<[1], [0], [0], [1], [0, 0, 1, 1], [], []>} : vector<32x49xf32>, vector<49x49xf32>, vector<32x49xf32> -> vector<32x49xf32>
    %cst_132 = arith.constant 0.0204081628 : f32
    %238 = vector.broadcast %cst_132 : f32 to vector<32x49xf32>
    %239 = arith.mulf %237, %238 : vector<32x49xf32>
    %cst_133 = arith.constant 9.99999974E-6 : f32
    %240 = vector.broadcast %cst_133 : f32 to vector<32x49xf32>
    %241 = arith.addf %239, %240 : vector<32x49xf32>
    %242 = math.rsqrt %241 : vector<32x49xf32>
    %c768 = arith.constant 768 : index
    %c0_134 = arith.constant 0 : index
    %243 = vector.load %arg2[%c768, %c0_134] : memref<928x1xf32, #tpu.memory_space<vmem>>, vector<32x1xf32>
    %244 = vector.broadcast %243 : vector<32x1xf32> to vector<32x49xf32>
    %245 = arith.mulf %242, %244 : vector<32x49xf32>
    %246 = arith.mulf %235, %245 : vector<32x49xf32>
    %c768_135 = arith.constant 768 : index
    %c0_136 = arith.constant 0 : index
    %247 = vector.load %arg3[%c768_135, %c0_136] : memref<928x1xf32, #tpu.memory_space<vmem>>, vector<32x1xf32>
    %248 = vector.broadcast %247 : vector<32x1xf32> to vector<32x49xf32>
    %249 = arith.addf %246, %248 : vector<32x49xf32>
    %c768_137 = arith.constant 768 : index
    %c0_138 = arith.constant 0 : index
    %250 = vector.load %arg18[%c768_137, %c0_138] : memref<928x49xf32, #tpu.memory_space<vmem>>, vector<32x49xf32>
    tpu.vector_store %arg18[%c768_137, %c0_138], %249 {strides = array<i32>} : memref<928x49xf32, #tpu.memory_space<vmem>>, vector<32x49xf32>,
    %c0_139 = arith.constant 0 : index
    %c0_140 = arith.constant 0 : index
    %251 = vector.load %arg15[%c0_139, %c0_140] : memref<32x49xf32, #tpu.memory_space<vmem>>, vector<32x49xf32>
    %cst_141 = arith.constant dense<0.000000e+00> : vector<32x49xf32>
    %252 = tpu.matmul %251, %51, %cst_141 {dimension_numbers = #tpu.dot_dimension_numbers<[1], [0], [0], [1], [0, 0, 1, 1], [], []>} : vector<32x49xf32>, vector<49x49xf32>, vector<32x49xf32> -> vector<32x49xf32>
    %cst_142 = arith.constant 0.0204081628 : f32
    %253 = vector.broadcast %cst_142 : f32 to vector<32x49xf32>
    %254 = arith.mulf %252, %253 : vector<32x49xf32>
    %255 = arith.subf %251, %254 : vector<32x49xf32>
    %256 = arith.mulf %255, %255 : vector<32x49xf32>
    %cst_143 = arith.constant dense<0.000000e+00> : vector<32x49xf32>
    %257 = tpu.matmul %256, %51, %cst_143 {dimension_numbers = #tpu.dot_dimension_numbers<[1], [0], [0], [1], [0, 0, 1, 1], [], []>} : vector<32x49xf32>, vector<49x49xf32>, vector<32x49xf32> -> vector<32x49xf32>
    %cst_144 = arith.constant 0.0204081628 : f32
    %258 = vector.broadcast %cst_144 : f32 to vector<32x49xf32>
    %259 = arith.mulf %257, %258 : vector<32x49xf32>
    %cst_145 = arith.constant 9.99999974E-6 : f32
    %260 = vector.broadcast %cst_145 : f32 to vector<32x49xf32>
    %261 = arith.addf %259, %260 : vector<32x49xf32>
    %262 = math.rsqrt %261 : vector<32x49xf32>
    %c800 = arith.constant 800 : index
    %c0_146 = arith.constant 0 : index
    %263 = vector.load %arg2[%c800, %c0_146] : memref<928x1xf32, #tpu.memory_space<vmem>>, vector<32x1xf32>
    %264 = vector.broadcast %263 : vector<32x1xf32> to vector<32x49xf32>
    %265 = arith.mulf %262, %264 : vector<32x49xf32>
    %266 = arith.mulf %255, %265 : vector<32x49xf32>
    %c800_147 = arith.constant 800 : index
    %c0_148 = arith.constant 0 : index
    %267 = vector.load %arg3[%c800_147, %c0_148] : memref<928x1xf32, #tpu.memory_space<vmem>>, vector<32x1xf32>
    %268 = vector.broadcast %267 : vector<32x1xf32> to vector<32x49xf32>
    %269 = arith.addf %266, %268 : vector<32x49xf32>
    %c800_149 = arith.constant 800 : index
    %c0_150 = arith.constant 0 : index
    %270 = vector.load %arg18[%c800_149, %c0_150] : memref<928x49xf32, #tpu.memory_space<vmem>>, vector<32x49xf32>
    tpu.vector_store %arg18[%c800_149, %c0_150], %269 {strides = array<i32>} : memref<928x49xf32, #tpu.memory_space<vmem>>, vector<32x49xf32>,
    %c0_151 = arith.constant 0 : index
    %c0_152 = arith.constant 0 : index
    %271 = vector.load %arg16[%c0_151, %c0_152] : memref<32x49xf32, #tpu.memory_space<vmem>>, vector<32x49xf32>
    %cst_153 = arith.constant dense<0.000000e+00> : vector<32x49xf32>
    %272 = tpu.matmul %271, %51, %cst_153 {dimension_numbers = #tpu.dot_dimension_numbers<[1], [0], [0], [1], [0, 0, 1, 1], [], []>} : vector<32x49xf32>, vector<49x49xf32>, vector<32x49xf32> -> vector<32x49xf32>
    %cst_154 = arith.constant 0.0204081628 : f32
    %273 = vector.broadcast %cst_154 : f32 to vector<32x49xf32>
    %274 = arith.mulf %272, %273 : vector<32x49xf32>
    %275 = arith.subf %271, %274 : vector<32x49xf32>
    %276 = arith.mulf %275, %275 : vector<32x49xf32>
    %cst_155 = arith.constant dense<0.000000e+00> : vector<32x49xf32>
    %277 = tpu.matmul %276, %51, %cst_155 {dimension_numbers = #tpu.dot_dimension_numbers<[1], [0], [0], [1], [0, 0, 1, 1], [], []>} : vector<32x49xf32>, vector<49x49xf32>, vector<32x49xf32> -> vector<32x49xf32>
    %cst_156 = arith.constant 0.0204081628 : f32
    %278 = vector.broadcast %cst_156 : f32 to vector<32x49xf32>
    %279 = arith.mulf %277, %278 : vector<32x49xf32>
    %cst_157 = arith.constant 9.99999974E-6 : f32
    %280 = vector.broadcast %cst_157 : f32 to vector<32x49xf32>
    %281 = arith.addf %279, %280 : vector<32x49xf32>
    %282 = math.rsqrt %281 : vector<32x49xf32>
    %c832 = arith.constant 832 : index
    %c0_158 = arith.constant 0 : index
    %283 = vector.load %arg2[%c832, %c0_158] : memref<928x1xf32, #tpu.memory_space<vmem>>, vector<32x1xf32>
    %284 = vector.broadcast %283 : vector<32x1xf32> to vector<32x49xf32>
    %285 = arith.mulf %282, %284 : vector<32x49xf32>
    %286 = arith.mulf %275, %285 : vector<32x49xf32>
    %c832_159 = arith.constant 832 : index
    %c0_160 = arith.constant 0 : index
    %287 = vector.load %arg3[%c832_159, %c0_160] : memref<928x1xf32, #tpu.memory_space<vmem>>, vector<32x1xf32>
    %288 = vector.broadcast %287 : vector<32x1xf32> to vector<32x49xf32>
    %289 = arith.addf %286, %288 : vector<32x49xf32>
    %c832_161 = arith.constant 832 : index
    %c0_162 = arith.constant 0 : index
    %290 = vector.load %arg18[%c832_161, %c0_162] : memref<928x49xf32, #tpu.memory_space<vmem>>, vector<32x49xf32>
    tpu.vector_store %arg18[%c832_161, %c0_162], %289 {strides = array<i32>} : memref<928x49xf32, #tpu.memory_space<vmem>>, vector<32x49xf32>,
    %c0_163 = arith.constant 0 : index
    %c0_164 = arith.constant 0 : index
    %291 = vector.load %arg17[%c0_163, %c0_164] : memref<32x49xf32, #tpu.memory_space<vmem>>, vector<32x49xf32>
    %cst_165 = arith.constant dense<0.000000e+00> : vector<32x49xf32>
    %292 = tpu.matmul %291, %51, %cst_165 {dimension_numbers = #tpu.dot_dimension_numbers<[1], [0], [0], [1], [0, 0, 1, 1], [], []>} : vector<32x49xf32>, vector<49x49xf32>, vector<32x49xf32> -> vector<32x49xf32>
    %cst_166 = arith.constant 0.0204081628 : f32
    %293 = vector.broadcast %cst_166 : f32 to vector<32x49xf32>
    %294 = arith.mulf %292, %293 : vector<32x49xf32>
    %295 = arith.subf %291, %294 : vector<32x49xf32>
    %296 = arith.mulf %295, %295 : vector<32x49xf32>
    %cst_167 = arith.constant dense<0.000000e+00> : vector<32x49xf32>
    %297 = tpu.matmul %296, %51, %cst_167 {dimension_numbers = #tpu.dot_dimension_numbers<[1], [0], [0], [1], [0, 0, 1, 1], [], []>} : vector<32x49xf32>, vector<49x49xf32>, vector<32x49xf32> -> vector<32x49xf32>
    %cst_168 = arith.constant 0.0204081628 : f32
    %298 = vector.broadcast %cst_168 : f32 to vector<32x49xf32>
    %299 = arith.mulf %297, %298 : vector<32x49xf32>
    %cst_169 = arith.constant 9.99999974E-6 : f32
    %300 = vector.broadcast %cst_169 : f32 to vector<32x49xf32>
    %301 = arith.addf %299, %300 : vector<32x49xf32>
    %302 = math.rsqrt %301 : vector<32x49xf32>
    %c896 = arith.constant 896 : index
    %c0_170 = arith.constant 0 : index
    %303 = vector.load %arg2[%c896, %c0_170] : memref<928x1xf32, #tpu.memory_space<vmem>>, vector<32x1xf32>
    %304 = vector.broadcast %303 : vector<32x1xf32> to vector<32x49xf32>
    %305 = arith.mulf %302, %304 : vector<32x49xf32>
    %306 = arith.mulf %295, %305 : vector<32x49xf32>
    %c896_171 = arith.constant 896 : index
    %c0_172 = arith.constant 0 : index
    %307 = vector.load %arg3[%c896_171, %c0_172] : memref<928x1xf32, #tpu.memory_space<vmem>>, vector<32x1xf32>
    %308 = vector.broadcast %307 : vector<32x1xf32> to vector<32x49xf32>
    %309 = arith.addf %306, %308 : vector<32x49xf32>
    %c896_173 = arith.constant 896 : index
    %c0_174 = arith.constant 0 : index
    %310 = vector.load %arg18[%c896_173, %c0_174] : memref<928x49xf32, #tpu.memory_space<vmem>>, vector<32x49xf32>
    tpu.vector_store %arg18[%c896_173, %c0_174], %309 {strides = array<i32>} : memref<928x49xf32, #tpu.memory_space<vmem>>, vector<32x49xf32>,
    tpu.wait_dma2 semaphore(%arg21 : memref<!tpu.dma_semaphore, #tpu.memory_space<semaphore_mem>>) src(%arg5 : memref<512x49xf32, #tpu.memory_space<any>>) dst(%arg20 : memref<512x49xf32, #tpu.memory_space<vmem>>)
    %c0_175 = arith.constant 0 : index
    %c0_176 = arith.constant 0 : index
    %311 = vector.load %arg20[%c0_175, %c0_176] : memref<512x49xf32, #tpu.memory_space<vmem>>, vector<128x49xf32>
    %cst_177 = arith.constant dense<0.000000e+00> : vector<128x49xf32>
    %312 = tpu.matmul %311, %51, %cst_177 {dimension_numbers = #tpu.dot_dimension_numbers<[1], [0], [0], [1], [0, 0, 1, 1], [], []>} : vector<128x49xf32>, vector<49x49xf32>, vector<128x49xf32> -> vector<128x49xf32>
    %cst_178 = arith.constant 0.0204081628 : f32
    %313 = vector.broadcast %cst_178 : f32 to vector<128x49xf32>
    %314 = arith.mulf %312, %313 : vector<128x49xf32>
    %315 = arith.subf %311, %314 : vector<128x49xf32>
    %316 = arith.mulf %315, %315 : vector<128x49xf32>
    %cst_179 = arith.constant dense<0.000000e+00> : vector<128x49xf32>
    %317 = tpu.matmul %316, %51, %cst_179 {dimension_numbers = #tpu.dot_dimension_numbers<[1], [0], [0], [1], [0, 0, 1, 1], [], []>} : vector<128x49xf32>, vector<49x49xf32>, vector<128x49xf32> -> vector<128x49xf32>
    %cst_180 = arith.constant 0.0204081628 : f32
    %318 = vector.broadcast %cst_180 : f32 to vector<128x49xf32>
    %319 = arith.mulf %317, %318 : vector<128x49xf32>
    %cst_181 = arith.constant 9.99999974E-6 : f32
    %320 = vector.broadcast %cst_181 : f32 to vector<128x49xf32>
    %321 = arith.addf %319, %320 : vector<128x49xf32>
    %322 = math.rsqrt %321 : vector<128x49xf32>
    %c0_182 = arith.constant 0 : index
    %c0_183 = arith.constant 0 : index
    %323 = vector.load %arg2[%c0_182, %c0_183] : memref<928x1xf32, #tpu.memory_space<vmem>>, vector<128x1xf32>
    %324 = vector.broadcast %323 : vector<128x1xf32> to vector<128x49xf32>
    %325 = arith.mulf %322, %324 : vector<128x49xf32>
    %326 = arith.mulf %315, %325 : vector<128x49xf32>
    %c0_184 = arith.constant 0 : index
    %c0_185 = arith.constant 0 : index
    %327 = vector.load %arg3[%c0_184, %c0_185] : memref<928x1xf32, #tpu.memory_space<vmem>>, vector<128x1xf32>
    %328 = vector.broadcast %327 : vector<128x1xf32> to vector<128x49xf32>
    %329 = arith.addf %326, %328 : vector<128x49xf32>
    %c0_186 = arith.constant 0 : index
    %c0_187 = arith.constant 0 : index
    %330 = vector.load %arg18[%c0_186, %c0_187] : memref<928x49xf32, #tpu.memory_space<vmem>>, vector<128x49xf32>
    tpu.vector_store %arg18[%c0_186, %c0_187], %329 {strides = array<i32>} : memref<928x49xf32, #tpu.memory_space<vmem>>, vector<128x49xf32>,
    %c128 = arith.constant 128 : index
    %c0_188 = arith.constant 0 : index
    %331 = vector.load %arg20[%c128, %c0_188] : memref<512x49xf32, #tpu.memory_space<vmem>>, vector<128x49xf32>
    %cst_189 = arith.constant dense<0.000000e+00> : vector<128x49xf32>
    %332 = tpu.matmul %331, %51, %cst_189 {dimension_numbers = #tpu.dot_dimension_numbers<[1], [0], [0], [1], [0, 0, 1, 1], [], []>} : vector<128x49xf32>, vector<49x49xf32>, vector<128x49xf32> -> vector<128x49xf32>
    %cst_190 = arith.constant 0.0204081628 : f32
    %333 = vector.broadcast %cst_190 : f32 to vector<128x49xf32>
    %334 = arith.mulf %332, %333 : vector<128x49xf32>
    %335 = arith.subf %331, %334 : vector<128x49xf32>
    %336 = arith.mulf %335, %335 : vector<128x49xf32>
    %cst_191 = arith.constant dense<0.000000e+00> : vector<128x49xf32>
    %337 = tpu.matmul %336, %51, %cst_191 {dimension_numbers = #tpu.dot_dimension_numbers<[1], [0], [0], [1], [0, 0, 1, 1], [], []>} : vector<128x49xf32>, vector<49x49xf32>, vector<128x49xf32> -> vector<128x49xf32>
    %cst_192 = arith.constant 0.0204081628 : f32
    %338 = vector.broadcast %cst_192 : f32 to vector<128x49xf32>
    %339 = arith.mulf %337, %338 : vector<128x49xf32>
    %cst_193 = arith.constant 9.99999974E-6 : f32
    %340 = vector.broadcast %cst_193 : f32 to vector<128x49xf32>
    %341 = arith.addf %339, %340 : vector<128x49xf32>
    %342 = math.rsqrt %341 : vector<128x49xf32>
    %c128_194 = arith.constant 128 : index
    %c0_195 = arith.constant 0 : index
    %343 = vector.load %arg2[%c128_194, %c0_195] : memref<928x1xf32, #tpu.memory_space<vmem>>, vector<128x1xf32>
    %344 = vector.broadcast %343 : vector<128x1xf32> to vector<128x49xf32>
    %345 = arith.mulf %342, %344 : vector<128x49xf32>
    %346 = arith.mulf %335, %345 : vector<128x49xf32>
    %c128_196 = arith.constant 128 : index
    %c0_197 = arith.constant 0 : index
    %347 = vector.load %arg3[%c128_196, %c0_197] : memref<928x1xf32, #tpu.memory_space<vmem>>, vector<128x1xf32>
    %348 = vector.broadcast %347 : vector<128x1xf32> to vector<128x49xf32>
    %349 = arith.addf %346, %348 : vector<128x49xf32>
    %c128_198 = arith.constant 128 : index
    %c0_199 = arith.constant 0 : index
    %350 = vector.load %arg18[%c128_198, %c0_199] : memref<928x49xf32, #tpu.memory_space<vmem>>, vector<128x49xf32>
    tpu.vector_store %arg18[%c128_198, %c0_199], %349 {strides = array<i32>} : memref<928x49xf32, #tpu.memory_space<vmem>>, vector<128x49xf32>,
    %c256 = arith.constant 256 : index
    %c0_200 = arith.constant 0 : index
    %351 = vector.load %arg20[%c256, %c0_200] : memref<512x49xf32, #tpu.memory_space<vmem>>, vector<128x49xf32>
    %cst_201 = arith.constant dense<0.000000e+00> : vector<128x49xf32>
    %352 = tpu.matmul %351, %51, %cst_201 {dimension_numbers = #tpu.dot_dimension_numbers<[1], [0], [0], [1], [0, 0, 1, 1], [], []>} : vector<128x49xf32>, vector<49x49xf32>, vector<128x49xf32> -> vector<128x49xf32>
    %cst_202 = arith.constant 0.0204081628 : f32
    %353 = vector.broadcast %cst_202 : f32 to vector<128x49xf32>
    %354 = arith.mulf %352, %353 : vector<128x49xf32>
    %355 = arith.subf %351, %354 : vector<128x49xf32>
    %356 = arith.mulf %355, %355 : vector<128x49xf32>
    %cst_203 = arith.constant dense<0.000000e+00> : vector<128x49xf32>
    %357 = tpu.matmul %356, %51, %cst_203 {dimension_numbers = #tpu.dot_dimension_numbers<[1], [0], [0], [1], [0, 0, 1, 1], [], []>} : vector<128x49xf32>, vector<49x49xf32>, vector<128x49xf32> -> vector<128x49xf32>
    %cst_204 = arith.constant 0.0204081628 : f32
    %358 = vector.broadcast %cst_204 : f32 to vector<128x49xf32>
    %359 = arith.mulf %357, %358 : vector<128x49xf32>
    %cst_205 = arith.constant 9.99999974E-6 : f32
    %360 = vector.broadcast %cst_205 : f32 to vector<128x49xf32>
    %361 = arith.addf %359, %360 : vector<128x49xf32>
    %362 = math.rsqrt %361 : vector<128x49xf32>
    %c256_206 = arith.constant 256 : index
    %c0_207 = arith.constant 0 : index
    %363 = vector.load %arg2[%c256_206, %c0_207] : memref<928x1xf32, #tpu.memory_space<vmem>>, vector<128x1xf32>
    %364 = vector.broadcast %363 : vector<128x1xf32> to vector<128x49xf32>
    %365 = arith.mulf %362, %364 : vector<128x49xf32>
    %366 = arith.mulf %355, %365 : vector<128x49xf32>
    %c256_208 = arith.constant 256 : index
    %c0_209 = arith.constant 0 : index
    %367 = vector.load %arg3[%c256_208, %c0_209] : memref<928x1xf32, #tpu.memory_space<vmem>>, vector<128x1xf32>
    %368 = vector.broadcast %367 : vector<128x1xf32> to vector<128x49xf32>
    %369 = arith.addf %366, %368 : vector<128x49xf32>
    %c256_210 = arith.constant 256 : index
    %c0_211 = arith.constant 0 : index
    %370 = vector.load %arg18[%c256_210, %c0_211] : memref<928x49xf32, #tpu.memory_space<vmem>>, vector<128x49xf32>
    tpu.vector_store %arg18[%c256_210, %c0_211], %369 {strides = array<i32>} : memref<928x49xf32, #tpu.memory_space<vmem>>, vector<128x49xf32>,
    %c384 = arith.constant 384 : index
    %c0_212 = arith.constant 0 : index
    %371 = vector.load %arg20[%c384, %c0_212] : memref<512x49xf32, #tpu.memory_space<vmem>>, vector<128x49xf32>
    %cst_213 = arith.constant dense<0.000000e+00> : vector<128x49xf32>
    %372 = tpu.matmul %371, %51, %cst_213 {dimension_numbers = #tpu.dot_dimension_numbers<[1], [0], [0], [1], [0, 0, 1, 1], [], []>} : vector<128x49xf32>, vector<49x49xf32>, vector<128x49xf32> -> vector<128x49xf32>
    %cst_214 = arith.constant 0.0204081628 : f32
    %373 = vector.broadcast %cst_214 : f32 to vector<128x49xf32>
    %374 = arith.mulf %372, %373 : vector<128x49xf32>
    %375 = arith.subf %371, %374 : vector<128x49xf32>
    %376 = arith.mulf %375, %375 : vector<128x49xf32>
    %cst_215 = arith.constant dense<0.000000e+00> : vector<128x49xf32>
    %377 = tpu.matmul %376, %51, %cst_215 {dimension_numbers = #tpu.dot_dimension_numbers<[1], [0], [0], [1], [0, 0, 1, 1], [], []>} : vector<128x49xf32>, vector<49x49xf32>, vector<128x49xf32> -> vector<128x49xf32>
    %cst_216 = arith.constant 0.0204081628 : f32
    %378 = vector.broadcast %cst_216 : f32 to vector<128x49xf32>
    %379 = arith.mulf %377, %378 : vector<128x49xf32>
    %cst_217 = arith.constant 9.99999974E-6 : f32
    %380 = vector.broadcast %cst_217 : f32 to vector<128x49xf32>
    %381 = arith.addf %379, %380 : vector<128x49xf32>
    %382 = math.rsqrt %381 : vector<128x49xf32>
    %c384_218 = arith.constant 384 : index
    %c0_219 = arith.constant 0 : index
    %383 = vector.load %arg2[%c384_218, %c0_219] : memref<928x1xf32, #tpu.memory_space<vmem>>, vector<128x1xf32>
    %384 = vector.broadcast %383 : vector<128x1xf32> to vector<128x49xf32>
    %385 = arith.mulf %382, %384 : vector<128x49xf32>
    %386 = arith.mulf %375, %385 : vector<128x49xf32>
    %c384_220 = arith.constant 384 : index
    %c0_221 = arith.constant 0 : index
    %387 = vector.load %arg3[%c384_220, %c0_221] : memref<928x1xf32, #tpu.memory_space<vmem>>, vector<128x1xf32>
    %388 = vector.broadcast %387 : vector<128x1xf32> to vector<128x49xf32>
    %389 = arith.addf %386, %388 : vector<128x49xf32>
    %c384_222 = arith.constant 384 : index
    %c0_223 = arith.constant 0 : index
    %390 = vector.load %arg18[%c384_222, %c0_223] : memref<928x49xf32, #tpu.memory_space<vmem>>, vector<128x49xf32>
    tpu.vector_store %arg18[%c384_222, %c0_223], %389 {strides = array<i32>} : memref<928x49xf32, #tpu.memory_space<vmem>>, vector<128x49xf32>,
    return
  }
}

</mosaic_0001>

<llo_original>
// kernel: forward.1
$region0: #{forward.1}
  #allocation0 [shape = 'u32[]', space=smem, size = 0x4, offset = 0x4, fixed_abs, tag = 'smem constant byte address 0x4 - core index']
  #allocation1 [shape = 'u32[144,128]{1,0:T(1,128)}', space=vmem, size = 0x12000, scoped, tag = 'internal scratch']
  #allocation2 [shape = 'f32[128,128]{1,0:T(8,128)}', space=vmem, size = 0x10000, scoped, tag = 'scratch operand']
  #allocation3 [shape = 'f32[512,49]{1,0:T(8,128)}', space=vmem, size = 0x40000, scoped, tag = 'scratch operand']
  #allocation4 [shape = 's32[1]{0}', space=sflag, size = 0x4, scoped, tag = 'scratch operand']
  #allocation5 [shape = 's32[]', space=sflag, size = 0x4, offset = 0, fixed_abs, tag = 'sflag constant byte address 0x0 - dummy sync flag']
  %s0 = inlined_call_operand.vmem [shape: f32[288,128], index: 0, kind: input, shape index: {}]
  %s1 = inlined_call_operand.vmem [shape: f32[9,49], index: 1, kind: input, shape index: {}]
  %s2 = inlined_call_operand.vmem [shape: f32[928,1], index: 2, kind: input, shape index: {}]
  %s3 = inlined_call_operand.vmem [shape: f32[928,1], index: 3, kind: input, shape index: {}]
  %s4 = inlined_call_operand.vmem [shape: f32[128,49], index: 4, kind: input, shape index: {}]
  %s5 = inlined_call_operand.vmem [shape: f32[512,49], index: 5, kind: input, shape index: {}]
  %s6 = inlined_call_operand.vmem [shape: f32[32,49], index: 6, kind: input, shape index: {}]
  %s7 = inlined_call_operand.vmem [shape: f32[32,49], index: 7, kind: input, shape index: {}]
  %s8 = inlined_call_operand.vmem [shape: f32[32,49], index: 8, kind: input, shape index: {}]
  %s9 = inlined_call_operand.vmem [shape: f32[32,49], index: 9, kind: input, shape index: {}]
  %s10 = inlined_call_operand.vmem [shape: f32[32,49], index: 10, kind: input, shape index: {}]
  %s11 = inlined_call_operand.vmem [shape: f32[32,49], index: 11, kind: input, shape index: {}]
  %s12 = inlined_call_operand.vmem [shape: f32[32,49], index: 12, kind: input, shape index: {}]
  %s13 = inlined_call_operand.vmem [shape: f32[32,49], index: 13, kind: input, shape index: {}]
  %s14 = inlined_call_operand.vmem [shape: f32[32,49], index: 14, kind: input, shape index: {}]
  %s15 = inlined_call_operand.vmem [shape: f32[32,49], index: 15, kind: input, shape index: {}]
  %s16 = inlined_call_operand.vmem [shape: f32[32,49], index: 16, kind: input, shape index: {}]
  %s17 = inlined_call_operand.vmem [shape: f32[32,49], index: 17, kind: input, shape index: {}]
  %s18 = inlined_call_operand.vmem [shape: f32[928,49], index: 18, kind: output, shape index: {}]
  %s19 = sld [smem:[#allocation0]]
  $region112: #{forward.1} parent=0
    _
  %s21 = ssub.s32 1, %s19
  %s22 = scalar_select 0, %s21, %s19
  // Predicated region
  $region2: #{forward.1} parent=0 // pred_check
    _
  $region3: #{forward.1} parent=0 // pred_check_branch
    %24 = sbr.rel (0) target = $region5
  $region4: #{forward.1} parent=0 // pred_region
    _
  $region5: #{forward.1} parent=0 // pred_fallthru
    _
  // Predicated region
  $region6: #{forward.1} parent=0 // pred_check
    _
  $region7: #{forward.1} parent=0 // pred_check_branch
    %26 = sbr.rel (0) target = $region9
  $region8: #{forward.1} parent=0 // pred_region
    _
  $region9: #{forward.1} parent=0 // pred_fallthru
    _
  // Predicated region
  $region10: #{forward.1} parent=0 // pred_check
    _
  $region11: #{forward.1} parent=0 // pred_check_branch
    %28 = sbr.rel (0) target = $region13
  $region12: #{forward.1} parent=0 // pred_region
    _
  $region13: #{forward.1} parent=0 // pred_fallthru
    _
  // Predicated region
  $region14: #{forward.1} parent=0 // pred_check
    _
  $region15: #{forward.1} parent=0 // pred_check_branch
    %30 = sbr.rel (0) target = $region17
  $region16: #{forward.1} parent=0 // pred_region
    _
  $region17: #{forward.1} parent=0 // pred_fallthru
    _
  // Predicated region
  $region18: #{forward.1} parent=0 // pred_check
    _
  $region19: #{forward.1} parent=0 // pred_check_branch
    %32 = sbr.rel (0) target = $region21
  $region20: #{forward.1} parent=0 // pred_region
    _
  $region21: #{forward.1} parent=0 // pred_fallthru
    _
  // Predicated region
  $region22: #{forward.1} parent=0 // pred_check
    _
  $region23: #{forward.1} parent=0 // pred_check_branch
    %34 = sbr.rel (0) target = $region25
  $region24: #{forward.1} parent=0 // pred_region
    _
  $region25: #{forward.1} parent=0 // pred_fallthru
    _
  // Predicated region
  $region26: #{forward.1} parent=0 // pred_check
    _
  $region27: #{forward.1} parent=0 // pred_check_branch
    %36 = sbr.rel (0) target = $region29
  $region28: #{forward.1} parent=0 // pred_region
    _
  $region29: #{forward.1} parent=0 // pred_fallthru
    _
  // Predicated region
  $region30: #{forward.1} parent=0 // pred_check
    _
  $region31: #{forward.1} parent=0 // pred_check_branch
    %38 = sbr.rel (0) target = $region33
  $region32: #{forward.1} parent=0 // pred_region
    _
  $region33: #{forward.1} parent=0 // pred_fallthru
    _
  // Predicated region
  $region34: #{forward.1} parent=0 // pred_check
    _
  $region35: #{forward.1} parent=0 // pred_check_branch
    %40 = sbr.rel (0) target = $region37
  $region36: #{forward.1} parent=0 // pred_region
    _
  $region37: #{forward.1} parent=0 // pred_fallthru
    _
  // Predicated region
  $region38: #{forward.1} parent=0 // pred_check
    _
  $region39: #{forward.1} parent=0 // pred_check_branch
    %42 = sbr.rel (0) target = $region41
  $region40: #{forward.1} parent=0 // pred_region
    _
  $region41: #{forward.1} parent=0 // pred_fallthru
    _
  // Predicated region
  $region42: #{forward.1} parent=0 // pred_check
    _
  $region43: #{forward.1} parent=0 // pred_check_branch
    %44 = sbr.rel (0) target = $region45
  $region44: #{forward.1} parent=0 // pred_region
    _
  $region45: #{forward.1} parent=0 // pred_fallthru
    _
  // Predicated region
  $region46: #{forward.1} parent=0 // pred_check
    _
  $region47: #{forward.1} parent=0 // pred_check_branch
    %46 = sbr.rel (0) target = $region49
  $region48: #{forward.1} parent=0 // pred_region
    _
  $region49: #{forward.1} parent=0 // pred_fallthru
    _
  // Predicated region
  $region50: #{forward.1} parent=0 // pred_check
    _
  $region51: #{forward.1} parent=0 // pred_check_branch
    %48 = sbr.rel (0) target = $region53
  $region52: #{forward.1} parent=0 // pred_region
    _
  $region53: #{forward.1} parent=0 // pred_fallthru
    _
  // Predicated region
  $region54: #{forward.1} parent=0 // pred_check
    _
  $region55: #{forward.1} parent=0 // pred_check_branch
    %50 = sbr.rel (0) target = $region57
  $region56: #{forward.1} parent=0 // pred_region
    _
  $region57: #{forward.1} parent=0 // pred_fallthru
    _
  // Predicated region
  $region58: #{forward.1} parent=0 // pred_check
    _
  $region59: #{forward.1} parent=0 // pred_check_branch
    %52 = sbr.rel (0) target = $region61
  $region60: #{forward.1} parent=0 // pred_region
    _
  $region61: #{forward.1} parent=0 // pred_fallthru
    _
  // Predicated region
  $region62: #{forward.1} parent=0 // pred_check
    _
  $region63: #{forward.1} parent=0 // pred_check_branch
    %54 = sbr.rel (0) target = $region65
  $region64: #{forward.1} parent=0 // pred_region
    _
  $region65: #{forward.1} parent=0 // pred_fallthru
    _
  // Predicated region
  $region66: #{forward.1} parent=0 // pred_check
    _
  $region67: #{forward.1} parent=0 // pred_check_branch
    %56 = sbr.rel (0) target = $region69
  $region68: #{forward.1} parent=0 // pred_region
    _
  $region69: #{forward.1} parent=0 // pred_fallthru
    _
  %p58 = scmp.lt.u32.totalorder 512, 8
  %p59 = pneg %p58
  // Predicated region
  $region70: #{forward.1} parent=0 // pred_check
    _
  $region71: #{forward.1} parent=0 // pred_check_branch
    %61 = sbr.rel (%p58) target = $region73
  $region72: #{forward.1} parent=0 // pred_region
    %s76 = sand.u32 512, 7
    %p77 = scmp.eq.s32.totalorder %s76, 0
    // Predicated region
    $region85: #{forward.1} parent=72 // pred_check
      %p78 = pneg %p77
    $region86: #{forward.1} parent=72 // pred_check_branch
      %80 = sbr.rel (%p78) target = $region88
    $region87: #{forward.1} parent=72 // pred_region
      loop: start=0, step=1, limit=1
      $region89: #{forward.1} parent=87 // loop_pre_header
        _
      $region90: #{forward.1} parent=87 // loop_header
        %s82 = sphi 0, %s86
        %p83 = scmp.ge.s32.totalorder %s82, 1
        %s87 = sphi %s5, %s5
        %s88 = sphi [#allocation3], [#allocation3]
      $region91: #{forward.1} parent=87 // loop_header_branch
        %85 = sbr.rel (%p83) target = $region95
      $region92: #{forward.1} parent=87 // loop_body
        %v89 = vld [vmem:[%s87] sm:$0xff]
        %90 = vst [vmem:[%s88] sm:$0xff] %v89
        %v91 = vld [vmem:[%s87 + $0x8] sm:$0xff]
        %92 = vst [vmem:[%s88 + $0x8] sm:$0xff] %v91
        %v93 = vld [vmem:[%s87 + $0x10] sm:$0xff]
        %94 = vst [vmem:[%s88 + $0x10] sm:$0xff] %v93
        %v95 = vld [vmem:[%s87 + $0x18] sm:$0xff]
        %96 = vst [vmem:[%s88 + $0x18] sm:$0xff] %v95
        %v97 = vld [vmem:[%s87 + $0x20] sm:$0xff]
        %98 = vst [vmem:[%s88 + $0x20] sm:$0xff] %v97
        %v99 = vld [vmem:[%s87 + $0x28] sm:$0xff]
        %100 = vst [vmem:[%s88 + $0x28] sm:$0xff] %v99
        %v101 = vld [vmem:[%s87 + $0x30] sm:$0xff]
        %102 = vst [vmem:[%s88 + $0x30] sm:$0xff] %v101
        %v103 = vld [vmem:[%s87 + $0x38] sm:$0xff]
        %104 = vst [vmem:[%s88 + $0x38] sm:$0xff] %v103
        %v105 = vld [vmem:[%s87 + $0x40] sm:$0xff]
        %106 = vst [vmem:[%s88 + $0x40] sm:$0xff] %v105
        %v107 = vld [vmem:[%s87 + $0x48] sm:$0xff]
        %108 = vst [vmem:[%s88 + $0x48] sm:$0xff] %v107
        %v109 = vld [vmem:[%s87 + $0x50] sm:$0xff]
        %110 = vst [vmem:[%s88 + $0x50] sm:$0xff] %v109
        %v111 = vld [vmem:[%s87 + $0x58] sm:$0xff]
        %112 = vst [vmem:[%s88 + $0x58] sm:$0xff] %v111
        %v113 = vld [vmem:[%s87 + $0x60] sm:$0xff]
        %114 = vst [vmem:[%s88 + $0x60] sm:$0xff] %v113
        %v115 = vld [vmem:[%s87 + $0x68] sm:$0xff]
        %116 = vst [vmem:[%s88 + $0x68] sm:$0xff] %v115
        %v117 = vld [vmem:[%s87 + $0x70] sm:$0xff]
        %118 = vst [vmem:[%s88 + $0x70] sm:$0xff] %v117
        %v119 = vld [vmem:[%s87 + $0x78] sm:$0xff]
        %120 = vst [vmem:[%s88 + $0x78] sm:$0xff] %v119
        %v121 = vld [vmem:[%s87 + $0x80] sm:$0xff]
        %122 = vst [vmem:[%s88 + $0x80] sm:$0xff] %v121
        %v123 = vld [vmem:[%s87 + $0x88] sm:$0xff]
        %124 = vst [vmem:[%s88 + $0x88] sm:$0xff] %v123
        %v125 = vld [vmem:[%s87 + $0x90] sm:$0xff]
        %126 = vst [vmem:[%s88 + $0x90] sm:$0xff] %v125
        %v127 = vld [vmem:[%s87 + $0x98] sm:$0xff]
        %128 = vst [vmem:[%s88 + $0x98] sm:$0xff] %v127
        %v129 = vld [vmem:[%s87 + $0xa0] sm:$0xff]
        %130 = vst [vmem:[%s88 + $0xa0] sm:$0xff] %v129
        %v131 = vld [vmem:[%s87 + $0xa8] sm:$0xff]
        %132 = vst [vmem:[%s88 + $0xa8] sm:$0xff] %v131
        %v133 = vld [vmem:[%s87 + $0xb0] sm:$0xff]
        %134 = vst [vmem:[%s88 + $0xb0] sm:$0xff] %v133
        %v135 = vld [vmem:[%s87 + $0xb8] sm:$0xff]
        %136 = vst [vmem:[%s88 + $0xb8] sm:$0xff] %v135
        %v137 = vld [vmem:[%s87 + $0xc0] sm:$0xff]
        %138 = vst [vmem:[%s88 + $0xc0] sm:$0xff] %v137
        %v139 = vld [vmem:[%s87 + $0xc8] sm:$0xff]
        %140 = vst [vmem:[%s88 + $0xc8] sm:$0xff] %v139
        %v141 = vld [vmem:[%s87 + $0xd0] sm:$0xff]
        %142 = vst [vmem:[%s88 + $0xd0] sm:$0xff] %v141
        %v143 = vld [vmem:[%s87 + $0xd8] sm:$0xff]
        %144 = vst [vmem:[%s88 + $0xd8] sm:$0xff] %v143
        %v145 = vld [vmem:[%s87 + $0xe0] sm:$0xff]
        %146 = vst [vmem:[%s88 + $0xe0] sm:$0xff] %v145
        %v147 = vld [vmem:[%s87 + $0xe8] sm:$0xff]
        %148 = vst [vmem:[%s88 + $0xe8] sm:$0xff] %v147
        %v149 = vld [vmem:[%s87 + $0xf0] sm:$0xff]
        %150 = vst [vmem:[%s88 + $0xf0] sm:$0xff] %v149
        %v151 = vld [vmem:[%s87 + $0xf8] sm:$0xff]
        %152 = vst [vmem:[%s88 + $0xf8] sm:$0xff] %v151
        %v153 = vld [vmem:[%s87 + $0x100] sm:$0xff]
        %154 = vst [vmem:[%s88 + $0x100] sm:$0xff] %v153
        %v155 = vld [vmem:[%s87 + $0x108] sm:$0xff]
        %156 = vst [vmem:[%s88 + $0x108] sm:$0xff] %v155
        %v157 = vld [vmem:[%s87 + $0x110] sm:$0xff]
        %158 = vst [vmem:[%s88 + $0x110] sm:$0xff] %v157
        %v159 = vld [vmem:[%s87 + $0x118] sm:$0xff]
        %160 = vst [vmem:[%s88 + $0x118] sm:$0xff] %v159
        %v161 = vld [vmem:[%s87 + $0x120] sm:$0xff]
        %162 = vst [vmem:[%s88 + $0x120] sm:$0xff] %v161
        %v163 = vld [vmem:[%s87 + $0x128] sm:$0xff]
        %164 = vst [vmem:[%s88 + $0x128] sm:$0xff] %v163
        %v165 = vld [vmem:[%s87 + $0x130] sm:$0xff]
        %166 = vst [vmem:[%s88 + $0x130] sm:$0xff] %v165
        %v167 = vld [vmem:[%s87 + $0x138] sm:$0xff]
        %168 = vst [vmem:[%s88 + $0x138] sm:$0xff] %v167
        %v169 = vld [vmem:[%s87 + $0x140] sm:$0xff]
        %170 = vst [vmem:[%s88 + $0x140] sm:$0xff] %v169
        %v171 = vld [vmem:[%s87 + $0x148] sm:$0xff]
        %172 = vst [vmem:[%s88 + $0x148] sm:$0xff] %v171
        %v173 = vld [vmem:[%s87 + $0x150] sm:$0xff]
        %174 = vst [vmem:[%s88 + $0x150] sm:$0xff] %v173
        %v175 = vld [vmem:[%s87 + $0x158] sm:$0xff]
        %176 = vst [vmem:[%s88 + $0x158] sm:$0xff] %v175
        %v177 = vld [vmem:[%s87 + $0x160] sm:$0xff]
        %178 = vst [vmem:[%s88 + $0x160] sm:$0xff] %v177
        %v179 = vld [vmem:[%s87 + $0x168] sm:$0xff]
        %180 = vst [vmem:[%s88 + $0x168] sm:$0xff] %v179
        %v181 = vld [vmem:[%s87 + $0x170] sm:$0xff]
        %182 = vst [vmem:[%s88 + $0x170] sm:$0xff] %v181
        %v183 = vld [vmem:[%s87 + $0x178] sm:$0xff]
        %184 = vst [vmem:[%s88 + $0x178] sm:$0xff] %v183
        %v185 = vld [vmem:[%s87 + $0x180] sm:$0xff]
        %186 = vst [vmem:[%s88 + $0x180] sm:$0xff] %v185
        %v187 = vld [vmem:[%s87 + $0x188] sm:$0xff]
        %188 = vst [vmem:[%s88 + $0x188] sm:$0xff] %v187
        %v189 = vld [vmem:[%s87 + $0x190] sm:$0xff]
        %190 = vst [vmem:[%s88 + $0x190] sm:$0xff] %v189
        %v191 = vld [vmem:[%s87 + $0x198] sm:$0xff]
        %192 = vst [vmem:[%s88 + $0x198] sm:$0xff] %v191
        %v193 = vld [vmem:[%s87 + $0x1a0] sm:$0xff]
        %194 = vst [vmem:[%s88 + $0x1a0] sm:$0xff] %v193
        %v195 = vld [vmem:[%s87 + $0x1a8] sm:$0xff]
        %196 = vst [vmem:[%s88 + $0x1a8] sm:$0xff] %v195
        %v197 = vld [vmem:[%s87 + $0x1b0] sm:$0xff]
        %198 = vst [vmem:[%s88 + $0x1b0] sm:$0xff] %v197
        %v199 = vld [vmem:[%s87 + $0x1b8] sm:$0xff]
        %200 = vst [vmem:[%s88 + $0x1b8] sm:$0xff] %v199
        %v201 = vld [vmem:[%s87 + $0x1c0] sm:$0xff]
        %202 = vst [vmem:[%s88 + $0x1c0] sm:$0xff] %v201
        %v203 = vld [vmem:[%s87 + $0x1c8] sm:$0xff]
        %204 = vst [vmem:[%s88 + $0x1c8] sm:$0xff] %v203
        %v205 = vld [vmem:[%s87 + $0x1d0] sm:$0xff]
        %206 = vst [vmem:[%s88 + $0x1d0] sm:$0xff] %v205
        %v207 = vld [vmem:[%s87 + $0x1d8] sm:$0xff]
        %208 = vst [vmem:[%s88 + $0x1d8] sm:$0xff] %v207
        %v209 = vld [vmem:[%s87 + $0x1e0] sm:$0xff]
        %210 = vst [vmem:[%s88 + $0x1e0] sm:$0xff] %v209
        %v211 = vld [vmem:[%s87 + $0x1e8] sm:$0xff]
        %212 = vst [vmem:[%s88 + $0x1e8] sm:$0xff] %v211
        %v213 = vld [vmem:[%s87 + $0x1f0] sm:$0xff]
        %214 = vst [vmem:[%s88 + $0x1f0] sm:$0xff] %v213
        %v215 = vld [vmem:[%s87 + $0x1f8] sm:$0xff]
        %216 = vst [vmem:[%s88 + $0x1f8] sm:$0xff] %v215
      $region93: #{forward.1} parent=87 // loop_footer
        %s86 = sadd.s32 1, %s82
      $region94: #{forward.1} parent=87 // loop_footer_branch
        %81 = sbr.rel target = $region90
      $region95: #{forward.1} parent=87 // loop_exit
        _
    $region88: #{forward.1} parent=72 // pred_fallthru
      _
    %p217 = pneg %p77
    // Predicated region
    $region96: #{forward.1} parent=72 // pred_check
      _
    $region97: #{forward.1} parent=72 // pred_check_branch
      %219 = sbr.rel (%p77) target = $region99
    $region98: #{forward.1} parent=72 // pred_region
      %s220 = sand.u32 512, 7
    $region99: #{forward.1} parent=72 // pred_fallthru
      _
  $region73: #{forward.1} parent=0 // pred_fallthru
    _
  // Predicated region
  $region74: #{forward.1} parent=0 // pred_check
    %p62 = pneg %p58
  $region75: #{forward.1} parent=0 // pred_check_branch
    %64 = sbr.rel (%p62) target = $region77
  $region76: #{forward.1} parent=0 // pred_region
    %s65 = sshllo.u32 0, 512
    loop: start=0, step=1, limit=1
    $region78: #{forward.1} parent=76 // loop_pre_header
      _
    $region79: #{forward.1} parent=76 // loop_header
      %s67 = sphi 0, %s71
      %p68 = scmp.ge.s32.totalorder %s67, 1
      %s72 = sphi %s5, %s5
      %s73 = sphi [#allocation3], [#allocation3]
    $region80: #{forward.1} parent=76 // loop_header_branch
      %70 = sbr.rel (%p68) target = $region84
    $region81: #{forward.1} parent=76 // loop_body
      %v74 = vld [vmem:[%s72] sm:%s65]
      %75 = vst [vmem:[%s73] sm:%s65] %v74
    $region82: #{forward.1} parent=76 // loop_footer
      %s71 = sadd.s32 1, %s67
    $region83: #{forward.1} parent=76 // loop_footer_branch
      %66 = sbr.rel target = $region79
    $region84: #{forward.1} parent=76 // loop_exit
      _
  $region77: #{forward.1} parent=0 // pred_fallthru
    _
  // Predicated region
  $region100: #{forward.1} parent=0 // pred_check
    _
  $region101: #{forward.1} parent=0 // pred_check_branch
    %223 = sbr.rel (0) target = $region103
  $region102: #{forward.1} parent=0 // pred_region
    %224 = vsyncadd [#allocation4], 8192
  $region103: #{forward.1} parent=0 // pred_fallthru
    _
  %225 = vst [vmem:[#allocation2] sm:$0xff] 0.0
  %226 = vst [vmem:[#allocation2 + $0x8] sm:$0xff] 0.0
  %227 = vst [vmem:[#allocation2 + $0x10] sm:$0xff] 0.0
  %228 = vst [vmem:[#allocation2 + $0x18] sm:$0xff] 0.0
  %229 = vst [vmem:[#allocation2 + $0x20] sm:$0xff] 0.0
  %230 = vst [vmem:[#allocation2 + $0x28] sm:$0xff] 0.0
  %231 = vst [vmem:[#allocation2 + $0x30] sm:$0xff] 0.0
  %232 = vst [vmem:[#allocation2 + $0x38] sm:$0xff] 0.0
  %233 = vst [vmem:[#allocation2 + $0x40] sm:$0xff] 0.0
  %234 = vst [vmem:[#allocation2 + $0x48] sm:$0xff] 0.0
  %235 = vst [vmem:[#allocation2 + $0x50] sm:$0xff] 0.0
  %236 = vst [vmem:[#allocation2 + $0x58] sm:$0xff] 0.0
  %237 = vst [vmem:[#allocation2 + $0x60] sm:$0xff] 0.0
  %238 = vst [vmem:[#allocation2 + $0x68] sm:$0xff] 0.0
  %239 = vst [vmem:[#allocation2 + $0x70] sm:$0xff] 0.0
  %240 = vst [vmem:[#allocation2 + $0x78] sm:$0xff] 0.0
  %v241 = vld [vmem:[%s4] sm:$0xff]
  %v242 = vld [vmem:[%s4 + $0x8] sm:$0xff]
  %v243 = vld [vmem:[%s4 + $0x10] sm:$0xff]
  %v244 = vld [vmem:[%s4 + $0x18] sm:$0xff]
  %v245 = vld [vmem:[%s4 + $0x20] sm:$0xff]
  %v246 = vld [vmem:[%s4 + $0x28] sm:$0xff]
  %v247 = vld [vmem:[%s4 + $0x30] sm:$0xff]
  %v248 = vld [vmem:[%s4 + $0x38] sm:$0xff]
  %v249 = vld [vmem:[%s4 + $0x40] sm:$0xff]
  %v250 = vld [vmem:[%s4 + $0x48] sm:$0xff]
  %v251 = vld [vmem:[%s4 + $0x50] sm:$0xff]
  %v252 = vld [vmem:[%s4 + $0x58] sm:$0xff]
  %v253 = vld [vmem:[%s4 + $0x60] sm:$0xff]
  %v254 = vld [vmem:[%s4 + $0x68] sm:$0xff]
  %v255 = vld [vmem:[%s4 + $0x70] sm:$0xff]
  %v256 = vld [vmem:[%s4 + $0x78] sm:$0xff]
  %273 = vrot.lane.b32.xlu0 %v241, 8
  %v274 = vpop.permute.xlu0 %273
  %275 = vrot.lane.b32.xlu0 %v242, 8
  %v276 = vpop.permute.xlu0 %275
  %277 = vrot.lane.b32.xlu0 %v243, 8
  %v278 = vpop.permute.xlu0 %277
  %279 = vrot.lane.b32.xlu0 %v244, 8
  %v280 = vpop.permute.xlu0 %279
  %281 = vrot.lane.b32.xlu0 %v245, 8
  %v282 = vpop.permute.xlu0 %281
  %283 = vrot.lane.b32.xlu0 %v246, 8
  %v284 = vpop.permute.xlu0 %283
  %285 = vrot.lane.b32.xlu0 %v247, 8
  %v286 = vpop.permute.xlu0 %285
  %287 = vrot.lane.b32.xlu0 %v248, 8
  %v288 = vpop.permute.xlu0 %287
  %289 = vrot.lane.b32.xlu0 %v249, 8
  %v290 = vpop.permute.xlu0 %289
  %291 = vrot.lane.b32.xlu0 %v250, 8
  %v292 = vpop.permute.xlu0 %291
  %293 = vrot.lane.b32.xlu0 %v251, 8
  %v294 = vpop.permute.xlu0 %293
  %295 = vrot.lane.b32.xlu0 %v252, 8
  %v296 = vpop.permute.xlu0 %295
  %297 = vrot.lane.b32.xlu0 %v253, 8
  %v298 = vpop.permute.xlu0 %297
  %299 = vrot.lane.b32.xlu0 %v254, 8
  %v300 = vpop.permute.xlu0 %299
  %301 = vrot.lane.b32.xlu0 %v255, 8
  %v302 = vpop.permute.xlu0 %301
  %303 = vrot.lane.b32.xlu0 %v256, 8
  %v304 = vpop.permute.xlu0 %303
  %vm321 = vcmask 465984
  %322 = vst.msk [vmem:[#allocation2] sm:$0xff] %vm321, %v274
  %323 = vst.msk [vmem:[#allocation2 + $0x8] sm:$0xff] %vm321, %v276
  %324 = vst.msk [vmem:[#allocation2 + $0x10] sm:$0xff] %vm321, %v278
  %325 = vst.msk [vmem:[#allocation2 + $0x18] sm:$0xff] %vm321, %v280
  %326 = vst.msk [vmem:[#allocation2 + $0x20] sm:$0xff] %vm321, %v282
  %327 = vst.msk [vmem:[#allocation2 + $0x28] sm:$0xff] %vm321, %v284
  %328 = vst.msk [vmem:[#allocation2 + $0x30] sm:$0xff] %vm321, %v286
  %329 = vst.msk [vmem:[#allocation2 + $0x38] sm:$0xff] %vm321, %v288
  %330 = vst.msk [vmem:[#allocation2 + $0x40] sm:$0xff] %vm321, %v290
  %331 = vst.msk [vmem:[#allocation2 + $0x48] sm:$0xff] %vm321, %v292
  %332 = vst.msk [vmem:[#allocation2 + $0x50] sm:$0xff] %vm321, %v294
  %333 = vst.msk [vmem:[#allocation2 + $0x58] sm:$0xff] %vm321, %v296
  %334 = vst.msk [vmem:[#allocation2 + $0x60] sm:$0xff] %vm321, %v298
  %335 = vst.msk [vmem:[#allocation2 + $0x68] sm:$0xff] %vm321, %v300
  %336 = vst.msk [vmem:[#allocation2 + $0x70] sm:$0xff] %vm321, %v302
  %337 = vst.msk [vmem:[#allocation2 + $0x78] sm:$0xff] %vm321, %v304
  %v338 = vld [vmem:[%s0] sm:$0xff]
  %v339 = vld [vmem:[%s0 + $0x8] sm:$0xff]
  %v340 = vld [vmem:[%s0 + $0x10] sm:$0xff]
  %v341 = vld [vmem:[%s0 + $0x18] sm:$0xff]
  %v342 = vld [vmem:[%s0 + $0x20] sm:$0xff]
  %v343 = vld [vmem:[%s0 + $0x28] sm:$0xff]
  %v344 = vld [vmem:[%s0 + $0x30] sm:$0xff]
  %v345 = vld [vmem:[%s0 + $0x38] sm:$0xff]
  %v346 = vld [vmem:[%s0 + $0x40] sm:$0xff]
  %v347 = vld [vmem:[%s0 + $0x48] sm:$0xff]
  %v348 = vld [vmem:[%s0 + $0x50] sm:$0xff]
  %v349 = vld [vmem:[%s0 + $0x58] sm:$0xff]
  %v350 = vld [vmem:[%s0 + $0x60] sm:$0xff]
  %v351 = vld [vmem:[%s0 + $0x68] sm:$0xff]
  %v352 = vld [vmem:[%s0 + $0x70] sm:$0xff]
  %v353 = vld [vmem:[%s0 + $0x78] sm:$0xff]
  %v354 = vld [vmem:[%s0 + $0x80] sm:$0xff]
  %v355 = vld [vmem:[%s0 + $0x88] sm:$0xff]
  %v356 = vld [vmem:[%s0 + $0x90] sm:$0xff]
  %v357 = vld [vmem:[%s0 + $0x98] sm:$0xff]
  %v358 = vld [vmem:[%s0 + $0xa0] sm:$0xff]
  %v359 = vld [vmem:[%s0 + $0xa8] sm:$0xff]
  %v360 = vld [vmem:[%s0 + $0xb0] sm:$0xff]
  %v361 = vld [vmem:[%s0 + $0xb8] sm:$0xff]
  %v362 = vld [vmem:[%s0 + $0xc0] sm:$0xff]
  %v363 = vld [vmem:[%s0 + $0xc8] sm:$0xff]
  %v364 = vld [vmem:[%s0 + $0xd0] sm:$0xff]
  %v365 = vld [vmem:[%s0 + $0xd8] sm:$0xff]
  %v366 = vld [vmem:[%s0 + $0xe0] sm:$0xff]
  %v367 = vld [vmem:[%s0 + $0xe8] sm:$0xff]
  %v368 = vld [vmem:[%s0 + $0xf0] sm:$0xff]
  %v369 = vld [vmem:[%s0 + $0xf8] sm:$0xff]
  %v370 = vld [vmem:[%s0 + $0x100] sm:$0xff]
  %v371 = vld [vmem:[%s0 + $0x108] sm:$0xff]
  %v372 = vld [vmem:[%s0 + $0x110] sm:$0xff]
  %v373 = vld [vmem:[%s0 + $0x118] sm:$0xff]
  %v374 = vld [vmem:[#allocation2] sm:$0xff]
  %v375 = vld [vmem:[#allocation2 + $0x8] sm:$0xff]
  %v376 = vld [vmem:[#allocation2 + $0x10] sm:$0xff]
  %v377 = vld [vmem:[#allocation2 + $0x18] sm:$0xff]
  %v378 = vld [vmem:[#allocation2 + $0x20] sm:$0xff]
  %v379 = vld [vmem:[#allocation2 + $0x28] sm:$0xff]
  %v380 = vld [vmem:[#allocation2 + $0x30] sm:$0xff]
  %v381 = vld [vmem:[#allocation2 + $0x38] sm:$0xff]
  %v382 = vld [vmem:[#allocation2 + $0x40] sm:$0xff]
  %v383 = vld [vmem:[#allocation2 + $0x48] sm:$0xff]
  %v384 = vld [vmem:[#allocation2 + $0x50] sm:$0xff]
  %v385 = vld [vmem:[#allocation2 + $0x58] sm:$0xff]
  %v386 = vld [vmem:[#allocation2 + $0x60] sm:$0xff]
  %v387 = vld [vmem:[#allocation2 + $0x68] sm:$0xff]
  %v388 = vld [vmem:[#allocation2 + $0x70] sm:$0xff]
  %v389 = vld [vmem:[#allocation2 + $0x78] sm:$0xff]
  %390 = vmatprep.subr.mxu0 0.0
  %391 = vmatpush1.msra.mxu0 %v374
  %392 = vmatprep.subr.mxu0 0.0
  %393 = vmatpush1.msra.mxu0 %v375
  %394 = vmatprep.subr.mxu0 0.0
  %395 = vmatpush1.msra.mxu0 %v376
  %396 = vmatprep.subr.mxu0 0.0
  %397 = vmatpush1.msra.mxu0 %v377
  %398 = vmatprep.subr.mxu0 0.0
  %399 = vmatpush1.msra.mxu0 %v378
  %400 = vmatprep.subr.mxu0 0.0
  %401 = vmatpush1.msra.mxu0 %v379
  %402 = vmatprep.subr.mxu0 0.0
  %403 = vmatpush1.msra.mxu0 %v380
  %404 = vmatprep.subr.mxu0 0.0
  %405 = vmatpush1.msra.mxu0 %v381
  %406 = vmatprep.subr.mxu0 0.0
  %407 = vmatpush1.msra.mxu0 %v382
  %408 = vmatprep.subr.mxu0 0.0
  %409 = vmatpush1.msra.mxu0 %v383
  %410 = vmatprep.subr.mxu0 0.0
  %411 = vmatpush1.msra.mxu0 %v384
  %412 = vmatprep.subr.mxu0 0.0
  %413 = vmatpush1.msra.mxu0 %v385
  %414 = vmatprep.subr.mxu0 0.0
  %415 = vmatpush1.msra.mxu0 %v386
  %416 = vmatprep.subr.mxu0 0.0
  %417 = vmatpush1.msra.mxu0 %v387
  %418 = vmatprep.subr.mxu0 0.0
  %419 = vmatpush1.msra.mxu0 %v388
  %420 = vmatprep.subr.mxu0 0.0
  %421 = vmatpush1.msra.mxu0 %v389
  %422 = vmatprep.subr.mxu0 0.0
  %423 = vmatpush1.msra.mxu0 0.0
  %424 = vmatprep.subr.mxu0 0.0
  %425 = vmatpush1.msra.mxu0 0.0
  %426 = vmatprep.subr.mxu0 0.0
  %427 = vmatpush1.msra.mxu0 0.0
  %428 = vmatprep.subr.mxu0 0.0
  %429 = vmatpush1.msra.mxu0 0.0
  %430 = vmatprep.subr.mxu0 0.0
  %431 = vmatpush1.msra.mxu0 0.0
  %432 = vmatprep.subr.mxu0 0.0
  %433 = vmatpush1.msra.mxu0 0.0
  %434 = vmatprep.subr.mxu0 0.0
  %435 = vmatpush1.msra.mxu0 0.0
  %436 = vmatprep.subr.mxu0 0.0
  %437 = vmatpush1.msra.mxu0 0.0
  %438 = vmatprep.subr.mxu0 0.0
  %439 = vmatpush1.msra.mxu0 0.0
  %440 = vmatprep.subr.mxu0 0.0
  %441 = vmatpush1.msra.mxu0 0.0
  %442 = vmatprep.subr.mxu0 0.0
  %443 = vmatpush1.msra.mxu0 0.0
  %444 = vmatprep.subr.mxu0 0.0
  %445 = vmatpush1.msra.mxu0 0.0
  %446 = vmatprep.subr.mxu0 0.0
  %447 = vmatpush1.msra.mxu0 0.0
  %448 = vmatprep.subr.mxu0 0.0
  %449 = vmatpush1.msra.mxu0 0.0
  %450 = vmatprep.subr.mxu0 0.0
  %451 = vmatpush1.msra.mxu0 0.0
  %452 = vmatprep.subr.mxu0 0.0
  %453 = vmatpush1.msra.mxu0 0.0
  %454 = vmatprep.mubr.f32.mxu0 0.0
  %455 = vmatmul.mubr.f32.gmra.mrb[0].mxu0 %v338
  %v456 = vpop.f32.mrb[0].mxu0
  %v457 = vadd.f32 0.0, %v456
  %v458 = vpop.f32.mrb[0].mxu0
  %459 = vmatprep.mubr.f32.mxu0 0.0
  %460 = vmatmul.mubr.f32.gmra.mrb[0].mxu0 %v339
  %v461 = vpop.f32.mrb[0].mxu0
  %v462 = vadd.f32 0.0, %v461
  %v463 = vpop.f32.mrb[0].mxu0
  %464 = vmatprep.mubr.f32.mxu0 0.0
  %465 = vmatmul.mubr.f32.gmra.mrb[0].mxu0 %v340
  %v466 = vpop.f32.mrb[0].mxu0
  %v467 = vadd.f32 0.0, %v466
  %v468 = vpop.f32.mrb[0].mxu0
  %469 = vmatprep.mubr.f32.mxu0 0.0
  %470 = vmatmul.mubr.f32.gmra.mrb[0].mxu0 %v341
  %v471 = vpop.f32.mrb[0].mxu0
  %v472 = vadd.f32 0.0, %v471
  %v473 = vpop.f32.mrb[0].mxu0
  %474 = vmatprep.mubr.f32.mxu0 0.0
  %475 = vmatmul.mubr.f32.gmra.mrb[0].mxu0 %v342
  %v476 = vpop.f32.mrb[0].mxu0
  %v477 = vadd.f32 0.0, %v476
  %v478 = vpop.f32.mrb[0].mxu0
  %479 = vmatprep.mubr.f32.mxu0 0.0
  %480 = vmatmul.mubr.f32.gmra.mrb[0].mxu0 %v343
  %v481 = vpop.f32.mrb[0].mxu0
  %v482 = vadd.f32 0.0, %v481
  %v483 = vpop.f32.mrb[0].mxu0
  %484 = vmatprep.mubr.f32.mxu0 0.0
  %485 = vmatmul.mubr.f32.gmra.mrb[0].mxu0 %v344
  %v486 = vpop.f32.mrb[0].mxu0
  %v487 = vadd.f32 0.0, %v486
  %v488 = vpop.f32.mrb[0].mxu0
  %489 = vmatprep.mubr.f32.mxu0 0.0
  %490 = vmatmul.mubr.f32.gmra.mrb[0].mxu0 %v345
  %v491 = vpop.f32.mrb[0].mxu0
  %v492 = vadd.f32 0.0, %v491
  %v493 = vpop.f32.mrb[0].mxu0
  %494 = vmatprep.mubr.f32.mxu0 0.0
  %495 = vmatmul.mubr.f32.gmra.mrb[0].mxu0 %v346
  %v496 = vpop.f32.mrb[0].mxu0
  %v497 = vadd.f32 0.0, %v496
  %v498 = vpop.f32.mrb[0].mxu0
  %499 = vmatprep.mubr.f32.mxu0 0.0
  %500 = vmatmul.mubr.f32.gmra.mrb[0].mxu0 %v347
  %v501 = vpop.f32.mrb[0].mxu0
  %v502 = vadd.f32 0.0, %v501
  %v503 = vpop.f32.mrb[0].mxu0
  %504 = vmatprep.mubr.f32.mxu0 0.0
  %505 = vmatmul.mubr.f32.gmra.mrb[0].mxu0 %v348
  %v506 = vpop.f32.mrb[0].mxu0
  %v507 = vadd.f32 0.0, %v506
  %v508 = vpop.f32.mrb[0].mxu0
  %509 = vmatprep.mubr.f32.mxu0 0.0
  %510 = vmatmul.mubr.f32.gmra.mrb[0].mxu0 %v349
  %v511 = vpop.f32.mrb[0].mxu0
  %v512 = vadd.f32 0.0, %v511
  %v513 = vpop.f32.mrb[0].mxu0
  %514 = vmatprep.mubr.f32.mxu0 0.0
  %515 = vmatmul.mubr.f32.gmra.mrb[0].mxu0 %v350
  %v516 = vpop.f32.mrb[0].mxu0
  %v517 = vadd.f32 0.0, %v516
  %v518 = vpop.f32.mrb[0].mxu0
  %519 = vmatprep.mubr.f32.mxu0 0.0
  %520 = vmatmul.mubr.f32.gmra.mrb[0].mxu0 %v351
  %v521 = vpop.f32.mrb[0].mxu0
  %v522 = vadd.f32 0.0, %v521
  %v523 = vpop.f32.mrb[0].mxu0
  %524 = vmatprep.mubr.f32.mxu0 0.0
  %525 = vmatmul.mubr.f32.gmra.mrb[0].mxu0 %v352
  %v526 = vpop.f32.mrb[0].mxu0
  %v527 = vadd.f32 0.0, %v526
  %v528 = vpop.f32.mrb[0].mxu0
  %529 = vmatprep.mubr.f32.mxu0 0.0
  %530 = vmatmul.mubr.f32.gmra.mrb[0].mxu0 %v353
  %v531 = vpop.f32.mrb[0].mxu0
  %v532 = vadd.f32 0.0, %v531
  %v533 = vpop.f32.mrb[0].mxu0
  %534 = vmatprep.mubr.f32.mxu0 0.0
  %535 = vmatmul.mubr.f32.gmra.mrb[0].mxu0 %v354
  %v536 = vpop.f32.mrb[0].mxu0
  %v537 = vadd.f32 0.0, %v536
  %v538 = vpop.f32.mrb[0].mxu0
  %539 = vmatprep.mubr.f32.mxu0 0.0
  %540 = vmatmul.mubr.f32.gmra.mrb[0].mxu0 %v355
  %v541 = vpop.f32.mrb[0].mxu0
  %v542 = vadd.f32 0.0, %v541
  %v543 = vpop.f32.mrb[0].mxu0
  %544 = vmatprep.mubr.f32.mxu0 0.0
  %545 = vmatmul.mubr.f32.gmra.mrb[0].mxu0 %v356
  %v546 = vpop.f32.mrb[0].mxu0
  %v547 = vadd.f32 0.0, %v546
  %v548 = vpop.f32.mrb[0].mxu0
  %549 = vmatprep.mubr.f32.mxu0 0.0
  %550 = vmatmul.mubr.f32.gmra.mrb[0].mxu0 %v357
  %v551 = vpop.f32.mrb[0].mxu0
  %v552 = vadd.f32 0.0, %v551
  %v553 = vpop.f32.mrb[0].mxu0
  %554 = vmatprep.mubr.f32.mxu0 0.0
  %555 = vmatmul.mubr.f32.gmra.mrb[0].mxu0 %v358
  %v556 = vpop.f32.mrb[0].mxu0
  %v557 = vadd.f32 0.0, %v556
  %v558 = vpop.f32.mrb[0].mxu0
  %559 = vmatprep.mubr.f32.mxu0 0.0
  %560 = vmatmul.mubr.f32.gmra.mrb[0].mxu0 %v359
  %v561 = vpop.f32.mrb[0].mxu0
  %v562 = vadd.f32 0.0, %v561
  %v563 = vpop.f32.mrb[0].mxu0
  %564 = vmatprep.mubr.f32.mxu0 0.0
  %565 = vmatmul.mubr.f32.gmra.mrb[0].mxu0 %v360
  %v566 = vpop.f32.mrb[0].mxu0
  %v567 = vadd.f32 0.0, %v566
  %v568 = vpop.f32.mrb[0].mxu0
  %569 = vmatprep.mubr.f32.mxu0 0.0
  %570 = vmatmul.mubr.f32.gmra.mrb[0].mxu0 %v361
  %v571 = vpop.f32.mrb[0].mxu0
  %v572 = vadd.f32 0.0, %v571
  %v573 = vpop.f32.mrb[0].mxu0
  %574 = vmatprep.mubr.f32.mxu0 0.0
  %575 = vmatmul.mubr.f32.gmra.mrb[0].mxu0 %v362
  %v576 = vpop.f32.mrb[0].mxu0
  %v577 = vadd.f32 0.0, %v576
  %v578 = vpop.f32.mrb[0].mxu0
  %579 = vmatprep.mubr.f32.mxu0 0.0
  %580 = vmatmul.mubr.f32.gmra.mrb[0].mxu0 %v363
  %v581 = vpop.f32.mrb[0].mxu0
  %v582 = vadd.f32 0.0, %v581
  %v583 = vpop.f32.mrb[0].mxu0
  %584 = vmatprep.mubr.f32.mxu0 0.0
  %585 = vmatmul.mubr.f32.gmra.mrb[0].mxu0 %v364
  %v586 = vpop.f32.mrb[0].mxu0
  %v587 = vadd.f32 0.0, %v586
  %v588 = vpop.f32.mrb[0].mxu0
  %589 = vmatprep.mubr.f32.mxu0 0.0
  %590 = vmatmul.mubr.f32.gmra.mrb[0].mxu0 %v365
  %v591 = vpop.f32.mrb[0].mxu0
  %v592 = vadd.f32 0.0, %v591
  %v593 = vpop.f32.mrb[0].mxu0
  %594 = vmatprep.mubr.f32.mxu0 0.0
  %595 = vmatmul.mubr.f32.gmra.mrb[0].mxu0 %v366
  %v596 = vpop.f32.mrb[0].mxu0
  %v597 = vadd.f32 0.0, %v596
  %v598 = vpop.f32.mrb[0].mxu0
  %599 = vmatprep.mubr.f32.mxu0 0.0
  %600 = vmatmul.mubr.f32.gmra.mrb[0].mxu0 %v367
  %v601 = vpop.f32.mrb[0].mxu0
  %v602 = vadd.f32 0.0, %v601
  %v603 = vpop.f32.mrb[0].mxu0
  %604 = vmatprep.mubr.f32.mxu0 0.0
  %605 = vmatmul.mubr.f32.gmra.mrb[0].mxu0 %v368
  %v606 = vpop.f32.mrb[0].mxu0
  %v607 = vadd.f32 0.0, %v606
  %v608 = vpop.f32.mrb[0].mxu0
  %609 = vmatprep.mubr.f32.mxu0 0.0
  %610 = vmatmul.mubr.f32.gmra.mrb[0].mxu0 %v369
  %v611 = vpop.f32.mrb[0].mxu0
  %v612 = vadd.f32 0.0, %v611
  %v613 = vpop.f32.mrb[0].mxu0
  %614 = vmatprep.mubr.f32.mxu0 0.0
  %615 = vmatmul.mubr.f32.gmra.mrb[0].mxu0 %v370
  %v616 = vpop.f32.mrb[0].mxu0
  %v617 = vadd.f32 0.0, %v616
  %v618 = vpop.f32.mrb[0].mxu0
  %619 = vmatprep.mubr.f32.mxu0 0.0
  %620 = vmatmul.mubr.f32.gmra.mrb[0].mxu0 %v371
  %v621 = vpop.f32.mrb[0].mxu0
  %v622 = vadd.f32 0.0, %v621
  %v623 = vpop.f32.mrb[0].mxu0
  %624 = vmatprep.mubr.f32.mxu0 0.0
  %625 = vmatmul.mubr.f32.gmra.mrb[0].mxu0 %v372
  %v626 = vpop.f32.mrb[0].mxu0
  %v627 = vadd.f32 0.0, %v626
  %v628 = vpop.f32.mrb[0].mxu0
  %629 = vmatprep.mubr.f32.mxu0 0.0
  %630 = vmatmul.mubr.f32.gmra.mrb[0].mxu0 %v373
  %v631 = vpop.f32.mrb[0].mxu0
  %v632 = vadd.f32 0.0, %v631
  %v633 = vpop.f32.mrb[0].mxu0
  %634 = vdwg.mxu0
  %v635 = vld [vmem:[%s1] sm:$0x1]
  %v636 = vlaneseq
  %v637 = vshrl.u32 %v636, 7
  %v638 = vsub.s32 0, %v637
  %v639 = vrot.slane %v635, %v638
  %v640 = vmul.f32 %v457, %v639
  %v641 = vmul.f32 %v462, %v639
  %v642 = vmul.f32 %v467, %v639
  %v643 = vmul.f32 %v472, %v639
  %v644 = vld [vmem:[%s1 + $0x1] sm:$0x1]
  %v645 = vlaneseq
  %v646 = vshrl.u32 %v645, 7
  %v647 = vsub.s32 0, %v646
  %v648 = vrot.slane %v644, %v647
  %650 = vrot.lane.b32.xlu0 %v648, 1
  %v651 = vpop.permute.xlu0 %650
  %v653 = vmul.f32 %v477, %v651
  %v654 = vmul.f32 %v482, %v651
  %v655 = vmul.f32 %v487, %v651
  %v656 = vmul.f32 %v492, %v651
  %v657 = vld [vmem:[%s1 + $0x2] sm:$0x1]
  %v658 = vlaneseq
  %v659 = vshrl.u32 %v658, 7
  %v660 = vsub.s32 0, %v659
  %v661 = vrot.slane %v657, %v660
  %663 = vrot.lane.b32.xlu0 %v661, 2
  %v664 = vpop.permute.xlu0 %663
  %v666 = vmul.f32 %v497, %v664
  %v667 = vmul.f32 %v502, %v664
  %v668 = vmul.f32 %v507, %v664
  %v669 = vmul.f32 %v512, %v664
  %v670 = vld [vmem:[%s1 + $0x3] sm:$0x1]
  %v671 = vlaneseq
  %v672 = vshrl.u32 %v671, 7
  %v673 = vsub.s32 0, %v672
  %v674 = vrot.slane %v670, %v673
  %676 = vrot.lane.b32.xlu0 %v674, 7
  %v677 = vpop.permute.xlu0 %676
  %v679 = vmul.f32 %v517, %v677
  %v680 = vmul.f32 %v522, %v677
  %v681 = vmul.f32 %v527, %v677
  %v682 = vmul.f32 %v532, %v677
  %v683 = vld [vmem:[%s1 + $0x4] sm:$0x1]
  %v684 = vlaneseq
  %v685 = vshrl.u32 %v684, 7
  %v686 = vsub.s32 0, %v685
  %v687 = vrot.slane %v683, %v686
  %689 = vrot.lane.b32.xlu0 %v687, 8
  %v690 = vpop.permute.xlu0 %689
  %v692 = vmul.f32 %v537, %v690
  %v693 = vmul.f32 %v542, %v690
  %v694 = vmul.f32 %v547, %v690
  %v695 = vmul.f32 %v552, %v690
  %v696 = vld [vmem:[%s1 + $0x5] sm:$0x1]
  %v697 = vlaneseq
  %v698 = vshrl.u32 %v697, 7
  %v699 = vsub.s32 0, %v698
  %v700 = vrot.slane %v696, %v699
  %702 = vrot.lane.b32.xlu0 %v700, 9
  %v703 = vpop.permute.xlu0 %702
  %v705 = vmul.f32 %v557, %v703
  %v706 = vmul.f32 %v562, %v703
  %v707 = vmul.f32 %v567, %v703
  %v708 = vmul.f32 %v572, %v703
  %v709 = vld [vmem:[%s1 + $0x6] sm:$0x1]
  %v710 = vlaneseq
  %v711 = vshrl.u32 %v710, 7
  %v712 = vsub.s32 0, %v711
  %v713 = vrot.slane %v709, %v712
  %715 = vrot.lane.b32.xlu0 %v713, 14
  %v716 = vpop.permute.xlu0 %715
  %v718 = vmul.f32 %v577, %v716
  %v719 = vmul.f32 %v582, %v716
  %v720 = vmul.f32 %v587, %v716
  %v721 = vmul.f32 %v592, %v716
  %v722 = vld [vmem:[%s1 + $0x7] sm:$0x1]
  %v723 = vlaneseq
  %v724 = vshrl.u32 %v723, 7
  %v725 = vsub.s32 0, %v724
  %v726 = vrot.slane %v722, %v725
  %728 = vrot.lane.b32.xlu0 %v726, 15
  %v729 = vpop.permute.xlu0 %728
  %v731 = vmul.f32 %v597, %v729
  %v732 = vmul.f32 %v602, %v729
  %v733 = vmul.f32 %v607, %v729
  %v734 = vmul.f32 %v612, %v729
  %v735 = vld [vmem:[%s1 + $0x8] sm:$0x1]
  %v736 = vlaneseq
  %v737 = vshrl.u32 %v736, 7
  %v738 = vsub.s32 0, %v737
  %v739 = vrot.slane %v735, %v738
  %741 = vrot.lane.b32.xlu0 %v739, 16
  %v742 = vpop.permute.xlu0 %741
  %v744 = vmul.f32 %v617, %v742
  %v745 = vmul.f32 %v622, %v742
  %v746 = vmul.f32 %v627, %v742
  %v747 = vmul.f32 %v632, %v742
  %752 = vrot.lane.b32.xlu0 %v653, 127
  %v753 = vpop.permute.xlu0 %752
  %754 = vrot.lane.b32.xlu0 %v654, 127
  %v755 = vpop.permute.xlu0 %754
  %756 = vrot.lane.b32.xlu0 %v655, 127
  %v757 = vpop.permute.xlu0 %756
  %758 = vrot.lane.b32.xlu0 %v656, 127
  %v759 = vpop.permute.xlu0 %758
  %v764 = vadd.f32 %v640, %v753
  %v765 = vadd.f32 %v641, %v755
  %v766 = vadd.f32 %v642, %v757
  %v767 = vadd.f32 %v643, %v759
  %772 = vrot.lane.b32.xlu0 %v679, 123
  %v773 = vpop.permute.xlu0 %772
  %774 = vrot.lane.b32.xlu0 %v680, 123
  %v775 = vpop.permute.xlu0 %774
  %776 = vrot.lane.b32.xlu0 %v681, 123
  %v777 = vpop.permute.xlu0 %776
  %778 = vrot.lane.b32.xlu0 %v682, 123
  %v779 = vpop.permute.xlu0 %778
  %v784 = vadd.f32 %v666, %v773
  %v785 = vadd.f32 %v667, %v775
  %v786 = vadd.f32 %v668, %v777
  %v787 = vadd.f32 %v669, %v779
  %792 = vrot.lane.b32.xlu0 %v705, 127
  %v793 = vpop.permute.xlu0 %792
  %794 = vrot.lane.b32.xlu0 %v706, 127
  %v795 = vpop.permute.xlu0 %794
  %796 = vrot.lane.b32.xlu0 %v707, 127
  %v797 = vpop.permute.xlu0 %796
  %798 = vrot.lane.b32.xlu0 %v708, 127
  %v799 = vpop.permute.xlu0 %798
  %v804 = vadd.f32 %v692, %v793
  %v805 = vadd.f32 %v693, %v795
  %v806 = vadd.f32 %v694, %v797
  %v807 = vadd.f32 %v695, %v799
  %812 = vrot.lane.b32.xlu0 %v731, 127
  %v813 = vpop.permute.xlu0 %812
  %814 = vrot.lane.b32.xlu0 %v732, 127
  %v815 = vpop.permute.xlu0 %814
  %816 = vrot.lane.b32.xlu0 %v733, 127
  %v817 = vpop.permute.xlu0 %816
  %818 = vrot.lane.b32.xlu0 %v734, 127
  %v819 = vpop.permute.xlu0 %818
  %v824 = vadd.f32 %v718, %v813
  %v825 = vadd.f32 %v719, %v815
  %v826 = vadd.f32 %v720, %v817
  %v827 = vadd.f32 %v721, %v819
  %832 = vrot.lane.b32.xlu0 %v784, 126
  %v833 = vpop.permute.xlu0 %832
  %834 = vrot.lane.b32.xlu0 %v785, 126
  %v835 = vpop.permute.xlu0 %834
  %836 = vrot.lane.b32.xlu0 %v786, 126
  %v837 = vpop.permute.xlu0 %836
  %838 = vrot.lane.b32.xlu0 %v787, 126
  %v839 = vpop.permute.xlu0 %838
  %v844 = vadd.f32 %v764, %v833
  %v845 = vadd.f32 %v765, %v835
  %v846 = vadd.f32 %v766, %v837
  %v847 = vadd.f32 %v767, %v839
  %852 = vrot.lane.b32.xlu0 %v824, 122
  %v853 = vpop.permute.xlu0 %852
  %854 = vrot.lane.b32.xlu0 %v825, 122
  %v855 = vpop.permute.xlu0 %854
  %856 = vrot.lane.b32.xlu0 %v826, 122
  %v857 = vpop.permute.xlu0 %856
  %858 = vrot.lane.b32.xlu0 %v827, 122
  %v859 = vpop.permute.xlu0 %858
  %v864 = vadd.f32 %v804, %v853
  %v865 = vadd.f32 %v805, %v855
  %v866 = vadd.f32 %v806, %v857
  %v867 = vadd.f32 %v807, %v859
  %872 = vrot.lane.b32.xlu0 %v864, 120
  %v873 = vpop.permute.xlu0 %872
  %874 = vrot.lane.b32.xlu0 %v865, 120
  %v875 = vpop.permute.xlu0 %874
  %876 = vrot.lane.b32.xlu0 %v866, 120
  %v877 = vpop.permute.xlu0 %876
  %878 = vrot.lane.b32.xlu0 %v867, 120
  %v879 = vpop.permute.xlu0 %878
  %v884 = vadd.f32 %v844, %v873
  %v885 = vadd.f32 %v845, %v875
  %v886 = vadd.f32 %v846, %v877
  %v887 = vadd.f32 %v847, %v879
  %892 = vrot.lane.b32.xlu0 %v744, 112
  %v893 = vpop.permute.xlu0 %892
  %894 = vrot.lane.b32.xlu0 %v745, 112
  %v895 = vpop.permute.xlu0 %894
  %896 = vrot.lane.b32.xlu0 %v746, 112
  %v897 = vpop.permute.xlu0 %896
  %898 = vrot.lane.b32.xlu0 %v747, 112
  %v899 = vpop.permute.xlu0 %898
  %v904 = vadd.f32 %v884, %v893
  %v905 = vadd.f32 %v885, %v895
  %v906 = vadd.f32 %v886, %v897
  %v907 = vadd.f32 %v887, %v899
  %vm908 = vcmask 400384
  %v910 = vsel %vm908, %v904, 0
  %v913 = vsel %vm908, %v905, 0
  %v916 = vsel %vm908, %v906, 0
  %v919 = vsel %vm908, %v907, 0
  %vm921 = vcmask 1040384
  %v923 = vsel %vm921, 1.0, 0
  %925 = vmatprep.subr.mxu0 0.0
  %926 = vmatpush1.msra.mxu0 1.0
  %927 = vmatprep.subr.mxu0 0.0
  %928 = vmatpush1.msra.mxu0 1.0
  %929 = vmatprep.subr.mxu0 0.0
  %930 = vmatpush1.msra.mxu0 1.0
  %931 = vmatprep.subr.mxu0 0.0
  %932 = vmatpush1.msra.mxu0 1.0
  %933 = vmatprep.subr.mxu0 0.0
  %934 = vmatpush1.msra.mxu0 1.0
  %935 = vmatprep.subr.mxu0 0.0
  %936 = vmatpush1.msra.mxu0 1.0
  %937 = vmatprep.subr.mxu0 0.0
  %938 = vmatpush1.msra.mxu0 %v923
  %939 = vmatprep.subr.mxu0 0.0
  %940 = vmatpush1.msra.mxu0 0.0
  %941 = vmatprep.subr.mxu0 0.0
  %942 = vmatpush1.msra.mxu0 0.0
  %943 = vmatprep.subr.mxu0 0.0
  %944 = vmatpush1.msra.mxu0 0.0
  %945 = vmatprep.subr.mxu0 0.0
  %946 = vmatpush1.msra.mxu0 0.0
  %947 = vmatprep.subr.mxu0 0.0
  %948 = vmatpush1.msra.mxu0 0.0
  %949 = vmatprep.subr.mxu0 0.0
  %950 = vmatpush1.msra.mxu0 0.0
  %951 = vmatprep.subr.mxu0 0.0
  %952 = vmatpush1.msra.mxu0 0.0
  %953 = vmatprep.subr.mxu0 0.0
  %954 = vmatpush1.msra.mxu0 0.0
  %955 = vmatprep.subr.mxu0 0.0
  %956 = vmatpush1.msra.mxu0 0.0
  %957 = vmatprep.subr.mxu0 0.0
  %958 = vmatpush1.msra.mxu0 0.0
  %959 = vmatprep.subr.mxu0 0.0
  %960 = vmatpush1.msra.mxu0 0.0
  %961 = vmatprep.subr.mxu0 0.0
  %962 = vmatpush1.msra.mxu0 0.0
  %963 = vmatprep.subr.mxu0 0.0
  %964 = vmatpush1.msra.mxu0 0.0
  %965 = vmatprep.subr.mxu0 0.0
  %966 = vmatpush1.msra.mxu0 0.0
  %967 = vmatprep.subr.mxu0 0.0
  %968 = vmatpush1.msra.mxu0 0.0
  %969 = vmatprep.subr.mxu0 0.0
  %970 = vmatpush1.msra.mxu0 0.0
  %971 = vmatprep.subr.mxu0 0.0
  %972 = vmatpush1.msra.mxu0 0.0
  %973 = vmatprep.subr.mxu0 0.0
  %974 = vmatpush1.msra.mxu0 0.0
  %975 = vmatprep.subr.mxu0 0.0
  %976 = vmatpush1.msra.mxu0 0.0
  %977 = vmatprep.subr.mxu0 0.0
  %978 = vmatpush1.msra.mxu0 0.0
  %979 = vmatprep.subr.mxu0 0.0
  %980 = vmatpush1.msra.mxu0 0.0
  %981 = vmatprep.subr.mxu0 0.0
  %982 = vmatpush1.msra.mxu0 0.0
  %983 = vmatprep.subr.mxu0 0.0
  %984 = vmatpush1.msra.mxu0 0.0
  %985 = vmatprep.subr.mxu0 0.0
  %986 = vmatpush1.msra.mxu0 0.0
  %987 = vmatprep.subr.mxu0 0.0
  %988 = vmatpush1.msra.mxu0 0.0
  %989 = vmatprep.mubr.f32.mxu0 0.0
  %990 = vmatmul.mubr.f32.gmra.mrb[0].mxu0 %v910
  %v991 = vpop.f32.mrb[0].mxu0
  %v992 = vadd.f32 0.0, %v991
  %v993 = vpop.f32.mrb[0].mxu0
  %994 = vmatprep.mubr.f32.mxu0 0.0
  %995 = vmatmul.mubr.f32.gmra.mrb[0].mxu0 %v913
  %v996 = vpop.f32.mrb[0].mxu0
  %v997 = vadd.f32 0.0, %v996
  %v998 = vpop.f32.mrb[0].mxu0
  %999 = vmatprep.mubr.f32.mxu0 0.0
  %1000 = vmatmul.mubr.f32.gmra.mrb[0].mxu0 %v916
  %v1001 = vpop.f32.mrb[0].mxu0
  %v1002 = vadd.f32 0.0, %v1001
  %v1003 = vpop.f32.mrb[0].mxu0
  %1004 = vmatprep.mubr.f32.mxu0 0.0
  %1005 = vmatmul.mubr.f32.gmra.mrb[0].mxu0 %v919
  %v1006 = vpop.f32.mrb[0].mxu0
  %v1007 = vadd.f32 0.0, %v1006
  %v1008 = vpop.f32.mrb[0].mxu0
  %1009 = vdwg.mxu0
  %v1010 = vmul.f32 %v992, 0.020408163
  %v1011 = vmul.f32 %v997, 0.020408163
  %v1012 = vmul.f32 %v1002, 0.020408163
  %v1013 = vmul.f32 %v1007, 0.020408163
  %v1014 = vsub.f32 %v904, %v1010
  %v1015 = vsub.f32 %v905, %v1011
  %v1016 = vsub.f32 %v906, %v1012
  %v1017 = vsub.f32 %v907, %v1013
  %v1018 = vmul.f32 %v1014, %v1014
  %v1019 = vmul.f32 %v1015, %v1015
  %v1020 = vmul.f32 %v1016, %v1016
  %v1021 = vmul.f32 %v1017, %v1017
  %v1023 = vsel %vm908, %v1018, 0
  %v1026 = vsel %vm908, %v1019, 0
  %v1029 = vsel %vm908, %v1020, 0
  %v1032 = vsel %vm908, %v1021, 0
  %1034 = vmatprep.subr.mxu0 0.0
  %1035 = vmatpush1.msra.mxu0 1.0
  %1036 = vmatprep.subr.mxu0 0.0
  %1037 = vmatpush1.msra.mxu0 1.0
  %1038 = vmatprep.subr.mxu0 0.0
  %1039 = vmatpush1.msra.mxu0 1.0
  %1040 = vmatprep.subr.mxu0 0.0
  %1041 = vmatpush1.msra.mxu0 1.0
  %1042 = vmatprep.subr.mxu0 0.0
  %1043 = vmatpush1.msra.mxu0 1.0
  %1044 = vmatprep.subr.mxu0 0.0
  %1045 = vmatpush1.msra.mxu0 1.0
  %1046 = vmatprep.subr.mxu0 0.0
  %1047 = vmatpush1.msra.mxu0 %v923
  %1048 = vmatprep.subr.mxu0 0.0
  %1049 = vmatpush1.msra.mxu0 0.0
  %1050 = vmatprep.subr.mxu0 0.0
  %1051 = vmatpush1.msra.mxu0 0.0
  %1052 = vmatprep.subr.mxu0 0.0
  %1053 = vmatpush1.msra.mxu0 0.0
  %1054 = vmatprep.subr.mxu0 0.0
  %1055 = vmatpush1.msra.mxu0 0.0
  %1056 = vmatprep.subr.mxu0 0.0
  %1057 = vmatpush1.msra.mxu0 0.0
  %1058 = vmatprep.subr.mxu0 0.0
  %1059 = vmatpush1.msra.mxu0 0.0
  %1060 = vmatprep.subr.mxu0 0.0
  %1061 = vmatpush1.msra.mxu0 0.0
  %1062 = vmatprep.subr.mxu0 0.0
  %1063 = vmatpush1.msra.mxu0 0.0
  %1064 = vmatprep.subr.mxu0 0.0
  %1065 = vmatpush1.msra.mxu0 0.0
  %1066 = vmatprep.subr.mxu0 0.0
  %1067 = vmatpush1.msra.mxu0 0.0
  %1068 = vmatprep.subr.mxu0 0.0
  %1069 = vmatpush1.msra.mxu0 0.0
  %1070 = vmatprep.subr.mxu0 0.0
  %1071 = vmatpush1.msra.mxu0 0.0
  %1072 = vmatprep.subr.mxu0 0.0
  %1073 = vmatpush1.msra.mxu0 0.0
  %1074 = vmatprep.subr.mxu0 0.0
  %1075 = vmatpush1.msra.mxu0 0.0
  %1076 = vmatprep.subr.mxu0 0.0
  %1077 = vmatpush1.msra.mxu0 0.0
  %1078 = vmatprep.subr.mxu0 0.0
  %1079 = vmatpush1.msra.mxu0 0.0
  %1080 = vmatprep.subr.mxu0 0.0
  %1081 = vmatpush1.msra.mxu0 0.0
  %1082 = vmatprep.subr.mxu0 0.0
  %1083 = vmatpush1.msra.mxu0 0.0
  %1084 = vmatprep.subr.mxu0 0.0
  %1085 = vmatpush1.msra.mxu0 0.0
  %1086 = vmatprep.subr.mxu0 0.0
  %1087 = vmatpush1.msra.mxu0 0.0
  %1088 = vmatprep.subr.mxu0 0.0
  %1089 = vmatpush1.msra.mxu0 0.0
  %1090 = vmatprep.subr.mxu0 0.0
  %1091 = vmatpush1.msra.mxu0 0.0
  %1092 = vmatprep.subr.mxu0 0.0
  %1093 = vmatpush1.msra.mxu0 0.0
  %1094 = vmatprep.subr.mxu0 0.0
  %1095 = vmatpush1.msra.mxu0 0.0
  %1096 = vmatprep.subr.mxu0 0.0
  %1097 = vmatpush1.msra.mxu0 0.0
  %1098 = vmatprep.mubr.f32.mxu0 0.0
  %1099 = vmatmul.mubr.f32.gmra.mrb[0].mxu0 %v1023
  %v1100 = vpop.f32.mrb[0].mxu0
  %v1101 = vadd.f32 0.0, %v1100
  %v1102 = vpop.f32.mrb[0].mxu0
  %1103 = vmatprep.mubr.f32.mxu0 0.0
  %1104 = vmatmul.mubr.f32.gmra.mrb[0].mxu0 %v1026
  %v1105 = vpop.f32.mrb[0].mxu0
  %v1106 = vadd.f32 0.0, %v1105
  %v1107 = vpop.f32.mrb[0].mxu0
  %1108 = vmatprep.mubr.f32.mxu0 0.0
  %1109 = vmatmul.mubr.f32.gmra.mrb[0].mxu0 %v1029
  %v1110 = vpop.f32.mrb[0].mxu0
  %v1111 = vadd.f32 0.0, %v1110
  %v1112 = vpop.f32.mrb[0].mxu0
  %1113 = vmatprep.mubr.f32.mxu0 0.0
  %1114 = vmatmul.mubr.f32.gmra.mrb[0].mxu0 %v1032
  %v1115 = vpop.f32.mrb[0].mxu0
  %v1116 = vadd.f32 0.0, %v1115
  %v1117 = vpop.f32.mrb[0].mxu0
  %1118 = vdwg.mxu0
  %v1119 = vmul.f32 %v1101, 0.020408163
  %v1120 = vmul.f32 %v1106, 0.020408163
  %v1121 = vmul.f32 %v1111, 0.020408163
  %v1122 = vmul.f32 %v1116, 0.020408163
  %v1123 = vadd.f32 %v1119, 1e-05
  %v1124 = vadd.f32 %v1120, 1e-05
  %v1125 = vadd.f32 %v1121, 1e-05
  %v1126 = vadd.f32 %v1122, 1e-05
  %v1127 = vrsqrt.pop %v1123
  %v1128 = vrsqrt.pop %v1124
  %v1129 = vrsqrt.pop %v1125
  %v1130 = vrsqrt.pop %v1126
  %v1131 = vld [vmem:[%s2 + $0x360] sm:$0xff]
  %v1132 = vld [vmem:[%s2 + $0x368] sm:$0xff]
  %v1133 = vld [vmem:[%s2 + $0x370] sm:$0xff]
  %v1134 = vld [vmem:[%s2 + $0x378] sm:$0xff]
  %1136 = vset.pattern.permute.xlu0 0
  %1137 = vperm.xlu0 %1136, %v1131
  %v1138 = vpop.permute.xlu0 %1137
  %1141 = vset.pattern.permute.xlu0 0
  %1142 = vperm.xlu0 %1141, %v1132
  %v1143 = vpop.permute.xlu0 %1142
  %1146 = vset.pattern.permute.xlu0 0
  %1147 = vperm.xlu0 %1146, %v1133
  %v1148 = vpop.permute.xlu0 %1147
  %1151 = vset.pattern.permute.xlu0 0
  %1152 = vperm.xlu0 %1151, %v1134
  %v1153 = vpop.permute.xlu0 %1152
  %v1155 = vmul.f32 %v1127, %v1138
  %v1156 = vmul.f32 %v1128, %v1143
  %v1157 = vmul.f32 %v1129, %v1148
  %v1158 = vmul.f32 %v1130, %v1153
  %v1159 = vmul.f32 %v1014, %v1155
  %v1160 = vmul.f32 %v1015, %v1156
  %v1161 = vmul.f32 %v1016, %v1157
  %v1162 = vmul.f32 %v1017, %v1158
  %v1163 = vld [vmem:[%s3 + $0x360] sm:$0xff]
  %v1164 = vld [vmem:[%s3 + $0x368] sm:$0xff]
  %v1165 = vld [vmem:[%s3 + $0x370] sm:$0xff]
  %v1166 = vld [vmem:[%s3 + $0x378] sm:$0xff]
  %1168 = vset.pattern.permute.xlu0 0
  %1169 = vperm.xlu0 %1168, %v1163
  %v1170 = vpop.permute.xlu0 %1169
  %1173 = vset.pattern.permute.xlu0 0
  %1174 = vperm.xlu0 %1173, %v1164
  %v1175 = vpop.permute.xlu0 %1174
  %1178 = vset.pattern.permute.xlu0 0
  %1179 = vperm.xlu0 %1178, %v1165
  %v1180 = vpop.permute.xlu0 %1179
  %1183 = vset.pattern.permute.xlu0 0
  %1184 = vperm.xlu0 %1183, %v1166
  %v1185 = vpop.permute.xlu0 %1184
  %v1187 = vadd.f32 %v1159, %v1170
  %v1188 = vadd.f32 %v1160, %v1175
  %v1189 = vadd.f32 %v1161, %v1180
  %v1190 = vadd.f32 %v1162, %v1185
  %1191 = vst.msk [vmem:[%s18 + $0x360] sm:$0xff] %vm908, %v1187
  %1192 = vst.msk [vmem:[%s18 + $0x368] sm:$0xff] %vm908, %v1188
  %1193 = vst.msk [vmem:[%s18 + $0x370] sm:$0xff] %vm908, %v1189
  %1194 = vst.msk [vmem:[%s18 + $0x378] sm:$0xff] %vm908, %v1190
  %v1195 = vld [vmem:[%s6] sm:$0xff]
  %v1196 = vld [vmem:[%s6 + $0x8] sm:$0xff]
  %v1197 = vld [vmem:[%s6 + $0x10] sm:$0xff]
  %v1198 = vld [vmem:[%s6 + $0x18] sm:$0xff]
  %v1200 = vsel %vm908, %v1195, 0
  %v1203 = vsel %vm908, %v1196, 0
  %v1206 = vsel %vm908, %v1197, 0
  %v1209 = vsel %vm908, %v1198, 0
  %1211 = vmatprep.subr.mxu0 0.0
  %1212 = vmatpush1.msra.mxu0 1.0
  %1213 = vmatprep.subr.mxu0 0.0
  %1214 = vmatpush1.msra.mxu0 1.0
  %1215 = vmatprep.subr.mxu0 0.0
  %1216 = vmatpush1.msra.mxu0 1.0
  %1217 = vmatprep.subr.mxu0 0.0
  %1218 = vmatpush1.msra.mxu0 1.0
  %1219 = vmatprep.subr.mxu0 0.0
  %1220 = vmatpush1.msra.mxu0 1.0
  %1221 = vmatprep.subr.mxu0 0.0
  %1222 = vmatpush1.msra.mxu0 1.0
  %1223 = vmatprep.subr.mxu0 0.0
  %1224 = vmatpush1.msra.mxu0 %v923
  %1225 = vmatprep.subr.mxu0 0.0
  %1226 = vmatpush1.msra.mxu0 0.0
  %1227 = vmatprep.subr.mxu0 0.0
  %1228 = vmatpush1.msra.mxu0 0.0
  %1229 = vmatprep.subr.mxu0 0.0
  %1230 = vmatpush1.msra.mxu0 0.0
  %1231 = vmatprep.subr.mxu0 0.0
  %1232 = vmatpush1.msra.mxu0 0.0
  %1233 = vmatprep.subr.mxu0 0.0
  %1234 = vmatpush1.msra.mxu0 0.0
  %1235 = vmatprep.subr.mxu0 0.0
  %1236 = vmatpush1.msra.mxu0 0.0
  %1237 = vmatprep.subr.mxu0 0.0
  %1238 = vmatpush1.msra.mxu0 0.0
  %1239 = vmatprep.subr.mxu0 0.0
  %1240 = vmatpush1.msra.mxu0 0.0
  %1241 = vmatprep.subr.mxu0 0.0
  %1242 = vmatpush1.msra.mxu0 0.0
  %1243 = vmatprep.subr.mxu0 0.0
  %1244 = vmatpush1.msra.mxu0 0.0
  %1245 = vmatprep.subr.mxu0 0.0
  %1246 = vmatpush1.msra.mxu0 0.0
  %1247 = vmatprep.subr.mxu0 0.0
  %1248 = vmatpush1.msra.mxu0 0.0
  %1249 = vmatprep.subr.mxu0 0.0
  %1250 = vmatpush1.msra.mxu0 0.0
  %1251 = vmatprep.subr.mxu0 0.0
  %1252 = vmatpush1.msra.mxu0 0.0
  %1253 = vmatprep.subr.mxu0 0.0
  %1254 = vmatpush1.msra.mxu0 0.0
  %1255 = vmatprep.subr.mxu0 0.0
  %1256 = vmatpush1.msra.mxu0 0.0
  %1257 = vmatprep.subr.mxu0 0.0
  %1258 = vmatpush1.msra.mxu0 0.0
  %1259 = vmatprep.subr.mxu0 0.0
  %1260 = vmatpush1.msra.mxu0 0.0
  %1261 = vmatprep.subr.mxu0 0.0
  %1262 = vmatpush1.msra.mxu0 0.0
  %1263 = vmatprep.subr.mxu0 0.0
  %1264 = vmatpush1.msra.mxu0 0.0
  %1265 = vmatprep.subr.mxu0 0.0
  %1266 = vmatpush1.msra.mxu0 0.0
  %1267 = vmatprep.subr.mxu0 0.0
  %1268 = vmatpush1.msra.mxu0 0.0
  %1269 = vmatprep.subr.mxu0 0.0
  %1270 = vmatpush1.msra.mxu0 0.0
  %1271 = vmatprep.subr.mxu0 0.0
  %1272 = vmatpush1.msra.mxu0 0.0
  %1273 = vmatprep.subr.mxu0 0.0
  %1274 = vmatpush1.msra.mxu0 0.0
  %1275 = vmatprep.mubr.f32.mxu0 0.0
  %1276 = vmatmul.mubr.f32.gmra.mrb[0].mxu0 %v1200
  %v1277 = vpop.f32.mrb[0].mxu0
  %v1278 = vadd.f32 0.0, %v1277
  %v1279 = vpop.f32.mrb[0].mxu0
  %1280 = vmatprep.mubr.f32.mxu0 0.0
  %1281 = vmatmul.mubr.f32.gmra.mrb[0].mxu0 %v1203
  %v1282 = vpop.f32.mrb[0].mxu0
  %v1283 = vadd.f32 0.0, %v1282
  %v1284 = vpop.f32.mrb[0].mxu0
  %1285 = vmatprep.mubr.f32.mxu0 0.0
  %1286 = vmatmul.mubr.f32.gmra.mrb[0].mxu0 %v1206
  %v1287 = vpop.f32.mrb[0].mxu0
  %v1288 = vadd.f32 0.0, %v1287
  %v1289 = vpop.f32.mrb[0].mxu0
  %1290 = vmatprep.mubr.f32.mxu0 0.0
  %1291 = vmatmul.mubr.f32.gmra.mrb[0].mxu0 %v1209
  %v1292 = vpop.f32.mrb[0].mxu0
  %v1293 = vadd.f32 0.0, %v1292
  %v1294 = vpop.f32.mrb[0].mxu0
  %1295 = vdwg.mxu0
  %v1296 = vmul.f32 %v1278, 0.020408163
  %v1297 = vmul.f32 %v1283, 0.020408163
  %v1298 = vmul.f32 %v1288, 0.020408163
  %v1299 = vmul.f32 %v1293, 0.020408163
  %v1300 = vsub.f32 %v1195, %v1296
  %v1301 = vsub.f32 %v1196, %v1297
  %v1302 = vsub.f32 %v1197, %v1298
  %v1303 = vsub.f32 %v1198, %v1299
  %v1304 = vmul.f32 %v1300, %v1300
  %v1305 = vmul.f32 %v1301, %v1301
  %v1306 = vmul.f32 %v1302, %v1302
  %v1307 = vmul.f32 %v1303, %v1303
  %v1309 = vsel %vm908, %v1304, 0
  %v1312 = vsel %vm908, %v1305, 0
  %v1315 = vsel %vm908, %v1306, 0
  %v1318 = vsel %vm908, %v1307, 0
  %1320 = vmatprep.subr.mxu0 0.0
  %1321 = vmatpush1.msra.mxu0 1.0
  %1322 = vmatprep.subr.mxu0 0.0
  %1323 = vmatpush1.msra.mxu0 1.0
  %1324 = vmatprep.subr.mxu0 0.0
  %1325 = vmatpush1.msra.mxu0 1.0
  %1326 = vmatprep.subr.mxu0 0.0
  %1327 = vmatpush1.msra.mxu0 1.0
  %1328 = vmatprep.subr.mxu0 0.0
  %1329 = vmatpush1.msra.mxu0 1.0
  %1330 = vmatprep.subr.mxu0 0.0
  %1331 = vmatpush1.msra.mxu0 1.0
  %1332 = vmatprep.subr.mxu0 0.0
  %1333 = vmatpush1.msra.mxu0 %v923
  %1334 = vmatprep.subr.mxu0 0.0
  %1335 = vmatpush1.msra.mxu0 0.0
  %1336 = vmatprep.subr.mxu0 0.0
  %1337 = vmatpush1.msra.mxu0 0.0
  %1338 = vmatprep.subr.mxu0 0.0
  %1339 = vmatpush1.msra.mxu0 0.0
  %1340 = vmatprep.subr.mxu0 0.0
  %1341 = vmatpush1.msra.mxu0 0.0
  %1342 = vmatprep.subr.mxu0 0.0
  %1343 = vmatpush1.msra.mxu0 0.0
  %1344 = vmatprep.subr.mxu0 0.0
  %1345 = vmatpush1.msra.mxu0 0.0
  %1346 = vmatprep.subr.mxu0 0.0
  %1347 = vmatpush1.msra.mxu0 0.0
  %1348 = vmatprep.subr.mxu0 0.0
  %1349 = vmatpush1.msra.mxu0 0.0
  %1350 = vmatprep.subr.mxu0 0.0
  %1351 = vmatpush1.msra.mxu0 0.0
  %1352 = vmatprep.subr.mxu0 0.0
  %1353 = vmatpush1.msra.mxu0 0.0
  %1354 = vmatprep.subr.mxu0 0.0
  %1355 = vmatpush1.msra.mxu0 0.0
  %1356 = vmatprep.subr.mxu0 0.0
  %1357 = vmatpush1.msra.mxu0 0.0
  %1358 = vmatprep.subr.mxu0 0.0
  %1359 = vmatpush1.msra.mxu0 0.0
  %1360 = vmatprep.subr.mxu0 0.0
  %1361 = vmatpush1.msra.mxu0 0.0
  %1362 = vmatprep.subr.mxu0 0.0
  %1363 = vmatpush1.msra.mxu0 0.0
  %1364 = vmatprep.subr.mxu0 0.0
  %1365 = vmatpush1.msra.mxu0 0.0
  %1366 = vmatprep.subr.mxu0 0.0
  %1367 = vmatpush1.msra.mxu0 0.0
  %1368 = vmatprep.subr.mxu0 0.0
  %1369 = vmatpush1.msra.mxu0 0.0
  %1370 = vmatprep.subr.mxu0 0.0
  %1371 = vmatpush1.msra.mxu0 0.0
  %1372 = vmatprep.subr.mxu0 0.0
  %1373 = vmatpush1.msra.mxu0 0.0
  %1374 = vmatprep.subr.mxu0 0.0
  %1375 = vmatpush1.msra.mxu0 0.0
  %1376 = vmatprep.subr.mxu0 0.0
  %1377 = vmatpush1.msra.mxu0 0.0
  %1378 = vmatprep.subr.mxu0 0.0
  %1379 = vmatpush1.msra.mxu0 0.0
  %1380 = vmatprep.subr.mxu0 0.0
  %1381 = vmatpush1.msra.mxu0 0.0
  %1382 = vmatprep.subr.mxu0 0.0
  %1383 = vmatpush1.msra.mxu0 0.0
  %1384 = vmatprep.mubr.f32.mxu0 0.0
  %1385 = vmatmul.mubr.f32.gmra.mrb[0].mxu0 %v1309
  %v1386 = vpop.f32.mrb[0].mxu0
  %v1387 = vadd.f32 0.0, %v1386
  %v1388 = vpop.f32.mrb[0].mxu0
  %1389 = vmatprep.mubr.f32.mxu0 0.0
  %1390 = vmatmul.mubr.f32.gmra.mrb[0].mxu0 %v1312
  %v1391 = vpop.f32.mrb[0].mxu0
  %v1392 = vadd.f32 0.0, %v1391
  %v1393 = vpop.f32.mrb[0].mxu0
  %1394 = vmatprep.mubr.f32.mxu0 0.0
  %1395 = vmatmul.mubr.f32.gmra.mrb[0].mxu0 %v1315
  %v1396 = vpop.f32.mrb[0].mxu0
  %v1397 = vadd.f32 0.0, %v1396
  %v1398 = vpop.f32.mrb[0].mxu0
  %1399 = vmatprep.mubr.f32.mxu0 0.0
  %1400 = vmatmul.mubr.f32.gmra.mrb[0].mxu0 %v1318
  %v1401 = vpop.f32.mrb[0].mxu0
  %v1402 = vadd.f32 0.0, %v1401
  %v1403 = vpop.f32.mrb[0].mxu0
  %1404 = vdwg.mxu0
  %v1405 = vmul.f32 %v1387, 0.020408163
  %v1406 = vmul.f32 %v1392, 0.020408163
  %v1407 = vmul.f32 %v1397, 0.020408163
  %v1408 = vmul.f32 %v1402, 0.020408163
  %v1409 = vadd.f32 %v1405, 1e-05
  %v1410 = vadd.f32 %v1406, 1e-05
  %v1411 = vadd.f32 %v1407, 1e-05
  %v1412 = vadd.f32 %v1408, 1e-05
  %v1413 = vrsqrt.pop %v1409
  %v1414 = vrsqrt.pop %v1410
  %v1415 = vrsqrt.pop %v1411
  %v1416 = vrsqrt.pop %v1412
  %v1417 = vld [vmem:[%s2 + $0x200] sm:$0xff]
  %v1418 = vld [vmem:[%s2 + $0x208] sm:$0xff]
  %v1419 = vld [vmem:[%s2 + $0x210] sm:$0xff]
  %v1420 = vld [vmem:[%s2 + $0x218] sm:$0xff]
  %1422 = vset.pattern.permute.xlu0 0
  %1423 = vperm.xlu0 %1422, %v1417
  %v1424 = vpop.permute.xlu0 %1423
  %1427 = vset.pattern.permute.xlu0 0
  %1428 = vperm.xlu0 %1427, %v1418
  %v1429 = vpop.permute.xlu0 %1428
  %1432 = vset.pattern.permute.xlu0 0
  %1433 = vperm.xlu0 %1432, %v1419
  %v1434 = vpop.permute.xlu0 %1433
  %1437 = vset.pattern.permute.xlu0 0
  %1438 = vperm.xlu0 %1437, %v1420
  %v1439 = vpop.permute.xlu0 %1438
  %v1441 = vmul.f32 %v1413, %v1424
  %v1442 = vmul.f32 %v1414, %v1429
  %v1443 = vmul.f32 %v1415, %v1434
  %v1444 = vmul.f32 %v1416, %v1439
  %v1445 = vmul.f32 %v1300, %v1441
  %v1446 = vmul.f32 %v1301, %v1442
  %v1447 = vmul.f32 %v1302, %v1443
  %v1448 = vmul.f32 %v1303, %v1444
  %v1449 = vld [vmem:[%s3 + $0x200] sm:$0xff]
  %v1450 = vld [vmem:[%s3 + $0x208] sm:$0xff]
  %v1451 = vld [vmem:[%s3 + $0x210] sm:$0xff]
  %v1452 = vld [vmem:[%s3 + $0x218] sm:$0xff]
  %1454 = vset.pattern.permute.xlu0 0
  %1455 = vperm.xlu0 %1454, %v1449
  %v1456 = vpop.permute.xlu0 %1455
  %1459 = vset.pattern.permute.xlu0 0
  %1460 = vperm.xlu0 %1459, %v1450
  %v1461 = vpop.permute.xlu0 %1460
  %1464 = vset.pattern.permute.xlu0 0
  %1465 = vperm.xlu0 %1464, %v1451
  %v1466 = vpop.permute.xlu0 %1465
  %1469 = vset.pattern.permute.xlu0 0
  %1470 = vperm.xlu0 %1469, %v1452
  %v1471 = vpop.permute.xlu0 %1470
  %v1473 = vadd.f32 %v1445, %v1456
  %v1474 = vadd.f32 %v1446, %v1461
  %v1475 = vadd.f32 %v1447, %v1466
  %v1476 = vadd.f32 %v1448, %v1471
  %1477 = vst.msk [vmem:[%s18 + $0x200] sm:$0xff] %vm908, %v1473
  %1478 = vst.msk [vmem:[%s18 + $0x208] sm:$0xff] %vm908, %v1474
  %1479 = vst.msk [vmem:[%s18 + $0x210] sm:$0xff] %vm908, %v1475
  %1480 = vst.msk [vmem:[%s18 + $0x218] sm:$0xff] %vm908, %v1476
  %v1481 = vld [vmem:[%s7] sm:$0xff]
  %v1482 = vld [vmem:[%s7 + $0x8] sm:$0xff]
  %v1483 = vld [vmem:[%s7 + $0x10] sm:$0xff]
  %v1484 = vld [vmem:[%s7 + $0x18] sm:$0xff]
  %v1486 = vsel %vm908, %v1481, 0
  %v1489 = vsel %vm908, %v1482, 0
  %v1492 = vsel %vm908, %v1483, 0
  %v1495 = vsel %vm908, %v1484, 0
  %1497 = vmatprep.subr.mxu0 0.0
  %1498 = vmatpush1.msra.mxu0 1.0
  %1499 = vmatprep.subr.mxu0 0.0
  %1500 = vmatpush1.msra.mxu0 1.0
  %1501 = vmatprep.subr.mxu0 0.0
  %1502 = vmatpush1.msra.mxu0 1.0
  %1503 = vmatprep.subr.mxu0 0.0
  %1504 = vmatpush1.msra.mxu0 1.0
  %1505 = vmatprep.subr.mxu0 0.0
  %1506 = vmatpush1.msra.mxu0 1.0
  %1507 = vmatprep.subr.mxu0 0.0
  %1508 = vmatpush1.msra.mxu0 1.0
  %1509 = vmatprep.subr.mxu0 0.0
  %1510 = vmatpush1.msra.mxu0 %v923
  %1511 = vmatprep.subr.mxu0 0.0
  %1512 = vmatpush1.msra.mxu0 0.0
  %1513 = vmatprep.subr.mxu0 0.0
  %1514 = vmatpush1.msra.mxu0 0.0
  %1515 = vmatprep.subr.mxu0 0.0
  %1516 = vmatpush1.msra.mxu0 0.0
  %1517 = vmatprep.subr.mxu0 0.0
  %1518 = vmatpush1.msra.mxu0 0.0
  %1519 = vmatprep.subr.mxu0 0.0
  %1520 = vmatpush1.msra.mxu0 0.0
  %1521 = vmatprep.subr.mxu0 0.0
  %1522 = vmatpush1.msra.mxu0 0.0
  %1523 = vmatprep.subr.mxu0 0.0
  %1524 = vmatpush1.msra.mxu0 0.0
  %1525 = vmatprep.subr.mxu0 0.0
  %1526 = vmatpush1.msra.mxu0 0.0
  %1527 = vmatprep.subr.mxu0 0.0
  %1528 = vmatpush1.msra.mxu0 0.0
  %1529 = vmatprep.subr.mxu0 0.0
  %1530 = vmatpush1.msra.mxu0 0.0
  %1531 = vmatprep.subr.mxu0 0.0
  %1532 = vmatpush1.msra.mxu0 0.0
  %1533 = vmatprep.subr.mxu0 0.0
  %1534 = vmatpush1.msra.mxu0 0.0
  %1535 = vmatprep.subr.mxu0 0.0
  %1536 = vmatpush1.msra.mxu0 0.0
  %1537 = vmatprep.subr.mxu0 0.0
  %1538 = vmatpush1.msra.mxu0 0.0
  %1539 = vmatprep.subr.mxu0 0.0
  %1540 = vmatpush1.msra.mxu0 0.0
  %1541 = vmatprep.subr.mxu0 0.0
  %1542 = vmatpush1.msra.mxu0 0.0
  %1543 = vmatprep.subr.mxu0 0.0
  %1544 = vmatpush1.msra.mxu0 0.0
  %1545 = vmatprep.subr.mxu0 0.0
  %1546 = vmatpush1.msra.mxu0 0.0
  %1547 = vmatprep.subr.mxu0 0.0
  %1548 = vmatpush1.msra.mxu0 0.0
  %1549 = vmatprep.subr.mxu0 0.0
  %1550 = vmatpush1.msra.mxu0 0.0
  %1551 = vmatprep.subr.mxu0 0.0
  %1552 = vmatpush1.msra.mxu0 0.0
  %1553 = vmatprep.subr.mxu0 0.0
  %1554 = vmatpush1.msra.mxu0 0.0
  %1555 = vmatprep.subr.mxu0 0.0
  %1556 = vmatpush1.msra.mxu0 0.0
  %1557 = vmatprep.subr.mxu0 0.0
  %1558 = vmatpush1.msra.mxu0 0.0
  %1559 = vmatprep.subr.mxu0 0.0
  %1560 = vmatpush1.msra.mxu0 0.0
  %1561 = vmatprep.mubr.f32.mxu0 0.0
  %1562 = vmatmul.mubr.f32.gmra.mrb[0].mxu0 %v1486
  %v1563 = vpop.f32.mrb[0].mxu0
  %v1564 = vadd.f32 0.0, %v1563
  %v1565 = vpop.f32.mrb[0].mxu0
  %1566 = vmatprep.mubr.f32.mxu0 0.0
  %1567 = vmatmul.mubr.f32.gmra.mrb[0].mxu0 %v1489
  %v1568 = vpop.f32.mrb[0].mxu0
  %v1569 = vadd.f32 0.0, %v1568
  %v1570 = vpop.f32.mrb[0].mxu0
  %1571 = vmatprep.mubr.f32.mxu0 0.0
  %1572 = vmatmul.mubr.f32.gmra.mrb[0].mxu0 %v1492
  %v1573 = vpop.f32.mrb[0].mxu0
  %v1574 = vadd.f32 0.0, %v1573
  %v1575 = vpop.f32.mrb[0].mxu0
  %1576 = vmatprep.mubr.f32.mxu0 0.0
  %1577 = vmatmul.mubr.f32.gmra.mrb[0].mxu0 %v1495
  %v1578 = vpop.f32.mrb[0].mxu0
  %v1579 = vadd.f32 0.0, %v1578
  %v1580 = vpop.f32.mrb[0].mxu0
  %1581 = vdwg.mxu0
  %v1582 = vmul.f32 %v1564, 0.020408163
  %v1583 = vmul.f32 %v1569, 0.020408163
  %v1584 = vmul.f32 %v1574, 0.020408163
  %v1585 = vmul.f32 %v1579, 0.020408163
  %v1586 = vsub.f32 %v1481, %v1582
  %v1587 = vsub.f32 %v1482, %v1583
  %v1588 = vsub.f32 %v1483, %v1584
  %v1589 = vsub.f32 %v1484, %v1585
  %v1590 = vmul.f32 %v1586, %v1586
  %v1591 = vmul.f32 %v1587, %v1587
  %v1592 = vmul.f32 %v1588, %v1588
  %v1593 = vmul.f32 %v1589, %v1589
  %v1595 = vsel %vm908, %v1590, 0
  %v1598 = vsel %vm908, %v1591, 0
  %v1601 = vsel %vm908, %v1592, 0
  %v1604 = vsel %vm908, %v1593, 0
  %1606 = vmatprep.subr.mxu0 0.0
  %1607 = vmatpush1.msra.mxu0 1.0
  %1608 = vmatprep.subr.mxu0 0.0
  %1609 = vmatpush1.msra.mxu0 1.0
  %1610 = vmatprep.subr.mxu0 0.0
  %1611 = vmatpush1.msra.mxu0 1.0
  %1612 = vmatprep.subr.mxu0 0.0
  %1613 = vmatpush1.msra.mxu0 1.0
  %1614 = vmatprep.subr.mxu0 0.0
  %1615 = vmatpush1.msra.mxu0 1.0
  %1616 = vmatprep.subr.mxu0 0.0
  %1617 = vmatpush1.msra.mxu0 1.0
  %1618 = vmatprep.subr.mxu0 0.0
  %1619 = vmatpush1.msra.mxu0 %v923
  %1620 = vmatprep.subr.mxu0 0.0
  %1621 = vmatpush1.msra.mxu0 0.0
  %1622 = vmatprep.subr.mxu0 0.0
  %1623 = vmatpush1.msra.mxu0 0.0
  %1624 = vmatprep.subr.mxu0 0.0
  %1625 = vmatpush1.msra.mxu0 0.0
  %1626 = vmatprep.subr.mxu0 0.0
  %1627 = vmatpush1.msra.mxu0 0.0
  %1628 = vmatprep.subr.mxu0 0.0
  %1629 = vmatpush1.msra.mxu0 0.0
  %1630 = vmatprep.subr.mxu0 0.0
  %1631 = vmatpush1.msra.mxu0 0.0
  %1632 = vmatprep.subr.mxu0 0.0
  %1633 = vmatpush1.msra.mxu0 0.0
  %1634 = vmatprep.subr.mxu0 0.0
  %1635 = vmatpush1.msra.mxu0 0.0
  %1636 = vmatprep.subr.mxu0 0.0
  %1637 = vmatpush1.msra.mxu0 0.0
  %1638 = vmatprep.subr.mxu0 0.0
  %1639 = vmatpush1.msra.mxu0 0.0
  %1640 = vmatprep.subr.mxu0 0.0
  %1641 = vmatpush1.msra.mxu0 0.0
  %1642 = vmatprep.subr.mxu0 0.0
  %1643 = vmatpush1.msra.mxu0 0.0
  %1644 = vmatprep.subr.mxu0 0.0
  %1645 = vmatpush1.msra.mxu0 0.0
  %1646 = vmatprep.subr.mxu0 0.0
  %1647 = vmatpush1.msra.mxu0 0.0
  %1648 = vmatprep.subr.mxu0 0.0
  %1649 = vmatpush1.msra.mxu0 0.0
  %1650 = vmatprep.subr.mxu0 0.0
  %1651 = vmatpush1.msra.mxu0 0.0
  %1652 = vmatprep.subr.mxu0 0.0
  %1653 = vmatpush1.msra.mxu0 0.0
  %1654 = vmatprep.subr.mxu0 0.0
  %1655 = vmatpush1.msra.mxu0 0.0
  %1656 = vmatprep.subr.mxu0 0.0
  %1657 = vmatpush1.msra.mxu0 0.0
  %1658 = vmatprep.subr.mxu0 0.0
  %1659 = vmatpush1.msra.mxu0 0.0
  %1660 = vmatprep.subr.mxu0 0.0
  %1661 = vmatpush1.msra.mxu0 0.0
  %1662 = vmatprep.subr.mxu0 0.0
  %1663 = vmatpush1.msra.mxu0 0.0
  %1664 = vmatprep.subr.mxu0 0.0
  %1665 = vmatpush1.msra.mxu0 0.0
  %1666 = vmatprep.subr.mxu0 0.0
  %1667 = vmatpush1.msra.mxu0 0.0
  %1668 = vmatprep.subr.mxu0 0.0
  %1669 = vmatpush1.msra.mxu0 0.0
  %1670 = vmatprep.mubr.f32.mxu0 0.0
  %1671 = vmatmul.mubr.f32.gmra.mrb[0].mxu0 %v1595
  %v1672 = vpop.f32.mrb[0].mxu0
  %v1673 = vadd.f32 0.0, %v1672
  %v1674 = vpop.f32.mrb[0].mxu0
  %1675 = vmatprep.mubr.f32.mxu0 0.0
  %1676 = vmatmul.mubr.f32.gmra.mrb[0].mxu0 %v1598
  %v1677 = vpop.f32.mrb[0].mxu0
  %v1678 = vadd.f32 0.0, %v1677
  %v1679 = vpop.f32.mrb[0].mxu0
  %1680 = vmatprep.mubr.f32.mxu0 0.0
  %1681 = vmatmul.mubr.f32.gmra.mrb[0].mxu0 %v1601
  %v1682 = vpop.f32.mrb[0].mxu0
  %v1683 = vadd.f32 0.0, %v1682
  %v1684 = vpop.f32.mrb[0].mxu0
  %1685 = vmatprep.mubr.f32.mxu0 0.0
  %1686 = vmatmul.mubr.f32.gmra.mrb[0].mxu0 %v1604
  %v1687 = vpop.f32.mrb[0].mxu0
  %v1688 = vadd.f32 0.0, %v1687
  %v1689 = vpop.f32.mrb[0].mxu0
  %1690 = vdwg.mxu0
  %v1691 = vmul.f32 %v1673, 0.020408163
  %v1692 = vmul.f32 %v1678, 0.020408163
  %v1693 = vmul.f32 %v1683, 0.020408163
  %v1694 = vmul.f32 %v1688, 0.020408163
  %v1695 = vadd.f32 %v1691, 1e-05
  %v1696 = vadd.f32 %v1692, 1e-05
  %v1697 = vadd.f32 %v1693, 1e-05
  %v1698 = vadd.f32 %v1694, 1e-05
  %v1699 = vrsqrt.pop %v1695
  %v1700 = vrsqrt.pop %v1696
  %v1701 = vrsqrt.pop %v1697
  %v1702 = vrsqrt.pop %v1698
  %v1703 = vld [vmem:[%s2 + $0x220] sm:$0xff]
  %v1704 = vld [vmem:[%s2 + $0x228] sm:$0xff]
  %v1705 = vld [vmem:[%s2 + $0x230] sm:$0xff]
  %v1706 = vld [vmem:[%s2 + $0x238] sm:$0xff]
  %1708 = vset.pattern.permute.xlu0 0
  %1709 = vperm.xlu0 %1708, %v1703
  %v1710 = vpop.permute.xlu0 %1709
  %1713 = vset.pattern.permute.xlu0 0
  %1714 = vperm.xlu0 %1713, %v1704
  %v1715 = vpop.permute.xlu0 %1714
  %1718 = vset.pattern.permute.xlu0 0
  %1719 = vperm.xlu0 %1718, %v1705
  %v1720 = vpop.permute.xlu0 %1719
  %1723 = vset.pattern.permute.xlu0 0
  %1724 = vperm.xlu0 %1723, %v1706
  %v1725 = vpop.permute.xlu0 %1724
  %v1727 = vmul.f32 %v1699, %v1710
  %v1728 = vmul.f32 %v1700, %v1715
  %v1729 = vmul.f32 %v1701, %v1720
  %v1730 = vmul.f32 %v1702, %v1725
  %v1731 = vmul.f32 %v1586, %v1727
  %v1732 = vmul.f32 %v1587, %v1728
  %v1733 = vmul.f32 %v1588, %v1729
  %v1734 = vmul.f32 %v1589, %v1730
  %v1735 = vld [vmem:[%s3 + $0x220] sm:$0xff]
  %v1736 = vld [vmem:[%s3 + $0x228] sm:$0xff]
  %v1737 = vld [vmem:[%s3 + $0x230] sm:$0xff]
  %v1738 = vld [vmem:[%s3 + $0x238] sm:$0xff]
  %1740 = vset.pattern.permute.xlu0 0
  %1741 = vperm.xlu0 %1740, %v1735
  %v1742 = vpop.permute.xlu0 %1741
  %1745 = vset.pattern.permute.xlu0 0
  %1746 = vperm.xlu0 %1745, %v1736
  %v1747 = vpop.permute.xlu0 %1746
  %1750 = vset.pattern.permute.xlu0 0
  %1751 = vperm.xlu0 %1750, %v1737
  %v1752 = vpop.permute.xlu0 %1751
  %1755 = vset.pattern.permute.xlu0 0
  %1756 = vperm.xlu0 %1755, %v1738
  %v1757 = vpop.permute.xlu0 %1756
  %v1759 = vadd.f32 %v1731, %v1742
  %v1760 = vadd.f32 %v1732, %v1747
  %v1761 = vadd.f32 %v1733, %v1752
  %v1762 = vadd.f32 %v1734, %v1757
  %1763 = vst.msk [vmem:[%s18 + $0x220] sm:$0xff] %vm908, %v1759
  %1764 = vst.msk [vmem:[%s18 + $0x228] sm:$0xff] %vm908, %v1760
  %1765 = vst.msk [vmem:[%s18 + $0x230] sm:$0xff] %vm908, %v1761
  %1766 = vst.msk [vmem:[%s18 + $0x238] sm:$0xff] %vm908, %v1762
  %v1767 = vld [vmem:[%s8] sm:$0xff]
  %v1768 = vld [vmem:[%s8 + $0x8] sm:$0xff]
  %v1769 = vld [vmem:[%s8 + $0x10] sm:$0xff]
  %v1770 = vld [vmem:[%s8 + $0x18] sm:$0xff]
  %v1772 = vsel %vm908, %v1767, 0
  %v1775 = vsel %vm908, %v1768, 0
  %v1778 = vsel %vm908, %v1769, 0
  %v1781 = vsel %vm908, %v1770, 0
  %1783 = vmatprep.subr.mxu0 0.0
  %1784 = vmatpush1.msra.mxu0 1.0
  %1785 = vmatprep.subr.mxu0 0.0
  %1786 = vmatpush1.msra.mxu0 1.0
  %1787 = vmatprep.subr.mxu0 0.0
  %1788 = vmatpush1.msra.mxu0 1.0
  %1789 = vmatprep.subr.mxu0 0.0
  %1790 = vmatpush1.msra.mxu0 1.0
  %1791 = vmatprep.subr.mxu0 0.0
  %1792 = vmatpush1.msra.mxu0 1.0
  %1793 = vmatprep.subr.mxu0 0.0
  %1794 = vmatpush1.msra.mxu0 1.0
  %1795 = vmatprep.subr.mxu0 0.0
  %1796 = vmatpush1.msra.mxu0 %v923
  %1797 = vmatprep.subr.mxu0 0.0
  %1798 = vmatpush1.msra.mxu0 0.0
  %1799 = vmatprep.subr.mxu0 0.0
  %1800 = vmatpush1.msra.mxu0 0.0
  %1801 = vmatprep.subr.mxu0 0.0
  %1802 = vmatpush1.msra.mxu0 0.0
  %1803 = vmatprep.subr.mxu0 0.0
  %1804 = vmatpush1.msra.mxu0 0.0
  %1805 = vmatprep.subr.mxu0 0.0
  %1806 = vmatpush1.msra.mxu0 0.0
  %1807 = vmatprep.subr.mxu0 0.0
  %1808 = vmatpush1.msra.mxu0 0.0
  %1809 = vmatprep.subr.mxu0 0.0
  %1810 = vmatpush1.msra.mxu0 0.0
  %1811 = vmatprep.subr.mxu0 0.0
  %1812 = vmatpush1.msra.mxu0 0.0
  %1813 = vmatprep.subr.mxu0 0.0
  %1814 = vmatpush1.msra.mxu0 0.0
  %1815 = vmatprep.subr.mxu0 0.0
  %1816 = vmatpush1.msra.mxu0 0.0
  %1817 = vmatprep.subr.mxu0 0.0
  %1818 = vmatpush1.msra.mxu0 0.0
  %1819 = vmatprep.subr.mxu0 0.0
  %1820 = vmatpush1.msra.mxu0 0.0
  %1821 = vmatprep.subr.mxu0 0.0
  %1822 = vmatpush1.msra.mxu0 0.0
  %1823 = vmatprep.subr.mxu0 0.0
  %1824 = vmatpush1.msra.mxu0 0.0
  %1825 = vmatprep.subr.mxu0 0.0
  %1826 = vmatpush1.msra.mxu0 0.0
  %1827 = vmatprep.subr.mxu0 0.0
  %1828 = vmatpush1.msra.mxu0 0.0
  %1829 = vmatprep.subr.mxu0 0.0
  %1830 = vmatpush1.msra.mxu0 0.0
  %1831 = vmatprep.subr.mxu0 0.0
  %1832 = vmatpush1.msra.mxu0 0.0
  %1833 = vmatprep.subr.mxu0 0.0
  %1834 = vmatpush1.msra.mxu0 0.0
  %1835 = vmatprep.subr.mxu0 0.0
  %1836 = vmatpush1.msra.mxu0 0.0
  %1837 = vmatprep.subr.mxu0 0.0
  %1838 = vmatpush1.msra.mxu0 0.0
  %1839 = vmatprep.subr.mxu0 0.0
  %1840 = vmatpush1.msra.mxu0 0.0
  %1841 = vmatprep.subr.mxu0 0.0
  %1842 = vmatpush1.msra.mxu0 0.0
  %1843 = vmatprep.subr.mxu0 0.0
  %1844 = vmatpush1.msra.mxu0 0.0
  %1845 = vmatprep.subr.mxu0 0.0
  %1846 = vmatpush1.msra.mxu0 0.0
  %1847 = vmatprep.mubr.f32.mxu0 0.0
  %1848 = vmatmul.mubr.f32.gmra.mrb[0].mxu0 %v1772
  %v1849 = vpop.f32.mrb[0].mxu0
  %v1850 = vadd.f32 0.0, %v1849
  %v1851 = vpop.f32.mrb[0].mxu0
  %1852 = vmatprep.mubr.f32.mxu0 0.0
  %1853 = vmatmul.mubr.f32.gmra.mrb[0].mxu0 %v1775
  %v1854 = vpop.f32.mrb[0].mxu0
  %v1855 = vadd.f32 0.0, %v1854
  %v1856 = vpop.f32.mrb[0].mxu0
  %1857 = vmatprep.mubr.f32.mxu0 0.0
  %1858 = vmatmul.mubr.f32.gmra.mrb[0].mxu0 %v1778
  %v1859 = vpop.f32.mrb[0].mxu0
  %v1860 = vadd.f32 0.0, %v1859
  %v1861 = vpop.f32.mrb[0].mxu0
  %1862 = vmatprep.mubr.f32.mxu0 0.0
  %1863 = vmatmul.mubr.f32.gmra.mrb[0].mxu0 %v1781
  %v1864 = vpop.f32.mrb[0].mxu0
  %v1865 = vadd.f32 0.0, %v1864
  %v1866 = vpop.f32.mrb[0].mxu0
  %1867 = vdwg.mxu0
  %v1868 = vmul.f32 %v1850, 0.020408163
  %v1869 = vmul.f32 %v1855, 0.020408163
  %v1870 = vmul.f32 %v1860, 0.020408163
  %v1871 = vmul.f32 %v1865, 0.020408163
  %v1872 = vsub.f32 %v1767, %v1868
  %v1873 = vsub.f32 %v1768, %v1869
  %v1874 = vsub.f32 %v1769, %v1870
  %v1875 = vsub.f32 %v1770, %v1871
  %v1876 = vmul.f32 %v1872, %v1872
  %v1877 = vmul.f32 %v1873, %v1873
  %v1878 = vmul.f32 %v1874, %v1874
  %v1879 = vmul.f32 %v1875, %v1875
  %v1881 = vsel %vm908, %v1876, 0
  %v1884 = vsel %vm908, %v1877, 0
  %v1887 = vsel %vm908, %v1878, 0
  %v1890 = vsel %vm908, %v1879, 0
  %1892 = vmatprep.subr.mxu0 0.0
  %1893 = vmatpush1.msra.mxu0 1.0
  %1894 = vmatprep.subr.mxu0 0.0
  %1895 = vmatpush1.msra.mxu0 1.0
  %1896 = vmatprep.subr.mxu0 0.0
  %1897 = vmatpush1.msra.mxu0 1.0
  %1898 = vmatprep.subr.mxu0 0.0
  %1899 = vmatpush1.msra.mxu0 1.0
  %1900 = vmatprep.subr.mxu0 0.0
  %1901 = vmatpush1.msra.mxu0 1.0
  %1902 = vmatprep.subr.mxu0 0.0
  %1903 = vmatpush1.msra.mxu0 1.0
  %1904 = vmatprep.subr.mxu0 0.0
  %1905 = vmatpush1.msra.mxu0 %v923
  %1906 = vmatprep.subr.mxu0 0.0
  %1907 = vmatpush1.msra.mxu0 0.0
  %1908 = vmatprep.subr.mxu0 0.0
  %1909 = vmatpush1.msra.mxu0 0.0
  %1910 = vmatprep.subr.mxu0 0.0
  %1911 = vmatpush1.msra.mxu0 0.0
  %1912 = vmatprep.subr.mxu0 0.0
  %1913 = vmatpush1.msra.mxu0 0.0
  %1914 = vmatprep.subr.mxu0 0.0
  %1915 = vmatpush1.msra.mxu0 0.0
  %1916 = vmatprep.subr.mxu0 0.0
  %1917 = vmatpush1.msra.mxu0 0.0
  %1918 = vmatprep.subr.mxu0 0.0
  %1919 = vmatpush1.msra.mxu0 0.0
  %1920 = vmatprep.subr.mxu0 0.0
  %1921 = vmatpush1.msra.mxu0 0.0
  %1922 = vmatprep.subr.mxu0 0.0
  %1923 = vmatpush1.msra.mxu0 0.0
  %1924 = vmatprep.subr.mxu0 0.0
  %1925 = vmatpush1.msra.mxu0 0.0
  %1926 = vmatprep.subr.mxu0 0.0
  %1927 = vmatpush1.msra.mxu0 0.0
  %1928 = vmatprep.subr.mxu0 0.0
  %1929 = vmatpush1.msra.mxu0 0.0
  %1930 = vmatprep.subr.mxu0 0.0
  %1931 = vmatpush1.msra.mxu0 0.0
  %1932 = vmatprep.subr.mxu0 0.0
  %1933 = vmatpush1.msra.mxu0 0.0
  %1934 = vmatprep.subr.mxu0 0.0
  %1935 = vmatpush1.msra.mxu0 0.0
  %1936 = vmatprep.subr.mxu0 0.0
  %1937 = vmatpush1.msra.mxu0 0.0
  %1938 = vmatprep.subr.mxu0 0.0
  %1939 = vmatpush1.msra.mxu0 0.0
  %1940 = vmatprep.subr.mxu0 0.0
  %1941 = vmatpush1.msra.mxu0 0.0
  %1942 = vmatprep.subr.mxu0 0.0
  %1943 = vmatpush1.msra.mxu0 0.0
  %1944 = vmatprep.subr.mxu0 0.0
  %1945 = vmatpush1.msra.mxu0 0.0
  %1946 = vmatprep.subr.mxu0 0.0
  %1947 = vmatpush1.msra.mxu0 0.0
  %1948 = vmatprep.subr.mxu0 0.0
  %1949 = vmatpush1.msra.mxu0 0.0
  %1950 = vmatprep.subr.mxu0 0.0
  %1951 = vmatpush1.msra.mxu0 0.0
  %1952 = vmatprep.subr.mxu0 0.0
  %1953 = vmatpush1.msra.mxu0 0.0
  %1954 = vmatprep.subr.mxu0 0.0
  %1955 = vmatpush1.msra.mxu0 0.0
  %1956 = vmatprep.mubr.f32.mxu0 0.0
  %1957 = vmatmul.mubr.f32.gmra.mrb[0].mxu0 %v1881
  %v1958 = vpop.f32.mrb[0].mxu0
  %v1959 = vadd.f32 0.0, %v1958
  %v1960 = vpop.f32.mrb[0].mxu0
  %1961 = vmatprep.mubr.f32.mxu0 0.0
  %1962 = vmatmul.mubr.f32.gmra.mrb[0].mxu0 %v1884
  %v1963 = vpop.f32.mrb[0].mxu0
  %v1964 = vadd.f32 0.0, %v1963
  %v1965 = vpop.f32.mrb[0].mxu0
  %1966 = vmatprep.mubr.f32.mxu0 0.0
  %1967 = vmatmul.mubr.f32.gmra.mrb[0].mxu0 %v1887
  %v1968 = vpop.f32.mrb[0].mxu0
  %v1969 = vadd.f32 0.0, %v1968
  %v1970 = vpop.f32.mrb[0].mxu0
  %1971 = vmatprep.mubr.f32.mxu0 0.0
  %1972 = vmatmul.mubr.f32.gmra.mrb[0].mxu0 %v1890
  %v1973 = vpop.f32.mrb[0].mxu0
  %v1974 = vadd.f32 0.0, %v1973
  %v1975 = vpop.f32.mrb[0].mxu0
  %1976 = vdwg.mxu0
  %v1977 = vmul.f32 %v1959, 0.020408163
  %v1978 = vmul.f32 %v1964, 0.020408163
  %v1979 = vmul.f32 %v1969, 0.020408163
  %v1980 = vmul.f32 %v1974, 0.020408163
  %v1981 = vadd.f32 %v1977, 1e-05
  %v1982 = vadd.f32 %v1978, 1e-05
  %v1983 = vadd.f32 %v1979, 1e-05
  %v1984 = vadd.f32 %v1980, 1e-05
  %v1985 = vrsqrt.pop %v1981
  %v1986 = vrsqrt.pop %v1982
  %v1987 = vrsqrt.pop %v1983
  %v1988 = vrsqrt.pop %v1984
  %v1989 = vld [vmem:[%s2 + $0x240] sm:$0xff]
  %v1990 = vld [vmem:[%s2 + $0x248] sm:$0xff]
  %v1991 = vld [vmem:[%s2 + $0x250] sm:$0xff]
  %v1992 = vld [vmem:[%s2 + $0x258] sm:$0xff]
  %1994 = vset.pattern.permute.xlu0 0
  %1995 = vperm.xlu0 %1994, %v1989
  %v1996 = vpop.permute.xlu0 %1995
  %1999 = vset.pattern.permute.xlu0 0
  %2000 = vperm.xlu0 %1999, %v1990
  %v2001 = vpop.permute.xlu0 %2000
  %2004 = vset.pattern.permute.xlu0 0
  %2005 = vperm.xlu0 %2004, %v1991
  %v2006 = vpop.permute.xlu0 %2005
  %2009 = vset.pattern.permute.xlu0 0
  %2010 = vperm.xlu0 %2009, %v1992
  %v2011 = vpop.permute.xlu0 %2010
  %v2013 = vmul.f32 %v1985, %v1996
  %v2014 = vmul.f32 %v1986, %v2001
  %v2015 = vmul.f32 %v1987, %v2006
  %v2016 = vmul.f32 %v1988, %v2011
  %v2017 = vmul.f32 %v1872, %v2013
  %v2018 = vmul.f32 %v1873, %v2014
  %v2019 = vmul.f32 %v1874, %v2015
  %v2020 = vmul.f32 %v1875, %v2016
  %v2021 = vld [vmem:[%s3 + $0x240] sm:$0xff]
  %v2022 = vld [vmem:[%s3 + $0x248] sm:$0xff]
  %v2023 = vld [vmem:[%s3 + $0x250] sm:$0xff]
  %v2024 = vld [vmem:[%s3 + $0x258] sm:$0xff]
  %2026 = vset.pattern.permute.xlu0 0
  %2027 = vperm.xlu0 %2026, %v2021
  %v2028 = vpop.permute.xlu0 %2027
  %2031 = vset.pattern.permute.xlu0 0
  %2032 = vperm.xlu0 %2031, %v2022
  %v2033 = vpop.permute.xlu0 %2032
  %2036 = vset.pattern.permute.xlu0 0
  %2037 = vperm.xlu0 %2036, %v2023
  %v2038 = vpop.permute.xlu0 %2037
  %2041 = vset.pattern.permute.xlu0 0
  %2042 = vperm.xlu0 %2041, %v2024
  %v2043 = vpop.permute.xlu0 %2042
  %v2045 = vadd.f32 %v2017, %v2028
  %v2046 = vadd.f32 %v2018, %v2033
  %v2047 = vadd.f32 %v2019, %v2038
  %v2048 = vadd.f32 %v2020, %v2043
  %2049 = vst.msk [vmem:[%s18 + $0x240] sm:$0xff] %vm908, %v2045
  %2050 = vst.msk [vmem:[%s18 + $0x248] sm:$0xff] %vm908, %v2046
  %2051 = vst.msk [vmem:[%s18 + $0x250] sm:$0xff] %vm908, %v2047
  %2052 = vst.msk [vmem:[%s18 + $0x258] sm:$0xff] %vm908, %v2048
  %v2053 = vld [vmem:[%s9] sm:$0xff]
  %v2054 = vld [vmem:[%s9 + $0x8] sm:$0xff]
  %v2055 = vld [vmem:[%s9 + $0x10] sm:$0xff]
  %v2056 = vld [vmem:[%s9 + $0x18] sm:$0xff]
  %v2058 = vsel %vm908, %v2053, 0
  %v2061 = vsel %vm908, %v2054, 0
  %v2064 = vsel %vm908, %v2055, 0
  %v2067 = vsel %vm908, %v2056, 0
  %2069 = vmatprep.subr.mxu0 0.0
  %2070 = vmatpush1.msra.mxu0 1.0
  %2071 = vmatprep.subr.mxu0 0.0
  %2072 = vmatpush1.msra.mxu0 1.0
  %2073 = vmatprep.subr.mxu0 0.0
  %2074 = vmatpush1.msra.mxu0 1.0
  %2075 = vmatprep.subr.mxu0 0.0
  %2076 = vmatpush1.msra.mxu0 1.0
  %2077 = vmatprep.subr.mxu0 0.0
  %2078 = vmatpush1.msra.mxu0 1.0
  %2079 = vmatprep.subr.mxu0 0.0
  %2080 = vmatpush1.msra.mxu0 1.0
  %2081 = vmatprep.subr.mxu0 0.0
  %2082 = vmatpush1.msra.mxu0 %v923
  %2083 = vmatprep.subr.mxu0 0.0
  %2084 = vmatpush1.msra.mxu0 0.0
  %2085 = vmatprep.subr.mxu0 0.0
  %2086 = vmatpush1.msra.mxu0 0.0
  %2087 = vmatprep.subr.mxu0 0.0
  %2088 = vmatpush1.msra.mxu0 0.0
  %2089 = vmatprep.subr.mxu0 0.0
  %2090 = vmatpush1.msra.mxu0 0.0
  %2091 = vmatprep.subr.mxu0 0.0
  %2092 = vmatpush1.msra.mxu0 0.0
  %2093 = vmatprep.subr.mxu0 0.0
  %2094 = vmatpush1.msra.mxu0 0.0
  %2095 = vmatprep.subr.mxu0 0.0
  %2096 = vmatpush1.msra.mxu0 0.0
  %2097 = vmatprep.subr.mxu0 0.0
  %2098 = vmatpush1.msra.mxu0 0.0
  %2099 = vmatprep.subr.mxu0 0.0
  %2100 = vmatpush1.msra.mxu0 0.0
  %2101 = vmatprep.subr.mxu0 0.0
  %2102 = vmatpush1.msra.mxu0 0.0
  %2103 = vmatprep.subr.mxu0 0.0
  %2104 = vmatpush1.msra.mxu0 0.0
  %2105 = vmatprep.subr.mxu0 0.0
  %2106 = vmatpush1.msra.mxu0 0.0
  %2107 = vmatprep.subr.mxu0 0.0
  %2108 = vmatpush1.msra.mxu0 0.0
  %2109 = vmatprep.subr.mxu0 0.0
  %2110 = vmatpush1.msra.mxu0 0.0
  %2111 = vmatprep.subr.mxu0 0.0
  %2112 = vmatpush1.msra.mxu0 0.0
  %2113 = vmatprep.subr.mxu0 0.0
  %2114 = vmatpush1.msra.mxu0 0.0
  %2115 = vmatprep.subr.mxu0 0.0
  %2116 = vmatpush1.msra.mxu0 0.0
  %2117 = vmatprep.subr.mxu0 0.0
  %2118 = vmatpush1.msra.mxu0 0.0
  %2119 = vmatprep.subr.mxu0 0.0
  %2120 = vmatpush1.msra.mxu0 0.0
  %2121 = vmatprep.subr.mxu0 0.0
  %2122 = vmatpush1.msra.mxu0 0.0
  %2123 = vmatprep.subr.mxu0 0.0
  %2124 = vmatpush1.msra.mxu0 0.0
  %2125 = vmatprep.subr.mxu0 0.0
  %2126 = vmatpush1.msra.mxu0 0.0
  %2127 = vmatprep.subr.mxu0 0.0
  %2128 = vmatpush1.msra.mxu0 0.0
  %2129 = vmatprep.subr.mxu0 0.0
  %2130 = vmatpush1.msra.mxu0 0.0
  %2131 = vmatprep.subr.mxu0 0.0
  %2132 = vmatpush1.msra.mxu0 0.0
  %2133 = vmatprep.mubr.f32.mxu0 0.0
  %2134 = vmatmul.mubr.f32.gmra.mrb[0].mxu0 %v2058
  %v2135 = vpop.f32.mrb[0].mxu0
  %v2136 = vadd.f32 0.0, %v2135
  %v2137 = vpop.f32.mrb[0].mxu0
  %2138 = vmatprep.mubr.f32.mxu0 0.0
  %2139 = vmatmul.mubr.f32.gmra.mrb[0].mxu0 %v2061
  %v2140 = vpop.f32.mrb[0].mxu0
  %v2141 = vadd.f32 0.0, %v2140
  %v2142 = vpop.f32.mrb[0].mxu0
  %2143 = vmatprep.mubr.f32.mxu0 0.0
  %2144 = vmatmul.mubr.f32.gmra.mrb[0].mxu0 %v2064
  %v2145 = vpop.f32.mrb[0].mxu0
  %v2146 = vadd.f32 0.0, %v2145
  %v2147 = vpop.f32.mrb[0].mxu0
  %2148 = vmatprep.mubr.f32.mxu0 0.0
  %2149 = vmatmul.mubr.f32.gmra.mrb[0].mxu0 %v2067
  %v2150 = vpop.f32.mrb[0].mxu0
  %v2151 = vadd.f32 0.0, %v2150
  %v2152 = vpop.f32.mrb[0].mxu0
  %2153 = vdwg.mxu0
  %v2154 = vmul.f32 %v2136, 0.020408163
  %v2155 = vmul.f32 %v2141, 0.020408163
  %v2156 = vmul.f32 %v2146, 0.020408163
  %v2157 = vmul.f32 %v2151, 0.020408163
  %v2158 = vsub.f32 %v2053, %v2154
  %v2159 = vsub.f32 %v2054, %v2155
  %v2160 = vsub.f32 %v2055, %v2156
  %v2161 = vsub.f32 %v2056, %v2157
  %v2162 = vmul.f32 %v2158, %v2158
  %v2163 = vmul.f32 %v2159, %v2159
  %v2164 = vmul.f32 %v2160, %v2160
  %v2165 = vmul.f32 %v2161, %v2161
  %v2167 = vsel %vm908, %v2162, 0
  %v2170 = vsel %vm908, %v2163, 0
  %v2173 = vsel %vm908, %v2164, 0
  %v2176 = vsel %vm908, %v2165, 0
  %2178 = vmatprep.subr.mxu0 0.0
  %2179 = vmatpush1.msra.mxu0 1.0
  %2180 = vmatprep.subr.mxu0 0.0
  %2181 = vmatpush1.msra.mxu0 1.0
  %2182 = vmatprep.subr.mxu0 0.0
  %2183 = vmatpush1.msra.mxu0 1.0
  %2184 = vmatprep.subr.mxu0 0.0
  %2185 = vmatpush1.msra.mxu0 1.0
  %2186 = vmatprep.subr.mxu0 0.0
  %2187 = vmatpush1.msra.mxu0 1.0
  %2188 = vmatprep.subr.mxu0 0.0
  %2189 = vmatpush1.msra.mxu0 1.0
  %2190 = vmatprep.subr.mxu0 0.0
  %2191 = vmatpush1.msra.mxu0 %v923
  %2192 = vmatprep.subr.mxu0 0.0
  %2193 = vmatpush1.msra.mxu0 0.0
  %2194 = vmatprep.subr.mxu0 0.0
  %2195 = vmatpush1.msra.mxu0 0.0
  %2196 = vmatprep.subr.mxu0 0.0
  %2197 = vmatpush1.msra.mxu0 0.0
  %2198 = vmatprep.subr.mxu0 0.0
  %2199 = vmatpush1.msra.mxu0 0.0
  %2200 = vmatprep.subr.mxu0 0.0
  %2201 = vmatpush1.msra.mxu0 0.0
  %2202 = vmatprep.subr.mxu0 0.0
  %2203 = vmatpush1.msra.mxu0 0.0
  %2204 = vmatprep.subr.mxu0 0.0
  %2205 = vmatpush1.msra.mxu0 0.0
  %2206 = vmatprep.subr.mxu0 0.0
  %2207 = vmatpush1.msra.mxu0 0.0
  %2208 = vmatprep.subr.mxu0 0.0
  %2209 = vmatpush1.msra.mxu0 0.0
  %2210 = vmatprep.subr.mxu0 0.0
  %2211 = vmatpush1.msra.mxu0 0.0
  %2212 = vmatprep.subr.mxu0 0.0
  %2213 = vmatpush1.msra.mxu0 0.0
  %2214 = vmatprep.subr.mxu0 0.0
  %2215 = vmatpush1.msra.mxu0 0.0
  %2216 = vmatprep.subr.mxu0 0.0
  %2217 = vmatpush1.msra.mxu0 0.0
  %2218 = vmatprep.subr.mxu0 0.0
  %2219 = vmatpush1.msra.mxu0 0.0
  %2220 = vmatprep.subr.mxu0 0.0
  %2221 = vmatpush1.msra.mxu0 0.0
  %2222 = vmatprep.subr.mxu0 0.0
  %2223 = vmatpush1.msra.mxu0 0.0
  %2224 = vmatprep.subr.mxu0 0.0
  %2225 = vmatpush1.msra.mxu0 0.0
  %2226 = vmatprep.subr.mxu0 0.0
  %2227 = vmatpush1.msra.mxu0 0.0
  %2228 = vmatprep.subr.mxu0 0.0
  %2229 = vmatpush1.msra.mxu0 0.0
  %2230 = vmatprep.subr.mxu0 0.0
  %2231 = vmatpush1.msra.mxu0 0.0
  %2232 = vmatprep.subr.mxu0 0.0
  %2233 = vmatpush1.msra.mxu0 0.0
  %2234 = vmatprep.subr.mxu0 0.0
  %2235 = vmatpush1.msra.mxu0 0.0
  %2236 = vmatprep.subr.mxu0 0.0
  %2237 = vmatpush1.msra.mxu0 0.0
  %2238 = vmatprep.subr.mxu0 0.0
  %2239 = vmatpush1.msra.mxu0 0.0
  %2240 = vmatprep.subr.mxu0 0.0
  %2241 = vmatpush1.msra.mxu0 0.0
  %2242 = vmatprep.mubr.f32.mxu0 0.0
  %2243 = vmatmul.mubr.f32.gmra.mrb[0].mxu0 %v2167
  %v2244 = vpop.f32.mrb[0].mxu0
  %v2245 = vadd.f32 0.0, %v2244
  %v2246 = vpop.f32.mrb[0].mxu0
  %2247 = vmatprep.mubr.f32.mxu0 0.0
  %2248 = vmatmul.mubr.f32.gmra.mrb[0].mxu0 %v2170
  %v2249 = vpop.f32.mrb[0].mxu0
  %v2250 = vadd.f32 0.0, %v2249
  %v2251 = vpop.f32.mrb[0].mxu0
  %2252 = vmatprep.mubr.f32.mxu0 0.0
  %2253 = vmatmul.mubr.f32.gmra.mrb[0].mxu0 %v2173
  %v2254 = vpop.f32.mrb[0].mxu0
  %v2255 = vadd.f32 0.0, %v2254
  %v2256 = vpop.f32.mrb[0].mxu0
  %2257 = vmatprep.mubr.f32.mxu0 0.0
  %2258 = vmatmul.mubr.f32.gmra.mrb[0].mxu0 %v2176
  %v2259 = vpop.f32.mrb[0].mxu0
  %v2260 = vadd.f32 0.0, %v2259
  %v2261 = vpop.f32.mrb[0].mxu0
  %2262 = vdwg.mxu0
  %v2263 = vmul.f32 %v2245, 0.020408163
  %v2264 = vmul.f32 %v2250, 0.020408163
  %v2265 = vmul.f32 %v2255, 0.020408163
  %v2266 = vmul.f32 %v2260, 0.020408163
  %v2267 = vadd.f32 %v2263, 1e-05
  %v2268 = vadd.f32 %v2264, 1e-05
  %v2269 = vadd.f32 %v2265, 1e-05
  %v2270 = vadd.f32 %v2266, 1e-05
  %v2271 = vrsqrt.pop %v2267
  %v2272 = vrsqrt.pop %v2268
  %v2273 = vrsqrt.pop %v2269
  %v2274 = vrsqrt.pop %v2270
  %v2275 = vld [vmem:[%s2 + $0x260] sm:$0xff]
  %v2276 = vld [vmem:[%s2 + $0x268] sm:$0xff]
  %v2277 = vld [vmem:[%s2 + $0x270] sm:$0xff]
  %v2278 = vld [vmem:[%s2 + $0x278] sm:$0xff]
  %2280 = vset.pattern.permute.xlu0 0
  %2281 = vperm.xlu0 %2280, %v2275
  %v2282 = vpop.permute.xlu0 %2281
  %2285 = vset.pattern.permute.xlu0 0
  %2286 = vperm.xlu0 %2285, %v2276
  %v2287 = vpop.permute.xlu0 %2286
  %2290 = vset.pattern.permute.xlu0 0
  %2291 = vperm.xlu0 %2290, %v2277
  %v2292 = vpop.permute.xlu0 %2291
  %2295 = vset.pattern.permute.xlu0 0
  %2296 = vperm.xlu0 %2295, %v2278
  %v2297 = vpop.permute.xlu0 %2296
  %v2299 = vmul.f32 %v2271, %v2282
  %v2300 = vmul.f32 %v2272, %v2287
  %v2301 = vmul.f32 %v2273, %v2292
  %v2302 = vmul.f32 %v2274, %v2297
  %v2303 = vmul.f32 %v2158, %v2299
  %v2304 = vmul.f32 %v2159, %v2300
  %v2305 = vmul.f32 %v2160, %v2301
  %v2306 = vmul.f32 %v2161, %v2302
  %v2307 = vld [vmem:[%s3 + $0x260] sm:$0xff]
  %v2308 = vld [vmem:[%s3 + $0x268] sm:$0xff]
  %v2309 = vld [vmem:[%s3 + $0x270] sm:$0xff]
  %v2310 = vld [vmem:[%s3 + $0x278] sm:$0xff]
  %2312 = vset.pattern.permute.xlu0 0
  %2313 = vperm.xlu0 %2312, %v2307
  %v2314 = vpop.permute.xlu0 %2313
  %2317 = vset.pattern.permute.xlu0 0
  %2318 = vperm.xlu0 %2317, %v2308
  %v2319 = vpop.permute.xlu0 %2318
  %2322 = vset.pattern.permute.xlu0 0
  %2323 = vperm.xlu0 %2322, %v2309
  %v2324 = vpop.permute.xlu0 %2323
  %2327 = vset.pattern.permute.xlu0 0
  %2328 = vperm.xlu0 %2327, %v2310
  %v2329 = vpop.permute.xlu0 %2328
  %v2331 = vadd.f32 %v2303, %v2314
  %v2332 = vadd.f32 %v2304, %v2319
  %v2333 = vadd.f32 %v2305, %v2324
  %v2334 = vadd.f32 %v2306, %v2329
  %2335 = vst.msk [vmem:[%s18 + $0x260] sm:$0xff] %vm908, %v2331
  %2336 = vst.msk [vmem:[%s18 + $0x268] sm:$0xff] %vm908, %v2332
  %2337 = vst.msk [vmem:[%s18 + $0x270] sm:$0xff] %vm908, %v2333
  %2338 = vst.msk [vmem:[%s18 + $0x278] sm:$0xff] %vm908, %v2334
  %v2339 = vld [vmem:[%s10] sm:$0xff]
  %v2340 = vld [vmem:[%s10 + $0x8] sm:$0xff]
  %v2341 = vld [vmem:[%s10 + $0x10] sm:$0xff]
  %v2342 = vld [vmem:[%s10 + $0x18] sm:$0xff]
  %v2344 = vsel %vm908, %v2339, 0
  %v2347 = vsel %vm908, %v2340, 0
  %v2350 = vsel %vm908, %v2341, 0
  %v2353 = vsel %vm908, %v2342, 0
  %2355 = vmatprep.subr.mxu0 0.0
  %2356 = vmatpush1.msra.mxu0 1.0
  %2357 = vmatprep.subr.mxu0 0.0
  %2358 = vmatpush1.msra.mxu0 1.0
  %2359 = vmatprep.subr.mxu0 0.0
  %2360 = vmatpush1.msra.mxu0 1.0
  %2361 = vmatprep.subr.mxu0 0.0
  %2362 = vmatpush1.msra.mxu0 1.0
  %2363 = vmatprep.subr.mxu0 0.0
  %2364 = vmatpush1.msra.mxu0 1.0
  %2365 = vmatprep.subr.mxu0 0.0
  %2366 = vmatpush1.msra.mxu0 1.0
  %2367 = vmatprep.subr.mxu0 0.0
  %2368 = vmatpush1.msra.mxu0 %v923
  %2369 = vmatprep.subr.mxu0 0.0
  %2370 = vmatpush1.msra.mxu0 0.0
  %2371 = vmatprep.subr.mxu0 0.0
  %2372 = vmatpush1.msra.mxu0 0.0
  %2373 = vmatprep.subr.mxu0 0.0
  %2374 = vmatpush1.msra.mxu0 0.0
  %2375 = vmatprep.subr.mxu0 0.0
  %2376 = vmatpush1.msra.mxu0 0.0
  %2377 = vmatprep.subr.mxu0 0.0
  %2378 = vmatpush1.msra.mxu0 0.0
  %2379 = vmatprep.subr.mxu0 0.0
  %2380 = vmatpush1.msra.mxu0 0.0
  %2381 = vmatprep.subr.mxu0 0.0
  %2382 = vmatpush1.msra.mxu0 0.0
  %2383 = vmatprep.subr.mxu0 0.0
  %2384 = vmatpush1.msra.mxu0 0.0
  %2385 = vmatprep.subr.mxu0 0.0
  %2386 = vmatpush1.msra.mxu0 0.0
  %2387 = vmatprep.subr.mxu0 0.0
  %2388 = vmatpush1.msra.mxu0 0.0
  %2389 = vmatprep.subr.mxu0 0.0
  %2390 = vmatpush1.msra.mxu0 0.0
  %2391 = vmatprep.subr.mxu0 0.0
  %2392 = vmatpush1.msra.mxu0 0.0
  %2393 = vmatprep.subr.mxu0 0.0
  %2394 = vmatpush1.msra.mxu0 0.0
  %2395 = vmatprep.subr.mxu0 0.0
  %2396 = vmatpush1.msra.mxu0 0.0
  %2397 = vmatprep.subr.mxu0 0.0
  %2398 = vmatpush1.msra.mxu0 0.0
  %2399 = vmatprep.subr.mxu0 0.0
  %2400 = vmatpush1.msra.mxu0 0.0
  %2401 = vmatprep.subr.mxu0 0.0
  %2402 = vmatpush1.msra.mxu0 0.0
  %2403 = vmatprep.subr.mxu0 0.0
  %2404 = vmatpush1.msra.mxu0 0.0
  %2405 = vmatprep.subr.mxu0 0.0
  %2406 = vmatpush1.msra.mxu0 0.0
  %2407 = vmatprep.subr.mxu0 0.0
  %2408 = vmatpush1.msra.mxu0 0.0
  %2409 = vmatprep.subr.mxu0 0.0
  %2410 = vmatpush1.msra.mxu0 0.0
  %2411 = vmatprep.subr.mxu0 0.0
  %2412 = vmatpush1.msra.mxu0 0.0
  %2413 = vmatprep.subr.mxu0 0.0
  %2414 = vmatpush1.msra.mxu0 0.0
  %2415 = vmatprep.subr.mxu0 0.0
  %2416 = vmatpush1.msra.mxu0 0.0
  %2417 = vmatprep.subr.mxu0 0.0
  %2418 = vmatpush1.msra.mxu0 0.0
  %2419 = vmatprep.mubr.f32.mxu0 0.0
  %2420 = vmatmul.mubr.f32.gmra.mrb[0].mxu0 %v2344
  %v2421 = vpop.f32.mrb[0].mxu0
  %v2422 = vadd.f32 0.0, %v2421
  %v2423 = vpop.f32.mrb[0].mxu0
  %2424 = vmatprep.mubr.f32.mxu0 0.0
  %2425 = vmatmul.mubr.f32.gmra.mrb[0].mxu0 %v2347
  %v2426 = vpop.f32.mrb[0].mxu0
  %v2427 = vadd.f32 0.0, %v2426
  %v2428 = vpop.f32.mrb[0].mxu0
  %2429 = vmatprep.mubr.f32.mxu0 0.0
  %2430 = vmatmul.mubr.f32.gmra.mrb[0].mxu0 %v2350
  %v2431 = vpop.f32.mrb[0].mxu0
  %v2432 = vadd.f32 0.0, %v2431
  %v2433 = vpop.f32.mrb[0].mxu0
  %2434 = vmatprep.mubr.f32.mxu0 0.0
  %2435 = vmatmul.mubr.f32.gmra.mrb[0].mxu0 %v2353
  %v2436 = vpop.f32.mrb[0].mxu0
  %v2437 = vadd.f32 0.0, %v2436
  %v2438 = vpop.f32.mrb[0].mxu0
  %2439 = vdwg.mxu0
  %v2440 = vmul.f32 %v2422, 0.020408163
  %v2441 = vmul.f32 %v2427, 0.020408163
  %v2442 = vmul.f32 %v2432, 0.020408163
  %v2443 = vmul.f32 %v2437, 0.020408163
  %v2444 = vsub.f32 %v2339, %v2440
  %v2445 = vsub.f32 %v2340, %v2441
  %v2446 = vsub.f32 %v2341, %v2442
  %v2447 = vsub.f32 %v2342, %v2443
  %v2448 = vmul.f32 %v2444, %v2444
  %v2449 = vmul.f32 %v2445, %v2445
  %v2450 = vmul.f32 %v2446, %v2446
  %v2451 = vmul.f32 %v2447, %v2447
  %v2453 = vsel %vm908, %v2448, 0
  %v2456 = vsel %vm908, %v2449, 0
  %v2459 = vsel %vm908, %v2450, 0
  %v2462 = vsel %vm908, %v2451, 0
  %2464 = vmatprep.subr.mxu0 0.0
  %2465 = vmatpush1.msra.mxu0 1.0
  %2466 = vmatprep.subr.mxu0 0.0
  %2467 = vmatpush1.msra.mxu0 1.0
  %2468 = vmatprep.subr.mxu0 0.0
  %2469 = vmatpush1.msra.mxu0 1.0
  %2470 = vmatprep.subr.mxu0 0.0
  %2471 = vmatpush1.msra.mxu0 1.0
  %2472 = vmatprep.subr.mxu0 0.0
  %2473 = vmatpush1.msra.mxu0 1.0
  %2474 = vmatprep.subr.mxu0 0.0
  %2475 = vmatpush1.msra.mxu0 1.0
  %2476 = vmatprep.subr.mxu0 0.0
  %2477 = vmatpush1.msra.mxu0 %v923
  %2478 = vmatprep.subr.mxu0 0.0
  %2479 = vmatpush1.msra.mxu0 0.0
  %2480 = vmatprep.subr.mxu0 0.0
  %2481 = vmatpush1.msra.mxu0 0.0
  %2482 = vmatprep.subr.mxu0 0.0
  %2483 = vmatpush1.msra.mxu0 0.0
  %2484 = vmatprep.subr.mxu0 0.0
  %2485 = vmatpush1.msra.mxu0 0.0
  %2486 = vmatprep.subr.mxu0 0.0
  %2487 = vmatpush1.msra.mxu0 0.0
  %2488 = vmatprep.subr.mxu0 0.0
  %2489 = vmatpush1.msra.mxu0 0.0
  %2490 = vmatprep.subr.mxu0 0.0
  %2491 = vmatpush1.msra.mxu0 0.0
  %2492 = vmatprep.subr.mxu0 0.0
  %2493 = vmatpush1.msra.mxu0 0.0
  %2494 = vmatprep.subr.mxu0 0.0
  %2495 = vmatpush1.msra.mxu0 0.0
  %2496 = vmatprep.subr.mxu0 0.0
  %2497 = vmatpush1.msra.mxu0 0.0
  %2498 = vmatprep.subr.mxu0 0.0
  %2499 = vmatpush1.msra.mxu0 0.0
  %2500 = vmatprep.subr.mxu0 0.0
  %2501 = vmatpush1.msra.mxu0 0.0
  %2502 = vmatprep.subr.mxu0 0.0
  %2503 = vmatpush1.msra.mxu0 0.0
  %2504 = vmatprep.subr.mxu0 0.0
  %2505 = vmatpush1.msra.mxu0 0.0
  %2506 = vmatprep.subr.mxu0 0.0
  %2507 = vmatpush1.msra.mxu0 0.0
  %2508 = vmatprep.subr.mxu0 0.0
  %2509 = vmatpush1.msra.mxu0 0.0
  %2510 = vmatprep.subr.mxu0 0.0
  %2511 = vmatpush1.msra.mxu0 0.0
  %2512 = vmatprep.subr.mxu0 0.0
  %2513 = vmatpush1.msra.mxu0 0.0
  %2514 = vmatprep.subr.mxu0 0.0
  %2515 = vmatpush1.msra.mxu0 0.0
  %2516 = vmatprep.subr.mxu0 0.0
  %2517 = vmatpush1.msra.mxu0 0.0
  %2518 = vmatprep.subr.mxu0 0.0
  %2519 = vmatpush1.msra.mxu0 0.0
  %2520 = vmatprep.subr.mxu0 0.0
  %2521 = vmatpush1.msra.mxu0 0.0
  %2522 = vmatprep.subr.mxu0 0.0
  %2523 = vmatpush1.msra.mxu0 0.0
  %2524 = vmatprep.subr.mxu0 0.0
  %2525 = vmatpush1.msra.mxu0 0.0
  %2526 = vmatprep.subr.mxu0 0.0
  %2527 = vmatpush1.msra.mxu0 0.0
  %2528 = vmatprep.mubr.f32.mxu0 0.0
  %2529 = vmatmul.mubr.f32.gmra.mrb[0].mxu0 %v2453
  %v2530 = vpop.f32.mrb[0].mxu0
  %v2531 = vadd.f32 0.0, %v2530
  %v2532 = vpop.f32.mrb[0].mxu0
  %2533 = vmatprep.mubr.f32.mxu0 0.0
  %2534 = vmatmul.mubr.f32.gmra.mrb[0].mxu0 %v2456
  %v2535 = vpop.f32.mrb[0].mxu0
  %v2536 = vadd.f32 0.0, %v2535
  %v2537 = vpop.f32.mrb[0].mxu0
  %2538 = vmatprep.mubr.f32.mxu0 0.0
  %2539 = vmatmul.mubr.f32.gmra.mrb[0].mxu0 %v2459
  %v2540 = vpop.f32.mrb[0].mxu0
  %v2541 = vadd.f32 0.0, %v2540
  %v2542 = vpop.f32.mrb[0].mxu0
  %2543 = vmatprep.mubr.f32.mxu0 0.0
  %2544 = vmatmul.mubr.f32.gmra.mrb[0].mxu0 %v2462
  %v2545 = vpop.f32.mrb[0].mxu0
  %v2546 = vadd.f32 0.0, %v2545
  %v2547 = vpop.f32.mrb[0].mxu0
  %2548 = vdwg.mxu0
  %v2549 = vmul.f32 %v2531, 0.020408163
  %v2550 = vmul.f32 %v2536, 0.020408163
  %v2551 = vmul.f32 %v2541, 0.020408163
  %v2552 = vmul.f32 %v2546, 0.020408163
  %v2553 = vadd.f32 %v2549, 1e-05
  %v2554 = vadd.f32 %v2550, 1e-05
  %v2555 = vadd.f32 %v2551, 1e-05
  %v2556 = vadd.f32 %v2552, 1e-05
  %v2557 = vrsqrt.pop %v2553
  %v2558 = vrsqrt.pop %v2554
  %v2559 = vrsqrt.pop %v2555
  %v2560 = vrsqrt.pop %v2556
  %v2561 = vld [vmem:[%s2 + $0x280] sm:$0xff]
  %v2562 = vld [vmem:[%s2 + $0x288] sm:$0xff]
  %v2563 = vld [vmem:[%s2 + $0x290] sm:$0xff]
  %v2564 = vld [vmem:[%s2 + $0x298] sm:$0xff]
  %2566 = vset.pattern.permute.xlu0 0
  %2567 = vperm.xlu0 %2566, %v2561
  %v2568 = vpop.permute.xlu0 %2567
  %2571 = vset.pattern.permute.xlu0 0
  %2572 = vperm.xlu0 %2571, %v2562
  %v2573 = vpop.permute.xlu0 %2572
  %2576 = vset.pattern.permute.xlu0 0
  %2577 = vperm.xlu0 %2576, %v2563
  %v2578 = vpop.permute.xlu0 %2577
  %2581 = vset.pattern.permute.xlu0 0
  %2582 = vperm.xlu0 %2581, %v2564
  %v2583 = vpop.permute.xlu0 %2582
  %v2585 = vmul.f32 %v2557, %v2568
  %v2586 = vmul.f32 %v2558, %v2573
  %v2587 = vmul.f32 %v2559, %v2578
  %v2588 = vmul.f32 %v2560, %v2583
  %v2589 = vmul.f32 %v2444, %v2585
  %v2590 = vmul.f32 %v2445, %v2586
  %v2591 = vmul.f32 %v2446, %v2587
  %v2592 = vmul.f32 %v2447, %v2588
  %v2593 = vld [vmem:[%s3 + $0x280] sm:$0xff]
  %v2594 = vld [vmem:[%s3 + $0x288] sm:$0xff]
  %v2595 = vld [vmem:[%s3 + $0x290] sm:$0xff]
  %v2596 = vld [vmem:[%s3 + $0x298] sm:$0xff]
  %2598 = vset.pattern.permute.xlu0 0
  %2599 = vperm.xlu0 %2598, %v2593
  %v2600 = vpop.permute.xlu0 %2599
  %2603 = vset.pattern.permute.xlu0 0
  %2604 = vperm.xlu0 %2603, %v2594
  %v2605 = vpop.permute.xlu0 %2604
  %2608 = vset.pattern.permute.xlu0 0
  %2609 = vperm.xlu0 %2608, %v2595
  %v2610 = vpop.permute.xlu0 %2609
  %2613 = vset.pattern.permute.xlu0 0
  %2614 = vperm.xlu0 %2613, %v2596
  %v2615 = vpop.permute.xlu0 %2614
  %v2617 = vadd.f32 %v2589, %v2600
  %v2618 = vadd.f32 %v2590, %v2605
  %v2619 = vadd.f32 %v2591, %v2610
  %v2620 = vadd.f32 %v2592, %v2615
  %2621 = vst.msk [vmem:[%s18 + $0x280] sm:$0xff] %vm908, %v2617
  %2622 = vst.msk [vmem:[%s18 + $0x288] sm:$0xff] %vm908, %v2618
  %2623 = vst.msk [vmem:[%s18 + $0x290] sm:$0xff] %vm908, %v2619
  %2624 = vst.msk [vmem:[%s18 + $0x298] sm:$0xff] %vm908, %v2620
  %v2625 = vld [vmem:[%s11] sm:$0xff]
  %v2626 = vld [vmem:[%s11 + $0x8] sm:$0xff]
  %v2627 = vld [vmem:[%s11 + $0x10] sm:$0xff]
  %v2628 = vld [vmem:[%s11 + $0x18] sm:$0xff]
  %v2630 = vsel %vm908, %v2625, 0
  %v2633 = vsel %vm908, %v2626, 0
  %v2636 = vsel %vm908, %v2627, 0
  %v2639 = vsel %vm908, %v2628, 0
  %2641 = vmatprep.subr.mxu0 0.0
  %2642 = vmatpush1.msra.mxu0 1.0
  %2643 = vmatprep.subr.mxu0 0.0
  %2644 = vmatpush1.msra.mxu0 1.0
  %2645 = vmatprep.subr.mxu0 0.0
  %2646 = vmatpush1.msra.mxu0 1.0
  %2647 = vmatprep.subr.mxu0 0.0
  %2648 = vmatpush1.msra.mxu0 1.0
  %2649 = vmatprep.subr.mxu0 0.0
  %2650 = vmatpush1.msra.mxu0 1.0
  %2651 = vmatprep.subr.mxu0 0.0
  %2652 = vmatpush1.msra.mxu0 1.0
  %2653 = vmatprep.subr.mxu0 0.0
  %2654 = vmatpush1.msra.mxu0 %v923
  %2655 = vmatprep.subr.mxu0 0.0
  %2656 = vmatpush1.msra.mxu0 0.0
  %2657 = vmatprep.subr.mxu0 0.0
  %2658 = vmatpush1.msra.mxu0 0.0
  %2659 = vmatprep.subr.mxu0 0.0
  %2660 = vmatpush1.msra.mxu0 0.0
  %2661 = vmatprep.subr.mxu0 0.0
  %2662 = vmatpush1.msra.mxu0 0.0
  %2663 = vmatprep.subr.mxu0 0.0
  %2664 = vmatpush1.msra.mxu0 0.0
  %2665 = vmatprep.subr.mxu0 0.0
  %2666 = vmatpush1.msra.mxu0 0.0
  %2667 = vmatprep.subr.mxu0 0.0
  %2668 = vmatpush1.msra.mxu0 0.0
  %2669 = vmatprep.subr.mxu0 0.0
  %2670 = vmatpush1.msra.mxu0 0.0
  %2671 = vmatprep.subr.mxu0 0.0
  %2672 = vmatpush1.msra.mxu0 0.0
  %2673 = vmatprep.subr.mxu0 0.0
  %2674 = vmatpush1.msra.mxu0 0.0
  %2675 = vmatprep.subr.mxu0 0.0
  %2676 = vmatpush1.msra.mxu0 0.0
  %2677 = vmatprep.subr.mxu0 0.0
  %2678 = vmatpush1.msra.mxu0 0.0
  %2679 = vmatprep.subr.mxu0 0.0
  %2680 = vmatpush1.msra.mxu0 0.0
  %2681 = vmatprep.subr.mxu0 0.0
  %2682 = vmatpush1.msra.mxu0 0.0
  %2683 = vmatprep.subr.mxu0 0.0
  %2684 = vmatpush1.msra.mxu0 0.0
  %2685 = vmatprep.subr.mxu0 0.0
  %2686 = vmatpush1.msra.mxu0 0.0
  %2687 = vmatprep.subr.mxu0 0.0
  %2688 = vmatpush1.msra.mxu0 0.0
  %2689 = vmatprep.subr.mxu0 0.0
  %2690 = vmatpush1.msra.mxu0 0.0
  %2691 = vmatprep.subr.mxu0 0.0
  %2692 = vmatpush1.msra.mxu0 0.0
  %2693 = vmatprep.subr.mxu0 0.0
  %2694 = vmatpush1.msra.mxu0 0.0
  %2695 = vmatprep.subr.mxu0 0.0
  %2696 = vmatpush1.msra.mxu0 0.0
  %2697 = vmatprep.subr.mxu0 0.0
  %2698 = vmatpush1.msra.mxu0 0.0
  %2699 = vmatprep.subr.mxu0 0.0
  %2700 = vmatpush1.msra.mxu0 0.0
  %2701 = vmatprep.subr.mxu0 0.0
  %2702 = vmatpush1.msra.mxu0 0.0
  %2703 = vmatprep.subr.mxu0 0.0
  %2704 = vmatpush1.msra.mxu0 0.0
  %2705 = vmatprep.mubr.f32.mxu0 0.0
  %2706 = vmatmul.mubr.f32.gmra.mrb[0].mxu0 %v2630
  %v2707 = vpop.f32.mrb[0].mxu0
  %v2708 = vadd.f32 0.0, %v2707
  %v2709 = vpop.f32.mrb[0].mxu0
  %2710 = vmatprep.mubr.f32.mxu0 0.0
  %2711 = vmatmul.mubr.f32.gmra.mrb[0].mxu0 %v2633
  %v2712 = vpop.f32.mrb[0].mxu0
  %v2713 = vadd.f32 0.0, %v2712
  %v2714 = vpop.f32.mrb[0].mxu0
  %2715 = vmatprep.mubr.f32.mxu0 0.0
  %2716 = vmatmul.mubr.f32.gmra.mrb[0].mxu0 %v2636
  %v2717 = vpop.f32.mrb[0].mxu0
  %v2718 = vadd.f32 0.0, %v2717
  %v2719 = vpop.f32.mrb[0].mxu0
  %2720 = vmatprep.mubr.f32.mxu0 0.0
  %2721 = vmatmul.mubr.f32.gmra.mrb[0].mxu0 %v2639
  %v2722 = vpop.f32.mrb[0].mxu0
  %v2723 = vadd.f32 0.0, %v2722
  %v2724 = vpop.f32.mrb[0].mxu0
  %2725 = vdwg.mxu0
  %v2726 = vmul.f32 %v2708, 0.020408163
  %v2727 = vmul.f32 %v2713, 0.020408163
  %v2728 = vmul.f32 %v2718, 0.020408163
  %v2729 = vmul.f32 %v2723, 0.020408163
  %v2730 = vsub.f32 %v2625, %v2726
  %v2731 = vsub.f32 %v2626, %v2727
  %v2732 = vsub.f32 %v2627, %v2728
  %v2733 = vsub.f32 %v2628, %v2729
  %v2734 = vmul.f32 %v2730, %v2730
  %v2735 = vmul.f32 %v2731, %v2731
  %v2736 = vmul.f32 %v2732, %v2732
  %v2737 = vmul.f32 %v2733, %v2733
  %v2739 = vsel %vm908, %v2734, 0
  %v2742 = vsel %vm908, %v2735, 0
  %v2745 = vsel %vm908, %v2736, 0
  %v2748 = vsel %vm908, %v2737, 0
  %2750 = vmatprep.subr.mxu0 0.0
  %2751 = vmatpush1.msra.mxu0 1.0
  %2752 = vmatprep.subr.mxu0 0.0
  %2753 = vmatpush1.msra.mxu0 1.0
  %2754 = vmatprep.subr.mxu0 0.0
  %2755 = vmatpush1.msra.mxu0 1.0
  %2756 = vmatprep.subr.mxu0 0.0
  %2757 = vmatpush1.msra.mxu0 1.0
  %2758 = vmatprep.subr.mxu0 0.0
  %2759 = vmatpush1.msra.mxu0 1.0
  %2760 = vmatprep.subr.mxu0 0.0
  %2761 = vmatpush1.msra.mxu0 1.0
  %2762 = vmatprep.subr.mxu0 0.0
  %2763 = vmatpush1.msra.mxu0 %v923
  %2764 = vmatprep.subr.mxu0 0.0
  %2765 = vmatpush1.msra.mxu0 0.0
  %2766 = vmatprep.subr.mxu0 0.0
  %2767 = vmatpush1.msra.mxu0 0.0
  %2768 = vmatprep.subr.mxu0 0.0
  %2769 = vmatpush1.msra.mxu0 0.0
  %2770 = vmatprep.subr.mxu0 0.0
  %2771 = vmatpush1.msra.mxu0 0.0
  %2772 = vmatprep.subr.mxu0 0.0
  %2773 = vmatpush1.msra.mxu0 0.0
  %2774 = vmatprep.subr.mxu0 0.0
  %2775 = vmatpush1.msra.mxu0 0.0
  %2776 = vmatprep.subr.mxu0 0.0
  %2777 = vmatpush1.msra.mxu0 0.0
  %2778 = vmatprep.subr.mxu0 0.0
  %2779 = vmatpush1.msra.mxu0 0.0
  %2780 = vmatprep.subr.mxu0 0.0
  %2781 = vmatpush1.msra.mxu0 0.0
  %2782 = vmatprep.subr.mxu0 0.0
  %2783 = vmatpush1.msra.mxu0 0.0
  %2784 = vmatprep.subr.mxu0 0.0
  %2785 = vmatpush1.msra.mxu0 0.0
  %2786 = vmatprep.subr.mxu0 0.0
  %2787 = vmatpush1.msra.mxu0 0.0
  %2788 = vmatprep.subr.mxu0 0.0
  %2789 = vmatpush1.msra.mxu0 0.0
  %2790 = vmatprep.subr.mxu0 0.0
  %2791 = vmatpush1.msra.mxu0 0.0
  %2792 = vmatprep.subr.mxu0 0.0
  %2793 = vmatpush1.msra.mxu0 0.0
  %2794 = vmatprep.subr.mxu0 0.0
  %2795 = vmatpush1.msra.mxu0 0.0
  %2796 = vmatprep.subr.mxu0 0.0
  %2797 = vmatpush1.msra.mxu0 0.0
  %2798 = vmatprep.subr.mxu0 0.0
  %2799 = vmatpush1.msra.mxu0 0.0
  %2800 = vmatprep.subr.mxu0 0.0
  %2801 = vmatpush1.msra.mxu0 0.0
  %2802 = vmatprep.subr.mxu0 0.0
  %2803 = vmatpush1.msra.mxu0 0.0
  %2804 = vmatprep.subr.mxu0 0.0
  %2805 = vmatpush1.msra.mxu0 0.0
  %2806 = vmatprep.subr.mxu0 0.0
  %2807 = vmatpush1.msra.mxu0 0.0
  %2808 = vmatprep.subr.mxu0 0.0
  %2809 = vmatpush1.msra.mxu0 0.0
  %2810 = vmatprep.subr.mxu0 0.0
  %2811 = vmatpush1.msra.mxu0 0.0
  %2812 = vmatprep.subr.mxu0 0.0
  %2813 = vmatpush1.msra.mxu0 0.0
  %2814 = vmatprep.mubr.f32.mxu0 0.0
  %2815 = vmatmul.mubr.f32.gmra.mrb[0].mxu0 %v2739
  %v2816 = vpop.f32.mrb[0].mxu0
  %v2817 = vadd.f32 0.0, %v2816
  %v2818 = vpop.f32.mrb[0].mxu0
  %2819 = vmatprep.mubr.f32.mxu0 0.0
  %2820 = vmatmul.mubr.f32.gmra.mrb[0].mxu0 %v2742
  %v2821 = vpop.f32.mrb[0].mxu0
  %v2822 = vadd.f32 0.0, %v2821
  %v2823 = vpop.f32.mrb[0].mxu0
  %2824 = vmatprep.mubr.f32.mxu0 0.0
  %2825 = vmatmul.mubr.f32.gmra.mrb[0].mxu0 %v2745
  %v2826 = vpop.f32.mrb[0].mxu0
  %v2827 = vadd.f32 0.0, %v2826
  %v2828 = vpop.f32.mrb[0].mxu0
  %2829 = vmatprep.mubr.f32.mxu0 0.0
  %2830 = vmatmul.mubr.f32.gmra.mrb[0].mxu0 %v2748
  %v2831 = vpop.f32.mrb[0].mxu0
  %v2832 = vadd.f32 0.0, %v2831
  %v2833 = vpop.f32.mrb[0].mxu0
  %2834 = vdwg.mxu0
  %v2835 = vmul.f32 %v2817, 0.020408163
  %v2836 = vmul.f32 %v2822, 0.020408163
  %v2837 = vmul.f32 %v2827, 0.020408163
  %v2838 = vmul.f32 %v2832, 0.020408163
  %v2839 = vadd.f32 %v2835, 1e-05
  %v2840 = vadd.f32 %v2836, 1e-05
  %v2841 = vadd.f32 %v2837, 1e-05
  %v2842 = vadd.f32 %v2838, 1e-05
  %v2843 = vrsqrt.pop %v2839
  %v2844 = vrsqrt.pop %v2840
  %v2845 = vrsqrt.pop %v2841
  %v2846 = vrsqrt.pop %v2842
  %v2847 = vld [vmem:[%s2 + $0x2a0] sm:$0xff]
  %v2848 = vld [vmem:[%s2 + $0x2a8] sm:$0xff]
  %v2849 = vld [vmem:[%s2 + $0x2b0] sm:$0xff]
  %v2850 = vld [vmem:[%s2 + $0x2b8] sm:$0xff]
  %2852 = vset.pattern.permute.xlu0 0
  %2853 = vperm.xlu0 %2852, %v2847
  %v2854 = vpop.permute.xlu0 %2853
  %2857 = vset.pattern.permute.xlu0 0
  %2858 = vperm.xlu0 %2857, %v2848
  %v2859 = vpop.permute.xlu0 %2858
  %2862 = vset.pattern.permute.xlu0 0
  %2863 = vperm.xlu0 %2862, %v2849
  %v2864 = vpop.permute.xlu0 %2863
  %2867 = vset.pattern.permute.xlu0 0
  %2868 = vperm.xlu0 %2867, %v2850
  %v2869 = vpop.permute.xlu0 %2868
  %v2871 = vmul.f32 %v2843, %v2854
  %v2872 = vmul.f32 %v2844, %v2859
  %v2873 = vmul.f32 %v2845, %v2864
  %v2874 = vmul.f32 %v2846, %v2869
  %v2875 = vmul.f32 %v2730, %v2871
  %v2876 = vmul.f32 %v2731, %v2872
  %v2877 = vmul.f32 %v2732, %v2873
  %v2878 = vmul.f32 %v2733, %v2874
  %v2879 = vld [vmem:[%s3 + $0x2a0] sm:$0xff]
  %v2880 = vld [vmem:[%s3 + $0x2a8] sm:$0xff]
  %v2881 = vld [vmem:[%s3 + $0x2b0] sm:$0xff]
  %v2882 = vld [vmem:[%s3 + $0x2b8] sm:$0xff]
  %2884 = vset.pattern.permute.xlu0 0
  %2885 = vperm.xlu0 %2884, %v2879
  %v2886 = vpop.permute.xlu0 %2885
  %2889 = vset.pattern.permute.xlu0 0
  %2890 = vperm.xlu0 %2889, %v2880
  %v2891 = vpop.permute.xlu0 %2890
  %2894 = vset.pattern.permute.xlu0 0
  %2895 = vperm.xlu0 %2894, %v2881
  %v2896 = vpop.permute.xlu0 %2895
  %2899 = vset.pattern.permute.xlu0 0
  %2900 = vperm.xlu0 %2899, %v2882
  %v2901 = vpop.permute.xlu0 %2900
  %v2903 = vadd.f32 %v2875, %v2886
  %v2904 = vadd.f32 %v2876, %v2891
  %v2905 = vadd.f32 %v2877, %v2896
  %v2906 = vadd.f32 %v2878, %v2901
  %2907 = vst.msk [vmem:[%s18 + $0x2a0] sm:$0xff] %vm908, %v2903
  %2908 = vst.msk [vmem:[%s18 + $0x2a8] sm:$0xff] %vm908, %v2904
  %2909 = vst.msk [vmem:[%s18 + $0x2b0] sm:$0xff] %vm908, %v2905
  %2910 = vst.msk [vmem:[%s18 + $0x2b8] sm:$0xff] %vm908, %v2906
  %v2911 = vld [vmem:[%s12] sm:$0xff]
  %v2912 = vld [vmem:[%s12 + $0x8] sm:$0xff]
  %v2913 = vld [vmem:[%s12 + $0x10] sm:$0xff]
  %v2914 = vld [vmem:[%s12 + $0x18] sm:$0xff]
  %v2916 = vsel %vm908, %v2911, 0
  %v2919 = vsel %vm908, %v2912, 0
  %v2922 = vsel %vm908, %v2913, 0
  %v2925 = vsel %vm908, %v2914, 0
  %2927 = vmatprep.subr.mxu0 0.0
  %2928 = vmatpush1.msra.mxu0 1.0
  %2929 = vmatprep.subr.mxu0 0.0
  %2930 = vmatpush1.msra.mxu0 1.0
  %2931 = vmatprep.subr.mxu0 0.0
  %2932 = vmatpush1.msra.mxu0 1.0
  %2933 = vmatprep.subr.mxu0 0.0
  %2934 = vmatpush1.msra.mxu0 1.0
  %2935 = vmatprep.subr.mxu0 0.0
  %2936 = vmatpush1.msra.mxu0 1.0
  %2937 = vmatprep.subr.mxu0 0.0
  %2938 = vmatpush1.msra.mxu0 1.0
  %2939 = vmatprep.subr.mxu0 0.0
  %2940 = vmatpush1.msra.mxu0 %v923
  %2941 = vmatprep.subr.mxu0 0.0
  %2942 = vmatpush1.msra.mxu0 0.0
  %2943 = vmatprep.subr.mxu0 0.0
  %2944 = vmatpush1.msra.mxu0 0.0
  %2945 = vmatprep.subr.mxu0 0.0
  %2946 = vmatpush1.msra.mxu0 0.0
  %2947 = vmatprep.subr.mxu0 0.0
  %2948 = vmatpush1.msra.mxu0 0.0
  %2949 = vmatprep.subr.mxu0 0.0
  %2950 = vmatpush1.msra.mxu0 0.0
  %2951 = vmatprep.subr.mxu0 0.0
  %2952 = vmatpush1.msra.mxu0 0.0
  %2953 = vmatprep.subr.mxu0 0.0
  %2954 = vmatpush1.msra.mxu0 0.0
  %2955 = vmatprep.subr.mxu0 0.0
  %2956 = vmatpush1.msra.mxu0 0.0
  %2957 = vmatprep.subr.mxu0 0.0
  %2958 = vmatpush1.msra.mxu0 0.0
  %2959 = vmatprep.subr.mxu0 0.0
  %2960 = vmatpush1.msra.mxu0 0.0
  %2961 = vmatprep.subr.mxu0 0.0
  %2962 = vmatpush1.msra.mxu0 0.0
  %2963 = vmatprep.subr.mxu0 0.0
  %2964 = vmatpush1.msra.mxu0 0.0
  %2965 = vmatprep.subr.mxu0 0.0
  %2966 = vmatpush1.msra.mxu0 0.0
  %2967 = vmatprep.subr.mxu0 0.0
  %2968 = vmatpush1.msra.mxu0 0.0
  %2969 = vmatprep.subr.mxu0 0.0
  %2970 = vmatpush1.msra.mxu0 0.0
  %2971 = vmatprep.subr.mxu0 0.0
  %2972 = vmatpush1.msra.mxu0 0.0
  %2973 = vmatprep.subr.mxu0 0.0
  %2974 = vmatpush1.msra.mxu0 0.0
  %2975 = vmatprep.subr.mxu0 0.0
  %2976 = vmatpush1.msra.mxu0 0.0
  %2977 = vmatprep.subr.mxu0 0.0
  %2978 = vmatpush1.msra.mxu0 0.0
  %2979 = vmatprep.subr.mxu0 0.0
  %2980 = vmatpush1.msra.mxu0 0.0
  %2981 = vmatprep.subr.mxu0 0.0
  %2982 = vmatpush1.msra.mxu0 0.0
  %2983 = vmatprep.subr.mxu0 0.0
  %2984 = vmatpush1.msra.mxu0 0.0
  %2985 = vmatprep.subr.mxu0 0.0
  %2986 = vmatpush1.msra.mxu0 0.0
  %2987 = vmatprep.subr.mxu0 0.0
  %2988 = vmatpush1.msra.mxu0 0.0
  %2989 = vmatprep.subr.mxu0 0.0
  %2990 = vmatpush1.msra.mxu0 0.0
  %2991 = vmatprep.mubr.f32.mxu0 0.0
  %2992 = vmatmul.mubr.f32.gmra.mrb[0].mxu0 %v2916
  %v2993 = vpop.f32.mrb[0].mxu0
  %v2994 = vadd.f32 0.0, %v2993
  %v2995 = vpop.f32.mrb[0].mxu0
  %2996 = vmatprep.mubr.f32.mxu0 0.0
  %2997 = vmatmul.mubr.f32.gmra.mrb[0].mxu0 %v2919
  %v2998 = vpop.f32.mrb[0].mxu0
  %v2999 = vadd.f32 0.0, %v2998
  %v3000 = vpop.f32.mrb[0].mxu0
  %3001 = vmatprep.mubr.f32.mxu0 0.0
  %3002 = vmatmul.mubr.f32.gmra.mrb[0].mxu0 %v2922
  %v3003 = vpop.f32.mrb[0].mxu0
  %v3004 = vadd.f32 0.0, %v3003
  %v3005 = vpop.f32.mrb[0].mxu0
  %3006 = vmatprep.mubr.f32.mxu0 0.0
  %3007 = vmatmul.mubr.f32.gmra.mrb[0].mxu0 %v2925
  %v3008 = vpop.f32.mrb[0].mxu0
  %v3009 = vadd.f32 0.0, %v3008
  %v3010 = vpop.f32.mrb[0].mxu0
  %3011 = vdwg.mxu0
  %v3012 = vmul.f32 %v2994, 0.020408163
  %v3013 = vmul.f32 %v2999, 0.020408163
  %v3014 = vmul.f32 %v3004, 0.020408163
  %v3015 = vmul.f32 %v3009, 0.020408163
  %v3016 = vsub.f32 %v2911, %v3012
  %v3017 = vsub.f32 %v2912, %v3013
  %v3018 = vsub.f32 %v2913, %v3014
  %v3019 = vsub.f32 %v2914, %v3015
  %v3020 = vmul.f32 %v3016, %v3016
  %v3021 = vmul.f32 %v3017, %v3017
  %v3022 = vmul.f32 %v3018, %v3018
  %v3023 = vmul.f32 %v3019, %v3019
  %v3025 = vsel %vm908, %v3020, 0
  %v3028 = vsel %vm908, %v3021, 0
  %v3031 = vsel %vm908, %v3022, 0
  %v3034 = vsel %vm908, %v3023, 0
  %3036 = vmatprep.subr.mxu0 0.0
  %3037 = vmatpush1.msra.mxu0 1.0
  %3038 = vmatprep.subr.mxu0 0.0
  %3039 = vmatpush1.msra.mxu0 1.0
  %3040 = vmatprep.subr.mxu0 0.0
  %3041 = vmatpush1.msra.mxu0 1.0
  %3042 = vmatprep.subr.mxu0 0.0
  %3043 = vmatpush1.msra.mxu0 1.0
  %3044 = vmatprep.subr.mxu0 0.0
  %3045 = vmatpush1.msra.mxu0 1.0
  %3046 = vmatprep.subr.mxu0 0.0
  %3047 = vmatpush1.msra.mxu0 1.0
  %3048 = vmatprep.subr.mxu0 0.0
  %3049 = vmatpush1.msra.mxu0 %v923
  %3050 = vmatprep.subr.mxu0 0.0
  %3051 = vmatpush1.msra.mxu0 0.0
  %3052 = vmatprep.subr.mxu0 0.0
  %3053 = vmatpush1.msra.mxu0 0.0
  %3054 = vmatprep.subr.mxu0 0.0
  %3055 = vmatpush1.msra.mxu0 0.0
  %3056 = vmatprep.subr.mxu0 0.0
  %3057 = vmatpush1.msra.mxu0 0.0
  %3058 = vmatprep.subr.mxu0 0.0
  %3059 = vmatpush1.msra.mxu0 0.0
  %3060 = vmatprep.subr.mxu0 0.0
  %3061 = vmatpush1.msra.mxu0 0.0
  %3062 = vmatprep.subr.mxu0 0.0
  %3063 = vmatpush1.msra.mxu0 0.0
  %3064 = vmatprep.subr.mxu0 0.0
  %3065 = vmatpush1.msra.mxu0 0.0
  %3066 = vmatprep.subr.mxu0 0.0
  %3067 = vmatpush1.msra.mxu0 0.0
  %3068 = vmatprep.subr.mxu0 0.0
  %3069 = vmatpush1.msra.mxu0 0.0
  %3070 = vmatprep.subr.mxu0 0.0
  %3071 = vmatpush1.msra.mxu0 0.0
  %3072 = vmatprep.subr.mxu0 0.0
  %3073 = vmatpush1.msra.mxu0 0.0
  %3074 = vmatprep.subr.mxu0 0.0
  %3075 = vmatpush1.msra.mxu0 0.0
  %3076 = vmatprep.subr.mxu0 0.0
  %3077 = vmatpush1.msra.mxu0 0.0
  %3078 = vmatprep.subr.mxu0 0.0
  %3079 = vmatpush1.msra.mxu0 0.0
  %3080 = vmatprep.subr.mxu0 0.0
  %3081 = vmatpush1.msra.mxu0 0.0
  %3082 = vmatprep.subr.mxu0 0.0
  %3083 = vmatpush1.msra.mxu0 0.0
  %3084 = vmatprep.subr.mxu0 0.0
  %3085 = vmatpush1.msra.mxu0 0.0
  %3086 = vmatprep.subr.mxu0 0.0
  %3087 = vmatpush1.msra.mxu0 0.0
  %3088 = vmatprep.subr.mxu0 0.0
  %3089 = vmatpush1.msra.mxu0 0.0
  %3090 = vmatprep.subr.mxu0 0.0
  %3091 = vmatpush1.msra.mxu0 0.0
  %3092 = vmatprep.subr.mxu0 0.0
  %3093 = vmatpush1.msra.mxu0 0.0
  %3094 = vmatprep.subr.mxu0 0.0
  %3095 = vmatpush1.msra.mxu0 0.0
  %3096 = vmatprep.subr.mxu0 0.0
  %3097 = vmatpush1.msra.mxu0 0.0
  %3098 = vmatprep.subr.mxu0 0.0
  %3099 = vmatpush1.msra.mxu0 0.0
  %3100 = vmatprep.mubr.f32.mxu0 0.0
  %3101 = vmatmul.mubr.f32.gmra.mrb[0].mxu0 %v3025
  %v3102 = vpop.f32.mrb[0].mxu0
  %v3103 = vadd.f32 0.0, %v3102
  %v3104 = vpop.f32.mrb[0].mxu0
  %3105 = vmatprep.mubr.f32.mxu0 0.0
  %3106 = vmatmul.mubr.f32.gmra.mrb[0].mxu0 %v3028
  %v3107 = vpop.f32.mrb[0].mxu0
  %v3108 = vadd.f32 0.0, %v3107
  %v3109 = vpop.f32.mrb[0].mxu0
  %3110 = vmatprep.mubr.f32.mxu0 0.0
  %3111 = vmatmul.mubr.f32.gmra.mrb[0].mxu0 %v3031
  %v3112 = vpop.f32.mrb[0].mxu0
  %v3113 = vadd.f32 0.0, %v3112
  %v3114 = vpop.f32.mrb[0].mxu0
  %3115 = vmatprep.mubr.f32.mxu0 0.0
  %3116 = vmatmul.mubr.f32.gmra.mrb[0].mxu0 %v3034
  %v3117 = vpop.f32.mrb[0].mxu0
  %v3118 = vadd.f32 0.0, %v3117
  %v3119 = vpop.f32.mrb[0].mxu0
  %3120 = vdwg.mxu0
  %v3121 = vmul.f32 %v3103, 0.020408163
  %v3122 = vmul.f32 %v3108, 0.020408163
  %v3123 = vmul.f32 %v3113, 0.020408163
  %v3124 = vmul.f32 %v3118, 0.020408163
  %v3125 = vadd.f32 %v3121, 1e-05
  %v3126 = vadd.f32 %v3122, 1e-05
  %v3127 = vadd.f32 %v3123, 1e-05
  %v3128 = vadd.f32 %v3124, 1e-05
  %v3129 = vrsqrt.pop %v3125
  %v3130 = vrsqrt.pop %v3126
  %v3131 = vrsqrt.pop %v3127
  %v3132 = vrsqrt.pop %v3128
  %v3133 = vld [vmem:[%s2 + $0x2c0] sm:$0xff]
  %v3134 = vld [vmem:[%s2 + $0x2c8] sm:$0xff]
  %v3135 = vld [vmem:[%s2 + $0x2d0] sm:$0xff]
  %v3136 = vld [vmem:[%s2 + $0x2d8] sm:$0xff]
  %3138 = vset.pattern.permute.xlu0 0
  %3139 = vperm.xlu0 %3138, %v3133
  %v3140 = vpop.permute.xlu0 %3139
  %3143 = vset.pattern.permute.xlu0 0
  %3144 = vperm.xlu0 %3143, %v3134
  %v3145 = vpop.permute.xlu0 %3144
  %3148 = vset.pattern.permute.xlu0 0
  %3149 = vperm.xlu0 %3148, %v3135
  %v3150 = vpop.permute.xlu0 %3149
  %3153 = vset.pattern.permute.xlu0 0
  %3154 = vperm.xlu0 %3153, %v3136
  %v3155 = vpop.permute.xlu0 %3154
  %v3157 = vmul.f32 %v3129, %v3140
  %v3158 = vmul.f32 %v3130, %v3145
  %v3159 = vmul.f32 %v3131, %v3150
  %v3160 = vmul.f32 %v3132, %v3155
  %v3161 = vmul.f32 %v3016, %v3157
  %v3162 = vmul.f32 %v3017, %v3158
  %v3163 = vmul.f32 %v3018, %v3159
  %v3164 = vmul.f32 %v3019, %v3160
  %v3165 = vld [vmem:[%s3 + $0x2c0] sm:$0xff]
  %v3166 = vld [vmem:[%s3 + $0x2c8] sm:$0xff]
  %v3167 = vld [vmem:[%s3 + $0x2d0] sm:$0xff]
  %v3168 = vld [vmem:[%s3 + $0x2d8] sm:$0xff]
  %3170 = vset.pattern.permute.xlu0 0
  %3171 = vperm.xlu0 %3170, %v3165
  %v3172 = vpop.permute.xlu0 %3171
  %3175 = vset.pattern.permute.xlu0 0
  %3176 = vperm.xlu0 %3175, %v3166
  %v3177 = vpop.permute.xlu0 %3176
  %3180 = vset.pattern.permute.xlu0 0
  %3181 = vperm.xlu0 %3180, %v3167
  %v3182 = vpop.permute.xlu0 %3181
  %3185 = vset.pattern.permute.xlu0 0
  %3186 = vperm.xlu0 %3185, %v3168
  %v3187 = vpop.permute.xlu0 %3186
  %v3189 = vadd.f32 %v3161, %v3172
  %v3190 = vadd.f32 %v3162, %v3177
  %v3191 = vadd.f32 %v3163, %v3182
  %v3192 = vadd.f32 %v3164, %v3187
  %3193 = vst.msk [vmem:[%s18 + $0x2c0] sm:$0xff] %vm908, %v3189
  %3194 = vst.msk [vmem:[%s18 + $0x2c8] sm:$0xff] %vm908, %v3190
  %3195 = vst.msk [vmem:[%s18 + $0x2d0] sm:$0xff] %vm908, %v3191
  %3196 = vst.msk [vmem:[%s18 + $0x2d8] sm:$0xff] %vm908, %v3192
  %v3197 = vld [vmem:[%s13] sm:$0xff]
  %v3198 = vld [vmem:[%s13 + $0x8] sm:$0xff]
  %v3199 = vld [vmem:[%s13 + $0x10] sm:$0xff]
  %v3200 = vld [vmem:[%s13 + $0x18] sm:$0xff]
  %v3202 = vsel %vm908, %v3197, 0
  %v3205 = vsel %vm908, %v3198, 0
  %v3208 = vsel %vm908, %v3199, 0
  %v3211 = vsel %vm908, %v3200, 0
  %3213 = vmatprep.subr.mxu0 0.0
  %3214 = vmatpush1.msra.mxu0 1.0
  %3215 = vmatprep.subr.mxu0 0.0
  %3216 = vmatpush1.msra.mxu0 1.0
  %3217 = vmatprep.subr.mxu0 0.0
  %3218 = vmatpush1.msra.mxu0 1.0
  %3219 = vmatprep.subr.mxu0 0.0
  %3220 = vmatpush1.msra.mxu0 1.0
  %3221 = vmatprep.subr.mxu0 0.0
  %3222 = vmatpush1.msra.mxu0 1.0
  %3223 = vmatprep.subr.mxu0 0.0
  %3224 = vmatpush1.msra.mxu0 1.0
  %3225 = vmatprep.subr.mxu0 0.0
  %3226 = vmatpush1.msra.mxu0 %v923
  %3227 = vmatprep.subr.mxu0 0.0
  %3228 = vmatpush1.msra.mxu0 0.0
  %3229 = vmatprep.subr.mxu0 0.0
  %3230 = vmatpush1.msra.mxu0 0.0
  %3231 = vmatprep.subr.mxu0 0.0
  %3232 = vmatpush1.msra.mxu0 0.0
  %3233 = vmatprep.subr.mxu0 0.0
  %3234 = vmatpush1.msra.mxu0 0.0
  %3235 = vmatprep.subr.mxu0 0.0
  %3236 = vmatpush1.msra.mxu0 0.0
  %3237 = vmatprep.subr.mxu0 0.0
  %3238 = vmatpush1.msra.mxu0 0.0
  %3239 = vmatprep.subr.mxu0 0.0
  %3240 = vmatpush1.msra.mxu0 0.0
  %3241 = vmatprep.subr.mxu0 0.0
  %3242 = vmatpush1.msra.mxu0 0.0
  %3243 = vmatprep.subr.mxu0 0.0
  %3244 = vmatpush1.msra.mxu0 0.0
  %3245 = vmatprep.subr.mxu0 0.0
  %3246 = vmatpush1.msra.mxu0 0.0
  %3247 = vmatprep.subr.mxu0 0.0
  %3248 = vmatpush1.msra.mxu0 0.0
  %3249 = vmatprep.subr.mxu0 0.0
  %3250 = vmatpush1.msra.mxu0 0.0
  %3251 = vmatprep.subr.mxu0 0.0
  %3252 = vmatpush1.msra.mxu0 0.0
  %3253 = vmatprep.subr.mxu0 0.0
  %3254 = vmatpush1.msra.mxu0 0.0
  %3255 = vmatprep.subr.mxu0 0.0
  %3256 = vmatpush1.msra.mxu0 0.0
  %3257 = vmatprep.subr.mxu0 0.0
  %3258 = vmatpush1.msra.mxu0 0.0
  %3259 = vmatprep.subr.mxu0 0.0
  %3260 = vmatpush1.msra.mxu0 0.0
  %3261 = vmatprep.subr.mxu0 0.0
  %3262 = vmatpush1.msra.mxu0 0.0
  %3263 = vmatprep.subr.mxu0 0.0
  %3264 = vmatpush1.msra.mxu0 0.0
  %3265 = vmatprep.subr.mxu0 0.0
  %3266 = vmatpush1.msra.mxu0 0.0
  %3267 = vmatprep.subr.mxu0 0.0
  %3268 = vmatpush1.msra.mxu0 0.0
  %3269 = vmatprep.subr.mxu0 0.0
  %3270 = vmatpush1.msra.mxu0 0.0
  %3271 = vmatprep.subr.mxu0 0.0
  %3272 = vmatpush1.msra.mxu0 0.0
  %3273 = vmatprep.subr.mxu0 0.0
  %3274 = vmatpush1.msra.mxu0 0.0
  %3275 = vmatprep.subr.mxu0 0.0
  %3276 = vmatpush1.msra.mxu0 0.0
  %3277 = vmatprep.mubr.f32.mxu0 0.0
  %3278 = vmatmul.mubr.f32.gmra.mrb[0].mxu0 %v3202
  %v3279 = vpop.f32.mrb[0].mxu0
  %v3280 = vadd.f32 0.0, %v3279
  %v3281 = vpop.f32.mrb[0].mxu0
  %3282 = vmatprep.mubr.f32.mxu0 0.0
  %3283 = vmatmul.mubr.f32.gmra.mrb[0].mxu0 %v3205
  %v3284 = vpop.f32.mrb[0].mxu0
  %v3285 = vadd.f32 0.0, %v3284
  %v3286 = vpop.f32.mrb[0].mxu0
  %3287 = vmatprep.mubr.f32.mxu0 0.0
  %3288 = vmatmul.mubr.f32.gmra.mrb[0].mxu0 %v3208
  %v3289 = vpop.f32.mrb[0].mxu0
  %v3290 = vadd.f32 0.0, %v3289
  %v3291 = vpop.f32.mrb[0].mxu0
  %3292 = vmatprep.mubr.f32.mxu0 0.0
  %3293 = vmatmul.mubr.f32.gmra.mrb[0].mxu0 %v3211
  %v3294 = vpop.f32.mrb[0].mxu0
  %v3295 = vadd.f32 0.0, %v3294
  %v3296 = vpop.f32.mrb[0].mxu0
  %3297 = vdwg.mxu0
  %v3298 = vmul.f32 %v3280, 0.020408163
  %v3299 = vmul.f32 %v3285, 0.020408163
  %v3300 = vmul.f32 %v3290, 0.020408163
  %v3301 = vmul.f32 %v3295, 0.020408163
  %v3302 = vsub.f32 %v3197, %v3298
  %v3303 = vsub.f32 %v3198, %v3299
  %v3304 = vsub.f32 %v3199, %v3300
  %v3305 = vsub.f32 %v3200, %v3301
  %v3306 = vmul.f32 %v3302, %v3302
  %v3307 = vmul.f32 %v3303, %v3303
  %v3308 = vmul.f32 %v3304, %v3304
  %v3309 = vmul.f32 %v3305, %v3305
  %v3311 = vsel %vm908, %v3306, 0
  %v3314 = vsel %vm908, %v3307, 0
  %v3317 = vsel %vm908, %v3308, 0
  %v3320 = vsel %vm908, %v3309, 0
  %3322 = vmatprep.subr.mxu0 0.0
  %3323 = vmatpush1.msra.mxu0 1.0
  %3324 = vmatprep.subr.mxu0 0.0
  %3325 = vmatpush1.msra.mxu0 1.0
  %3326 = vmatprep.subr.mxu0 0.0
  %3327 = vmatpush1.msra.mxu0 1.0
  %3328 = vmatprep.subr.mxu0 0.0
  %3329 = vmatpush1.msra.mxu0 1.0
  %3330 = vmatprep.subr.mxu0 0.0
  %3331 = vmatpush1.msra.mxu0 1.0
  %3332 = vmatprep.subr.mxu0 0.0
  %3333 = vmatpush1.msra.mxu0 1.0
  %3334 = vmatprep.subr.mxu0 0.0
  %3335 = vmatpush1.msra.mxu0 %v923
  %3336 = vmatprep.subr.mxu0 0.0
  %3337 = vmatpush1.msra.mxu0 0.0
  %3338 = vmatprep.subr.mxu0 0.0
  %3339 = vmatpush1.msra.mxu0 0.0
  %3340 = vmatprep.subr.mxu0 0.0
  %3341 = vmatpush1.msra.mxu0 0.0
  %3342 = vmatprep.subr.mxu0 0.0
  %3343 = vmatpush1.msra.mxu0 0.0
  %3344 = vmatprep.subr.mxu0 0.0
  %3345 = vmatpush1.msra.mxu0 0.0
  %3346 = vmatprep.subr.mxu0 0.0
  %3347 = vmatpush1.msra.mxu0 0.0
  %3348 = vmatprep.subr.mxu0 0.0
  %3349 = vmatpush1.msra.mxu0 0.0
  %3350 = vmatprep.subr.mxu0 0.0
  %3351 = vmatpush1.msra.mxu0 0.0
  %3352 = vmatprep.subr.mxu0 0.0
  %3353 = vmatpush1.msra.mxu0 0.0
  %3354 = vmatprep.subr.mxu0 0.0
  %3355 = vmatpush1.msra.mxu0 0.0
  %3356 = vmatprep.subr.mxu0 0.0
  %3357 = vmatpush1.msra.mxu0 0.0
  %3358 = vmatprep.subr.mxu0 0.0
  %3359 = vmatpush1.msra.mxu0 0.0
  %3360 = vmatprep.subr.mxu0 0.0
  %3361 = vmatpush1.msra.mxu0 0.0
  %3362 = vmatprep.subr.mxu0 0.0
  %3363 = vmatpush1.msra.mxu0 0.0
  %3364 = vmatprep.subr.mxu0 0.0
  %3365 = vmatpush1.msra.mxu0 0.0
  %3366 = vmatprep.subr.mxu0 0.0
  %3367 = vmatpush1.msra.mxu0 0.0
  %3368 = vmatprep.subr.mxu0 0.0
  %3369 = vmatpush1.msra.mxu0 0.0
  %3370 = vmatprep.subr.mxu0 0.0
  %3371 = vmatpush1.msra.mxu0 0.0
  %3372 = vmatprep.subr.mxu0 0.0
  %3373 = vmatpush1.msra.mxu0 0.0
  %3374 = vmatprep.subr.mxu0 0.0
  %3375 = vmatpush1.msra.mxu0 0.0
  %3376 = vmatprep.subr.mxu0 0.0
  %3377 = vmatpush1.msra.mxu0 0.0
  %3378 = vmatprep.subr.mxu0 0.0
  %3379 = vmatpush1.msra.mxu0 0.0
  %3380 = vmatprep.subr.mxu0 0.0
  %3381 = vmatpush1.msra.mxu0 0.0
  %3382 = vmatprep.subr.mxu0 0.0
  %3383 = vmatpush1.msra.mxu0 0.0
  %3384 = vmatprep.subr.mxu0 0.0
  %3385 = vmatpush1.msra.mxu0 0.0
  %3386 = vmatprep.mubr.f32.mxu0 0.0
  %3387 = vmatmul.mubr.f32.gmra.mrb[0].mxu0 %v3311
  %v3388 = vpop.f32.mrb[0].mxu0
  %v3389 = vadd.f32 0.0, %v3388
  %v3390 = vpop.f32.mrb[0].mxu0
  %3391 = vmatprep.mubr.f32.mxu0 0.0
  %3392 = vmatmul.mubr.f32.gmra.mrb[0].mxu0 %v3314
  %v3393 = vpop.f32.mrb[0].mxu0
  %v3394 = vadd.f32 0.0, %v3393
  %v3395 = vpop.f32.mrb[0].mxu0
  %3396 = vmatprep.mubr.f32.mxu0 0.0
  %3397 = vmatmul.mubr.f32.gmra.mrb[0].mxu0 %v3317
  %v3398 = vpop.f32.mrb[0].mxu0
  %v3399 = vadd.f32 0.0, %v3398
  %v3400 = vpop.f32.mrb[0].mxu0
  %3401 = vmatprep.mubr.f32.mxu0 0.0
  %3402 = vmatmul.mubr.f32.gmra.mrb[0].mxu0 %v3320
  %v3403 = vpop.f32.mrb[0].mxu0
  %v3404 = vadd.f32 0.0, %v3403
  %v3405 = vpop.f32.mrb[0].mxu0
  %3406 = vdwg.mxu0
  %v3407 = vmul.f32 %v3389, 0.020408163
  %v3408 = vmul.f32 %v3394, 0.020408163
  %v3409 = vmul.f32 %v3399, 0.020408163
  %v3410 = vmul.f32 %v3404, 0.020408163
  %v3411 = vadd.f32 %v3407, 1e-05
  %v3412 = vadd.f32 %v3408, 1e-05
  %v3413 = vadd.f32 %v3409, 1e-05
  %v3414 = vadd.f32 %v3410, 1e-05
  %v3415 = vrsqrt.pop %v3411
  %v3416 = vrsqrt.pop %v3412
  %v3417 = vrsqrt.pop %v3413
  %v3418 = vrsqrt.pop %v3414
  %v3419 = vld [vmem:[%s2 + $0x2e0] sm:$0xff]
  %v3420 = vld [vmem:[%s2 + $0x2e8] sm:$0xff]
  %v3421 = vld [vmem:[%s2 + $0x2f0] sm:$0xff]
  %v3422 = vld [vmem:[%s2 + $0x2f8] sm:$0xff]
  %3424 = vset.pattern.permute.xlu0 0
  %3425 = vperm.xlu0 %3424, %v3419
  %v3426 = vpop.permute.xlu0 %3425
  %3429 = vset.pattern.permute.xlu0 0
  %3430 = vperm.xlu0 %3429, %v3420
  %v3431 = vpop.permute.xlu0 %3430
  %3434 = vset.pattern.permute.xlu0 0
  %3435 = vperm.xlu0 %3434, %v3421
  %v3436 = vpop.permute.xlu0 %3435
  %3439 = vset.pattern.permute.xlu0 0
  %3440 = vperm.xlu0 %3439, %v3422
  %v3441 = vpop.permute.xlu0 %3440
  %v3443 = vmul.f32 %v3415, %v3426
  %v3444 = vmul.f32 %v3416, %v3431
  %v3445 = vmul.f32 %v3417, %v3436
  %v3446 = vmul.f32 %v3418, %v3441
  %v3447 = vmul.f32 %v3302, %v3443
  %v3448 = vmul.f32 %v3303, %v3444
  %v3449 = vmul.f32 %v3304, %v3445
  %v3450 = vmul.f32 %v3305, %v3446
  %v3451 = vld [vmem:[%s3 + $0x2e0] sm:$0xff]
  %v3452 = vld [vmem:[%s3 + $0x2e8] sm:$0xff]
  %v3453 = vld [vmem:[%s3 + $0x2f0] sm:$0xff]
  %v3454 = vld [vmem:[%s3 + $0x2f8] sm:$0xff]
  %3456 = vset.pattern.permute.xlu0 0
  %3457 = vperm.xlu0 %3456, %v3451
  %v3458 = vpop.permute.xlu0 %3457
  %3461 = vset.pattern.permute.xlu0 0
  %3462 = vperm.xlu0 %3461, %v3452
  %v3463 = vpop.permute.xlu0 %3462
  %3466 = vset.pattern.permute.xlu0 0
  %3467 = vperm.xlu0 %3466, %v3453
  %v3468 = vpop.permute.xlu0 %3467
  %3471 = vset.pattern.permute.xlu0 0
  %3472 = vperm.xlu0 %3471, %v3454
  %v3473 = vpop.permute.xlu0 %3472
  %v3475 = vadd.f32 %v3447, %v3458
  %v3476 = vadd.f32 %v3448, %v3463
  %v3477 = vadd.f32 %v3449, %v3468
  %v3478 = vadd.f32 %v3450, %v3473
  %3479 = vst.msk [vmem:[%s18 + $0x2e0] sm:$0xff] %vm908, %v3475
  %3480 = vst.msk [vmem:[%s18 + $0x2e8] sm:$0xff] %vm908, %v3476
  %3481 = vst.msk [vmem:[%s18 + $0x2f0] sm:$0xff] %vm908, %v3477
  %3482 = vst.msk [vmem:[%s18 + $0x2f8] sm:$0xff] %vm908, %v3478
  %v3483 = vld [vmem:[%s14] sm:$0xff]
  %v3484 = vld [vmem:[%s14 + $0x8] sm:$0xff]
  %v3485 = vld [vmem:[%s14 + $0x10] sm:$0xff]
  %v3486 = vld [vmem:[%s14 + $0x18] sm:$0xff]
  %v3488 = vsel %vm908, %v3483, 0
  %v3491 = vsel %vm908, %v3484, 0
  %v3494 = vsel %vm908, %v3485, 0
  %v3497 = vsel %vm908, %v3486, 0
  %3499 = vmatprep.subr.mxu0 0.0
  %3500 = vmatpush1.msra.mxu0 1.0
  %3501 = vmatprep.subr.mxu0 0.0
  %3502 = vmatpush1.msra.mxu0 1.0
  %3503 = vmatprep.subr.mxu0 0.0
  %3504 = vmatpush1.msra.mxu0 1.0
  %3505 = vmatprep.subr.mxu0 0.0
  %3506 = vmatpush1.msra.mxu0 1.0
  %3507 = vmatprep.subr.mxu0 0.0
  %3508 = vmatpush1.msra.mxu0 1.0
  %3509 = vmatprep.subr.mxu0 0.0
  %3510 = vmatpush1.msra.mxu0 1.0
  %3511 = vmatprep.subr.mxu0 0.0
  %3512 = vmatpush1.msra.mxu0 %v923
  %3513 = vmatprep.subr.mxu0 0.0
  %3514 = vmatpush1.msra.mxu0 0.0
  %3515 = vmatprep.subr.mxu0 0.0
  %3516 = vmatpush1.msra.mxu0 0.0
  %3517 = vmatprep.subr.mxu0 0.0
  %3518 = vmatpush1.msra.mxu0 0.0
  %3519 = vmatprep.subr.mxu0 0.0
  %3520 = vmatpush1.msra.mxu0 0.0
  %3521 = vmatprep.subr.mxu0 0.0
  %3522 = vmatpush1.msra.mxu0 0.0
  %3523 = vmatprep.subr.mxu0 0.0
  %3524 = vmatpush1.msra.mxu0 0.0
  %3525 = vmatprep.subr.mxu0 0.0
  %3526 = vmatpush1.msra.mxu0 0.0
  %3527 = vmatprep.subr.mxu0 0.0
  %3528 = vmatpush1.msra.mxu0 0.0
  %3529 = vmatprep.subr.mxu0 0.0
  %3530 = vmatpush1.msra.mxu0 0.0
  %3531 = vmatprep.subr.mxu0 0.0
  %3532 = vmatpush1.msra.mxu0 0.0
  %3533 = vmatprep.subr.mxu0 0.0
  %3534 = vmatpush1.msra.mxu0 0.0
  %3535 = vmatprep.subr.mxu0 0.0
  %3536 = vmatpush1.msra.mxu0 0.0
  %3537 = vmatprep.subr.mxu0 0.0
  %3538 = vmatpush1.msra.mxu0 0.0
  %3539 = vmatprep.subr.mxu0 0.0
  %3540 = vmatpush1.msra.mxu0 0.0
  %3541 = vmatprep.subr.mxu0 0.0
  %3542 = vmatpush1.msra.mxu0 0.0
  %3543 = vmatprep.subr.mxu0 0.0
  %3544 = vmatpush1.msra.mxu0 0.0
  %3545 = vmatprep.subr.mxu0 0.0
  %3546 = vmatpush1.msra.mxu0 0.0
  %3547 = vmatprep.subr.mxu0 0.0
  %3548 = vmatpush1.msra.mxu0 0.0
  %3549 = vmatprep.subr.mxu0 0.0
  %3550 = vmatpush1.msra.mxu0 0.0
  %3551 = vmatprep.subr.mxu0 0.0
  %3552 = vmatpush1.msra.mxu0 0.0
  %3553 = vmatprep.subr.mxu0 0.0
  %3554 = vmatpush1.msra.mxu0 0.0
  %3555 = vmatprep.subr.mxu0 0.0
  %3556 = vmatpush1.msra.mxu0 0.0
  %3557 = vmatprep.subr.mxu0 0.0
  %3558 = vmatpush1.msra.mxu0 0.0
  %3559 = vmatprep.subr.mxu0 0.0
  %3560 = vmatpush1.msra.mxu0 0.0
  %3561 = vmatprep.subr.mxu0 0.0
  %3562 = vmatpush1.msra.mxu0 0.0
  %3563 = vmatprep.mubr.f32.mxu0 0.0
  %3564 = vmatmul.mubr.f32.gmra.mrb[0].mxu0 %v3488
  %v3565 = vpop.f32.mrb[0].mxu0
  %v3566 = vadd.f32 0.0, %v3565
  %v3567 = vpop.f32.mrb[0].mxu0
  %3568 = vmatprep.mubr.f32.mxu0 0.0
  %3569 = vmatmul.mubr.f32.gmra.mrb[0].mxu0 %v3491
  %v3570 = vpop.f32.mrb[0].mxu0
  %v3571 = vadd.f32 0.0, %v3570
  %v3572 = vpop.f32.mrb[0].mxu0
  %3573 = vmatprep.mubr.f32.mxu0 0.0
  %3574 = vmatmul.mubr.f32.gmra.mrb[0].mxu0 %v3494
  %v3575 = vpop.f32.mrb[0].mxu0
  %v3576 = vadd.f32 0.0, %v3575
  %v3577 = vpop.f32.mrb[0].mxu0
  %3578 = vmatprep.mubr.f32.mxu0 0.0
  %3579 = vmatmul.mubr.f32.gmra.mrb[0].mxu0 %v3497
  %v3580 = vpop.f32.mrb[0].mxu0
  %v3581 = vadd.f32 0.0, %v3580
  %v3582 = vpop.f32.mrb[0].mxu0
  %3583 = vdwg.mxu0
  %v3584 = vmul.f32 %v3566, 0.020408163
  %v3585 = vmul.f32 %v3571, 0.020408163
  %v3586 = vmul.f32 %v3576, 0.020408163
  %v3587 = vmul.f32 %v3581, 0.020408163
  %v3588 = vsub.f32 %v3483, %v3584
  %v3589 = vsub.f32 %v3484, %v3585
  %v3590 = vsub.f32 %v3485, %v3586
  %v3591 = vsub.f32 %v3486, %v3587
  %v3592 = vmul.f32 %v3588, %v3588
  %v3593 = vmul.f32 %v3589, %v3589
  %v3594 = vmul.f32 %v3590, %v3590
  %v3595 = vmul.f32 %v3591, %v3591
  %v3597 = vsel %vm908, %v3592, 0
  %v3600 = vsel %vm908, %v3593, 0
  %v3603 = vsel %vm908, %v3594, 0
  %v3606 = vsel %vm908, %v3595, 0
  %3608 = vmatprep.subr.mxu0 0.0
  %3609 = vmatpush1.msra.mxu0 1.0
  %3610 = vmatprep.subr.mxu0 0.0
  %3611 = vmatpush1.msra.mxu0 1.0
  %3612 = vmatprep.subr.mxu0 0.0
  %3613 = vmatpush1.msra.mxu0 1.0
  %3614 = vmatprep.subr.mxu0 0.0
  %3615 = vmatpush1.msra.mxu0 1.0
  %3616 = vmatprep.subr.mxu0 0.0
  %3617 = vmatpush1.msra.mxu0 1.0
  %3618 = vmatprep.subr.mxu0 0.0
  %3619 = vmatpush1.msra.mxu0 1.0
  %3620 = vmatprep.subr.mxu0 0.0
  %3621 = vmatpush1.msra.mxu0 %v923
  %3622 = vmatprep.subr.mxu0 0.0
  %3623 = vmatpush1.msra.mxu0 0.0
  %3624 = vmatprep.subr.mxu0 0.0
  %3625 = vmatpush1.msra.mxu0 0.0
  %3626 = vmatprep.subr.mxu0 0.0
  %3627 = vmatpush1.msra.mxu0 0.0
  %3628 = vmatprep.subr.mxu0 0.0
  %3629 = vmatpush1.msra.mxu0 0.0
  %3630 = vmatprep.subr.mxu0 0.0
  %3631 = vmatpush1.msra.mxu0 0.0
  %3632 = vmatprep.subr.mxu0 0.0
  %3633 = vmatpush1.msra.mxu0 0.0
  %3634 = vmatprep.subr.mxu0 0.0
  %3635 = vmatpush1.msra.mxu0 0.0
  %3636 = vmatprep.subr.mxu0 0.0
  %3637 = vmatpush1.msra.mxu0 0.0
  %3638 = vmatprep.subr.mxu0 0.0
  %3639 = vmatpush1.msra.mxu0 0.0
  %3640 = vmatprep.subr.mxu0 0.0
  %3641 = vmatpush1.msra.mxu0 0.0
  %3642 = vmatprep.subr.mxu0 0.0
  %3643 = vmatpush1.msra.mxu0 0.0
  %3644 = vmatprep.subr.mxu0 0.0
  %3645 = vmatpush1.msra.mxu0 0.0
  %3646 = vmatprep.subr.mxu0 0.0
  %3647 = vmatpush1.msra.mxu0 0.0
  %3648 = vmatprep.subr.mxu0 0.0
  %3649 = vmatpush1.msra.mxu0 0.0
  %3650 = vmatprep.subr.mxu0 0.0
  %3651 = vmatpush1.msra.mxu0 0.0
  %3652 = vmatprep.subr.mxu0 0.0
  %3653 = vmatpush1.msra.mxu0 0.0
  %3654 = vmatprep.subr.mxu0 0.0
  %3655 = vmatpush1.msra.mxu0 0.0
  %3656 = vmatprep.subr.mxu0 0.0
  %3657 = vmatpush1.msra.mxu0 0.0
  %3658 = vmatprep.subr.mxu0 0.0
  %3659 = vmatpush1.msra.mxu0 0.0
  %3660 = vmatprep.subr.mxu0 0.0
  %3661 = vmatpush1.msra.mxu0 0.0
  %3662 = vmatprep.subr.mxu0 0.0
  %3663 = vmatpush1.msra.mxu0 0.0
  %3664 = vmatprep.subr.mxu0 0.0
  %3665 = vmatpush1.msra.mxu0 0.0
  %3666 = vmatprep.subr.mxu0 0.0
  %3667 = vmatpush1.msra.mxu0 0.0
  %3668 = vmatprep.subr.mxu0 0.0
  %3669 = vmatpush1.msra.mxu0 0.0
  %3670 = vmatprep.subr.mxu0 0.0
  %3671 = vmatpush1.msra.mxu0 0.0
  %3672 = vmatprep.mubr.f32.mxu0 0.0
  %3673 = vmatmul.mubr.f32.gmra.mrb[0].mxu0 %v3597
  %v3674 = vpop.f32.mrb[0].mxu0
  %v3675 = vadd.f32 0.0, %v3674
  %v3676 = vpop.f32.mrb[0].mxu0
  %3677 = vmatprep.mubr.f32.mxu0 0.0
  %3678 = vmatmul.mubr.f32.gmra.mrb[0].mxu0 %v3600
  %v3679 = vpop.f32.mrb[0].mxu0
  %v3680 = vadd.f32 0.0, %v3679
  %v3681 = vpop.f32.mrb[0].mxu0
  %3682 = vmatprep.mubr.f32.mxu0 0.0
  %3683 = vmatmul.mubr.f32.gmra.mrb[0].mxu0 %v3603
  %v3684 = vpop.f32.mrb[0].mxu0
  %v3685 = vadd.f32 0.0, %v3684
  %v3686 = vpop.f32.mrb[0].mxu0
  %3687 = vmatprep.mubr.f32.mxu0 0.0
  %3688 = vmatmul.mubr.f32.gmra.mrb[0].mxu0 %v3606
  %v3689 = vpop.f32.mrb[0].mxu0
  %v3690 = vadd.f32 0.0, %v3689
  %v3691 = vpop.f32.mrb[0].mxu0
  %3692 = vdwg.mxu0
  %v3693 = vmul.f32 %v3675, 0.020408163
  %v3694 = vmul.f32 %v3680, 0.020408163
  %v3695 = vmul.f32 %v3685, 0.020408163
  %v3696 = vmul.f32 %v3690, 0.020408163
  %v3697 = vadd.f32 %v3693, 1e-05
  %v3698 = vadd.f32 %v3694, 1e-05
  %v3699 = vadd.f32 %v3695, 1e-05
  %v3700 = vadd.f32 %v3696, 1e-05
  %v3701 = vrsqrt.pop %v3697
  %v3702 = vrsqrt.pop %v3698
  %v3703 = vrsqrt.pop %v3699
  %v3704 = vrsqrt.pop %v3700
  %v3705 = vld [vmem:[%s2 + $0x300] sm:$0xff]
  %v3706 = vld [vmem:[%s2 + $0x308] sm:$0xff]
  %v3707 = vld [vmem:[%s2 + $0x310] sm:$0xff]
  %v3708 = vld [vmem:[%s2 + $0x318] sm:$0xff]
  %3710 = vset.pattern.permute.xlu0 0
  %3711 = vperm.xlu0 %3710, %v3705
  %v3712 = vpop.permute.xlu0 %3711
  %3715 = vset.pattern.permute.xlu0 0
  %3716 = vperm.xlu0 %3715, %v3706
  %v3717 = vpop.permute.xlu0 %3716
  %3720 = vset.pattern.permute.xlu0 0
  %3721 = vperm.xlu0 %3720, %v3707
  %v3722 = vpop.permute.xlu0 %3721
  %3725 = vset.pattern.permute.xlu0 0
  %3726 = vperm.xlu0 %3725, %v3708
  %v3727 = vpop.permute.xlu0 %3726
  %v3729 = vmul.f32 %v3701, %v3712
  %v3730 = vmul.f32 %v3702, %v3717
  %v3731 = vmul.f32 %v3703, %v3722
  %v3732 = vmul.f32 %v3704, %v3727
  %v3733 = vmul.f32 %v3588, %v3729
  %v3734 = vmul.f32 %v3589, %v3730
  %v3735 = vmul.f32 %v3590, %v3731
  %v3736 = vmul.f32 %v3591, %v3732
  %v3737 = vld [vmem:[%s3 + $0x300] sm:$0xff]
  %v3738 = vld [vmem:[%s3 + $0x308] sm:$0xff]
  %v3739 = vld [vmem:[%s3 + $0x310] sm:$0xff]
  %v3740 = vld [vmem:[%s3 + $0x318] sm:$0xff]
  %3742 = vset.pattern.permute.xlu0 0
  %3743 = vperm.xlu0 %3742, %v3737
  %v3744 = vpop.permute.xlu0 %3743
  %3747 = vset.pattern.permute.xlu0 0
  %3748 = vperm.xlu0 %3747, %v3738
  %v3749 = vpop.permute.xlu0 %3748
  %3752 = vset.pattern.permute.xlu0 0
  %3753 = vperm.xlu0 %3752, %v3739
  %v3754 = vpop.permute.xlu0 %3753
  %3757 = vset.pattern.permute.xlu0 0
  %3758 = vperm.xlu0 %3757, %v3740
  %v3759 = vpop.permute.xlu0 %3758
  %v3761 = vadd.f32 %v3733, %v3744
  %v3762 = vadd.f32 %v3734, %v3749
  %v3763 = vadd.f32 %v3735, %v3754
  %v3764 = vadd.f32 %v3736, %v3759
  %3765 = vst.msk [vmem:[%s18 + $0x300] sm:$0xff] %vm908, %v3761
  %3766 = vst.msk [vmem:[%s18 + $0x308] sm:$0xff] %vm908, %v3762
  %3767 = vst.msk [vmem:[%s18 + $0x310] sm:$0xff] %vm908, %v3763
  %3768 = vst.msk [vmem:[%s18 + $0x318] sm:$0xff] %vm908, %v3764
  %v3769 = vld [vmem:[%s15] sm:$0xff]
  %v3770 = vld [vmem:[%s15 + $0x8] sm:$0xff]
  %v3771 = vld [vmem:[%s15 + $0x10] sm:$0xff]
  %v3772 = vld [vmem:[%s15 + $0x18] sm:$0xff]
  %v3774 = vsel %vm908, %v3769, 0
  %v3777 = vsel %vm908, %v3770, 0
  %v3780 = vsel %vm908, %v3771, 0
  %v3783 = vsel %vm908, %v3772, 0
  %3785 = vmatprep.subr.mxu0 0.0
  %3786 = vmatpush1.msra.mxu0 1.0
  %3787 = vmatprep.subr.mxu0 0.0
  %3788 = vmatpush1.msra.mxu0 1.0
  %3789 = vmatprep.subr.mxu0 0.0
  %3790 = vmatpush1.msra.mxu0 1.0
  %3791 = vmatprep.subr.mxu0 0.0
  %3792 = vmatpush1.msra.mxu0 1.0
  %3793 = vmatprep.subr.mxu0 0.0
  %3794 = vmatpush1.msra.mxu0 1.0
  %3795 = vmatprep.subr.mxu0 0.0
  %3796 = vmatpush1.msra.mxu0 1.0
  %3797 = vmatprep.subr.mxu0 0.0
  %3798 = vmatpush1.msra.mxu0 %v923
  %3799 = vmatprep.subr.mxu0 0.0
  %3800 = vmatpush1.msra.mxu0 0.0
  %3801 = vmatprep.subr.mxu0 0.0
  %3802 = vmatpush1.msra.mxu0 0.0
  %3803 = vmatprep.subr.mxu0 0.0
  %3804 = vmatpush1.msra.mxu0 0.0
  %3805 = vmatprep.subr.mxu0 0.0
  %3806 = vmatpush1.msra.mxu0 0.0
  %3807 = vmatprep.subr.mxu0 0.0
  %3808 = vmatpush1.msra.mxu0 0.0
  %3809 = vmatprep.subr.mxu0 0.0
  %3810 = vmatpush1.msra.mxu0 0.0
  %3811 = vmatprep.subr.mxu0 0.0
  %3812 = vmatpush1.msra.mxu0 0.0
  %3813 = vmatprep.subr.mxu0 0.0
  %3814 = vmatpush1.msra.mxu0 0.0
  %3815 = vmatprep.subr.mxu0 0.0
  %3816 = vmatpush1.msra.mxu0 0.0
  %3817 = vmatprep.subr.mxu0 0.0
  %3818 = vmatpush1.msra.mxu0 0.0
  %3819 = vmatprep.subr.mxu0 0.0
  %3820 = vmatpush1.msra.mxu0 0.0
  %3821 = vmatprep.subr.mxu0 0.0
  %3822 = vmatpush1.msra.mxu0 0.0
  %3823 = vmatprep.subr.mxu0 0.0
  %3824 = vmatpush1.msra.mxu0 0.0
  %3825 = vmatprep.subr.mxu0 0.0
  %3826 = vmatpush1.msra.mxu0 0.0
  %3827 = vmatprep.subr.mxu0 0.0
  %3828 = vmatpush1.msra.mxu0 0.0
  %3829 = vmatprep.subr.mxu0 0.0
  %3830 = vmatpush1.msra.mxu0 0.0
  %3831 = vmatprep.subr.mxu0 0.0
  %3832 = vmatpush1.msra.mxu0 0.0
  %3833 = vmatprep.subr.mxu0 0.0
  %3834 = vmatpush1.msra.mxu0 0.0
  %3835 = vmatprep.subr.mxu0 0.0
  %3836 = vmatpush1.msra.mxu0 0.0
  %3837 = vmatprep.subr.mxu0 0.0
  %3838 = vmatpush1.msra.mxu0 0.0
  %3839 = vmatprep.subr.mxu0 0.0
  %3840 = vmatpush1.msra.mxu0 0.0
  %3841 = vmatprep.subr.mxu0 0.0
  %3842 = vmatpush1.msra.mxu0 0.0
  %3843 = vmatprep.subr.mxu0 0.0
  %3844 = vmatpush1.msra.mxu0 0.0
  %3845 = vmatprep.subr.mxu0 0.0
  %3846 = vmatpush1.msra.mxu0 0.0
  %3847 = vmatprep.subr.mxu0 0.0
  %3848 = vmatpush1.msra.mxu0 0.0
  %3849 = vmatprep.mubr.f32.mxu0 0.0
  %3850 = vmatmul.mubr.f32.gmra.mrb[0].mxu0 %v3774
  %v3851 = vpop.f32.mrb[0].mxu0
  %v3852 = vadd.f32 0.0, %v3851
  %v3853 = vpop.f32.mrb[0].mxu0
  %3854 = vmatprep.mubr.f32.mxu0 0.0
  %3855 = vmatmul.mubr.f32.gmra.mrb[0].mxu0 %v3777
  %v3856 = vpop.f32.mrb[0].mxu0
  %v3857 = vadd.f32 0.0, %v3856
  %v3858 = vpop.f32.mrb[0].mxu0
  %3859 = vmatprep.mubr.f32.mxu0 0.0
  %3860 = vmatmul.mubr.f32.gmra.mrb[0].mxu0 %v3780
  %v3861 = vpop.f32.mrb[0].mxu0
  %v3862 = vadd.f32 0.0, %v3861
  %v3863 = vpop.f32.mrb[0].mxu0
  %3864 = vmatprep.mubr.f32.mxu0 0.0
  %3865 = vmatmul.mubr.f32.gmra.mrb[0].mxu0 %v3783
  %v3866 = vpop.f32.mrb[0].mxu0
  %v3867 = vadd.f32 0.0, %v3866
  %v3868 = vpop.f32.mrb[0].mxu0
  %3869 = vdwg.mxu0
  %v3870 = vmul.f32 %v3852, 0.020408163
  %v3871 = vmul.f32 %v3857, 0.020408163
  %v3872 = vmul.f32 %v3862, 0.020408163
  %v3873 = vmul.f32 %v3867, 0.020408163
  %v3874 = vsub.f32 %v3769, %v3870
  %v3875 = vsub.f32 %v3770, %v3871
  %v3876 = vsub.f32 %v3771, %v3872
  %v3877 = vsub.f32 %v3772, %v3873
  %v3878 = vmul.f32 %v3874, %v3874
  %v3879 = vmul.f32 %v3875, %v3875
  %v3880 = vmul.f32 %v3876, %v3876
  %v3881 = vmul.f32 %v3877, %v3877
  %v3883 = vsel %vm908, %v3878, 0
  %v3886 = vsel %vm908, %v3879, 0
  %v3889 = vsel %vm908, %v3880, 0
  %v3892 = vsel %vm908, %v3881, 0
  %3894 = vmatprep.subr.mxu0 0.0
  %3895 = vmatpush1.msra.mxu0 1.0
  %3896 = vmatprep.subr.mxu0 0.0
  %3897 = vmatpush1.msra.mxu0 1.0
  %3898 = vmatprep.subr.mxu0 0.0
  %3899 = vmatpush1.msra.mxu0 1.0
  %3900 = vmatprep.subr.mxu0 0.0
  %3901 = vmatpush1.msra.mxu0 1.0
  %3902 = vmatprep.subr.mxu0 0.0
  %3903 = vmatpush1.msra.mxu0 1.0
  %3904 = vmatprep.subr.mxu0 0.0
  %3905 = vmatpush1.msra.mxu0 1.0
  %3906 = vmatprep.subr.mxu0 0.0
  %3907 = vmatpush1.msra.mxu0 %v923
  %3908 = vmatprep.subr.mxu0 0.0
  %3909 = vmatpush1.msra.mxu0 0.0
  %3910 = vmatprep.subr.mxu0 0.0
  %3911 = vmatpush1.msra.mxu0 0.0
  %3912 = vmatprep.subr.mxu0 0.0
  %3913 = vmatpush1.msra.mxu0 0.0
  %3914 = vmatprep.subr.mxu0 0.0
  %3915 = vmatpush1.msra.mxu0 0.0
  %3916 = vmatprep.subr.mxu0 0.0
  %3917 = vmatpush1.msra.mxu0 0.0
  %3918 = vmatprep.subr.mxu0 0.0
  %3919 = vmatpush1.msra.mxu0 0.0
  %3920 = vmatprep.subr.mxu0 0.0
  %3921 = vmatpush1.msra.mxu0 0.0
  %3922 = vmatprep.subr.mxu0 0.0
  %3923 = vmatpush1.msra.mxu0 0.0
  %3924 = vmatprep.subr.mxu0 0.0
  %3925 = vmatpush1.msra.mxu0 0.0
  %3926 = vmatprep.subr.mxu0 0.0
  %3927 = vmatpush1.msra.mxu0 0.0
  %3928 = vmatprep.subr.mxu0 0.0
  %3929 = vmatpush1.msra.mxu0 0.0
  %3930 = vmatprep.subr.mxu0 0.0
  %3931 = vmatpush1.msra.mxu0 0.0
  %3932 = vmatprep.subr.mxu0 0.0
  %3933 = vmatpush1.msra.mxu0 0.0
  %3934 = vmatprep.subr.mxu0 0.0
  %3935 = vmatpush1.msra.mxu0 0.0
  %3936 = vmatprep.subr.mxu0 0.0
  %3937 = vmatpush1.msra.mxu0 0.0
  %3938 = vmatprep.subr.mxu0 0.0
  %3939 = vmatpush1.msra.mxu0 0.0
  %3940 = vmatprep.subr.mxu0 0.0
  %3941 = vmatpush1.msra.mxu0 0.0
  %3942 = vmatprep.subr.mxu0 0.0
  %3943 = vmatpush1.msra.mxu0 0.0
  %3944 = vmatprep.subr.mxu0 0.0
  %3945 = vmatpush1.msra.mxu0 0.0
  %3946 = vmatprep.subr.mxu0 0.0
  %3947 = vmatpush1.msra.mxu0 0.0
  %3948 = vmatprep.subr.mxu0 0.0
  %3949 = vmatpush1.msra.mxu0 0.0
  %3950 = vmatprep.subr.mxu0 0.0
  %3951 = vmatpush1.msra.mxu0 0.0
  %3952 = vmatprep.subr.mxu0 0.0
  %3953 = vmatpush1.msra.mxu0 0.0
  %3954 = vmatprep.subr.mxu0 0.0
  %3955 = vmatpush1.msra.mxu0 0.0
  %3956 = vmatprep.subr.mxu0 0.0
  %3957 = vmatpush1.msra.mxu0 0.0
  %3958 = vmatprep.mubr.f32.mxu0 0.0
  %3959 = vmatmul.mubr.f32.gmra.mrb[0].mxu0 %v3883
  %v3960 = vpop.f32.mrb[0].mxu0
  %v3961 = vadd.f32 0.0, %v3960
  %v3962 = vpop.f32.mrb[0].mxu0
  %3963 = vmatprep.mubr.f32.mxu0 0.0
  %3964 = vmatmul.mubr.f32.gmra.mrb[0].mxu0 %v3886
  %v3965 = vpop.f32.mrb[0].mxu0
  %v3966 = vadd.f32 0.0, %v3965
  %v3967 = vpop.f32.mrb[0].mxu0
  %3968 = vmatprep.mubr.f32.mxu0 0.0
  %3969 = vmatmul.mubr.f32.gmra.mrb[0].mxu0 %v3889
  %v3970 = vpop.f32.mrb[0].mxu0
  %v3971 = vadd.f32 0.0, %v3970
  %v3972 = vpop.f32.mrb[0].mxu0
  %3973 = vmatprep.mubr.f32.mxu0 0.0
  %3974 = vmatmul.mubr.f32.gmra.mrb[0].mxu0 %v3892
  %v3975 = vpop.f32.mrb[0].mxu0
  %v3976 = vadd.f32 0.0, %v3975
  %v3977 = vpop.f32.mrb[0].mxu0
  %3978 = vdwg.mxu0
  %v3979 = vmul.f32 %v3961, 0.020408163
  %v3980 = vmul.f32 %v3966, 0.020408163
  %v3981 = vmul.f32 %v3971, 0.020408163
  %v3982 = vmul.f32 %v3976, 0.020408163
  %v3983 = vadd.f32 %v3979, 1e-05
  %v3984 = vadd.f32 %v3980, 1e-05
  %v3985 = vadd.f32 %v3981, 1e-05
  %v3986 = vadd.f32 %v3982, 1e-05
  %v3987 = vrsqrt.pop %v3983
  %v3988 = vrsqrt.pop %v3984
  %v3989 = vrsqrt.pop %v3985
  %v3990 = vrsqrt.pop %v3986
  %v3991 = vld [vmem:[%s2 + $0x320] sm:$0xff]
  %v3992 = vld [vmem:[%s2 + $0x328] sm:$0xff]
  %v3993 = vld [vmem:[%s2 + $0x330] sm:$0xff]
  %v3994 = vld [vmem:[%s2 + $0x338] sm:$0xff]
  %3996 = vset.pattern.permute.xlu0 0
  %3997 = vperm.xlu0 %3996, %v3991
  %v3998 = vpop.permute.xlu0 %3997
  %4001 = vset.pattern.permute.xlu0 0
  %4002 = vperm.xlu0 %4001, %v3992
  %v4003 = vpop.permute.xlu0 %4002
  %4006 = vset.pattern.permute.xlu0 0
  %4007 = vperm.xlu0 %4006, %v3993
  %v4008 = vpop.permute.xlu0 %4007
  %4011 = vset.pattern.permute.xlu0 0
  %4012 = vperm.xlu0 %4011, %v3994
  %v4013 = vpop.permute.xlu0 %4012
  %v4015 = vmul.f32 %v3987, %v3998
  %v4016 = vmul.f32 %v3988, %v4003
  %v4017 = vmul.f32 %v3989, %v4008
  %v4018 = vmul.f32 %v3990, %v4013
  %v4019 = vmul.f32 %v3874, %v4015
  %v4020 = vmul.f32 %v3875, %v4016
  %v4021 = vmul.f32 %v3876, %v4017
  %v4022 = vmul.f32 %v3877, %v4018
  %v4023 = vld [vmem:[%s3 + $0x320] sm:$0xff]
  %v4024 = vld [vmem:[%s3 + $0x328] sm:$0xff]
  %v4025 = vld [vmem:[%s3 + $0x330] sm:$0xff]
  %v4026 = vld [vmem:[%s3 + $0x338] sm:$0xff]
  %4028 = vset.pattern.permute.xlu0 0
  %4029 = vperm.xlu0 %4028, %v4023
  %v4030 = vpop.permute.xlu0 %4029
  %4033 = vset.pattern.permute.xlu0 0
  %4034 = vperm.xlu0 %4033, %v4024
  %v4035 = vpop.permute.xlu0 %4034
  %4038 = vset.pattern.permute.xlu0 0
  %4039 = vperm.xlu0 %4038, %v4025
  %v4040 = vpop.permute.xlu0 %4039
  %4043 = vset.pattern.permute.xlu0 0
  %4044 = vperm.xlu0 %4043, %v4026
  %v4045 = vpop.permute.xlu0 %4044
  %v4047 = vadd.f32 %v4019, %v4030
  %v4048 = vadd.f32 %v4020, %v4035
  %v4049 = vadd.f32 %v4021, %v4040
  %v4050 = vadd.f32 %v4022, %v4045
  %4051 = vst.msk [vmem:[%s18 + $0x320] sm:$0xff] %vm908, %v4047
  %4052 = vst.msk [vmem:[%s18 + $0x328] sm:$0xff] %vm908, %v4048
  %4053 = vst.msk [vmem:[%s18 + $0x330] sm:$0xff] %vm908, %v4049
  %4054 = vst.msk [vmem:[%s18 + $0x338] sm:$0xff] %vm908, %v4050
  %v4055 = vld [vmem:[%s16] sm:$0xff]
  %v4056 = vld [vmem:[%s16 + $0x8] sm:$0xff]
  %v4057 = vld [vmem:[%s16 + $0x10] sm:$0xff]
  %v4058 = vld [vmem:[%s16 + $0x18] sm:$0xff]
  %v4060 = vsel %vm908, %v4055, 0
  %v4063 = vsel %vm908, %v4056, 0
  %v4066 = vsel %vm908, %v4057, 0
  %v4069 = vsel %vm908, %v4058, 0
  %4071 = vmatprep.subr.mxu0 0.0
  %4072 = vmatpush1.msra.mxu0 1.0
  %4073 = vmatprep.subr.mxu0 0.0
  %4074 = vmatpush1.msra.mxu0 1.0
  %4075 = vmatprep.subr.mxu0 0.0
  %4076 = vmatpush1.msra.mxu0 1.0
  %4077 = vmatprep.subr.mxu0 0.0
  %4078 = vmatpush1.msra.mxu0 1.0
  %4079 = vmatprep.subr.mxu0 0.0
  %4080 = vmatpush1.msra.mxu0 1.0
  %4081 = vmatprep.subr.mxu0 0.0
  %4082 = vmatpush1.msra.mxu0 1.0
  %4083 = vmatprep.subr.mxu0 0.0
  %4084 = vmatpush1.msra.mxu0 %v923
  %4085 = vmatprep.subr.mxu0 0.0
  %4086 = vmatpush1.msra.mxu0 0.0
  %4087 = vmatprep.subr.mxu0 0.0
  %4088 = vmatpush1.msra.mxu0 0.0
  %4089 = vmatprep.subr.mxu0 0.0
  %4090 = vmatpush1.msra.mxu0 0.0
  %4091 = vmatprep.subr.mxu0 0.0
  %4092 = vmatpush1.msra.mxu0 0.0
  %4093 = vmatprep.subr.mxu0 0.0
  %4094 = vmatpush1.msra.mxu0 0.0
  %4095 = vmatprep.subr.mxu0 0.0
  %4096 = vmatpush1.msra.mxu0 0.0
  %4097 = vmatprep.subr.mxu0 0.0
  %4098 = vmatpush1.msra.mxu0 0.0
  %4099 = vmatprep.subr.mxu0 0.0
  %4100 = vmatpush1.msra.mxu0 0.0
  %4101 = vmatprep.subr.mxu0 0.0
  %4102 = vmatpush1.msra.mxu0 0.0
  %4103 = vmatprep.subr.mxu0 0.0
  %4104 = vmatpush1.msra.mxu0 0.0
  %4105 = vmatprep.subr.mxu0 0.0
  %4106 = vmatpush1.msra.mxu0 0.0
  %4107 = vmatprep.subr.mxu0 0.0
  %4108 = vmatpush1.msra.mxu0 0.0
  %4109 = vmatprep.subr.mxu0 0.0
  %4110 = vmatpush1.msra.mxu0 0.0
  %4111 = vmatprep.subr.mxu0 0.0
  %4112 = vmatpush1.msra.mxu0 0.0
  %4113 = vmatprep.subr.mxu0 0.0
  %4114 = vmatpush1.msra.mxu0 0.0
  %4115 = vmatprep.subr.mxu0 0.0
  %4116 = vmatpush1.msra.mxu0 0.0
  %4117 = vmatprep.subr.mxu0 0.0
  %4118 = vmatpush1.msra.mxu0 0.0
  %4119 = vmatprep.subr.mxu0 0.0
  %4120 = vmatpush1.msra.mxu0 0.0
  %4121 = vmatprep.subr.mxu0 0.0
  %4122 = vmatpush1.msra.mxu0 0.0
  %4123 = vmatprep.subr.mxu0 0.0
  %4124 = vmatpush1.msra.mxu0 0.0
  %4125 = vmatprep.subr.mxu0 0.0
  %4126 = vmatpush1.msra.mxu0 0.0
  %4127 = vmatprep.subr.mxu0 0.0
  %4128 = vmatpush1.msra.mxu0 0.0
  %4129 = vmatprep.subr.mxu0 0.0
  %4130 = vmatpush1.msra.mxu0 0.0
  %4131 = vmatprep.subr.mxu0 0.0
  %4132 = vmatpush1.msra.mxu0 0.0
  %4133 = vmatprep.subr.mxu0 0.0
  %4134 = vmatpush1.msra.mxu0 0.0
  %4135 = vmatprep.mubr.f32.mxu0 0.0
  %4136 = vmatmul.mubr.f32.gmra.mrb[0].mxu0 %v4060
  %v4137 = vpop.f32.mrb[0].mxu0
  %v4138 = vadd.f32 0.0, %v4137
  %v4139 = vpop.f32.mrb[0].mxu0
  %4140 = vmatprep.mubr.f32.mxu0 0.0
  %4141 = vmatmul.mubr.f32.gmra.mrb[0].mxu0 %v4063
  %v4142 = vpop.f32.mrb[0].mxu0
  %v4143 = vadd.f32 0.0, %v4142
  %v4144 = vpop.f32.mrb[0].mxu0
  %4145 = vmatprep.mubr.f32.mxu0 0.0
  %4146 = vmatmul.mubr.f32.gmra.mrb[0].mxu0 %v4066
  %v4147 = vpop.f32.mrb[0].mxu0
  %v4148 = vadd.f32 0.0, %v4147
  %v4149 = vpop.f32.mrb[0].mxu0
  %4150 = vmatprep.mubr.f32.mxu0 0.0
  %4151 = vmatmul.mubr.f32.gmra.mrb[0].mxu0 %v4069
  %v4152 = vpop.f32.mrb[0].mxu0
  %v4153 = vadd.f32 0.0, %v4152
  %v4154 = vpop.f32.mrb[0].mxu0
  %4155 = vdwg.mxu0
  %v4156 = vmul.f32 %v4138, 0.020408163
  %v4157 = vmul.f32 %v4143, 0.020408163
  %v4158 = vmul.f32 %v4148, 0.020408163
  %v4159 = vmul.f32 %v4153, 0.020408163
  %v4160 = vsub.f32 %v4055, %v4156
  %v4161 = vsub.f32 %v4056, %v4157
  %v4162 = vsub.f32 %v4057, %v4158
  %v4163 = vsub.f32 %v4058, %v4159
  %v4164 = vmul.f32 %v4160, %v4160
  %v4165 = vmul.f32 %v4161, %v4161
  %v4166 = vmul.f32 %v4162, %v4162
  %v4167 = vmul.f32 %v4163, %v4163
  %v4169 = vsel %vm908, %v4164, 0
  %v4172 = vsel %vm908, %v4165, 0
  %v4175 = vsel %vm908, %v4166, 0
  %v4178 = vsel %vm908, %v4167, 0
  %4180 = vmatprep.subr.mxu0 0.0
  %4181 = vmatpush1.msra.mxu0 1.0
  %4182 = vmatprep.subr.mxu0 0.0
  %4183 = vmatpush1.msra.mxu0 1.0
  %4184 = vmatprep.subr.mxu0 0.0
  %4185 = vmatpush1.msra.mxu0 1.0
  %4186 = vmatprep.subr.mxu0 0.0
  %4187 = vmatpush1.msra.mxu0 1.0
  %4188 = vmatprep.subr.mxu0 0.0
  %4189 = vmatpush1.msra.mxu0 1.0
  %4190 = vmatprep.subr.mxu0 0.0
  %4191 = vmatpush1.msra.mxu0 1.0
  %4192 = vmatprep.subr.mxu0 0.0
  %4193 = vmatpush1.msra.mxu0 %v923
  %4194 = vmatprep.subr.mxu0 0.0
  %4195 = vmatpush1.msra.mxu0 0.0
  %4196 = vmatprep.subr.mxu0 0.0
  %4197 = vmatpush1.msra.mxu0 0.0
  %4198 = vmatprep.subr.mxu0 0.0
  %4199 = vmatpush1.msra.mxu0 0.0
  %4200 = vmatprep.subr.mxu0 0.0
  %4201 = vmatpush1.msra.mxu0 0.0
  %4202 = vmatprep.subr.mxu0 0.0
  %4203 = vmatpush1.msra.mxu0 0.0
  %4204 = vmatprep.subr.mxu0 0.0
  %4205 = vmatpush1.msra.mxu0 0.0
  %4206 = vmatprep.subr.mxu0 0.0
  %4207 = vmatpush1.msra.mxu0 0.0
  %4208 = vmatprep.subr.mxu0 0.0
  %4209 = vmatpush1.msra.mxu0 0.0
  %4210 = vmatprep.subr.mxu0 0.0
  %4211 = vmatpush1.msra.mxu0 0.0
  %4212 = vmatprep.subr.mxu0 0.0
  %4213 = vmatpush1.msra.mxu0 0.0
  %4214 = vmatprep.subr.mxu0 0.0
  %4215 = vmatpush1.msra.mxu0 0.0
  %4216 = vmatprep.subr.mxu0 0.0
  %4217 = vmatpush1.msra.mxu0 0.0
  %4218 = vmatprep.subr.mxu0 0.0
  %4219 = vmatpush1.msra.mxu0 0.0
  %4220 = vmatprep.subr.mxu0 0.0
  %4221 = vmatpush1.msra.mxu0 0.0
  %4222 = vmatprep.subr.mxu0 0.0
  %4223 = vmatpush1.msra.mxu0 0.0
  %4224 = vmatprep.subr.mxu0 0.0
  %4225 = vmatpush1.msra.mxu0 0.0
  %4226 = vmatprep.subr.mxu0 0.0
  %4227 = vmatpush1.msra.mxu0 0.0
  %4228 = vmatprep.subr.mxu0 0.0
  %4229 = vmatpush1.msra.mxu0 0.0
  %4230 = vmatprep.subr.mxu0 0.0
  %4231 = vmatpush1.msra.mxu0 0.0
  %4232 = vmatprep.subr.mxu0 0.0
  %4233 = vmatpush1.msra.mxu0 0.0
  %4234 = vmatprep.subr.mxu0 0.0
  %4235 = vmatpush1.msra.mxu0 0.0
  %4236 = vmatprep.subr.mxu0 0.0
  %4237 = vmatpush1.msra.mxu0 0.0
  %4238 = vmatprep.subr.mxu0 0.0
  %4239 = vmatpush1.msra.mxu0 0.0
  %4240 = vmatprep.subr.mxu0 0.0
  %4241 = vmatpush1.msra.mxu0 0.0
  %4242 = vmatprep.subr.mxu0 0.0
  %4243 = vmatpush1.msra.mxu0 0.0
  %4244 = vmatprep.mubr.f32.mxu0 0.0
  %4245 = vmatmul.mubr.f32.gmra.mrb[0].mxu0 %v4169
  %v4246 = vpop.f32.mrb[0].mxu0
  %v4247 = vadd.f32 0.0, %v4246
  %v4248 = vpop.f32.mrb[0].mxu0
  %4249 = vmatprep.mubr.f32.mxu0 0.0
  %4250 = vmatmul.mubr.f32.gmra.mrb[0].mxu0 %v4172
  %v4251 = vpop.f32.mrb[0].mxu0
  %v4252 = vadd.f32 0.0, %v4251
  %v4253 = vpop.f32.mrb[0].mxu0
  %4254 = vmatprep.mubr.f32.mxu0 0.0
  %4255 = vmatmul.mubr.f32.gmra.mrb[0].mxu0 %v4175
  %v4256 = vpop.f32.mrb[0].mxu0
  %v4257 = vadd.f32 0.0, %v4256
  %v4258 = vpop.f32.mrb[0].mxu0
  %4259 = vmatprep.mubr.f32.mxu0 0.0
  %4260 = vmatmul.mubr.f32.gmra.mrb[0].mxu0 %v4178
  %v4261 = vpop.f32.mrb[0].mxu0
  %v4262 = vadd.f32 0.0, %v4261
  %v4263 = vpop.f32.mrb[0].mxu0
  %4264 = vdwg.mxu0
  %v4265 = vmul.f32 %v4247, 0.020408163
  %v4266 = vmul.f32 %v4252, 0.020408163
  %v4267 = vmul.f32 %v4257, 0.020408163
  %v4268 = vmul.f32 %v4262, 0.020408163
  %v4269 = vadd.f32 %v4265, 1e-05
  %v4270 = vadd.f32 %v4266, 1e-05
  %v4271 = vadd.f32 %v4267, 1e-05
  %v4272 = vadd.f32 %v4268, 1e-05
  %v4273 = vrsqrt.pop %v4269
  %v4274 = vrsqrt.pop %v4270
  %v4275 = vrsqrt.pop %v4271
  %v4276 = vrsqrt.pop %v4272
  %v4277 = vld [vmem:[%s2 + $0x340] sm:$0xff]
  %v4278 = vld [vmem:[%s2 + $0x348] sm:$0xff]
  %v4279 = vld [vmem:[%s2 + $0x350] sm:$0xff]
  %v4280 = vld [vmem:[%s2 + $0x358] sm:$0xff]
  %4282 = vset.pattern.permute.xlu0 0
  %4283 = vperm.xlu0 %4282, %v4277
  %v4284 = vpop.permute.xlu0 %4283
  %4287 = vset.pattern.permute.xlu0 0
  %4288 = vperm.xlu0 %4287, %v4278
  %v4289 = vpop.permute.xlu0 %4288
  %4292 = vset.pattern.permute.xlu0 0
  %4293 = vperm.xlu0 %4292, %v4279
  %v4294 = vpop.permute.xlu0 %4293
  %4297 = vset.pattern.permute.xlu0 0
  %4298 = vperm.xlu0 %4297, %v4280
  %v4299 = vpop.permute.xlu0 %4298
  %v4301 = vmul.f32 %v4273, %v4284
  %v4302 = vmul.f32 %v4274, %v4289
  %v4303 = vmul.f32 %v4275, %v4294
  %v4304 = vmul.f32 %v4276, %v4299
  %v4305 = vmul.f32 %v4160, %v4301
  %v4306 = vmul.f32 %v4161, %v4302
  %v4307 = vmul.f32 %v4162, %v4303
  %v4308 = vmul.f32 %v4163, %v4304
  %v4309 = vld [vmem:[%s3 + $0x340] sm:$0xff]
  %v4310 = vld [vmem:[%s3 + $0x348] sm:$0xff]
  %v4311 = vld [vmem:[%s3 + $0x350] sm:$0xff]
  %v4312 = vld [vmem:[%s3 + $0x358] sm:$0xff]
  %4314 = vset.pattern.permute.xlu0 0
  %4315 = vperm.xlu0 %4314, %v4309
  %v4316 = vpop.permute.xlu0 %4315
  %4319 = vset.pattern.permute.xlu0 0
  %4320 = vperm.xlu0 %4319, %v4310
  %v4321 = vpop.permute.xlu0 %4320
  %4324 = vset.pattern.permute.xlu0 0
  %4325 = vperm.xlu0 %4324, %v4311
  %v4326 = vpop.permute.xlu0 %4325
  %4329 = vset.pattern.permute.xlu0 0
  %4330 = vperm.xlu0 %4329, %v4312
  %v4331 = vpop.permute.xlu0 %4330
  %v4333 = vadd.f32 %v4305, %v4316
  %v4334 = vadd.f32 %v4306, %v4321
  %v4335 = vadd.f32 %v4307, %v4326
  %v4336 = vadd.f32 %v4308, %v4331
  %4337 = vst.msk [vmem:[%s18 + $0x340] sm:$0xff] %vm908, %v4333
  %4338 = vst.msk [vmem:[%s18 + $0x348] sm:$0xff] %vm908, %v4334
  %4339 = vst.msk [vmem:[%s18 + $0x350] sm:$0xff] %vm908, %v4335
  %4340 = vst.msk [vmem:[%s18 + $0x358] sm:$0xff] %vm908, %v4336
  %v4341 = vld [vmem:[%s17] sm:$0xff]
  %v4342 = vld [vmem:[%s17 + $0x8] sm:$0xff]
  %v4343 = vld [vmem:[%s17 + $0x10] sm:$0xff]
  %v4344 = vld [vmem:[%s17 + $0x18] sm:$0xff]
  %v4346 = vsel %vm908, %v4341, 0
  %v4349 = vsel %vm908, %v4342, 0
  %v4352 = vsel %vm908, %v4343, 0
  %v4355 = vsel %vm908, %v4344, 0
  %4357 = vmatprep.subr.mxu0 0.0
  %4358 = vmatpush1.msra.mxu0 1.0
  %4359 = vmatprep.subr.mxu0 0.0
  %4360 = vmatpush1.msra.mxu0 1.0
  %4361 = vmatprep.subr.mxu0 0.0
  %4362 = vmatpush1.msra.mxu0 1.0
  %4363 = vmatprep.subr.mxu0 0.0
  %4364 = vmatpush1.msra.mxu0 1.0
  %4365 = vmatprep.subr.mxu0 0.0
  %4366 = vmatpush1.msra.mxu0 1.0
  %4367 = vmatprep.subr.mxu0 0.0
  %4368 = vmatpush1.msra.mxu0 1.0
  %4369 = vmatprep.subr.mxu0 0.0
  %4370 = vmatpush1.msra.mxu0 %v923
  %4371 = vmatprep.subr.mxu0 0.0
  %4372 = vmatpush1.msra.mxu0 0.0
  %4373 = vmatprep.subr.mxu0 0.0
  %4374 = vmatpush1.msra.mxu0 0.0
  %4375 = vmatprep.subr.mxu0 0.0
  %4376 = vmatpush1.msra.mxu0 0.0
  %4377 = vmatprep.subr.mxu0 0.0
  %4378 = vmatpush1.msra.mxu0 0.0
  %4379 = vmatprep.subr.mxu0 0.0
  %4380 = vmatpush1.msra.mxu0 0.0
  %4381 = vmatprep.subr.mxu0 0.0
  %4382 = vmatpush1.msra.mxu0 0.0
  %4383 = vmatprep.subr.mxu0 0.0
  %4384 = vmatpush1.msra.mxu0 0.0
  %4385 = vmatprep.subr.mxu0 0.0
  %4386 = vmatpush1.msra.mxu0 0.0
  %4387 = vmatprep.subr.mxu0 0.0
  %4388 = vmatpush1.msra.mxu0 0.0
  %4389 = vmatprep.subr.mxu0 0.0
  %4390 = vmatpush1.msra.mxu0 0.0
  %4391 = vmatprep.subr.mxu0 0.0
  %4392 = vmatpush1.msra.mxu0 0.0
  %4393 = vmatprep.subr.mxu0 0.0
  %4394 = vmatpush1.msra.mxu0 0.0
  %4395 = vmatprep.subr.mxu0 0.0
  %4396 = vmatpush1.msra.mxu0 0.0
  %4397 = vmatprep.subr.mxu0 0.0
  %4398 = vmatpush1.msra.mxu0 0.0
  %4399 = vmatprep.subr.mxu0 0.0
  %4400 = vmatpush1.msra.mxu0 0.0
  %4401 = vmatprep.subr.mxu0 0.0
  %4402 = vmatpush1.msra.mxu0 0.0
  %4403 = vmatprep.subr.mxu0 0.0
  %4404 = vmatpush1.msra.mxu0 0.0
  %4405 = vmatprep.subr.mxu0 0.0
  %4406 = vmatpush1.msra.mxu0 0.0
  %4407 = vmatprep.subr.mxu0 0.0
  %4408 = vmatpush1.msra.mxu0 0.0
  %4409 = vmatprep.subr.mxu0 0.0
  %4410 = vmatpush1.msra.mxu0 0.0
  %4411 = vmatprep.subr.mxu0 0.0
  %4412 = vmatpush1.msra.mxu0 0.0
  %4413 = vmatprep.subr.mxu0 0.0
  %4414 = vmatpush1.msra.mxu0 0.0
  %4415 = vmatprep.subr.mxu0 0.0
  %4416 = vmatpush1.msra.mxu0 0.0
  %4417 = vmatprep.subr.mxu0 0.0
  %4418 = vmatpush1.msra.mxu0 0.0
  %4419 = vmatprep.subr.mxu0 0.0
  %4420 = vmatpush1.msra.mxu0 0.0
  %4421 = vmatprep.mubr.f32.mxu0 0.0
  %4422 = vmatmul.mubr.f32.gmra.mrb[0].mxu0 %v4346
  %v4423 = vpop.f32.mrb[0].mxu0
  %v4424 = vadd.f32 0.0, %v4423
  %v4425 = vpop.f32.mrb[0].mxu0
  %4426 = vmatprep.mubr.f32.mxu0 0.0
  %4427 = vmatmul.mubr.f32.gmra.mrb[0].mxu0 %v4349
  %v4428 = vpop.f32.mrb[0].mxu0
  %v4429 = vadd.f32 0.0, %v4428
  %v4430 = vpop.f32.mrb[0].mxu0
  %4431 = vmatprep.mubr.f32.mxu0 0.0
  %4432 = vmatmul.mubr.f32.gmra.mrb[0].mxu0 %v4352
  %v4433 = vpop.f32.mrb[0].mxu0
  %v4434 = vadd.f32 0.0, %v4433
  %v4435 = vpop.f32.mrb[0].mxu0
  %4436 = vmatprep.mubr.f32.mxu0 0.0
  %4437 = vmatmul.mubr.f32.gmra.mrb[0].mxu0 %v4355
  %v4438 = vpop.f32.mrb[0].mxu0
  %v4439 = vadd.f32 0.0, %v4438
  %v4440 = vpop.f32.mrb[0].mxu0
  %4441 = vdwg.mxu0
  %v4442 = vmul.f32 %v4424, 0.020408163
  %v4443 = vmul.f32 %v4429, 0.020408163
  %v4444 = vmul.f32 %v4434, 0.020408163
  %v4445 = vmul.f32 %v4439, 0.020408163
  %v4446 = vsub.f32 %v4341, %v4442
  %v4447 = vsub.f32 %v4342, %v4443
  %v4448 = vsub.f32 %v4343, %v4444
  %v4449 = vsub.f32 %v4344, %v4445
  %v4450 = vmul.f32 %v4446, %v4446
  %v4451 = vmul.f32 %v4447, %v4447
  %v4452 = vmul.f32 %v4448, %v4448
  %v4453 = vmul.f32 %v4449, %v4449
  %v4455 = vsel %vm908, %v4450, 0
  %v4458 = vsel %vm908, %v4451, 0
  %v4461 = vsel %vm908, %v4452, 0
  %v4464 = vsel %vm908, %v4453, 0
  %4466 = vmatprep.subr.mxu0 0.0
  %4467 = vmatpush1.msra.mxu0 1.0
  %4468 = vmatprep.subr.mxu0 0.0
  %4469 = vmatpush1.msra.mxu0 1.0
  %4470 = vmatprep.subr.mxu0 0.0
  %4471 = vmatpush1.msra.mxu0 1.0
  %4472 = vmatprep.subr.mxu0 0.0
  %4473 = vmatpush1.msra.mxu0 1.0
  %4474 = vmatprep.subr.mxu0 0.0
  %4475 = vmatpush1.msra.mxu0 1.0
  %4476 = vmatprep.subr.mxu0 0.0
  %4477 = vmatpush1.msra.mxu0 1.0
  %4478 = vmatprep.subr.mxu0 0.0
  %4479 = vmatpush1.msra.mxu0 %v923
  %4480 = vmatprep.subr.mxu0 0.0
  %4481 = vmatpush1.msra.mxu0 0.0
  %4482 = vmatprep.subr.mxu0 0.0
  %4483 = vmatpush1.msra.mxu0 0.0
  %4484 = vmatprep.subr.mxu0 0.0
  %4485 = vmatpush1.msra.mxu0 0.0
  %4486 = vmatprep.subr.mxu0 0.0
  %4487 = vmatpush1.msra.mxu0 0.0
  %4488 = vmatprep.subr.mxu0 0.0
  %4489 = vmatpush1.msra.mxu0 0.0
  %4490 = vmatprep.subr.mxu0 0.0
  %4491 = vmatpush1.msra.mxu0 0.0
  %4492 = vmatprep.subr.mxu0 0.0
  %4493 = vmatpush1.msra.mxu0 0.0
  %4494 = vmatprep.subr.mxu0 0.0
  %4495 = vmatpush1.msra.mxu0 0.0
  %4496 = vmatprep.subr.mxu0 0.0
  %4497 = vmatpush1.msra.mxu0 0.0
  %4498 = vmatprep.subr.mxu0 0.0
  %4499 = vmatpush1.msra.mxu0 0.0
  %4500 = vmatprep.subr.mxu0 0.0
  %4501 = vmatpush1.msra.mxu0 0.0
  %4502 = vmatprep.subr.mxu0 0.0
  %4503 = vmatpush1.msra.mxu0 0.0
  %4504 = vmatprep.subr.mxu0 0.0
  %4505 = vmatpush1.msra.mxu0 0.0
  %4506 = vmatprep.subr.mxu0 0.0
  %4507 = vmatpush1.msra.mxu0 0.0
  %4508 = vmatprep.subr.mxu0 0.0
  %4509 = vmatpush1.msra.mxu0 0.0
  %4510 = vmatprep.subr.mxu0 0.0
  %4511 = vmatpush1.msra.mxu0 0.0
  %4512 = vmatprep.subr.mxu0 0.0
  %4513 = vmatpush1.msra.mxu0 0.0
  %4514 = vmatprep.subr.mxu0 0.0
  %4515 = vmatpush1.msra.mxu0 0.0
  %4516 = vmatprep.subr.mxu0 0.0
  %4517 = vmatpush1.msra.mxu0 0.0
  %4518 = vmatprep.subr.mxu0 0.0
  %4519 = vmatpush1.msra.mxu0 0.0
  %4520 = vmatprep.subr.mxu0 0.0
  %4521 = vmatpush1.msra.mxu0 0.0
  %4522 = vmatprep.subr.mxu0 0.0
  %4523 = vmatpush1.msra.mxu0 0.0
  %4524 = vmatprep.subr.mxu0 0.0
  %4525 = vmatpush1.msra.mxu0 0.0
  %4526 = vmatprep.subr.mxu0 0.0
  %4527 = vmatpush1.msra.mxu0 0.0
  %4528 = vmatprep.subr.mxu0 0.0
  %4529 = vmatpush1.msra.mxu0 0.0
  %4530 = vmatprep.mubr.f32.mxu0 0.0
  %4531 = vmatmul.mubr.f32.gmra.mrb[0].mxu0 %v4455
  %v4532 = vpop.f32.mrb[0].mxu0
  %v4533 = vadd.f32 0.0, %v4532
  %v4534 = vpop.f32.mrb[0].mxu0
  %4535 = vmatprep.mubr.f32.mxu0 0.0
  %4536 = vmatmul.mubr.f32.gmra.mrb[0].mxu0 %v4458
  %v4537 = vpop.f32.mrb[0].mxu0
  %v4538 = vadd.f32 0.0, %v4537
  %v4539 = vpop.f32.mrb[0].mxu0
  %4540 = vmatprep.mubr.f32.mxu0 0.0
  %4541 = vmatmul.mubr.f32.gmra.mrb[0].mxu0 %v4461
  %v4542 = vpop.f32.mrb[0].mxu0
  %v4543 = vadd.f32 0.0, %v4542
  %v4544 = vpop.f32.mrb[0].mxu0
  %4545 = vmatprep.mubr.f32.mxu0 0.0
  %4546 = vmatmul.mubr.f32.gmra.mrb[0].mxu0 %v4464
  %v4547 = vpop.f32.mrb[0].mxu0
  %v4548 = vadd.f32 0.0, %v4547
  %v4549 = vpop.f32.mrb[0].mxu0
  %4550 = vdwg.mxu0
  %v4551 = vmul.f32 %v4533, 0.020408163
  %v4552 = vmul.f32 %v4538, 0.020408163
  %v4553 = vmul.f32 %v4543, 0.020408163
  %v4554 = vmul.f32 %v4548, 0.020408163
  %v4555 = vadd.f32 %v4551, 1e-05
  %v4556 = vadd.f32 %v4552, 1e-05
  %v4557 = vadd.f32 %v4553, 1e-05
  %v4558 = vadd.f32 %v4554, 1e-05
  %v4559 = vrsqrt.pop %v4555
  %v4560 = vrsqrt.pop %v4556
  %v4561 = vrsqrt.pop %v4557
  %v4562 = vrsqrt.pop %v4558
  %v4563 = vld [vmem:[%s2 + $0x380] sm:$0xff]
  %v4564 = vld [vmem:[%s2 + $0x388] sm:$0xff]
  %v4565 = vld [vmem:[%s2 + $0x390] sm:$0xff]
  %v4566 = vld [vmem:[%s2 + $0x398] sm:$0xff]
  %4568 = vset.pattern.permute.xlu0 0
  %4569 = vperm.xlu0 %4568, %v4563
  %v4570 = vpop.permute.xlu0 %4569
  %4573 = vset.pattern.permute.xlu0 0
  %4574 = vperm.xlu0 %4573, %v4564
  %v4575 = vpop.permute.xlu0 %4574
  %4578 = vset.pattern.permute.xlu0 0
  %4579 = vperm.xlu0 %4578, %v4565
  %v4580 = vpop.permute.xlu0 %4579
  %4583 = vset.pattern.permute.xlu0 0
  %4584 = vperm.xlu0 %4583, %v4566
  %v4585 = vpop.permute.xlu0 %4584
  %v4587 = vmul.f32 %v4559, %v4570
  %v4588 = vmul.f32 %v4560, %v4575
  %v4589 = vmul.f32 %v4561, %v4580
  %v4590 = vmul.f32 %v4562, %v4585
  %v4591 = vmul.f32 %v4446, %v4587
  %v4592 = vmul.f32 %v4447, %v4588
  %v4593 = vmul.f32 %v4448, %v4589
  %v4594 = vmul.f32 %v4449, %v4590
  %v4595 = vld [vmem:[%s3 + $0x380] sm:$0xff]
  %v4596 = vld [vmem:[%s3 + $0x388] sm:$0xff]
  %v4597 = vld [vmem:[%s3 + $0x390] sm:$0xff]
  %v4598 = vld [vmem:[%s3 + $0x398] sm:$0xff]
  %4600 = vset.pattern.permute.xlu0 0
  %4601 = vperm.xlu0 %4600, %v4595
  %v4602 = vpop.permute.xlu0 %4601
  %4605 = vset.pattern.permute.xlu0 0
  %4606 = vperm.xlu0 %4605, %v4596
  %v4607 = vpop.permute.xlu0 %4606
  %4610 = vset.pattern.permute.xlu0 0
  %4611 = vperm.xlu0 %4610, %v4597
  %v4612 = vpop.permute.xlu0 %4611
  %4615 = vset.pattern.permute.xlu0 0
  %4616 = vperm.xlu0 %4615, %v4598
  %v4617 = vpop.permute.xlu0 %4616
  %v4619 = vadd.f32 %v4591, %v4602
  %v4620 = vadd.f32 %v4592, %v4607
  %v4621 = vadd.f32 %v4593, %v4612
  %v4622 = vadd.f32 %v4594, %v4617
  %4623 = vst.msk [vmem:[%s18 + $0x380] sm:$0xff] %vm908, %v4619
  %4624 = vst.msk [vmem:[%s18 + $0x388] sm:$0xff] %vm908, %v4620
  %4625 = vst.msk [vmem:[%s18 + $0x390] sm:$0xff] %vm908, %v4621
  %4626 = vst.msk [vmem:[%s18 + $0x398] sm:$0xff] %vm908, %v4622
  %s4627 = smul.u32 512, 1
  %s4628 = sshll.u32 %s4627, 4
  %4629 = dma.done [#allocation4], %s4628
  %v4630 = vld [vmem:[#allocation3] sm:$0xff]
  %v4631 = vld [vmem:[#allocation3 + $0x8] sm:$0xff]
  %v4632 = vld [vmem:[#allocation3 + $0x10] sm:$0xff]
  %v4633 = vld [vmem:[#allocation3 + $0x18] sm:$0xff]
  %v4634 = vld [vmem:[#allocation3 + $0x20] sm:$0xff]
  %v4635 = vld [vmem:[#allocation3 + $0x28] sm:$0xff]
  %v4636 = vld [vmem:[#allocation3 + $0x30] sm:$0xff]
  %v4637 = vld [vmem:[#allocation3 + $0x38] sm:$0xff]
  %v4638 = vld [vmem:[#allocation3 + $0x40] sm:$0xff]
  %v4639 = vld [vmem:[#allocation3 + $0x48] sm:$0xff]
  %v4640 = vld [vmem:[#allocation3 + $0x50] sm:$0xff]
  %v4641 = vld [vmem:[#allocation3 + $0x58] sm:$0xff]
  %v4642 = vld [vmem:[#allocation3 + $0x60] sm:$0xff]
  %v4643 = vld [vmem:[#allocation3 + $0x68] sm:$0xff]
  %v4644 = vld [vmem:[#allocation3 + $0x70] sm:$0xff]
  %v4645 = vld [vmem:[#allocation3 + $0x78] sm:$0xff]
  %v4647 = vsel %vm908, %v4630, 0
  %v4650 = vsel %vm908, %v4631, 0
  %v4653 = vsel %vm908, %v4632, 0
  %v4656 = vsel %vm908, %v4633, 0
  %v4659 = vsel %vm908, %v4634, 0
  %v4662 = vsel %vm908, %v4635, 0
  %v4665 = vsel %vm908, %v4636, 0
  %v4668 = vsel %vm908, %v4637, 0
  %v4671 = vsel %vm908, %v4638, 0
  %v4674 = vsel %vm908, %v4639, 0
  %v4677 = vsel %vm908, %v4640, 0
  %v4680 = vsel %vm908, %v4641, 0
  %v4683 = vsel %vm908, %v4642, 0
  %v4686 = vsel %vm908, %v4643, 0
  %v4689 = vsel %vm908, %v4644, 0
  %v4692 = vsel %vm908, %v4645, 0
  %4694 = vmatprep.subr.mxu0 0.0
  %4695 = vmatpush1.msra.mxu0 1.0
  %4696 = vmatprep.subr.mxu0 0.0
  %4697 = vmatpush1.msra.mxu0 1.0
  %4698 = vmatprep.subr.mxu0 0.0
  %4699 = vmatpush1.msra.mxu0 1.0
  %4700 = vmatprep.subr.mxu0 0.0
  %4701 = vmatpush1.msra.mxu0 1.0
  %4702 = vmatprep.subr.mxu0 0.0
  %4703 = vmatpush1.msra.mxu0 1.0
  %4704 = vmatprep.subr.mxu0 0.0
  %4705 = vmatpush1.msra.mxu0 1.0
  %4706 = vmatprep.subr.mxu0 0.0
  %4707 = vmatpush1.msra.mxu0 %v923
  %4708 = vmatprep.subr.mxu0 0.0
  %4709 = vmatpush1.msra.mxu0 0.0
  %4710 = vmatprep.subr.mxu0 0.0
  %4711 = vmatpush1.msra.mxu0 0.0
  %4712 = vmatprep.subr.mxu0 0.0
  %4713 = vmatpush1.msra.mxu0 0.0
  %4714 = vmatprep.subr.mxu0 0.0
  %4715 = vmatpush1.msra.mxu0 0.0
  %4716 = vmatprep.subr.mxu0 0.0
  %4717 = vmatpush1.msra.mxu0 0.0
  %4718 = vmatprep.subr.mxu0 0.0
  %4719 = vmatpush1.msra.mxu0 0.0
  %4720 = vmatprep.subr.mxu0 0.0
  %4721 = vmatpush1.msra.mxu0 0.0
  %4722 = vmatprep.subr.mxu0 0.0
  %4723 = vmatpush1.msra.mxu0 0.0
  %4724 = vmatprep.subr.mxu0 0.0
  %4725 = vmatpush1.msra.mxu0 0.0
  %4726 = vmatprep.subr.mxu0 0.0
  %4727 = vmatpush1.msra.mxu0 0.0
  %4728 = vmatprep.subr.mxu0 0.0
  %4729 = vmatpush1.msra.mxu0 0.0
  %4730 = vmatprep.subr.mxu0 0.0
  %4731 = vmatpush1.msra.mxu0 0.0
  %4732 = vmatprep.subr.mxu0 0.0
  %4733 = vmatpush1.msra.mxu0 0.0
  %4734 = vmatprep.subr.mxu0 0.0
  %4735 = vmatpush1.msra.mxu0 0.0
  %4736 = vmatprep.subr.mxu0 0.0
  %4737 = vmatpush1.msra.mxu0 0.0
  %4738 = vmatprep.subr.mxu0 0.0
  %4739 = vmatpush1.msra.mxu0 0.0
  %4740 = vmatprep.subr.mxu0 0.0
  %4741 = vmatpush1.msra.mxu0 0.0
  %4742 = vmatprep.subr.mxu0 0.0
  %4743 = vmatpush1.msra.mxu0 0.0
  %4744 = vmatprep.subr.mxu0 0.0
  %4745 = vmatpush1.msra.mxu0 0.0
  %4746 = vmatprep.subr.mxu0 0.0
  %4747 = vmatpush1.msra.mxu0 0.0
  %4748 = vmatprep.subr.mxu0 0.0
  %4749 = vmatpush1.msra.mxu0 0.0
  %4750 = vmatprep.subr.mxu0 0.0
  %4751 = vmatpush1.msra.mxu0 0.0
  %4752 = vmatprep.subr.mxu0 0.0
  %4753 = vmatpush1.msra.mxu0 0.0
  %4754 = vmatprep.subr.mxu0 0.0
  %4755 = vmatpush1.msra.mxu0 0.0
  %4756 = vmatprep.subr.mxu0 0.0
  %4757 = vmatpush1.msra.mxu0 0.0
  %4758 = vmatprep.mubr.f32.mxu0 0.0
  %4759 = vmatmul.mubr.f32.gmra.mrb[0].mxu0 %v4647
  %v4760 = vpop.f32.mrb[0].mxu0
  %v4761 = vadd.f32 0.0, %v4760
  %v4762 = vpop.f32.mrb[0].mxu0
  %4763 = vmatprep.mubr.f32.mxu0 0.0
  %4764 = vmatmul.mubr.f32.gmra.mrb[0].mxu0 %v4650
  %v4765 = vpop.f32.mrb[0].mxu0
  %v4766 = vadd.f32 0.0, %v4765
  %v4767 = vpop.f32.mrb[0].mxu0
  %4768 = vmatprep.mubr.f32.mxu0 0.0
  %4769 = vmatmul.mubr.f32.gmra.mrb[0].mxu0 %v4653
  %v4770 = vpop.f32.mrb[0].mxu0
  %v4771 = vadd.f32 0.0, %v4770
  %v4772 = vpop.f32.mrb[0].mxu0
  %4773 = vmatprep.mubr.f32.mxu0 0.0
  %4774 = vmatmul.mubr.f32.gmra.mrb[0].mxu0 %v4656
  %v4775 = vpop.f32.mrb[0].mxu0
  %v4776 = vadd.f32 0.0, %v4775
  %v4777 = vpop.f32.mrb[0].mxu0
  %4778 = vmatprep.mubr.f32.mxu0 0.0
  %4779 = vmatmul.mubr.f32.gmra.mrb[0].mxu0 %v4659
  %v4780 = vpop.f32.mrb[0].mxu0
  %v4781 = vadd.f32 0.0, %v4780
  %v4782 = vpop.f32.mrb[0].mxu0
  %4783 = vmatprep.mubr.f32.mxu0 0.0
  %4784 = vmatmul.mubr.f32.gmra.mrb[0].mxu0 %v4662
  %v4785 = vpop.f32.mrb[0].mxu0
  %v4786 = vadd.f32 0.0, %v4785
  %v4787 = vpop.f32.mrb[0].mxu0
  %4788 = vmatprep.mubr.f32.mxu0 0.0
  %4789 = vmatmul.mubr.f32.gmra.mrb[0].mxu0 %v4665
  %v4790 = vpop.f32.mrb[0].mxu0
  %v4791 = vadd.f32 0.0, %v4790
  %v4792 = vpop.f32.mrb[0].mxu0
  %4793 = vmatprep.mubr.f32.mxu0 0.0
  %4794 = vmatmul.mubr.f32.gmra.mrb[0].mxu0 %v4668
  %v4795 = vpop.f32.mrb[0].mxu0
  %v4796 = vadd.f32 0.0, %v4795
  %v4797 = vpop.f32.mrb[0].mxu0
  %4798 = vmatprep.mubr.f32.mxu0 0.0
  %4799 = vmatmul.mubr.f32.gmra.mrb[0].mxu0 %v4671
  %v4800 = vpop.f32.mrb[0].mxu0
  %v4801 = vadd.f32 0.0, %v4800
  %v4802 = vpop.f32.mrb[0].mxu0
  %4803 = vmatprep.mubr.f32.mxu0 0.0
  %4804 = vmatmul.mubr.f32.gmra.mrb[0].mxu0 %v4674
  %v4805 = vpop.f32.mrb[0].mxu0
  %v4806 = vadd.f32 0.0, %v4805
  %v4807 = vpop.f32.mrb[0].mxu0
  %4808 = vmatprep.mubr.f32.mxu0 0.0
  %4809 = vmatmul.mubr.f32.gmra.mrb[0].mxu0 %v4677
  %v4810 = vpop.f32.mrb[0].mxu0
  %v4811 = vadd.f32 0.0, %v4810
  %v4812 = vpop.f32.mrb[0].mxu0
  %4813 = vmatprep.mubr.f32.mxu0 0.0
  %4814 = vmatmul.mubr.f32.gmra.mrb[0].mxu0 %v4680
  %v4815 = vpop.f32.mrb[0].mxu0
  %v4816 = vadd.f32 0.0, %v4815
  %v4817 = vpop.f32.mrb[0].mxu0
  %4818 = vmatprep.mubr.f32.mxu0 0.0
  %4819 = vmatmul.mubr.f32.gmra.mrb[0].mxu0 %v4683
  %v4820 = vpop.f32.mrb[0].mxu0
  %v4821 = vadd.f32 0.0, %v4820
  %v4822 = vpop.f32.mrb[0].mxu0
  %4823 = vmatprep.mubr.f32.mxu0 0.0
  %4824 = vmatmul.mubr.f32.gmra.mrb[0].mxu0 %v4686
  %v4825 = vpop.f32.mrb[0].mxu0
  %v4826 = vadd.f32 0.0, %v4825
  %v4827 = vpop.f32.mrb[0].mxu0
  %4828 = vmatprep.mubr.f32.mxu0 0.0
  %4829 = vmatmul.mubr.f32.gmra.mrb[0].mxu0 %v4689
  %v4830 = vpop.f32.mrb[0].mxu0
  %v4831 = vadd.f32 0.0, %v4830
  %v4832 = vpop.f32.mrb[0].mxu0
  %4833 = vmatprep.mubr.f32.mxu0 0.0
  %4834 = vmatmul.mubr.f32.gmra.mrb[0].mxu0 %v4692
  %v4835 = vpop.f32.mrb[0].mxu0
  %v4836 = vadd.f32 0.0, %v4835
  %v4837 = vpop.f32.mrb[0].mxu0
  %4838 = vdwg.mxu0
  %v4839 = vmul.f32 %v4761, 0.020408163
  %v4840 = vmul.f32 %v4766, 0.020408163
  %v4841 = vmul.f32 %v4771, 0.020408163
  %v4842 = vmul.f32 %v4776, 0.020408163
  %v4843 = vmul.f32 %v4781, 0.020408163
  %v4844 = vmul.f32 %v4786, 0.020408163
  %v4845 = vmul.f32 %v4791, 0.020408163
  %v4846 = vmul.f32 %v4796, 0.020408163
  %v4847 = vmul.f32 %v4801, 0.020408163
  %v4848 = vmul.f32 %v4806, 0.020408163
  %v4849 = vmul.f32 %v4811, 0.020408163
  %v4850 = vmul.f32 %v4816, 0.020408163
  %v4851 = vmul.f32 %v4821, 0.020408163
  %v4852 = vmul.f32 %v4826, 0.020408163
  %v4853 = vmul.f32 %v4831, 0.020408163
  %v4854 = vmul.f32 %v4836, 0.020408163
  %v4855 = vsub.f32 %v4630, %v4839
  %v4856 = vsub.f32 %v4631, %v4840
  %v4857 = vsub.f32 %v4632, %v4841
  %v4858 = vsub.f32 %v4633, %v4842
  %v4859 = vsub.f32 %v4634, %v4843
  %v4860 = vsub.f32 %v4635, %v4844
  %v4861 = vsub.f32 %v4636, %v4845
  %v4862 = vsub.f32 %v4637, %v4846
  %v4863 = vsub.f32 %v4638, %v4847
  %v4864 = vsub.f32 %v4639, %v4848
  %v4865 = vsub.f32 %v4640, %v4849
  %v4866 = vsub.f32 %v4641, %v4850
  %v4867 = vsub.f32 %v4642, %v4851
  %v4868 = vsub.f32 %v4643, %v4852
  %v4869 = vsub.f32 %v4644, %v4853
  %v4870 = vsub.f32 %v4645, %v4854
  %v4871 = vmul.f32 %v4855, %v4855
  %v4872 = vmul.f32 %v4856, %v4856
  %v4873 = vmul.f32 %v4857, %v4857
  %v4874 = vmul.f32 %v4858, %v4858
  %v4875 = vmul.f32 %v4859, %v4859
  %v4876 = vmul.f32 %v4860, %v4860
  %v4877 = vmul.f32 %v4861, %v4861
  %v4878 = vmul.f32 %v4862, %v4862
  %v4879 = vmul.f32 %v4863, %v4863
  %v4880 = vmul.f32 %v4864, %v4864
  %v4881 = vmul.f32 %v4865, %v4865
  %v4882 = vmul.f32 %v4866, %v4866
  %v4883 = vmul.f32 %v4867, %v4867
  %v4884 = vmul.f32 %v4868, %v4868
  %v4885 = vmul.f32 %v4869, %v4869
  %v4886 = vmul.f32 %v4870, %v4870
  %v4888 = vsel %vm908, %v4871, 0
  %v4891 = vsel %vm908, %v4872, 0
  %v4894 = vsel %vm908, %v4873, 0
  %v4897 = vsel %vm908, %v4874, 0
  %v4900 = vsel %vm908, %v4875, 0
  %v4903 = vsel %vm908, %v4876, 0
  %v4906 = vsel %vm908, %v4877, 0
  %v4909 = vsel %vm908, %v4878, 0
  %v4912 = vsel %vm908, %v4879, 0
  %v4915 = vsel %vm908, %v4880, 0
  %v4918 = vsel %vm908, %v4881, 0
  %v4921 = vsel %vm908, %v4882, 0
  %v4924 = vsel %vm908, %v4883, 0
  %v4927 = vsel %vm908, %v4884, 0
  %v4930 = vsel %vm908, %v4885, 0
  %v4933 = vsel %vm908, %v4886, 0
  %4935 = vmatprep.subr.mxu0 0.0
  %4936 = vmatpush1.msra.mxu0 1.0
  %4937 = vmatprep.subr.mxu0 0.0
  %4938 = vmatpush1.msra.mxu0 1.0
  %4939 = vmatprep.subr.mxu0 0.0
  %4940 = vmatpush1.msra.mxu0 1.0
  %4941 = vmatprep.subr.mxu0 0.0
  %4942 = vmatpush1.msra.mxu0 1.0
  %4943 = vmatprep.subr.mxu0 0.0
  %4944 = vmatpush1.msra.mxu0 1.0
  %4945 = vmatprep.subr.mxu0 0.0
  %4946 = vmatpush1.msra.mxu0 1.0
  %4947 = vmatprep.subr.mxu0 0.0
  %4948 = vmatpush1.msra.mxu0 %v923
  %4949 = vmatprep.subr.mxu0 0.0
  %4950 = vmatpush1.msra.mxu0 0.0
  %4951 = vmatprep.subr.mxu0 0.0
  %4952 = vmatpush1.msra.mxu0 0.0
  %4953 = vmatprep.subr.mxu0 0.0
  %4954 = vmatpush1.msra.mxu0 0.0
  %4955 = vmatprep.subr.mxu0 0.0
  %4956 = vmatpush1.msra.mxu0 0.0
  %4957 = vmatprep.subr.mxu0 0.0
  %4958 = vmatpush1.msra.mxu0 0.0
  %4959 = vmatprep.subr.mxu0 0.0
  %4960 = vmatpush1.msra.mxu0 0.0
  %4961 = vmatprep.subr.mxu0 0.0
  %4962 = vmatpush1.msra.mxu0 0.0
  %4963 = vmatprep.subr.mxu0 0.0
  %4964 = vmatpush1.msra.mxu0 0.0
  %4965 = vmatprep.subr.mxu0 0.0
  %4966 = vmatpush1.msra.mxu0 0.0
  %4967 = vmatprep.subr.mxu0 0.0
  %4968 = vmatpush1.msra.mxu0 0.0
  %4969 = vmatprep.subr.mxu0 0.0
  %4970 = vmatpush1.msra.mxu0 0.0
  %4971 = vmatprep.subr.mxu0 0.0
  %4972 = vmatpush1.msra.mxu0 0.0
  %4973 = vmatprep.subr.mxu0 0.0
  %4974 = vmatpush1.msra.mxu0 0.0
  %4975 = vmatprep.subr.mxu0 0.0
  %4976 = vmatpush1.msra.mxu0 0.0
  %4977 = vmatprep.subr.mxu0 0.0
  %4978 = vmatpush1.msra.mxu0 0.0
  %4979 = vmatprep.subr.mxu0 0.0
  %4980 = vmatpush1.msra.mxu0 0.0
  %4981 = vmatprep.subr.mxu0 0.0
  %4982 = vmatpush1.msra.mxu0 0.0
  %4983 = vmatprep.subr.mxu0 0.0
  %4984 = vmatpush1.msra.mxu0 0.0
  %4985 = vmatprep.subr.mxu0 0.0
  %4986 = vmatpush1.msra.mxu0 0.0
  %4987 = vmatprep.subr.mxu0 0.0
  %4988 = vmatpush1.msra.mxu0 0.0
  %4989 = vmatprep.subr.mxu0 0.0
  %4990 = vmatpush1.msra.mxu0 0.0
  %4991 = vmatprep.subr.mxu0 0.0
  %4992 = vmatpush1.msra.mxu0 0.0
  %4993 = vmatprep.subr.mxu0 0.0
  %4994 = vmatpush1.msra.mxu0 0.0
  %4995 = vmatprep.subr.mxu0 0.0
  %4996 = vmatpush1.msra.mxu0 0.0
  %4997 = vmatprep.subr.mxu0 0.0
  %4998 = vmatpush1.msra.mxu0 0.0
  %4999 = vmatprep.mubr.f32.mxu0 0.0
  %5000 = vmatmul.mubr.f32.gmra.mrb[0].mxu0 %v4888
  %v5001 = vpop.f32.mrb[0].mxu0
  %v5002 = vadd.f32 0.0, %v5001
  %v5003 = vpop.f32.mrb[0].mxu0
  %5004 = vmatprep.mubr.f32.mxu0 0.0
  %5005 = vmatmul.mubr.f32.gmra.mrb[0].mxu0 %v4891
  %v5006 = vpop.f32.mrb[0].mxu0
  %v5007 = vadd.f32 0.0, %v5006
  %v5008 = vpop.f32.mrb[0].mxu0
  %5009 = vmatprep.mubr.f32.mxu0 0.0
  %5010 = vmatmul.mubr.f32.gmra.mrb[0].mxu0 %v4894
  %v5011 = vpop.f32.mrb[0].mxu0
  %v5012 = vadd.f32 0.0, %v5011
  %v5013 = vpop.f32.mrb[0].mxu0
  %5014 = vmatprep.mubr.f32.mxu0 0.0
  %5015 = vmatmul.mubr.f32.gmra.mrb[0].mxu0 %v4897
  %v5016 = vpop.f32.mrb[0].mxu0
  %v5017 = vadd.f32 0.0, %v5016
  %v5018 = vpop.f32.mrb[0].mxu0
  %5019 = vmatprep.mubr.f32.mxu0 0.0
  %5020 = vmatmul.mubr.f32.gmra.mrb[0].mxu0 %v4900
  %v5021 = vpop.f32.mrb[0].mxu0
  %v5022 = vadd.f32 0.0, %v5021
  %v5023 = vpop.f32.mrb[0].mxu0
  %5024 = vmatprep.mubr.f32.mxu0 0.0
  %5025 = vmatmul.mubr.f32.gmra.mrb[0].mxu0 %v4903
  %v5026 = vpop.f32.mrb[0].mxu0
  %v5027 = vadd.f32 0.0, %v5026
  %v5028 = vpop.f32.mrb[0].mxu0
  %5029 = vmatprep.mubr.f32.mxu0 0.0
  %5030 = vmatmul.mubr.f32.gmra.mrb[0].mxu0 %v4906
  %v5031 = vpop.f32.mrb[0].mxu0
  %v5032 = vadd.f32 0.0, %v5031
  %v5033 = vpop.f32.mrb[0].mxu0
  %5034 = vmatprep.mubr.f32.mxu0 0.0
  %5035 = vmatmul.mubr.f32.gmra.mrb[0].mxu0 %v4909
  %v5036 = vpop.f32.mrb[0].mxu0
  %v5037 = vadd.f32 0.0, %v5036
  %v5038 = vpop.f32.mrb[0].mxu0
  %5039 = vmatprep.mubr.f32.mxu0 0.0
  %5040 = vmatmul.mubr.f32.gmra.mrb[0].mxu0 %v4912
  %v5041 = vpop.f32.mrb[0].mxu0
  %v5042 = vadd.f32 0.0, %v5041
  %v5043 = vpop.f32.mrb[0].mxu0
  %5044 = vmatprep.mubr.f32.mxu0 0.0
  %5045 = vmatmul.mubr.f32.gmra.mrb[0].mxu0 %v4915
  %v5046 = vpop.f32.mrb[0].mxu0
  %v5047 = vadd.f32 0.0, %v5046
  %v5048 = vpop.f32.mrb[0].mxu0
  %5049 = vmatprep.mubr.f32.mxu0 0.0
  %5050 = vmatmul.mubr.f32.gmra.mrb[0].mxu0 %v4918
  %v5051 = vpop.f32.mrb[0].mxu0
  %v5052 = vadd.f32 0.0, %v5051
  %v5053 = vpop.f32.mrb[0].mxu0
  %5054 = vmatprep.mubr.f32.mxu0 0.0
  %5055 = vmatmul.mubr.f32.gmra.mrb[0].mxu0 %v4921
  %v5056 = vpop.f32.mrb[0].mxu0
  %v5057 = vadd.f32 0.0, %v5056
  %v5058 = vpop.f32.mrb[0].mxu0
  %5059 = vmatprep.mubr.f32.mxu0 0.0
  %5060 = vmatmul.mubr.f32.gmra.mrb[0].mxu0 %v4924
  %v5061 = vpop.f32.mrb[0].mxu0
  %v5062 = vadd.f32 0.0, %v5061
  %v5063 = vpop.f32.mrb[0].mxu0
  %5064 = vmatprep.mubr.f32.mxu0 0.0
  %5065 = vmatmul.mubr.f32.gmra.mrb[0].mxu0 %v4927
  %v5066 = vpop.f32.mrb[0].mxu0
  %v5067 = vadd.f32 0.0, %v5066
  %v5068 = vpop.f32.mrb[0].mxu0
  %5069 = vmatprep.mubr.f32.mxu0 0.0
  %5070 = vmatmul.mubr.f32.gmra.mrb[0].mxu0 %v4930
  %v5071 = vpop.f32.mrb[0].mxu0
  %v5072 = vadd.f32 0.0, %v5071
  %v5073 = vpop.f32.mrb[0].mxu0
  %5074 = vmatprep.mubr.f32.mxu0 0.0
  %5075 = vmatmul.mubr.f32.gmra.mrb[0].mxu0 %v4933
  %v5076 = vpop.f32.mrb[0].mxu0
  %v5077 = vadd.f32 0.0, %v5076
  %v5078 = vpop.f32.mrb[0].mxu0
  %5079 = vdwg.mxu0
  %v5080 = vmul.f32 %v5002, 0.020408163
  %v5081 = vmul.f32 %v5007, 0.020408163
  %v5082 = vmul.f32 %v5012, 0.020408163
  %v5083 = vmul.f32 %v5017, 0.020408163
  %v5084 = vmul.f32 %v5022, 0.020408163
  %v5085 = vmul.f32 %v5027, 0.020408163
  %v5086 = vmul.f32 %v5032, 0.020408163
  %v5087 = vmul.f32 %v5037, 0.020408163
  %v5088 = vmul.f32 %v5042, 0.020408163
  %v5089 = vmul.f32 %v5047, 0.020408163
  %v5090 = vmul.f32 %v5052, 0.020408163
  %v5091 = vmul.f32 %v5057, 0.020408163
  %v5092 = vmul.f32 %v5062, 0.020408163
  %v5093 = vmul.f32 %v5067, 0.020408163
  %v5094 = vmul.f32 %v5072, 0.020408163
  %v5095 = vmul.f32 %v5077, 0.020408163
  %v5096 = vadd.f32 %v5080, 1e-05
  %v5097 = vadd.f32 %v5081, 1e-05
  %v5098 = vadd.f32 %v5082, 1e-05
  %v5099 = vadd.f32 %v5083, 1e-05
  %v5100 = vadd.f32 %v5084, 1e-05
  %v5101 = vadd.f32 %v5085, 1e-05
  %v5102 = vadd.f32 %v5086, 1e-05
  %v5103 = vadd.f32 %v5087, 1e-05
  %v5104 = vadd.f32 %v5088, 1e-05
  %v5105 = vadd.f32 %v5089, 1e-05
  %v5106 = vadd.f32 %v5090, 1e-05
  %v5107 = vadd.f32 %v5091, 1e-05
  %v5108 = vadd.f32 %v5092, 1e-05
  %v5109 = vadd.f32 %v5093, 1e-05
  %v5110 = vadd.f32 %v5094, 1e-05
  %v5111 = vadd.f32 %v5095, 1e-05
  %v5112 = vrsqrt.pop %v5096
  %v5113 = vrsqrt.pop %v5097
  %v5114 = vrsqrt.pop %v5098
  %v5115 = vrsqrt.pop %v5099
  %v5116 = vrsqrt.pop %v5100
  %v5117 = vrsqrt.pop %v5101
  %v5118 = vrsqrt.pop %v5102
  %v5119 = vrsqrt.pop %v5103
  %v5120 = vrsqrt.pop %v5104
  %v5121 = vrsqrt.pop %v5105
  %v5122 = vrsqrt.pop %v5106
  %v5123 = vrsqrt.pop %v5107
  %v5124 = vrsqrt.pop %v5108
  %v5125 = vrsqrt.pop %v5109
  %v5126 = vrsqrt.pop %v5110
  %v5127 = vrsqrt.pop %v5111
  %v5128 = vld [vmem:[%s2] sm:$0xff]
  %v5129 = vld [vmem:[%s2 + $0x8] sm:$0xff]
  %v5130 = vld [vmem:[%s2 + $0x10] sm:$0xff]
  %v5131 = vld [vmem:[%s2 + $0x18] sm:$0xff]
  %v5132 = vld [vmem:[%s2 + $0x20] sm:$0xff]
  %v5133 = vld [vmem:[%s2 + $0x28] sm:$0xff]
  %v5134 = vld [vmem:[%s2 + $0x30] sm:$0xff]
  %v5135 = vld [vmem:[%s2 + $0x38] sm:$0xff]
  %v5136 = vld [vmem:[%s2 + $0x40] sm:$0xff]
  %v5137 = vld [vmem:[%s2 + $0x48] sm:$0xff]
  %v5138 = vld [vmem:[%s2 + $0x50] sm:$0xff]
  %v5139 = vld [vmem:[%s2 + $0x58] sm:$0xff]
  %v5140 = vld [vmem:[%s2 + $0x60] sm:$0xff]
  %v5141 = vld [vmem:[%s2 + $0x68] sm:$0xff]
  %v5142 = vld [vmem:[%s2 + $0x70] sm:$0xff]
  %v5143 = vld [vmem:[%s2 + $0x78] sm:$0xff]
  %5145 = vset.pattern.permute.xlu0 0
  %5146 = vperm.xlu0 %5145, %v5128
  %v5147 = vpop.permute.xlu0 %5146
  %5150 = vset.pattern.permute.xlu0 0
  %5151 = vperm.xlu0 %5150, %v5129
  %v5152 = vpop.permute.xlu0 %5151
  %5155 = vset.pattern.permute.xlu0 0
  %5156 = vperm.xlu0 %5155, %v5130
  %v5157 = vpop.permute.xlu0 %5156
  %5160 = vset.pattern.permute.xlu0 0
  %5161 = vperm.xlu0 %5160, %v5131
  %v5162 = vpop.permute.xlu0 %5161
  %5165 = vset.pattern.permute.xlu0 0
  %5166 = vperm.xlu0 %5165, %v5132
  %v5167 = vpop.permute.xlu0 %5166
  %5170 = vset.pattern.permute.xlu0 0
  %5171 = vperm.xlu0 %5170, %v5133
  %v5172 = vpop.permute.xlu0 %5171
  %5175 = vset.pattern.permute.xlu0 0
  %5176 = vperm.xlu0 %5175, %v5134
  %v5177 = vpop.permute.xlu0 %5176
  %5180 = vset.pattern.permute.xlu0 0
  %5181 = vperm.xlu0 %5180, %v5135
  %v5182 = vpop.permute.xlu0 %5181
  %5185 = vset.pattern.permute.xlu0 0
  %5186 = vperm.xlu0 %5185, %v5136
  %v5187 = vpop.permute.xlu0 %5186
  %5190 = vset.pattern.permute.xlu0 0
  %5191 = vperm.xlu0 %5190, %v5137
  %v5192 = vpop.permute.xlu0 %5191
  %5195 = vset.pattern.permute.xlu0 0
  %5196 = vperm.xlu0 %5195, %v5138
  %v5197 = vpop.permute.xlu0 %5196
  %5200 = vset.pattern.permute.xlu0 0
  %5201 = vperm.xlu0 %5200, %v5139
  %v5202 = vpop.permute.xlu0 %5201
  %5205 = vset.pattern.permute.xlu0 0
  %5206 = vperm.xlu0 %5205, %v5140
  %v5207 = vpop.permute.xlu0 %5206
  %5210 = vset.pattern.permute.xlu0 0
  %5211 = vperm.xlu0 %5210, %v5141
  %v5212 = vpop.permute.xlu0 %5211
  %5215 = vset.pattern.permute.xlu0 0
  %5216 = vperm.xlu0 %5215, %v5142
  %v5217 = vpop.permute.xlu0 %5216
  %5220 = vset.pattern.permute.xlu0 0
  %5221 = vperm.xlu0 %5220, %v5143
  %v5222 = vpop.permute.xlu0 %5221
  %v5224 = vmul.f32 %v5112, %v5147
  %v5225 = vmul.f32 %v5113, %v5152
  %v5226 = vmul.f32 %v5114, %v5157
  %v5227 = vmul.f32 %v5115, %v5162
  %v5228 = vmul.f32 %v5116, %v5167
  %v5229 = vmul.f32 %v5117, %v5172
  %v5230 = vmul.f32 %v5118, %v5177
  %v5231 = vmul.f32 %v5119, %v5182
  %v5232 = vmul.f32 %v5120, %v5187
  %v5233 = vmul.f32 %v5121, %v5192
  %v5234 = vmul.f32 %v5122, %v5197
  %v5235 = vmul.f32 %v5123, %v5202
  %v5236 = vmul.f32 %v5124, %v5207
  %v5237 = vmul.f32 %v5125, %v5212
  %v5238 = vmul.f32 %v5126, %v5217
  %v5239 = vmul.f32 %v5127, %v5222
  %v5240 = vmul.f32 %v4855, %v5224
  %v5241 = vmul.f32 %v4856, %v5225
  %v5242 = vmul.f32 %v4857, %v5226
  %v5243 = vmul.f32 %v4858, %v5227
  %v5244 = vmul.f32 %v4859, %v5228
  %v5245 = vmul.f32 %v4860, %v5229
  %v5246 = vmul.f32 %v4861, %v5230
  %v5247 = vmul.f32 %v4862, %v5231
  %v5248 = vmul.f32 %v4863, %v5232
  %v5249 = vmul.f32 %v4864, %v5233
  %v5250 = vmul.f32 %v4865, %v5234
  %v5251 = vmul.f32 %v4866, %v5235
  %v5252 = vmul.f32 %v4867, %v5236
  %v5253 = vmul.f32 %v4868, %v5237
  %v5254 = vmul.f32 %v4869, %v5238
  %v5255 = vmul.f32 %v4870, %v5239
  %v5256 = vld [vmem:[%s3] sm:$0xff]
  %v5257 = vld [vmem:[%s3 + $0x8] sm:$0xff]
  %v5258 = vld [vmem:[%s3 + $0x10] sm:$0xff]
  %v5259 = vld [vmem:[%s3 + $0x18] sm:$0xff]
  %v5260 = vld [vmem:[%s3 + $0x20] sm:$0xff]
  %v5261 = vld [vmem:[%s3 + $0x28] sm:$0xff]
  %v5262 = vld [vmem:[%s3 + $0x30] sm:$0xff]
  %v5263 = vld [vmem:[%s3 + $0x38] sm:$0xff]
  %v5264 = vld [vmem:[%s3 + $0x40] sm:$0xff]
  %v5265 = vld [vmem:[%s3 + $0x48] sm:$0xff]
  %v5266 = vld [vmem:[%s3 + $0x50] sm:$0xff]
  %v5267 = vld [vmem:[%s3 + $0x58] sm:$0xff]
  %v5268 = vld [vmem:[%s3 + $0x60] sm:$0xff]
  %v5269 = vld [vmem:[%s3 + $0x68] sm:$0xff]
  %v5270 = vld [vmem:[%s3 + $0x70] sm:$0xff]
  %v5271 = vld [vmem:[%s3 + $0x78] sm:$0xff]
  %5273 = vset.pattern.permute.xlu0 0
  %5274 = vperm.xlu0 %5273, %v5256
  %v5275 = vpop.permute.xlu0 %5274
  %5278 = vset.pattern.permute.xlu0 0
  %5279 = vperm.xlu0 %5278, %v5257
  %v5280 = vpop.permute.xlu0 %5279
  %5283 = vset.pattern.permute.xlu0 0
  %5284 = vperm.xlu0 %5283, %v5258
  %v5285 = vpop.permute.xlu0 %5284
  %5288 = vset.pattern.permute.xlu0 0
  %5289 = vperm.xlu0 %5288, %v5259
  %v5290 = vpop.permute.xlu0 %5289
  %5293 = vset.pattern.permute.xlu0 0
  %5294 = vperm.xlu0 %5293, %v5260
  %v5295 = vpop.permute.xlu0 %5294
  %5298 = vset.pattern.permute.xlu0 0
  %5299 = vperm.xlu0 %5298, %v5261
  %v5300 = vpop.permute.xlu0 %5299
  %5303 = vset.pattern.permute.xlu0 0
  %5304 = vperm.xlu0 %5303, %v5262
  %v5305 = vpop.permute.xlu0 %5304
  %5308 = vset.pattern.permute.xlu0 0
  %5309 = vperm.xlu0 %5308, %v5263
  %v5310 = vpop.permute.xlu0 %5309
  %5313 = vset.pattern.permute.xlu0 0
  %5314 = vperm.xlu0 %5313, %v5264
  %v5315 = vpop.permute.xlu0 %5314
  %5318 = vset.pattern.permute.xlu0 0
  %5319 = vperm.xlu0 %5318, %v5265
  %v5320 = vpop.permute.xlu0 %5319
  %5323 = vset.pattern.permute.xlu0 0
  %5324 = vperm.xlu0 %5323, %v5266
  %v5325 = vpop.permute.xlu0 %5324
  %5328 = vset.pattern.permute.xlu0 0
  %5329 = vperm.xlu0 %5328, %v5267
  %v5330 = vpop.permute.xlu0 %5329
  %5333 = vset.pattern.permute.xlu0 0
  %5334 = vperm.xlu0 %5333, %v5268
  %v5335 = vpop.permute.xlu0 %5334
  %5338 = vset.pattern.permute.xlu0 0
  %5339 = vperm.xlu0 %5338, %v5269
  %v5340 = vpop.permute.xlu0 %5339
  %5343 = vset.pattern.permute.xlu0 0
  %5344 = vperm.xlu0 %5343, %v5270
  %v5345 = vpop.permute.xlu0 %5344
  %5348 = vset.pattern.permute.xlu0 0
  %5349 = vperm.xlu0 %5348, %v5271
  %v5350 = vpop.permute.xlu0 %5349
  %v5352 = vadd.f32 %v5240, %v5275
  %v5353 = vadd.f32 %v5241, %v5280
  %v5354 = vadd.f32 %v5242, %v5285
  %v5355 = vadd.f32 %v5243, %v5290
  %v5356 = vadd.f32 %v5244, %v5295
  %v5357 = vadd.f32 %v5245, %v5300
  %v5358 = vadd.f32 %v5246, %v5305
  %v5359 = vadd.f32 %v5247, %v5310
  %v5360 = vadd.f32 %v5248, %v5315
  %v5361 = vadd.f32 %v5249, %v5320
  %v5362 = vadd.f32 %v5250, %v5325
  %v5363 = vadd.f32 %v5251, %v5330
  %v5364 = vadd.f32 %v5252, %v5335
  %v5365 = vadd.f32 %v5253, %v5340
  %v5366 = vadd.f32 %v5254, %v5345
  %v5367 = vadd.f32 %v5255, %v5350
  %5368 = vst.msk [vmem:[%s18] sm:$0xff] %vm908, %v5352
  %5369 = vst.msk [vmem:[%s18 + $0x8] sm:$0xff] %vm908, %v5353
  %5370 = vst.msk [vmem:[%s18 + $0x10] sm:$0xff] %vm908, %v5354
  %5371 = vst.msk [vmem:[%s18 + $0x18] sm:$0xff] %vm908, %v5355
  %5372 = vst.msk [vmem:[%s18 + $0x20] sm:$0xff] %vm908, %v5356
  %5373 = vst.msk [vmem:[%s18 + $0x28] sm:$0xff] %vm908, %v5357
  %5374 = vst.msk [vmem:[%s18 + $0x30] sm:$0xff] %vm908, %v5358
  %5375 = vst.msk [vmem:[%s18 + $0x38] sm:$0xff] %vm908, %v5359
  %5376 = vst.msk [vmem:[%s18 + $0x40] sm:$0xff] %vm908, %v5360
  %5377 = vst.msk [vmem:[%s18 + $0x48] sm:$0xff] %vm908, %v5361
  %5378 = vst.msk [vmem:[%s18 + $0x50] sm:$0xff] %vm908, %v5362
  %5379 = vst.msk [vmem:[%s18 + $0x58] sm:$0xff] %vm908, %v5363
  %5380 = vst.msk [vmem:[%s18 + $0x60] sm:$0xff] %vm908, %v5364
  %5381 = vst.msk [vmem:[%s18 + $0x68] sm:$0xff] %vm908, %v5365
  %5382 = vst.msk [vmem:[%s18 + $0x70] sm:$0xff] %vm908, %v5366
  %5383 = vst.msk [vmem:[%s18 + $0x78] sm:$0xff] %vm908, %v5367
  %v5384 = vld [vmem:[#allocation3 + $0x80] sm:$0xff]
  %v5385 = vld [vmem:[#allocation3 + $0x88] sm:$0xff]
  %v5386 = vld [vmem:[#allocation3 + $0x90] sm:$0xff]
  %v5387 = vld [vmem:[#allocation3 + $0x98] sm:$0xff]
  %v5388 = vld [vmem:[#allocation3 + $0xa0] sm:$0xff]
  %v5389 = vld [vmem:[#allocation3 + $0xa8] sm:$0xff]
  %v5390 = vld [vmem:[#allocation3 + $0xb0] sm:$0xff]
  %v5391 = vld [vmem:[#allocation3 + $0xb8] sm:$0xff]
  %v5392 = vld [vmem:[#allocation3 + $0xc0] sm:$0xff]
  %v5393 = vld [vmem:[#allocation3 + $0xc8] sm:$0xff]
  %v5394 = vld [vmem:[#allocation3 + $0xd0] sm:$0xff]
  %v5395 = vld [vmem:[#allocation3 + $0xd8] sm:$0xff]
  %v5396 = vld [vmem:[#allocation3 + $0xe0] sm:$0xff]
  %v5397 = vld [vmem:[#allocation3 + $0xe8] sm:$0xff]
  %v5398 = vld [vmem:[#allocation3 + $0xf0] sm:$0xff]
  %v5399 = vld [vmem:[#allocation3 + $0xf8] sm:$0xff]
  %v5401 = vsel %vm908, %v5384, 0
  %v5404 = vsel %vm908, %v5385, 0
  %v5407 = vsel %vm908, %v5386, 0
  %v5410 = vsel %vm908, %v5387, 0
  %v5413 = vsel %vm908, %v5388, 0
  %v5416 = vsel %vm908, %v5389, 0
  %v5419 = vsel %vm908, %v5390, 0
  %v5422 = vsel %vm908, %v5391, 0
  %v5425 = vsel %vm908, %v5392, 0
  %v5428 = vsel %vm908, %v5393, 0
  %v5431 = vsel %vm908, %v5394, 0
  %v5434 = vsel %vm908, %v5395, 0
  %v5437 = vsel %vm908, %v5396, 0
  %v5440 = vsel %vm908, %v5397, 0
  %v5443 = vsel %vm908, %v5398, 0
  %v5446 = vsel %vm908, %v5399, 0
  %5448 = vmatprep.subr.mxu0 0.0
  %5449 = vmatpush1.msra.mxu0 1.0
  %5450 = vmatprep.subr.mxu0 0.0
  %5451 = vmatpush1.msra.mxu0 1.0
  %5452 = vmatprep.subr.mxu0 0.0
  %5453 = vmatpush1.msra.mxu0 1.0
  %5454 = vmatprep.subr.mxu0 0.0
  %5455 = vmatpush1.msra.mxu0 1.0
  %5456 = vmatprep.subr.mxu0 0.0
  %5457 = vmatpush1.msra.mxu0 1.0
  %5458 = vmatprep.subr.mxu0 0.0
  %5459 = vmatpush1.msra.mxu0 1.0
  %5460 = vmatprep.subr.mxu0 0.0
  %5461 = vmatpush1.msra.mxu0 %v923
  %5462 = vmatprep.subr.mxu0 0.0
  %5463 = vmatpush1.msra.mxu0 0.0
  %5464 = vmatprep.subr.mxu0 0.0
  %5465 = vmatpush1.msra.mxu0 0.0
  %5466 = vmatprep.subr.mxu0 0.0
  %5467 = vmatpush1.msra.mxu0 0.0
  %5468 = vmatprep.subr.mxu0 0.0
  %5469 = vmatpush1.msra.mxu0 0.0
  %5470 = vmatprep.subr.mxu0 0.0
  %5471 = vmatpush1.msra.mxu0 0.0
  %5472 = vmatprep.subr.mxu0 0.0
  %5473 = vmatpush1.msra.mxu0 0.0
  %5474 = vmatprep.subr.mxu0 0.0
  %5475 = vmatpush1.msra.mxu0 0.0
  %5476 = vmatprep.subr.mxu0 0.0
  %5477 = vmatpush1.msra.mxu0 0.0
  %5478 = vmatprep.subr.mxu0 0.0
  %5479 = vmatpush1.msra.mxu0 0.0
  %5480 = vmatprep.subr.mxu0 0.0
  %5481 = vmatpush1.msra.mxu0 0.0
  %5482 = vmatprep.subr.mxu0 0.0
  %5483 = vmatpush1.msra.mxu0 0.0
  %5484 = vmatprep.subr.mxu0 0.0
  %5485 = vmatpush1.msra.mxu0 0.0
  %5486 = vmatprep.subr.mxu0 0.0
  %5487 = vmatpush1.msra.mxu0 0.0
  %5488 = vmatprep.subr.mxu0 0.0
  %5489 = vmatpush1.msra.mxu0 0.0
  %5490 = vmatprep.subr.mxu0 0.0
  %5491 = vmatpush1.msra.mxu0 0.0
  %5492 = vmatprep.subr.mxu0 0.0
  %5493 = vmatpush1.msra.mxu0 0.0
  %5494 = vmatprep.subr.mxu0 0.0
  %5495 = vmatpush1.msra.mxu0 0.0
  %5496 = vmatprep.subr.mxu0 0.0
  %5497 = vmatpush1.msra.mxu0 0.0
  %5498 = vmatprep.subr.mxu0 0.0
  %5499 = vmatpush1.msra.mxu0 0.0
  %5500 = vmatprep.subr.mxu0 0.0
  %5501 = vmatpush1.msra.mxu0 0.0
  %5502 = vmatprep.subr.mxu0 0.0
  %5503 = vmatpush1.msra.mxu0 0.0
  %5504 = vmatprep.subr.mxu0 0.0
  %5505 = vmatpush1.msra.mxu0 0.0
  %5506 = vmatprep.subr.mxu0 0.0
  %5507 = vmatpush1.msra.mxu0 0.0
  %5508 = vmatprep.subr.mxu0 0.0
  %5509 = vmatpush1.msra.mxu0 0.0
  %5510 = vmatprep.subr.mxu0 0.0
  %5511 = vmatpush1.msra.mxu0 0.0
  %5512 = vmatprep.mubr.f32.mxu0 0.0
  %5513 = vmatmul.mubr.f32.gmra.mrb[0].mxu0 %v5401
  %v5514 = vpop.f32.mrb[0].mxu0
  %v5515 = vadd.f32 0.0, %v5514
  %v5516 = vpop.f32.mrb[0].mxu0
  %5517 = vmatprep.mubr.f32.mxu0 0.0
  %5518 = vmatmul.mubr.f32.gmra.mrb[0].mxu0 %v5404
  %v5519 = vpop.f32.mrb[0].mxu0
  %v5520 = vadd.f32 0.0, %v5519
  %v5521 = vpop.f32.mrb[0].mxu0
  %5522 = vmatprep.mubr.f32.mxu0 0.0
  %5523 = vmatmul.mubr.f32.gmra.mrb[0].mxu0 %v5407
  %v5524 = vpop.f32.mrb[0].mxu0
  %v5525 = vadd.f32 0.0, %v5524
  %v5526 = vpop.f32.mrb[0].mxu0
  %5527 = vmatprep.mubr.f32.mxu0 0.0
  %5528 = vmatmul.mubr.f32.gmra.mrb[0].mxu0 %v5410
  %v5529 = vpop.f32.mrb[0].mxu0
  %v5530 = vadd.f32 0.0, %v5529
  %v5531 = vpop.f32.mrb[0].mxu0
  %5532 = vmatprep.mubr.f32.mxu0 0.0
  %5533 = vmatmul.mubr.f32.gmra.mrb[0].mxu0 %v5413
  %v5534 = vpop.f32.mrb[0].mxu0
  %v5535 = vadd.f32 0.0, %v5534
  %v5536 = vpop.f32.mrb[0].mxu0
  %5537 = vmatprep.mubr.f32.mxu0 0.0
  %5538 = vmatmul.mubr.f32.gmra.mrb[0].mxu0 %v5416
  %v5539 = vpop.f32.mrb[0].mxu0
  %v5540 = vadd.f32 0.0, %v5539
  %v5541 = vpop.f32.mrb[0].mxu0
  %5542 = vmatprep.mubr.f32.mxu0 0.0
  %5543 = vmatmul.mubr.f32.gmra.mrb[0].mxu0 %v5419
  %v5544 = vpop.f32.mrb[0].mxu0
  %v5545 = vadd.f32 0.0, %v5544
  %v5546 = vpop.f32.mrb[0].mxu0
  %5547 = vmatprep.mubr.f32.mxu0 0.0
  %5548 = vmatmul.mubr.f32.gmra.mrb[0].mxu0 %v5422
  %v5549 = vpop.f32.mrb[0].mxu0
  %v5550 = vadd.f32 0.0, %v5549
  %v5551 = vpop.f32.mrb[0].mxu0
  %5552 = vmatprep.mubr.f32.mxu0 0.0
  %5553 = vmatmul.mubr.f32.gmra.mrb[0].mxu0 %v5425
  %v5554 = vpop.f32.mrb[0].mxu0
  %v5555 = vadd.f32 0.0, %v5554
  %v5556 = vpop.f32.mrb[0].mxu0
  %5557 = vmatprep.mubr.f32.mxu0 0.0
  %5558 = vmatmul.mubr.f32.gmra.mrb[0].mxu0 %v5428
  %v5559 = vpop.f32.mrb[0].mxu0
  %v5560 = vadd.f32 0.0, %v5559
  %v5561 = vpop.f32.mrb[0].mxu0
  %5562 = vmatprep.mubr.f32.mxu0 0.0
  %5563 = vmatmul.mubr.f32.gmra.mrb[0].mxu0 %v5431
  %v5564 = vpop.f32.mrb[0].mxu0
  %v5565 = vadd.f32 0.0, %v5564
  %v5566 = vpop.f32.mrb[0].mxu0
  %5567 = vmatprep.mubr.f32.mxu0 0.0
  %5568 = vmatmul.mubr.f32.gmra.mrb[0].mxu0 %v5434
  %v5569 = vpop.f32.mrb[0].mxu0
  %v5570 = vadd.f32 0.0, %v5569
  %v5571 = vpop.f32.mrb[0].mxu0
  %5572 = vmatprep.mubr.f32.mxu0 0.0
  %5573 = vmatmul.mubr.f32.gmra.mrb[0].mxu0 %v5437
  %v5574 = vpop.f32.mrb[0].mxu0
  %v5575 = vadd.f32 0.0, %v5574
  %v5576 = vpop.f32.mrb[0].mxu0
  %5577 = vmatprep.mubr.f32.mxu0 0.0
  %5578 = vmatmul.mubr.f32.gmra.mrb[0].mxu0 %v5440
  %v5579 = vpop.f32.mrb[0].mxu0
  %v5580 = vadd.f32 0.0, %v5579
  %v5581 = vpop.f32.mrb[0].mxu0
  %5582 = vmatprep.mubr.f32.mxu0 0.0
  %5583 = vmatmul.mubr.f32.gmra.mrb[0].mxu0 %v5443
  %v5584 = vpop.f32.mrb[0].mxu0
  %v5585 = vadd.f32 0.0, %v5584
  %v5586 = vpop.f32.mrb[0].mxu0
  %5587 = vmatprep.mubr.f32.mxu0 0.0
  %5588 = vmatmul.mubr.f32.gmra.mrb[0].mxu0 %v5446
  %v5589 = vpop.f32.mrb[0].mxu0
  %v5590 = vadd.f32 0.0, %v5589
  %v5591 = vpop.f32.mrb[0].mxu0
  %5592 = vdwg.mxu0
  %v5593 = vmul.f32 %v5515, 0.020408163
  %v5594 = vmul.f32 %v5520, 0.020408163
  %v5595 = vmul.f32 %v5525, 0.020408163
  %v5596 = vmul.f32 %v5530, 0.020408163
  %v5597 = vmul.f32 %v5535, 0.020408163
  %v5598 = vmul.f32 %v5540, 0.020408163
  %v5599 = vmul.f32 %v5545, 0.020408163
  %v5600 = vmul.f32 %v5550, 0.020408163
  %v5601 = vmul.f32 %v5555, 0.020408163
  %v5602 = vmul.f32 %v5560, 0.020408163
  %v5603 = vmul.f32 %v5565, 0.020408163
  %v5604 = vmul.f32 %v5570, 0.020408163
  %v5605 = vmul.f32 %v5575, 0.020408163
  %v5606 = vmul.f32 %v5580, 0.020408163
  %v5607 = vmul.f32 %v5585, 0.020408163
  %v5608 = vmul.f32 %v5590, 0.020408163
  %v5609 = vsub.f32 %v5384, %v5593
  %v5610 = vsub.f32 %v5385, %v5594
  %v5611 = vsub.f32 %v5386, %v5595
  %v5612 = vsub.f32 %v5387, %v5596
  %v5613 = vsub.f32 %v5388, %v5597
  %v5614 = vsub.f32 %v5389, %v5598
  %v5615 = vsub.f32 %v5390, %v5599
  %v5616 = vsub.f32 %v5391, %v5600
  %v5617 = vsub.f32 %v5392, %v5601
  %v5618 = vsub.f32 %v5393, %v5602
  %v5619 = vsub.f32 %v5394, %v5603
  %v5620 = vsub.f32 %v5395, %v5604
  %v5621 = vsub.f32 %v5396, %v5605
  %v5622 = vsub.f32 %v5397, %v5606
  %v5623 = vsub.f32 %v5398, %v5607
  %v5624 = vsub.f32 %v5399, %v5608
  %v5625 = vmul.f32 %v5609, %v5609
  %v5626 = vmul.f32 %v5610, %v5610
  %v5627 = vmul.f32 %v5611, %v5611
  %v5628 = vmul.f32 %v5612, %v5612
  %v5629 = vmul.f32 %v5613, %v5613
  %v5630 = vmul.f32 %v5614, %v5614
  %v5631 = vmul.f32 %v5615, %v5615
  %v5632 = vmul.f32 %v5616, %v5616
  %v5633 = vmul.f32 %v5617, %v5617
  %v5634 = vmul.f32 %v5618, %v5618
  %v5635 = vmul.f32 %v5619, %v5619
  %v5636 = vmul.f32 %v5620, %v5620
  %v5637 = vmul.f32 %v5621, %v5621
  %v5638 = vmul.f32 %v5622, %v5622
  %v5639 = vmul.f32 %v5623, %v5623
  %v5640 = vmul.f32 %v5624, %v5624
  %v5642 = vsel %vm908, %v5625, 0
  %v5645 = vsel %vm908, %v5626, 0
  %v5648 = vsel %vm908, %v5627, 0
  %v5651 = vsel %vm908, %v5628, 0
  %v5654 = vsel %vm908, %v5629, 0
  %v5657 = vsel %vm908, %v5630, 0
  %v5660 = vsel %vm908, %v5631, 0
  %v5663 = vsel %vm908, %v5632, 0
  %v5666 = vsel %vm908, %v5633, 0
  %v5669 = vsel %vm908, %v5634, 0
  %v5672 = vsel %vm908, %v5635, 0
  %v5675 = vsel %vm908, %v5636, 0
  %v5678 = vsel %vm908, %v5637, 0
  %v5681 = vsel %vm908, %v5638, 0
  %v5684 = vsel %vm908, %v5639, 0
  %v5687 = vsel %vm908, %v5640, 0
  %5689 = vmatprep.subr.mxu0 0.0
  %5690 = vmatpush1.msra.mxu0 1.0
  %5691 = vmatprep.subr.mxu0 0.0
  %5692 = vmatpush1.msra.mxu0 1.0
  %5693 = vmatprep.subr.mxu0 0.0
  %5694 = vmatpush1.msra.mxu0 1.0
  %5695 = vmatprep.subr.mxu0 0.0
  %5696 = vmatpush1.msra.mxu0 1.0
  %5697 = vmatprep.subr.mxu0 0.0
  %5698 = vmatpush1.msra.mxu0 1.0
  %5699 = vmatprep.subr.mxu0 0.0
  %5700 = vmatpush1.msra.mxu0 1.0
  %5701 = vmatprep.subr.mxu0 0.0
  %5702 = vmatpush1.msra.mxu0 %v923
  %5703 = vmatprep.subr.mxu0 0.0
  %5704 = vmatpush1.msra.mxu0 0.0
  %5705 = vmatprep.subr.mxu0 0.0
  %5706 = vmatpush1.msra.mxu0 0.0
  %5707 = vmatprep.subr.mxu0 0.0
  %5708 = vmatpush1.msra.mxu0 0.0
  %5709 = vmatprep.subr.mxu0 0.0
  %5710 = vmatpush1.msra.mxu0 0.0
  %5711 = vmatprep.subr.mxu0 0.0
  %5712 = vmatpush1.msra.mxu0 0.0
  %5713 = vmatprep.subr.mxu0 0.0
  %5714 = vmatpush1.msra.mxu0 0.0
  %5715 = vmatprep.subr.mxu0 0.0
  %5716 = vmatpush1.msra.mxu0 0.0
  %5717 = vmatprep.subr.mxu0 0.0
  %5718 = vmatpush1.msra.mxu0 0.0
  %5719 = vmatprep.subr.mxu0 0.0
  %5720 = vmatpush1.msra.mxu0 0.0
  %5721 = vmatprep.subr.mxu0 0.0
  %5722 = vmatpush1.msra.mxu0 0.0
  %5723 = vmatprep.subr.mxu0 0.0
  %5724 = vmatpush1.msra.mxu0 0.0
  %5725 = vmatprep.subr.mxu0 0.0
  %5726 = vmatpush1.msra.mxu0 0.0
  %5727 = vmatprep.subr.mxu0 0.0
  %5728 = vmatpush1.msra.mxu0 0.0
  %5729 = vmatprep.subr.mxu0 0.0
  %5730 = vmatpush1.msra.mxu0 0.0
  %5731 = vmatprep.subr.mxu0 0.0
  %5732 = vmatpush1.msra.mxu0 0.0
  %5733 = vmatprep.subr.mxu0 0.0
  %5734 = vmatpush1.msra.mxu0 0.0
  %5735 = vmatprep.subr.mxu0 0.0
  %5736 = vmatpush1.msra.mxu0 0.0
  %5737 = vmatprep.subr.mxu0 0.0
  %5738 = vmatpush1.msra.mxu0 0.0
  %5739 = vmatprep.subr.mxu0 0.0
  %5740 = vmatpush1.msra.mxu0 0.0
  %5741 = vmatprep.subr.mxu0 0.0
  %5742 = vmatpush1.msra.mxu0 0.0
  %5743 = vmatprep.subr.mxu0 0.0
  %5744 = vmatpush1.msra.mxu0 0.0
  %5745 = vmatprep.subr.mxu0 0.0
  %5746 = vmatpush1.msra.mxu0 0.0
  %5747 = vmatprep.subr.mxu0 0.0
  %5748 = vmatpush1.msra.mxu0 0.0
  %5749 = vmatprep.subr.mxu0 0.0
  %5750 = vmatpush1.msra.mxu0 0.0
  %5751 = vmatprep.subr.mxu0 0.0
  %5752 = vmatpush1.msra.mxu0 0.0
  %5753 = vmatprep.mubr.f32.mxu0 0.0
  %5754 = vmatmul.mubr.f32.gmra.mrb[0].mxu0 %v5642
  %v5755 = vpop.f32.mrb[0].mxu0
  %v5756 = vadd.f32 0.0, %v5755
  %v5757 = vpop.f32.mrb[0].mxu0
  %5758 = vmatprep.mubr.f32.mxu0 0.0
  %5759 = vmatmul.mubr.f32.gmra.mrb[0].mxu0 %v5645
  %v5760 = vpop.f32.mrb[0].mxu0
  %v5761 = vadd.f32 0.0, %v5760
  %v5762 = vpop.f32.mrb[0].mxu0
  %5763 = vmatprep.mubr.f32.mxu0 0.0
  %5764 = vmatmul.mubr.f32.gmra.mrb[0].mxu0 %v5648
  %v5765 = vpop.f32.mrb[0].mxu0
  %v5766 = vadd.f32 0.0, %v5765
  %v5767 = vpop.f32.mrb[0].mxu0
  %5768 = vmatprep.mubr.f32.mxu0 0.0
  %5769 = vmatmul.mubr.f32.gmra.mrb[0].mxu0 %v5651
  %v5770 = vpop.f32.mrb[0].mxu0
  %v5771 = vadd.f32 0.0, %v5770
  %v5772 = vpop.f32.mrb[0].mxu0
  %5773 = vmatprep.mubr.f32.mxu0 0.0
  %5774 = vmatmul.mubr.f32.gmra.mrb[0].mxu0 %v5654
  %v5775 = vpop.f32.mrb[0].mxu0
  %v5776 = vadd.f32 0.0, %v5775
  %v5777 = vpop.f32.mrb[0].mxu0
  %5778 = vmatprep.mubr.f32.mxu0 0.0
  %5779 = vmatmul.mubr.f32.gmra.mrb[0].mxu0 %v5657
  %v5780 = vpop.f32.mrb[0].mxu0
  %v5781 = vadd.f32 0.0, %v5780
  %v5782 = vpop.f32.mrb[0].mxu0
  %5783 = vmatprep.mubr.f32.mxu0 0.0
  %5784 = vmatmul.mubr.f32.gmra.mrb[0].mxu0 %v5660
  %v5785 = vpop.f32.mrb[0].mxu0
  %v5786 = vadd.f32 0.0, %v5785
  %v5787 = vpop.f32.mrb[0].mxu0
  %5788 = vmatprep.mubr.f32.mxu0 0.0
  %5789 = vmatmul.mubr.f32.gmra.mrb[0].mxu0 %v5663
  %v5790 = vpop.f32.mrb[0].mxu0
  %v5791 = vadd.f32 0.0, %v5790
  %v5792 = vpop.f32.mrb[0].mxu0
  %5793 = vmatprep.mubr.f32.mxu0 0.0
  %5794 = vmatmul.mubr.f32.gmra.mrb[0].mxu0 %v5666
  %v5795 = vpop.f32.mrb[0].mxu0
  %v5796 = vadd.f32 0.0, %v5795
  %v5797 = vpop.f32.mrb[0].mxu0
  %5798 = vmatprep.mubr.f32.mxu0 0.0
  %5799 = vmatmul.mubr.f32.gmra.mrb[0].mxu0 %v5669
  %v5800 = vpop.f32.mrb[0].mxu0
  %v5801 = vadd.f32 0.0, %v5800
  %v5802 = vpop.f32.mrb[0].mxu0
  %5803 = vmatprep.mubr.f32.mxu0 0.0
  %5804 = vmatmul.mubr.f32.gmra.mrb[0].mxu0 %v5672
  %v5805 = vpop.f32.mrb[0].mxu0
  %v5806 = vadd.f32 0.0, %v5805
  %v5807 = vpop.f32.mrb[0].mxu0
  %5808 = vmatprep.mubr.f32.mxu0 0.0
  %5809 = vmatmul.mubr.f32.gmra.mrb[0].mxu0 %v5675
  %v5810 = vpop.f32.mrb[0].mxu0
  %v5811 = vadd.f32 0.0, %v5810
  %v5812 = vpop.f32.mrb[0].mxu0
  %5813 = vmatprep.mubr.f32.mxu0 0.0
  %5814 = vmatmul.mubr.f32.gmra.mrb[0].mxu0 %v5678
  %v5815 = vpop.f32.mrb[0].mxu0
  %v5816 = vadd.f32 0.0, %v5815
  %v5817 = vpop.f32.mrb[0].mxu0
  %5818 = vmatprep.mubr.f32.mxu0 0.0
  %5819 = vmatmul.mubr.f32.gmra.mrb[0].mxu0 %v5681
  %v5820 = vpop.f32.mrb[0].mxu0
  %v5821 = vadd.f32 0.0, %v5820
  %v5822 = vpop.f32.mrb[0].mxu0
  %5823 = vmatprep.mubr.f32.mxu0 0.0
  %5824 = vmatmul.mubr.f32.gmra.mrb[0].mxu0 %v5684
  %v5825 = vpop.f32.mrb[0].mxu0
  %v5826 = vadd.f32 0.0, %v5825
  %v5827 = vpop.f32.mrb[0].mxu0
  %5828 = vmatprep.mubr.f32.mxu0 0.0
  %5829 = vmatmul.mubr.f32.gmra.mrb[0].mxu0 %v5687
  %v5830 = vpop.f32.mrb[0].mxu0
  %v5831 = vadd.f32 0.0, %v5830
  %v5832 = vpop.f32.mrb[0].mxu0
  %5833 = vdwg.mxu0
  %v5834 = vmul.f32 %v5756, 0.020408163
  %v5835 = vmul.f32 %v5761, 0.020408163
  %v5836 = vmul.f32 %v5766, 0.020408163
  %v5837 = vmul.f32 %v5771, 0.020408163
  %v5838 = vmul.f32 %v5776, 0.020408163
  %v5839 = vmul.f32 %v5781, 0.020408163
  %v5840 = vmul.f32 %v5786, 0.020408163
  %v5841 = vmul.f32 %v5791, 0.020408163
  %v5842 = vmul.f32 %v5796, 0.020408163
  %v5843 = vmul.f32 %v5801, 0.020408163
  %v5844 = vmul.f32 %v5806, 0.020408163
  %v5845 = vmul.f32 %v5811, 0.020408163
  %v5846 = vmul.f32 %v5816, 0.020408163
  %v5847 = vmul.f32 %v5821, 0.020408163
  %v5848 = vmul.f32 %v5826, 0.020408163
  %v5849 = vmul.f32 %v5831, 0.020408163
  %v5850 = vadd.f32 %v5834, 1e-05
  %v5851 = vadd.f32 %v5835, 1e-05
  %v5852 = vadd.f32 %v5836, 1e-05
  %v5853 = vadd.f32 %v5837, 1e-05
  %v5854 = vadd.f32 %v5838, 1e-05
  %v5855 = vadd.f32 %v5839, 1e-05
  %v5856 = vadd.f32 %v5840, 1e-05
  %v5857 = vadd.f32 %v5841, 1e-05
  %v5858 = vadd.f32 %v5842, 1e-05
  %v5859 = vadd.f32 %v5843, 1e-05
  %v5860 = vadd.f32 %v5844, 1e-05
  %v5861 = vadd.f32 %v5845, 1e-05
  %v5862 = vadd.f32 %v5846, 1e-05
  %v5863 = vadd.f32 %v5847, 1e-05
  %v5864 = vadd.f32 %v5848, 1e-05
  %v5865 = vadd.f32 %v5849, 1e-05
  %v5866 = vrsqrt.pop %v5850
  %v5867 = vrsqrt.pop %v5851
  %v5868 = vrsqrt.pop %v5852
  %v5869 = vrsqrt.pop %v5853
  %v5870 = vrsqrt.pop %v5854
  %v5871 = vrsqrt.pop %v5855
  %v5872 = vrsqrt.pop %v5856
  %v5873 = vrsqrt.pop %v5857
  %v5874 = vrsqrt.pop %v5858
  %v5875 = vrsqrt.pop %v5859
  %v5876 = vrsqrt.pop %v5860
  %v5877 = vrsqrt.pop %v5861
  %v5878 = vrsqrt.pop %v5862
  %v5879 = vrsqrt.pop %v5863
  %v5880 = vrsqrt.pop %v5864
  %v5881 = vrsqrt.pop %v5865
  %v5882 = vld [vmem:[%s2 + $0x80] sm:$0xff]
  %v5883 = vld [vmem:[%s2 + $0x88] sm:$0xff]
  %v5884 = vld [vmem:[%s2 + $0x90] sm:$0xff]
  %v5885 = vld [vmem:[%s2 + $0x98] sm:$0xff]
  %v5886 = vld [vmem:[%s2 + $0xa0] sm:$0xff]
  %v5887 = vld [vmem:[%s2 + $0xa8] sm:$0xff]
  %v5888 = vld [vmem:[%s2 + $0xb0] sm:$0xff]
  %v5889 = vld [vmem:[%s2 + $0xb8] sm:$0xff]
  %v5890 = vld [vmem:[%s2 + $0xc0] sm:$0xff]
  %v5891 = vld [vmem:[%s2 + $0xc8] sm:$0xff]
  %v5892 = vld [vmem:[%s2 + $0xd0] sm:$0xff]
  %v5893 = vld [vmem:[%s2 + $0xd8] sm:$0xff]
  %v5894 = vld [vmem:[%s2 + $0xe0] sm:$0xff]
  %v5895 = vld [vmem:[%s2 + $0xe8] sm:$0xff]
  %v5896 = vld [vmem:[%s2 + $0xf0] sm:$0xff]
  %v5897 = vld [vmem:[%s2 + $0xf8] sm:$0xff]
  %5899 = vset.pattern.permute.xlu0 0
  %5900 = vperm.xlu0 %5899, %v5882
  %v5901 = vpop.permute.xlu0 %5900
  %5904 = vset.pattern.permute.xlu0 0
  %5905 = vperm.xlu0 %5904, %v5883
  %v5906 = vpop.permute.xlu0 %5905
  %5909 = vset.pattern.permute.xlu0 0
  %5910 = vperm.xlu0 %5909, %v5884
  %v5911 = vpop.permute.xlu0 %5910
  %5914 = vset.pattern.permute.xlu0 0
  %5915 = vperm.xlu0 %5914, %v5885
  %v5916 = vpop.permute.xlu0 %5915
  %5919 = vset.pattern.permute.xlu0 0
  %5920 = vperm.xlu0 %5919, %v5886
  %v5921 = vpop.permute.xlu0 %5920
  %5924 = vset.pattern.permute.xlu0 0
  %5925 = vperm.xlu0 %5924, %v5887
  %v5926 = vpop.permute.xlu0 %5925
  %5929 = vset.pattern.permute.xlu0 0
  %5930 = vperm.xlu0 %5929, %v5888
  %v5931 = vpop.permute.xlu0 %5930
  %5934 = vset.pattern.permute.xlu0 0
  %5935 = vperm.xlu0 %5934, %v5889
  %v5936 = vpop.permute.xlu0 %5935
  %5939 = vset.pattern.permute.xlu0 0
  %5940 = vperm.xlu0 %5939, %v5890
  %v5941 = vpop.permute.xlu0 %5940
  %5944 = vset.pattern.permute.xlu0 0
  %5945 = vperm.xlu0 %5944, %v5891
  %v5946 = vpop.permute.xlu0 %5945
  %5949 = vset.pattern.permute.xlu0 0
  %5950 = vperm.xlu0 %5949, %v5892
  %v5951 = vpop.permute.xlu0 %5950
  %5954 = vset.pattern.permute.xlu0 0
  %5955 = vperm.xlu0 %5954, %v5893
  %v5956 = vpop.permute.xlu0 %5955
  %5959 = vset.pattern.permute.xlu0 0
  %5960 = vperm.xlu0 %5959, %v5894
  %v5961 = vpop.permute.xlu0 %5960
  %5964 = vset.pattern.permute.xlu0 0
  %5965 = vperm.xlu0 %5964, %v5895
  %v5966 = vpop.permute.xlu0 %5965
  %5969 = vset.pattern.permute.xlu0 0
  %5970 = vperm.xlu0 %5969, %v5896
  %v5971 = vpop.permute.xlu0 %5970
  %5974 = vset.pattern.permute.xlu0 0
  %5975 = vperm.xlu0 %5974, %v5897
  %v5976 = vpop.permute.xlu0 %5975
  %v5978 = vmul.f32 %v5866, %v5901
  %v5979 = vmul.f32 %v5867, %v5906
  %v5980 = vmul.f32 %v5868, %v5911
  %v5981 = vmul.f32 %v5869, %v5916
  %v5982 = vmul.f32 %v5870, %v5921
  %v5983 = vmul.f32 %v5871, %v5926
  %v5984 = vmul.f32 %v5872, %v5931
  %v5985 = vmul.f32 %v5873, %v5936
  %v5986 = vmul.f32 %v5874, %v5941
  %v5987 = vmul.f32 %v5875, %v5946
  %v5988 = vmul.f32 %v5876, %v5951
  %v5989 = vmul.f32 %v5877, %v5956
  %v5990 = vmul.f32 %v5878, %v5961
  %v5991 = vmul.f32 %v5879, %v5966
  %v5992 = vmul.f32 %v5880, %v5971
  %v5993 = vmul.f32 %v5881, %v5976
  %v5994 = vmul.f32 %v5609, %v5978
  %v5995 = vmul.f32 %v5610, %v5979
  %v5996 = vmul.f32 %v5611, %v5980
  %v5997 = vmul.f32 %v5612, %v5981
  %v5998 = vmul.f32 %v5613, %v5982
  %v5999 = vmul.f32 %v5614, %v5983
  %v6000 = vmul.f32 %v5615, %v5984
  %v6001 = vmul.f32 %v5616, %v5985
  %v6002 = vmul.f32 %v5617, %v5986
  %v6003 = vmul.f32 %v5618, %v5987
  %v6004 = vmul.f32 %v5619, %v5988
  %v6005 = vmul.f32 %v5620, %v5989
  %v6006 = vmul.f32 %v5621, %v5990
  %v6007 = vmul.f32 %v5622, %v5991
  %v6008 = vmul.f32 %v5623, %v5992
  %v6009 = vmul.f32 %v5624, %v5993
  %v6010 = vld [vmem:[%s3 + $0x80] sm:$0xff]
  %v6011 = vld [vmem:[%s3 + $0x88] sm:$0xff]
  %v6012 = vld [vmem:[%s3 + $0x90] sm:$0xff]
  %v6013 = vld [vmem:[%s3 + $0x98] sm:$0xff]
  %v6014 = vld [vmem:[%s3 + $0xa0] sm:$0xff]
  %v6015 = vld [vmem:[%s3 + $0xa8] sm:$0xff]
  %v6016 = vld [vmem:[%s3 + $0xb0] sm:$0xff]
  %v6017 = vld [vmem:[%s3 + $0xb8] sm:$0xff]
  %v6018 = vld [vmem:[%s3 + $0xc0] sm:$0xff]
  %v6019 = vld [vmem:[%s3 + $0xc8] sm:$0xff]
  %v6020 = vld [vmem:[%s3 + $0xd0] sm:$0xff]
  %v6021 = vld [vmem:[%s3 + $0xd8] sm:$0xff]
  %v6022 = vld [vmem:[%s3 + $0xe0] sm:$0xff]
  %v6023 = vld [vmem:[%s3 + $0xe8] sm:$0xff]
  %v6024 = vld [vmem:[%s3 + $0xf0] sm:$0xff]
  %v6025 = vld [vmem:[%s3 + $0xf8] sm:$0xff]
  %6027 = vset.pattern.permute.xlu0 0
  %6028 = vperm.xlu0 %6027, %v6010
  %v6029 = vpop.permute.xlu0 %6028
  %6032 = vset.pattern.permute.xlu0 0
  %6033 = vperm.xlu0 %6032, %v6011
  %v6034 = vpop.permute.xlu0 %6033
  %6037 = vset.pattern.permute.xlu0 0
  %6038 = vperm.xlu0 %6037, %v6012
  %v6039 = vpop.permute.xlu0 %6038
  %6042 = vset.pattern.permute.xlu0 0
  %6043 = vperm.xlu0 %6042, %v6013
  %v6044 = vpop.permute.xlu0 %6043
  %6047 = vset.pattern.permute.xlu0 0
  %6048 = vperm.xlu0 %6047, %v6014
  %v6049 = vpop.permute.xlu0 %6048
  %6052 = vset.pattern.permute.xlu0 0
  %6053 = vperm.xlu0 %6052, %v6015
  %v6054 = vpop.permute.xlu0 %6053
  %6057 = vset.pattern.permute.xlu0 0
  %6058 = vperm.xlu0 %6057, %v6016
  %v6059 = vpop.permute.xlu0 %6058
  %6062 = vset.pattern.permute.xlu0 0
  %6063 = vperm.xlu0 %6062, %v6017
  %v6064 = vpop.permute.xlu0 %6063
  %6067 = vset.pattern.permute.xlu0 0
  %6068 = vperm.xlu0 %6067, %v6018
  %v6069 = vpop.permute.xlu0 %6068
  %6072 = vset.pattern.permute.xlu0 0
  %6073 = vperm.xlu0 %6072, %v6019
  %v6074 = vpop.permute.xlu0 %6073
  %6077 = vset.pattern.permute.xlu0 0
  %6078 = vperm.xlu0 %6077, %v6020
  %v6079 = vpop.permute.xlu0 %6078
  %6082 = vset.pattern.permute.xlu0 0
  %6083 = vperm.xlu0 %6082, %v6021
  %v6084 = vpop.permute.xlu0 %6083
  %6087 = vset.pattern.permute.xlu0 0
  %6088 = vperm.xlu0 %6087, %v6022
  %v6089 = vpop.permute.xlu0 %6088
  %6092 = vset.pattern.permute.xlu0 0
  %6093 = vperm.xlu0 %6092, %v6023
  %v6094 = vpop.permute.xlu0 %6093
  %6097 = vset.pattern.permute.xlu0 0
  %6098 = vperm.xlu0 %6097, %v6024
  %v6099 = vpop.permute.xlu0 %6098
  %6102 = vset.pattern.permute.xlu0 0
  %6103 = vperm.xlu0 %6102, %v6025
  %v6104 = vpop.permute.xlu0 %6103
  %v6106 = vadd.f32 %v5994, %v6029
  %v6107 = vadd.f32 %v5995, %v6034
  %v6108 = vadd.f32 %v5996, %v6039
  %v6109 = vadd.f32 %v5997, %v6044
  %v6110 = vadd.f32 %v5998, %v6049
  %v6111 = vadd.f32 %v5999, %v6054
  %v6112 = vadd.f32 %v6000, %v6059
  %v6113 = vadd.f32 %v6001, %v6064
  %v6114 = vadd.f32 %v6002, %v6069
  %v6115 = vadd.f32 %v6003, %v6074
  %v6116 = vadd.f32 %v6004, %v6079
  %v6117 = vadd.f32 %v6005, %v6084
  %v6118 = vadd.f32 %v6006, %v6089
  %v6119 = vadd.f32 %v6007, %v6094
  %v6120 = vadd.f32 %v6008, %v6099
  %v6121 = vadd.f32 %v6009, %v6104
  %6122 = vst.msk [vmem:[%s18 + $0x80] sm:$0xff] %vm908, %v6106
  %6123 = vst.msk [vmem:[%s18 + $0x88] sm:$0xff] %vm908, %v6107
  %6124 = vst.msk [vmem:[%s18 + $0x90] sm:$0xff] %vm908, %v6108
  %6125 = vst.msk [vmem:[%s18 + $0x98] sm:$0xff] %vm908, %v6109
  %6126 = vst.msk [vmem:[%s18 + $0xa0] sm:$0xff] %vm908, %v6110
  %6127 = vst.msk [vmem:[%s18 + $0xa8] sm:$0xff] %vm908, %v6111
  %6128 = vst.msk [vmem:[%s18 + $0xb0] sm:$0xff] %vm908, %v6112
  %6129 = vst.msk [vmem:[%s18 + $0xb8] sm:$0xff] %vm908, %v6113
  %6130 = vst.msk [vmem:[%s18 + $0xc0] sm:$0xff] %vm908, %v6114
  %6131 = vst.msk [vmem:[%s18 + $0xc8] sm:$0xff] %vm908, %v6115
  %6132 = vst.msk [vmem:[%s18 + $0xd0] sm:$0xff] %vm908, %v6116
  %6133 = vst.msk [vmem:[%s18 + $0xd8] sm:$0xff] %vm908, %v6117
  %6134 = vst.msk [vmem:[%s18 + $0xe0] sm:$0xff] %vm908, %v6118
  %6135 = vst.msk [vmem:[%s18 + $0xe8] sm:$0xff] %vm908, %v6119
  %6136 = vst.msk [vmem:[%s18 + $0xf0] sm:$0xff] %vm908, %v6120
  %6137 = vst.msk [vmem:[%s18 + $0xf8] sm:$0xff] %vm908, %v6121
  %v6138 = vld [vmem:[#allocation3 + $0x100] sm:$0xff]
  %v6139 = vld [vmem:[#allocation3 + $0x108] sm:$0xff]
  %v6140 = vld [vmem:[#allocation3 + $0x110] sm:$0xff]
  %v6141 = vld [vmem:[#allocation3 + $0x118] sm:$0xff]
  %v6142 = vld [vmem:[#allocation3 + $0x120] sm:$0xff]
  %v6143 = vld [vmem:[#allocation3 + $0x128] sm:$0xff]
  %v6144 = vld [vmem:[#allocation3 + $0x130] sm:$0xff]
  %v6145 = vld [vmem:[#allocation3 + $0x138] sm:$0xff]
  %v6146 = vld [vmem:[#allocation3 + $0x140] sm:$0xff]
  %v6147 = vld [vmem:[#allocation3 + $0x148] sm:$0xff]
  %v6148 = vld [vmem:[#allocation3 + $0x150] sm:$0xff]
  %v6149 = vld [vmem:[#allocation3 + $0x158] sm:$0xff]
  %v6150 = vld [vmem:[#allocation3 + $0x160] sm:$0xff]
  %v6151 = vld [vmem:[#allocation3 + $0x168] sm:$0xff]
  %v6152 = vld [vmem:[#allocation3 + $0x170] sm:$0xff]
  %v6153 = vld [vmem:[#allocation3 + $0x178] sm:$0xff]
  %v6155 = vsel %vm908, %v6138, 0
  %v6158 = vsel %vm908, %v6139, 0
  %v6161 = vsel %vm908, %v6140, 0
  %v6164 = vsel %vm908, %v6141, 0
  %v6167 = vsel %vm908, %v6142, 0
  %v6170 = vsel %vm908, %v6143, 0
  %v6173 = vsel %vm908, %v6144, 0
  %v6176 = vsel %vm908, %v6145, 0
  %v6179 = vsel %vm908, %v6146, 0
  %v6182 = vsel %vm908, %v6147, 0
  %v6185 = vsel %vm908, %v6148, 0
  %v6188 = vsel %vm908, %v6149, 0
  %v6191 = vsel %vm908, %v6150, 0
  %v6194 = vsel %vm908, %v6151, 0
  %v6197 = vsel %vm908, %v6152, 0
  %v6200 = vsel %vm908, %v6153, 0
  %6202 = vmatprep.subr.mxu0 0.0
  %6203 = vmatpush1.msra.mxu0 1.0
  %6204 = vmatprep.subr.mxu0 0.0
  %6205 = vmatpush1.msra.mxu0 1.0
  %6206 = vmatprep.subr.mxu0 0.0
  %6207 = vmatpush1.msra.mxu0 1.0
  %6208 = vmatprep.subr.mxu0 0.0
  %6209 = vmatpush1.msra.mxu0 1.0
  %6210 = vmatprep.subr.mxu0 0.0
  %6211 = vmatpush1.msra.mxu0 1.0
  %6212 = vmatprep.subr.mxu0 0.0
  %6213 = vmatpush1.msra.mxu0 1.0
  %6214 = vmatprep.subr.mxu0 0.0
  %6215 = vmatpush1.msra.mxu0 %v923
  %6216 = vmatprep.subr.mxu0 0.0
  %6217 = vmatpush1.msra.mxu0 0.0
  %6218 = vmatprep.subr.mxu0 0.0
  %6219 = vmatpush1.msra.mxu0 0.0
  %6220 = vmatprep.subr.mxu0 0.0
  %6221 = vmatpush1.msra.mxu0 0.0
  %6222 = vmatprep.subr.mxu0 0.0
  %6223 = vmatpush1.msra.mxu0 0.0
  %6224 = vmatprep.subr.mxu0 0.0
  %6225 = vmatpush1.msra.mxu0 0.0
  %6226 = vmatprep.subr.mxu0 0.0
  %6227 = vmatpush1.msra.mxu0 0.0
  %6228 = vmatprep.subr.mxu0 0.0
  %6229 = vmatpush1.msra.mxu0 0.0
  %6230 = vmatprep.subr.mxu0 0.0
  %6231 = vmatpush1.msra.mxu0 0.0
  %6232 = vmatprep.subr.mxu0 0.0
  %6233 = vmatpush1.msra.mxu0 0.0
  %6234 = vmatprep.subr.mxu0 0.0
  %6235 = vmatpush1.msra.mxu0 0.0
  %6236 = vmatprep.subr.mxu0 0.0
  %6237 = vmatpush1.msra.mxu0 0.0
  %6238 = vmatprep.subr.mxu0 0.0
  %6239 = vmatpush1.msra.mxu0 0.0
  %6240 = vmatprep.subr.mxu0 0.0
  %6241 = vmatpush1.msra.mxu0 0.0
  %6242 = vmatprep.subr.mxu0 0.0
  %6243 = vmatpush1.msra.mxu0 0.0
  %6244 = vmatprep.subr.mxu0 0.0
  %6245 = vmatpush1.msra.mxu0 0.0
  %6246 = vmatprep.subr.mxu0 0.0
  %6247 = vmatpush1.msra.mxu0 0.0
  %6248 = vmatprep.subr.mxu0 0.0
  %6249 = vmatpush1.msra.mxu0 0.0
  %6250 = vmatprep.subr.mxu0 0.0
  %6251 = vmatpush1.msra.mxu0 0.0
  %6252 = vmatprep.subr.mxu0 0.0
  %6253 = vmatpush1.msra.mxu0 0.0
  %6254 = vmatprep.subr.mxu0 0.0
  %6255 = vmatpush1.msra.mxu0 0.0
  %6256 = vmatprep.subr.mxu0 0.0
  %6257 = vmatpush1.msra.mxu0 0.0
  %6258 = vmatprep.subr.mxu0 0.0
  %6259 = vmatpush1.msra.mxu0 0.0
  %6260 = vmatprep.subr.mxu0 0.0
  %6261 = vmatpush1.msra.mxu0 0.0
  %6262 = vmatprep.subr.mxu0 0.0
  %6263 = vmatpush1.msra.mxu0 0.0
  %6264 = vmatprep.subr.mxu0 0.0
  %6265 = vmatpush1.msra.mxu0 0.0
  %6266 = vmatprep.mubr.f32.mxu0 0.0
  %6267 = vmatmul.mubr.f32.gmra.mrb[0].mxu0 %v6155
  %v6268 = vpop.f32.mrb[0].mxu0
  %v6269 = vadd.f32 0.0, %v6268
  %v6270 = vpop.f32.mrb[0].mxu0
  %6271 = vmatprep.mubr.f32.mxu0 0.0
  %6272 = vmatmul.mubr.f32.gmra.mrb[0].mxu0 %v6158
  %v6273 = vpop.f32.mrb[0].mxu0
  %v6274 = vadd.f32 0.0, %v6273
  %v6275 = vpop.f32.mrb[0].mxu0
  %6276 = vmatprep.mubr.f32.mxu0 0.0
  %6277 = vmatmul.mubr.f32.gmra.mrb[0].mxu0 %v6161
  %v6278 = vpop.f32.mrb[0].mxu0
  %v6279 = vadd.f32 0.0, %v6278
  %v6280 = vpop.f32.mrb[0].mxu0
  %6281 = vmatprep.mubr.f32.mxu0 0.0
  %6282 = vmatmul.mubr.f32.gmra.mrb[0].mxu0 %v6164
  %v6283 = vpop.f32.mrb[0].mxu0
  %v6284 = vadd.f32 0.0, %v6283
  %v6285 = vpop.f32.mrb[0].mxu0
  %6286 = vmatprep.mubr.f32.mxu0 0.0
  %6287 = vmatmul.mubr.f32.gmra.mrb[0].mxu0 %v6167
  %v6288 = vpop.f32.mrb[0].mxu0
  %v6289 = vadd.f32 0.0, %v6288
  %v6290 = vpop.f32.mrb[0].mxu0
  %6291 = vmatprep.mubr.f32.mxu0 0.0
  %6292 = vmatmul.mubr.f32.gmra.mrb[0].mxu0 %v6170
  %v6293 = vpop.f32.mrb[0].mxu0
  %v6294 = vadd.f32 0.0, %v6293
  %v6295 = vpop.f32.mrb[0].mxu0
  %6296 = vmatprep.mubr.f32.mxu0 0.0
  %6297 = vmatmul.mubr.f32.gmra.mrb[0].mxu0 %v6173
  %v6298 = vpop.f32.mrb[0].mxu0
  %v6299 = vadd.f32 0.0, %v6298
  %v6300 = vpop.f32.mrb[0].mxu0
  %6301 = vmatprep.mubr.f32.mxu0 0.0
  %6302 = vmatmul.mubr.f32.gmra.mrb[0].mxu0 %v6176
  %v6303 = vpop.f32.mrb[0].mxu0
  %v6304 = vadd.f32 0.0, %v6303
  %v6305 = vpop.f32.mrb[0].mxu0
  %6306 = vmatprep.mubr.f32.mxu0 0.0
  %6307 = vmatmul.mubr.f32.gmra.mrb[0].mxu0 %v6179
  %v6308 = vpop.f32.mrb[0].mxu0
  %v6309 = vadd.f32 0.0, %v6308
  %v6310 = vpop.f32.mrb[0].mxu0
  %6311 = vmatprep.mubr.f32.mxu0 0.0
  %6312 = vmatmul.mubr.f32.gmra.mrb[0].mxu0 %v6182
  %v6313 = vpop.f32.mrb[0].mxu0
  %v6314 = vadd.f32 0.0, %v6313
  %v6315 = vpop.f32.mrb[0].mxu0
  %6316 = vmatprep.mubr.f32.mxu0 0.0
  %6317 = vmatmul.mubr.f32.gmra.mrb[0].mxu0 %v6185
  %v6318 = vpop.f32.mrb[0].mxu0
  %v6319 = vadd.f32 0.0, %v6318
  %v6320 = vpop.f32.mrb[0].mxu0
  %6321 = vmatprep.mubr.f32.mxu0 0.0
  %6322 = vmatmul.mubr.f32.gmra.mrb[0].mxu0 %v6188
  %v6323 = vpop.f32.mrb[0].mxu0
  %v6324 = vadd.f32 0.0, %v6323
  %v6325 = vpop.f32.mrb[0].mxu0
  %6326 = vmatprep.mubr.f32.mxu0 0.0
  %6327 = vmatmul.mubr.f32.gmra.mrb[0].mxu0 %v6191
  %v6328 = vpop.f32.mrb[0].mxu0
  %v6329 = vadd.f32 0.0, %v6328
  %v6330 = vpop.f32.mrb[0].mxu0
  %6331 = vmatprep.mubr.f32.mxu0 0.0
  %6332 = vmatmul.mubr.f32.gmra.mrb[0].mxu0 %v6194
  %v6333 = vpop.f32.mrb[0].mxu0
  %v6334 = vadd.f32 0.0, %v6333
  %v6335 = vpop.f32.mrb[0].mxu0
  %6336 = vmatprep.mubr.f32.mxu0 0.0
  %6337 = vmatmul.mubr.f32.gmra.mrb[0].mxu0 %v6197
  %v6338 = vpop.f32.mrb[0].mxu0
  %v6339 = vadd.f32 0.0, %v6338
  %v6340 = vpop.f32.mrb[0].mxu0
  %6341 = vmatprep.mubr.f32.mxu0 0.0
  %6342 = vmatmul.mubr.f32.gmra.mrb[0].mxu0 %v6200
  %v6343 = vpop.f32.mrb[0].mxu0
  %v6344 = vadd.f32 0.0, %v6343
  %v6345 = vpop.f32.mrb[0].mxu0
  %6346 = vdwg.mxu0
  %v6347 = vmul.f32 %v6269, 0.020408163
  %v6348 = vmul.f32 %v6274, 0.020408163
  %v6349 = vmul.f32 %v6279, 0.020408163
  %v6350 = vmul.f32 %v6284, 0.020408163
  %v6351 = vmul.f32 %v6289, 0.020408163
  %v6352 = vmul.f32 %v6294, 0.020408163
  %v6353 = vmul.f32 %v6299, 0.020408163
  %v6354 = vmul.f32 %v6304, 0.020408163
  %v6355 = vmul.f32 %v6309, 0.020408163
  %v6356 = vmul.f32 %v6314, 0.020408163
  %v6357 = vmul.f32 %v6319, 0.020408163
  %v6358 = vmul.f32 %v6324, 0.020408163
  %v6359 = vmul.f32 %v6329, 0.020408163
  %v6360 = vmul.f32 %v6334, 0.020408163
  %v6361 = vmul.f32 %v6339, 0.020408163
  %v6362 = vmul.f32 %v6344, 0.020408163
  %v6363 = vsub.f32 %v6138, %v6347
  %v6364 = vsub.f32 %v6139, %v6348
  %v6365 = vsub.f32 %v6140, %v6349
  %v6366 = vsub.f32 %v6141, %v6350
  %v6367 = vsub.f32 %v6142, %v6351
  %v6368 = vsub.f32 %v6143, %v6352
  %v6369 = vsub.f32 %v6144, %v6353
  %v6370 = vsub.f32 %v6145, %v6354
  %v6371 = vsub.f32 %v6146, %v6355
  %v6372 = vsub.f32 %v6147, %v6356
  %v6373 = vsub.f32 %v6148, %v6357
  %v6374 = vsub.f32 %v6149, %v6358
  %v6375 = vsub.f32 %v6150, %v6359
  %v6376 = vsub.f32 %v6151, %v6360
  %v6377 = vsub.f32 %v6152, %v6361
  %v6378 = vsub.f32 %v6153, %v6362
  %v6379 = vmul.f32 %v6363, %v6363
  %v6380 = vmul.f32 %v6364, %v6364
  %v6381 = vmul.f32 %v6365, %v6365
  %v6382 = vmul.f32 %v6366, %v6366
  %v6383 = vmul.f32 %v6367, %v6367
  %v6384 = vmul.f32 %v6368, %v6368
  %v6385 = vmul.f32 %v6369, %v6369
  %v6386 = vmul.f32 %v6370, %v6370
  %v6387 = vmul.f32 %v6371, %v6371
  %v6388 = vmul.f32 %v6372, %v6372
  %v6389 = vmul.f32 %v6373, %v6373
  %v6390 = vmul.f32 %v6374, %v6374
  %v6391 = vmul.f32 %v6375, %v6375
  %v6392 = vmul.f32 %v6376, %v6376
  %v6393 = vmul.f32 %v6377, %v6377
  %v6394 = vmul.f32 %v6378, %v6378
  %v6396 = vsel %vm908, %v6379, 0
  %v6399 = vsel %vm908, %v6380, 0
  %v6402 = vsel %vm908, %v6381, 0
  %v6405 = vsel %vm908, %v6382, 0
  %v6408 = vsel %vm908, %v6383, 0
  %v6411 = vsel %vm908, %v6384, 0
  %v6414 = vsel %vm908, %v6385, 0
  %v6417 = vsel %vm908, %v6386, 0
  %v6420 = vsel %vm908, %v6387, 0
  %v6423 = vsel %vm908, %v6388, 0
  %v6426 = vsel %vm908, %v6389, 0
  %v6429 = vsel %vm908, %v6390, 0
  %v6432 = vsel %vm908, %v6391, 0
  %v6435 = vsel %vm908, %v6392, 0
  %v6438 = vsel %vm908, %v6393, 0
  %v6441 = vsel %vm908, %v6394, 0
  %6443 = vmatprep.subr.mxu0 0.0
  %6444 = vmatpush1.msra.mxu0 1.0
  %6445 = vmatprep.subr.mxu0 0.0
  %6446 = vmatpush1.msra.mxu0 1.0
  %6447 = vmatprep.subr.mxu0 0.0
  %6448 = vmatpush1.msra.mxu0 1.0
  %6449 = vmatprep.subr.mxu0 0.0
  %6450 = vmatpush1.msra.mxu0 1.0
  %6451 = vmatprep.subr.mxu0 0.0
  %6452 = vmatpush1.msra.mxu0 1.0
  %6453 = vmatprep.subr.mxu0 0.0
  %6454 = vmatpush1.msra.mxu0 1.0
  %6455 = vmatprep.subr.mxu0 0.0
  %6456 = vmatpush1.msra.mxu0 %v923
  %6457 = vmatprep.subr.mxu0 0.0
  %6458 = vmatpush1.msra.mxu0 0.0
  %6459 = vmatprep.subr.mxu0 0.0
  %6460 = vmatpush1.msra.mxu0 0.0
  %6461 = vmatprep.subr.mxu0 0.0
  %6462 = vmatpush1.msra.mxu0 0.0
  %6463 = vmatprep.subr.mxu0 0.0
  %6464 = vmatpush1.msra.mxu0 0.0
  %6465 = vmatprep.subr.mxu0 0.0
  %6466 = vmatpush1.msra.mxu0 0.0
  %6467 = vmatprep.subr.mxu0 0.0
  %6468 = vmatpush1.msra.mxu0 0.0
  %6469 = vmatprep.subr.mxu0 0.0
  %6470 = vmatpush1.msra.mxu0 0.0
  %6471 = vmatprep.subr.mxu0 0.0
  %6472 = vmatpush1.msra.mxu0 0.0
  %6473 = vmatprep.subr.mxu0 0.0
  %6474 = vmatpush1.msra.mxu0 0.0
  %6475 = vmatprep.subr.mxu0 0.0
  %6476 = vmatpush1.msra.mxu0 0.0
  %6477 = vmatprep.subr.mxu0 0.0
  %6478 = vmatpush1.msra.mxu0 0.0
  %6479 = vmatprep.subr.mxu0 0.0
  %6480 = vmatpush1.msra.mxu0 0.0
  %6481 = vmatprep.subr.mxu0 0.0
  %6482 = vmatpush1.msra.mxu0 0.0
  %6483 = vmatprep.subr.mxu0 0.0
  %6484 = vmatpush1.msra.mxu0 0.0
  %6485 = vmatprep.subr.mxu0 0.0
  %6486 = vmatpush1.msra.mxu0 0.0
  %6487 = vmatprep.subr.mxu0 0.0
  %6488 = vmatpush1.msra.mxu0 0.0
  %6489 = vmatprep.subr.mxu0 0.0
  %6490 = vmatpush1.msra.mxu0 0.0
  %6491 = vmatprep.subr.mxu0 0.0
  %6492 = vmatpush1.msra.mxu0 0.0
  %6493 = vmatprep.subr.mxu0 0.0
  %6494 = vmatpush1.msra.mxu0 0.0
  %6495 = vmatprep.subr.mxu0 0.0
  %6496 = vmatpush1.msra.mxu0 0.0
  %6497 = vmatprep.subr.mxu0 0.0
  %6498 = vmatpush1.msra.mxu0 0.0
  %6499 = vmatprep.subr.mxu0 0.0
  %6500 = vmatpush1.msra.mxu0 0.0
  %6501 = vmatprep.subr.mxu0 0.0
  %6502 = vmatpush1.msra.mxu0 0.0
  %6503 = vmatprep.subr.mxu0 0.0
  %6504 = vmatpush1.msra.mxu0 0.0
  %6505 = vmatprep.subr.mxu0 0.0
  %6506 = vmatpush1.msra.mxu0 0.0
  %6507 = vmatprep.mubr.f32.mxu0 0.0
  %6508 = vmatmul.mubr.f32.gmra.mrb[0].mxu0 %v6396
  %v6509 = vpop.f32.mrb[0].mxu0
  %v6510 = vadd.f32 0.0, %v6509
  %v6511 = vpop.f32.mrb[0].mxu0
  %6512 = vmatprep.mubr.f32.mxu0 0.0
  %6513 = vmatmul.mubr.f32.gmra.mrb[0].mxu0 %v6399
  %v6514 = vpop.f32.mrb[0].mxu0
  %v6515 = vadd.f32 0.0, %v6514
  %v6516 = vpop.f32.mrb[0].mxu0
  %6517 = vmatprep.mubr.f32.mxu0 0.0
  %6518 = vmatmul.mubr.f32.gmra.mrb[0].mxu0 %v6402
  %v6519 = vpop.f32.mrb[0].mxu0
  %v6520 = vadd.f32 0.0, %v6519
  %v6521 = vpop.f32.mrb[0].mxu0
  %6522 = vmatprep.mubr.f32.mxu0 0.0
  %6523 = vmatmul.mubr.f32.gmra.mrb[0].mxu0 %v6405
  %v6524 = vpop.f32.mrb[0].mxu0
  %v6525 = vadd.f32 0.0, %v6524
  %v6526 = vpop.f32.mrb[0].mxu0
  %6527 = vmatprep.mubr.f32.mxu0 0.0
  %6528 = vmatmul.mubr.f32.gmra.mrb[0].mxu0 %v6408
  %v6529 = vpop.f32.mrb[0].mxu0
  %v6530 = vadd.f32 0.0, %v6529
  %v6531 = vpop.f32.mrb[0].mxu0
  %6532 = vmatprep.mubr.f32.mxu0 0.0
  %6533 = vmatmul.mubr.f32.gmra.mrb[0].mxu0 %v6411
  %v6534 = vpop.f32.mrb[0].mxu0
  %v6535 = vadd.f32 0.0, %v6534
  %v6536 = vpop.f32.mrb[0].mxu0
  %6537 = vmatprep.mubr.f32.mxu0 0.0
  %6538 = vmatmul.mubr.f32.gmra.mrb[0].mxu0 %v6414
  %v6539 = vpop.f32.mrb[0].mxu0
  %v6540 = vadd.f32 0.0, %v6539
  %v6541 = vpop.f32.mrb[0].mxu0
  %6542 = vmatprep.mubr.f32.mxu0 0.0
  %6543 = vmatmul.mubr.f32.gmra.mrb[0].mxu0 %v6417
  %v6544 = vpop.f32.mrb[0].mxu0
  %v6545 = vadd.f32 0.0, %v6544
  %v6546 = vpop.f32.mrb[0].mxu0
  %6547 = vmatprep.mubr.f32.mxu0 0.0
  %6548 = vmatmul.mubr.f32.gmra.mrb[0].mxu0 %v6420
  %v6549 = vpop.f32.mrb[0].mxu0
  %v6550 = vadd.f32 0.0, %v6549
  %v6551 = vpop.f32.mrb[0].mxu0
  %6552 = vmatprep.mubr.f32.mxu0 0.0
  %6553 = vmatmul.mubr.f32.gmra.mrb[0].mxu0 %v6423
  %v6554 = vpop.f32.mrb[0].mxu0
  %v6555 = vadd.f32 0.0, %v6554
  %v6556 = vpop.f32.mrb[0].mxu0
  %6557 = vmatprep.mubr.f32.mxu0 0.0
  %6558 = vmatmul.mubr.f32.gmra.mrb[0].mxu0 %v6426
  %v6559 = vpop.f32.mrb[0].mxu0
  %v6560 = vadd.f32 0.0, %v6559
  %v6561 = vpop.f32.mrb[0].mxu0
  %6562 = vmatprep.mubr.f32.mxu0 0.0
  %6563 = vmatmul.mubr.f32.gmra.mrb[0].mxu0 %v6429
  %v6564 = vpop.f32.mrb[0].mxu0
  %v6565 = vadd.f32 0.0, %v6564
  %v6566 = vpop.f32.mrb[0].mxu0
  %6567 = vmatprep.mubr.f32.mxu0 0.0
  %6568 = vmatmul.mubr.f32.gmra.mrb[0].mxu0 %v6432
  %v6569 = vpop.f32.mrb[0].mxu0
  %v6570 = vadd.f32 0.0, %v6569
  %v6571 = vpop.f32.mrb[0].mxu0
  %6572 = vmatprep.mubr.f32.mxu0 0.0
  %6573 = vmatmul.mubr.f32.gmra.mrb[0].mxu0 %v6435
  %v6574 = vpop.f32.mrb[0].mxu0
  %v6575 = vadd.f32 0.0, %v6574
  %v6576 = vpop.f32.mrb[0].mxu0
  %6577 = vmatprep.mubr.f32.mxu0 0.0
  %6578 = vmatmul.mubr.f32.gmra.mrb[0].mxu0 %v6438
  %v6579 = vpop.f32.mrb[0].mxu0
  %v6580 = vadd.f32 0.0, %v6579
  %v6581 = vpop.f32.mrb[0].mxu0
  %6582 = vmatprep.mubr.f32.mxu0 0.0
  %6583 = vmatmul.mubr.f32.gmra.mrb[0].mxu0 %v6441
  %v6584 = vpop.f32.mrb[0].mxu0
  %v6585 = vadd.f32 0.0, %v6584
  %v6586 = vpop.f32.mrb[0].mxu0
  %6587 = vdwg.mxu0
  %v6588 = vmul.f32 %v6510, 0.020408163
  %v6589 = vmul.f32 %v6515, 0.020408163
  %v6590 = vmul.f32 %v6520, 0.020408163
  %v6591 = vmul.f32 %v6525, 0.020408163
  %v6592 = vmul.f32 %v6530, 0.020408163
  %v6593 = vmul.f32 %v6535, 0.020408163
  %v6594 = vmul.f32 %v6540, 0.020408163
  %v6595 = vmul.f32 %v6545, 0.020408163
  %v6596 = vmul.f32 %v6550, 0.020408163
  %v6597 = vmul.f32 %v6555, 0.020408163
  %v6598 = vmul.f32 %v6560, 0.020408163
  %v6599 = vmul.f32 %v6565, 0.020408163
  %v6600 = vmul.f32 %v6570, 0.020408163
  %v6601 = vmul.f32 %v6575, 0.020408163
  %v6602 = vmul.f32 %v6580, 0.020408163
  %v6603 = vmul.f32 %v6585, 0.020408163
  %v6604 = vadd.f32 %v6588, 1e-05
  %v6605 = vadd.f32 %v6589, 1e-05
  %v6606 = vadd.f32 %v6590, 1e-05
  %v6607 = vadd.f32 %v6591, 1e-05
  %v6608 = vadd.f32 %v6592, 1e-05
  %v6609 = vadd.f32 %v6593, 1e-05
  %v6610 = vadd.f32 %v6594, 1e-05
  %v6611 = vadd.f32 %v6595, 1e-05
  %v6612 = vadd.f32 %v6596, 1e-05
  %v6613 = vadd.f32 %v6597, 1e-05
  %v6614 = vadd.f32 %v6598, 1e-05
  %v6615 = vadd.f32 %v6599, 1e-05
  %v6616 = vadd.f32 %v6600, 1e-05
  %v6617 = vadd.f32 %v6601, 1e-05
  %v6618 = vadd.f32 %v6602, 1e-05
  %v6619 = vadd.f32 %v6603, 1e-05
  %v6620 = vrsqrt.pop %v6604
  %v6621 = vrsqrt.pop %v6605
  %v6622 = vrsqrt.pop %v6606
  %v6623 = vrsqrt.pop %v6607
  %v6624 = vrsqrt.pop %v6608
  %v6625 = vrsqrt.pop %v6609
  %v6626 = vrsqrt.pop %v6610
  %v6627 = vrsqrt.pop %v6611
  %v6628 = vrsqrt.pop %v6612
  %v6629 = vrsqrt.pop %v6613
  %v6630 = vrsqrt.pop %v6614
  %v6631 = vrsqrt.pop %v6615
  %v6632 = vrsqrt.pop %v6616
  %v6633 = vrsqrt.pop %v6617
  %v6634 = vrsqrt.pop %v6618
  %v6635 = vrsqrt.pop %v6619
  %v6636 = vld [vmem:[%s2 + $0x100] sm:$0xff]
  %v6637 = vld [vmem:[%s2 + $0x108] sm:$0xff]
  %v6638 = vld [vmem:[%s2 + $0x110] sm:$0xff]
  %v6639 = vld [vmem:[%s2 + $0x118] sm:$0xff]
  %v6640 = vld [vmem:[%s2 + $0x120] sm:$0xff]
  %v6641 = vld [vmem:[%s2 + $0x128] sm:$0xff]
  %v6642 = vld [vmem:[%s2 + $0x130] sm:$0xff]
  %v6643 = vld [vmem:[%s2 + $0x138] sm:$0xff]
  %v6644 = vld [vmem:[%s2 + $0x140] sm:$0xff]
  %v6645 = vld [vmem:[%s2 + $0x148] sm:$0xff]
  %v6646 = vld [vmem:[%s2 + $0x150] sm:$0xff]
  %v6647 = vld [vmem:[%s2 + $0x158] sm:$0xff]
  %v6648 = vld [vmem:[%s2 + $0x160] sm:$0xff]
  %v6649 = vld [vmem:[%s2 + $0x168] sm:$0xff]
  %v6650 = vld [vmem:[%s2 + $0x170] sm:$0xff]
  %v6651 = vld [vmem:[%s2 + $0x178] sm:$0xff]
  %6653 = vset.pattern.permute.xlu0 0
  %6654 = vperm.xlu0 %6653, %v6636
  %v6655 = vpop.permute.xlu0 %6654
  %6658 = vset.pattern.permute.xlu0 0
  %6659 = vperm.xlu0 %6658, %v6637
  %v6660 = vpop.permute.xlu0 %6659
  %6663 = vset.pattern.permute.xlu0 0
  %6664 = vperm.xlu0 %6663, %v6638
  %v6665 = vpop.permute.xlu0 %6664
  %6668 = vset.pattern.permute.xlu0 0
  %6669 = vperm.xlu0 %6668, %v6639
  %v6670 = vpop.permute.xlu0 %6669
  %6673 = vset.pattern.permute.xlu0 0
  %6674 = vperm.xlu0 %6673, %v6640
  %v6675 = vpop.permute.xlu0 %6674
  %6678 = vset.pattern.permute.xlu0 0
  %6679 = vperm.xlu0 %6678, %v6641
  %v6680 = vpop.permute.xlu0 %6679
  %6683 = vset.pattern.permute.xlu0 0
  %6684 = vperm.xlu0 %6683, %v6642
  %v6685 = vpop.permute.xlu0 %6684
  %6688 = vset.pattern.permute.xlu0 0
  %6689 = vperm.xlu0 %6688, %v6643
  %v6690 = vpop.permute.xlu0 %6689
  %6693 = vset.pattern.permute.xlu0 0
  %6694 = vperm.xlu0 %6693, %v6644
  %v6695 = vpop.permute.xlu0 %6694
  %6698 = vset.pattern.permute.xlu0 0
  %6699 = vperm.xlu0 %6698, %v6645
  %v6700 = vpop.permute.xlu0 %6699
  %6703 = vset.pattern.permute.xlu0 0
  %6704 = vperm.xlu0 %6703, %v6646
  %v6705 = vpop.permute.xlu0 %6704
  %6708 = vset.pattern.permute.xlu0 0
  %6709 = vperm.xlu0 %6708, %v6647
  %v6710 = vpop.permute.xlu0 %6709
  %6713 = vset.pattern.permute.xlu0 0
  %6714 = vperm.xlu0 %6713, %v6648
  %v6715 = vpop.permute.xlu0 %6714
  %6718 = vset.pattern.permute.xlu0 0
  %6719 = vperm.xlu0 %6718, %v6649
  %v6720 = vpop.permute.xlu0 %6719
  %6723 = vset.pattern.permute.xlu0 0
  %6724 = vperm.xlu0 %6723, %v6650
  %v6725 = vpop.permute.xlu0 %6724
  %6728 = vset.pattern.permute.xlu0 0
  %6729 = vperm.xlu0 %6728, %v6651
  %v6730 = vpop.permute.xlu0 %6729
  %v6732 = vmul.f32 %v6620, %v6655
  %v6733 = vmul.f32 %v6621, %v6660
  %v6734 = vmul.f32 %v6622, %v6665
  %v6735 = vmul.f32 %v6623, %v6670
  %v6736 = vmul.f32 %v6624, %v6675
  %v6737 = vmul.f32 %v6625, %v6680
  %v6738 = vmul.f32 %v6626, %v6685
  %v6739 = vmul.f32 %v6627, %v6690
  %v6740 = vmul.f32 %v6628, %v6695
  %v6741 = vmul.f32 %v6629, %v6700
  %v6742 = vmul.f32 %v6630, %v6705
  %v6743 = vmul.f32 %v6631, %v6710
  %v6744 = vmul.f32 %v6632, %v6715
  %v6745 = vmul.f32 %v6633, %v6720
  %v6746 = vmul.f32 %v6634, %v6725
  %v6747 = vmul.f32 %v6635, %v6730
  %v6748 = vmul.f32 %v6363, %v6732
  %v6749 = vmul.f32 %v6364, %v6733
  %v6750 = vmul.f32 %v6365, %v6734
  %v6751 = vmul.f32 %v6366, %v6735
  %v6752 = vmul.f32 %v6367, %v6736
  %v6753 = vmul.f32 %v6368, %v6737
  %v6754 = vmul.f32 %v6369, %v6738
  %v6755 = vmul.f32 %v6370, %v6739
  %v6756 = vmul.f32 %v6371, %v6740
  %v6757 = vmul.f32 %v6372, %v6741
  %v6758 = vmul.f32 %v6373, %v6742
  %v6759 = vmul.f32 %v6374, %v6743
  %v6760 = vmul.f32 %v6375, %v6744
  %v6761 = vmul.f32 %v6376, %v6745
  %v6762 = vmul.f32 %v6377, %v6746
  %v6763 = vmul.f32 %v6378, %v6747
  %v6764 = vld [vmem:[%s3 + $0x100] sm:$0xff]
  %v6765 = vld [vmem:[%s3 + $0x108] sm:$0xff]
  %v6766 = vld [vmem:[%s3 + $0x110] sm:$0xff]
  %v6767 = vld [vmem:[%s3 + $0x118] sm:$0xff]
  %v6768 = vld [vmem:[%s3 + $0x120] sm:$0xff]
  %v6769 = vld [vmem:[%s3 + $0x128] sm:$0xff]
  %v6770 = vld [vmem:[%s3 + $0x130] sm:$0xff]
  %v6771 = vld [vmem:[%s3 + $0x138] sm:$0xff]
  %v6772 = vld [vmem:[%s3 + $0x140] sm:$0xff]
  %v6773 = vld [vmem:[%s3 + $0x148] sm:$0xff]
  %v6774 = vld [vmem:[%s3 + $0x150] sm:$0xff]
  %v6775 = vld [vmem:[%s3 + $0x158] sm:$0xff]
  %v6776 = vld [vmem:[%s3 + $0x160] sm:$0xff]
  %v6777 = vld [vmem:[%s3 + $0x168] sm:$0xff]
  %v6778 = vld [vmem:[%s3 + $0x170] sm:$0xff]
  %v6779 = vld [vmem:[%s3 + $0x178] sm:$0xff]
  %6781 = vset.pattern.permute.xlu0 0
  %6782 = vperm.xlu0 %6781, %v6764
  %v6783 = vpop.permute.xlu0 %6782
  %6786 = vset.pattern.permute.xlu0 0
  %6787 = vperm.xlu0 %6786, %v6765
  %v6788 = vpop.permute.xlu0 %6787
  %6791 = vset.pattern.permute.xlu0 0
  %6792 = vperm.xlu0 %6791, %v6766
  %v6793 = vpop.permute.xlu0 %6792
  %6796 = vset.pattern.permute.xlu0 0
  %6797 = vperm.xlu0 %6796, %v6767
  %v6798 = vpop.permute.xlu0 %6797
  %6801 = vset.pattern.permute.xlu0 0
  %6802 = vperm.xlu0 %6801, %v6768
  %v6803 = vpop.permute.xlu0 %6802
  %6806 = vset.pattern.permute.xlu0 0
  %6807 = vperm.xlu0 %6806, %v6769
  %v6808 = vpop.permute.xlu0 %6807
  %6811 = vset.pattern.permute.xlu0 0
  %6812 = vperm.xlu0 %6811, %v6770
  %v6813 = vpop.permute.xlu0 %6812
  %6816 = vset.pattern.permute.xlu0 0
  %6817 = vperm.xlu0 %6816, %v6771
  %v6818 = vpop.permute.xlu0 %6817
  %6821 = vset.pattern.permute.xlu0 0
  %6822 = vperm.xlu0 %6821, %v6772
  %v6823 = vpop.permute.xlu0 %6822
  %6826 = vset.pattern.permute.xlu0 0
  %6827 = vperm.xlu0 %6826, %v6773
  %v6828 = vpop.permute.xlu0 %6827
  %6831 = vset.pattern.permute.xlu0 0
  %6832 = vperm.xlu0 %6831, %v6774
  %v6833 = vpop.permute.xlu0 %6832
  %6836 = vset.pattern.permute.xlu0 0
  %6837 = vperm.xlu0 %6836, %v6775
  %v6838 = vpop.permute.xlu0 %6837
  %6841 = vset.pattern.permute.xlu0 0
  %6842 = vperm.xlu0 %6841, %v6776
  %v6843 = vpop.permute.xlu0 %6842
  %6846 = vset.pattern.permute.xlu0 0
  %6847 = vperm.xlu0 %6846, %v6777
  %v6848 = vpop.permute.xlu0 %6847
  %6851 = vset.pattern.permute.xlu0 0
  %6852 = vperm.xlu0 %6851, %v6778
  %v6853 = vpop.permute.xlu0 %6852
  %6856 = vset.pattern.permute.xlu0 0
  %6857 = vperm.xlu0 %6856, %v6779
  %v6858 = vpop.permute.xlu0 %6857
  %v6860 = vadd.f32 %v6748, %v6783
  %v6861 = vadd.f32 %v6749, %v6788
  %v6862 = vadd.f32 %v6750, %v6793
  %v6863 = vadd.f32 %v6751, %v6798
  %v6864 = vadd.f32 %v6752, %v6803
  %v6865 = vadd.f32 %v6753, %v6808
  %v6866 = vadd.f32 %v6754, %v6813
  %v6867 = vadd.f32 %v6755, %v6818
  %v6868 = vadd.f32 %v6756, %v6823
  %v6869 = vadd.f32 %v6757, %v6828
  %v6870 = vadd.f32 %v6758, %v6833
  %v6871 = vadd.f32 %v6759, %v6838
  %v6872 = vadd.f32 %v6760, %v6843
  %v6873 = vadd.f32 %v6761, %v6848
  %v6874 = vadd.f32 %v6762, %v6853
  %v6875 = vadd.f32 %v6763, %v6858
  %6876 = vst.msk [vmem:[%s18 + $0x100] sm:$0xff] %vm908, %v6860
  %6877 = vst.msk [vmem:[%s18 + $0x108] sm:$0xff] %vm908, %v6861
  %6878 = vst.msk [vmem:[%s18 + $0x110] sm:$0xff] %vm908, %v6862
  %6879 = vst.msk [vmem:[%s18 + $0x118] sm:$0xff] %vm908, %v6863
  %6880 = vst.msk [vmem:[%s18 + $0x120] sm:$0xff] %vm908, %v6864
  %6881 = vst.msk [vmem:[%s18 + $0x128] sm:$0xff] %vm908, %v6865
  %6882 = vst.msk [vmem:[%s18 + $0x130] sm:$0xff] %vm908, %v6866
  %6883 = vst.msk [vmem:[%s18 + $0x138] sm:$0xff] %vm908, %v6867
  %6884 = vst.msk [vmem:[%s18 + $0x140] sm:$0xff] %vm908, %v6868
  %6885 = vst.msk [vmem:[%s18 + $0x148] sm:$0xff] %vm908, %v6869
  %6886 = vst.msk [vmem:[%s18 + $0x150] sm:$0xff] %vm908, %v6870
  %6887 = vst.msk [vmem:[%s18 + $0x158] sm:$0xff] %vm908, %v6871
  %6888 = vst.msk [vmem:[%s18 + $0x160] sm:$0xff] %vm908, %v6872
  %6889 = vst.msk [vmem:[%s18 + $0x168] sm:$0xff] %vm908, %v6873
  %6890 = vst.msk [vmem:[%s18 + $0x170] sm:$0xff] %vm908, %v6874
  %6891 = vst.msk [vmem:[%s18 + $0x178] sm:$0xff] %vm908, %v6875
  %v6892 = vld [vmem:[#allocation3 + $0x180] sm:$0xff]
  %v6893 = vld [vmem:[#allocation3 + $0x188] sm:$0xff]
  %v6894 = vld [vmem:[#allocation3 + $0x190] sm:$0xff]
  %v6895 = vld [vmem:[#allocation3 + $0x198] sm:$0xff]
  %v6896 = vld [vmem:[#allocation3 + $0x1a0] sm:$0xff]
  %v6897 = vld [vmem:[#allocation3 + $0x1a8] sm:$0xff]
  %v6898 = vld [vmem:[#allocation3 + $0x1b0] sm:$0xff]
  %v6899 = vld [vmem:[#allocation3 + $0x1b8] sm:$0xff]
  %v6900 = vld [vmem:[#allocation3 + $0x1c0] sm:$0xff]
  %v6901 = vld [vmem:[#allocation3 + $0x1c8] sm:$0xff]
  %v6902 = vld [vmem:[#allocation3 + $0x1d0] sm:$0xff]
  %v6903 = vld [vmem:[#allocation3 + $0x1d8] sm:$0xff]
  %v6904 = vld [vmem:[#allocation3 + $0x1e0] sm:$0xff]
  %v6905 = vld [vmem:[#allocation3 + $0x1e8] sm:$0xff]
  %v6906 = vld [vmem:[#allocation3 + $0x1f0] sm:$0xff]
  %v6907 = vld [vmem:[#allocation3 + $0x1f8] sm:$0xff]
  %v6909 = vsel %vm908, %v6892, 0
  %v6912 = vsel %vm908, %v6893, 0
  %v6915 = vsel %vm908, %v6894, 0
  %v6918 = vsel %vm908, %v6895, 0
  %v6921 = vsel %vm908, %v6896, 0
  %v6924 = vsel %vm908, %v6897, 0
  %v6927 = vsel %vm908, %v6898, 0
  %v6930 = vsel %vm908, %v6899, 0
  %v6933 = vsel %vm908, %v6900, 0
  %v6936 = vsel %vm908, %v6901, 0
  %v6939 = vsel %vm908, %v6902, 0
  %v6942 = vsel %vm908, %v6903, 0
  %v6945 = vsel %vm908, %v6904, 0
  %v6948 = vsel %vm908, %v6905, 0
  %v6951 = vsel %vm908, %v6906, 0
  %v6954 = vsel %vm908, %v6907, 0
  %6956 = vmatprep.subr.mxu0 0.0
  %6957 = vmatpush1.msra.mxu0 1.0
  %6958 = vmatprep.subr.mxu0 0.0
  %6959 = vmatpush1.msra.mxu0 1.0
  %6960 = vmatprep.subr.mxu0 0.0
  %6961 = vmatpush1.msra.mxu0 1.0
  %6962 = vmatprep.subr.mxu0 0.0
  %6963 = vmatpush1.msra.mxu0 1.0
  %6964 = vmatprep.subr.mxu0 0.0
  %6965 = vmatpush1.msra.mxu0 1.0
  %6966 = vmatprep.subr.mxu0 0.0
  %6967 = vmatpush1.msra.mxu0 1.0
  %6968 = vmatprep.subr.mxu0 0.0
  %6969 = vmatpush1.msra.mxu0 %v923
  %6970 = vmatprep.subr.mxu0 0.0
  %6971 = vmatpush1.msra.mxu0 0.0
  %6972 = vmatprep.subr.mxu0 0.0
  %6973 = vmatpush1.msra.mxu0 0.0
  %6974 = vmatprep.subr.mxu0 0.0
  %6975 = vmatpush1.msra.mxu0 0.0
  %6976 = vmatprep.subr.mxu0 0.0
  %6977 = vmatpush1.msra.mxu0 0.0
  %6978 = vmatprep.subr.mxu0 0.0
  %6979 = vmatpush1.msra.mxu0 0.0
  %6980 = vmatprep.subr.mxu0 0.0
  %6981 = vmatpush1.msra.mxu0 0.0
  %6982 = vmatprep.subr.mxu0 0.0
  %6983 = vmatpush1.msra.mxu0 0.0
  %6984 = vmatprep.subr.mxu0 0.0
  %6985 = vmatpush1.msra.mxu0 0.0
  %6986 = vmatprep.subr.mxu0 0.0
  %6987 = vmatpush1.msra.mxu0 0.0
  %6988 = vmatprep.subr.mxu0 0.0
  %6989 = vmatpush1.msra.mxu0 0.0
  %6990 = vmatprep.subr.mxu0 0.0
  %6991 = vmatpush1.msra.mxu0 0.0
  %6992 = vmatprep.subr.mxu0 0.0
  %6993 = vmatpush1.msra.mxu0 0.0
  %6994 = vmatprep.subr.mxu0 0.0
  %6995 = vmatpush1.msra.mxu0 0.0
  %6996 = vmatprep.subr.mxu0 0.0
  %6997 = vmatpush1.msra.mxu0 0.0
  %6998 = vmatprep.subr.mxu0 0.0
  %6999 = vmatpush1.msra.mxu0 0.0
  %7000 = vmatprep.subr.mxu0 0.0
  %7001 = vmatpush1.msra.mxu0 0.0
  %7002 = vmatprep.subr.mxu0 0.0
  %7003 = vmatpush1.msra.mxu0 0.0
  %7004 = vmatprep.subr.mxu0 0.0
  %7005 = vmatpush1.msra.mxu0 0.0
  %7006 = vmatprep.subr.mxu0 0.0
  %7007 = vmatpush1.msra.mxu0 0.0
  %7008 = vmatprep.subr.mxu0 0.0
  %7009 = vmatpush1.msra.mxu0 0.0
  %7010 = vmatprep.subr.mxu0 0.0
  %7011 = vmatpush1.msra.mxu0 0.0
  %7012 = vmatprep.subr.mxu0 0.0
  %7013 = vmatpush1.msra.mxu0 0.0
  %7014 = vmatprep.subr.mxu0 0.0
  %7015 = vmatpush1.msra.mxu0 0.0
  %7016 = vmatprep.subr.mxu0 0.0
  %7017 = vmatpush1.msra.mxu0 0.0
  %7018 = vmatprep.subr.mxu0 0.0
  %7019 = vmatpush1.msra.mxu0 0.0
  %7020 = vmatprep.mubr.f32.mxu0 0.0
  %7021 = vmatmul.mubr.f32.gmra.mrb[0].mxu0 %v6909
  %v7022 = vpop.f32.mrb[0].mxu0
  %v7023 = vadd.f32 0.0, %v7022
  %v7024 = vpop.f32.mrb[0].mxu0
  %7025 = vmatprep.mubr.f32.mxu0 0.0
  %7026 = vmatmul.mubr.f32.gmra.mrb[0].mxu0 %v6912
  %v7027 = vpop.f32.mrb[0].mxu0
  %v7028 = vadd.f32 0.0, %v7027
  %v7029 = vpop.f32.mrb[0].mxu0
  %7030 = vmatprep.mubr.f32.mxu0 0.0
  %7031 = vmatmul.mubr.f32.gmra.mrb[0].mxu0 %v6915
  %v7032 = vpop.f32.mrb[0].mxu0
  %v7033 = vadd.f32 0.0, %v7032
  %v7034 = vpop.f32.mrb[0].mxu0
  %7035 = vmatprep.mubr.f32.mxu0 0.0
  %7036 = vmatmul.mubr.f32.gmra.mrb[0].mxu0 %v6918
  %v7037 = vpop.f32.mrb[0].mxu0
  %v7038 = vadd.f32 0.0, %v7037
  %v7039 = vpop.f32.mrb[0].mxu0
  %7040 = vmatprep.mubr.f32.mxu0 0.0
  %7041 = vmatmul.mubr.f32.gmra.mrb[0].mxu0 %v6921
  %v7042 = vpop.f32.mrb[0].mxu0
  %v7043 = vadd.f32 0.0, %v7042
  %v7044 = vpop.f32.mrb[0].mxu0
  %7045 = vmatprep.mubr.f32.mxu0 0.0
  %7046 = vmatmul.mubr.f32.gmra.mrb[0].mxu0 %v6924
  %v7047 = vpop.f32.mrb[0].mxu0
  %v7048 = vadd.f32 0.0, %v7047
  %v7049 = vpop.f32.mrb[0].mxu0
  %7050 = vmatprep.mubr.f32.mxu0 0.0
  %7051 = vmatmul.mubr.f32.gmra.mrb[0].mxu0 %v6927
  %v7052 = vpop.f32.mrb[0].mxu0
  %v7053 = vadd.f32 0.0, %v7052
  %v7054 = vpop.f32.mrb[0].mxu0
  %7055 = vmatprep.mubr.f32.mxu0 0.0
  %7056 = vmatmul.mubr.f32.gmra.mrb[0].mxu0 %v6930
  %v7057 = vpop.f32.mrb[0].mxu0
  %v7058 = vadd.f32 0.0, %v7057
  %v7059 = vpop.f32.mrb[0].mxu0
  %7060 = vmatprep.mubr.f32.mxu0 0.0
  %7061 = vmatmul.mubr.f32.gmra.mrb[0].mxu0 %v6933
  %v7062 = vpop.f32.mrb[0].mxu0
  %v7063 = vadd.f32 0.0, %v7062
  %v7064 = vpop.f32.mrb[0].mxu0
  %7065 = vmatprep.mubr.f32.mxu0 0.0
  %7066 = vmatmul.mubr.f32.gmra.mrb[0].mxu0 %v6936
  %v7067 = vpop.f32.mrb[0].mxu0
  %v7068 = vadd.f32 0.0, %v7067
  %v7069 = vpop.f32.mrb[0].mxu0
  %7070 = vmatprep.mubr.f32.mxu0 0.0
  %7071 = vmatmul.mubr.f32.gmra.mrb[0].mxu0 %v6939
  %v7072 = vpop.f32.mrb[0].mxu0
  %v7073 = vadd.f32 0.0, %v7072
  %v7074 = vpop.f32.mrb[0].mxu0
  %7075 = vmatprep.mubr.f32.mxu0 0.0
  %7076 = vmatmul.mubr.f32.gmra.mrb[0].mxu0 %v6942
  %v7077 = vpop.f32.mrb[0].mxu0
  %v7078 = vadd.f32 0.0, %v7077
  %v7079 = vpop.f32.mrb[0].mxu0
  %7080 = vmatprep.mubr.f32.mxu0 0.0
  %7081 = vmatmul.mubr.f32.gmra.mrb[0].mxu0 %v6945
  %v7082 = vpop.f32.mrb[0].mxu0
  %v7083 = vadd.f32 0.0, %v7082
  %v7084 = vpop.f32.mrb[0].mxu0
  %7085 = vmatprep.mubr.f32.mxu0 0.0
  %7086 = vmatmul.mubr.f32.gmra.mrb[0].mxu0 %v6948
  %v7087 = vpop.f32.mrb[0].mxu0
  %v7088 = vadd.f32 0.0, %v7087
  %v7089 = vpop.f32.mrb[0].mxu0
  %7090 = vmatprep.mubr.f32.mxu0 0.0
  %7091 = vmatmul.mubr.f32.gmra.mrb[0].mxu0 %v6951
  %v7092 = vpop.f32.mrb[0].mxu0
  %v7093 = vadd.f32 0.0, %v7092
  %v7094 = vpop.f32.mrb[0].mxu0
  %7095 = vmatprep.mubr.f32.mxu0 0.0
  %7096 = vmatmul.mubr.f32.gmra.mrb[0].mxu0 %v6954
  %v7097 = vpop.f32.mrb[0].mxu0
  %v7098 = vadd.f32 0.0, %v7097
  %v7099 = vpop.f32.mrb[0].mxu0
  %7100 = vdwg.mxu0
  %v7101 = vmul.f32 %v7023, 0.020408163
  %v7102 = vmul.f32 %v7028, 0.020408163
  %v7103 = vmul.f32 %v7033, 0.020408163
  %v7104 = vmul.f32 %v7038, 0.020408163
  %v7105 = vmul.f32 %v7043, 0.020408163
  %v7106 = vmul.f32 %v7048, 0.020408163
  %v7107 = vmul.f32 %v7053, 0.020408163
  %v7108 = vmul.f32 %v7058, 0.020408163
  %v7109 = vmul.f32 %v7063, 0.020408163
  %v7110 = vmul.f32 %v7068, 0.020408163
  %v7111 = vmul.f32 %v7073, 0.020408163
  %v7112 = vmul.f32 %v7078, 0.020408163
  %v7113 = vmul.f32 %v7083, 0.020408163
  %v7114 = vmul.f32 %v7088, 0.020408163
  %v7115 = vmul.f32 %v7093, 0.020408163
  %v7116 = vmul.f32 %v7098, 0.020408163
  %v7117 = vsub.f32 %v6892, %v7101
  %v7118 = vsub.f32 %v6893, %v7102
  %v7119 = vsub.f32 %v6894, %v7103
  %v7120 = vsub.f32 %v6895, %v7104
  %v7121 = vsub.f32 %v6896, %v7105
  %v7122 = vsub.f32 %v6897, %v7106
  %v7123 = vsub.f32 %v6898, %v7107
  %v7124 = vsub.f32 %v6899, %v7108
  %v7125 = vsub.f32 %v6900, %v7109
  %v7126 = vsub.f32 %v6901, %v7110
  %v7127 = vsub.f32 %v6902, %v7111
  %v7128 = vsub.f32 %v6903, %v7112
  %v7129 = vsub.f32 %v6904, %v7113
  %v7130 = vsub.f32 %v6905, %v7114
  %v7131 = vsub.f32 %v6906, %v7115
  %v7132 = vsub.f32 %v6907, %v7116
  %v7133 = vmul.f32 %v7117, %v7117
  %v7134 = vmul.f32 %v7118, %v7118
  %v7135 = vmul.f32 %v7119, %v7119
  %v7136 = vmul.f32 %v7120, %v7120
  %v7137 = vmul.f32 %v7121, %v7121
  %v7138 = vmul.f32 %v7122, %v7122
  %v7139 = vmul.f32 %v7123, %v7123
  %v7140 = vmul.f32 %v7124, %v7124
  %v7141 = vmul.f32 %v7125, %v7125
  %v7142 = vmul.f32 %v7126, %v7126
  %v7143 = vmul.f32 %v7127, %v7127
  %v7144 = vmul.f32 %v7128, %v7128
  %v7145 = vmul.f32 %v7129, %v7129
  %v7146 = vmul.f32 %v7130, %v7130
  %v7147 = vmul.f32 %v7131, %v7131
  %v7148 = vmul.f32 %v7132, %v7132
  %v7150 = vsel %vm908, %v7133, 0
  %v7153 = vsel %vm908, %v7134, 0
  %v7156 = vsel %vm908, %v7135, 0
  %v7159 = vsel %vm908, %v7136, 0
  %v7162 = vsel %vm908, %v7137, 0
  %v7165 = vsel %vm908, %v7138, 0
  %v7168 = vsel %vm908, %v7139, 0
  %v7171 = vsel %vm908, %v7140, 0
  %v7174 = vsel %vm908, %v7141, 0
  %v7177 = vsel %vm908, %v7142, 0
  %v7180 = vsel %vm908, %v7143, 0
  %v7183 = vsel %vm908, %v7144, 0
  %v7186 = vsel %vm908, %v7145, 0
  %v7189 = vsel %vm908, %v7146, 0
  %v7192 = vsel %vm908, %v7147, 0
  %v7195 = vsel %vm908, %v7148, 0
  %7197 = vmatprep.subr.mxu0 0.0
  %7198 = vmatpush1.msra.mxu0 1.0
  %7199 = vmatprep.subr.mxu0 0.0
  %7200 = vmatpush1.msra.mxu0 1.0
  %7201 = vmatprep.subr.mxu0 0.0
  %7202 = vmatpush1.msra.mxu0 1.0
  %7203 = vmatprep.subr.mxu0 0.0
  %7204 = vmatpush1.msra.mxu0 1.0
  %7205 = vmatprep.subr.mxu0 0.0
  %7206 = vmatpush1.msra.mxu0 1.0
  %7207 = vmatprep.subr.mxu0 0.0
  %7208 = vmatpush1.msra.mxu0 1.0
  %7209 = vmatprep.subr.mxu0 0.0
  %7210 = vmatpush1.msra.mxu0 %v923
  %7211 = vmatprep.subr.mxu0 0.0
  %7212 = vmatpush1.msra.mxu0 0.0
  %7213 = vmatprep.subr.mxu0 0.0
  %7214 = vmatpush1.msra.mxu0 0.0
  %7215 = vmatprep.subr.mxu0 0.0
  %7216 = vmatpush1.msra.mxu0 0.0
  %7217 = vmatprep.subr.mxu0 0.0
  %7218 = vmatpush1.msra.mxu0 0.0
  %7219 = vmatprep.subr.mxu0 0.0
  %7220 = vmatpush1.msra.mxu0 0.0
  %7221 = vmatprep.subr.mxu0 0.0
  %7222 = vmatpush1.msra.mxu0 0.0
  %7223 = vmatprep.subr.mxu0 0.0
  %7224 = vmatpush1.msra.mxu0 0.0
  %7225 = vmatprep.subr.mxu0 0.0
  %7226 = vmatpush1.msra.mxu0 0.0
  %7227 = vmatprep.subr.mxu0 0.0
  %7228 = vmatpush1.msra.mxu0 0.0
  %7229 = vmatprep.subr.mxu0 0.0
  %7230 = vmatpush1.msra.mxu0 0.0
  %7231 = vmatprep.subr.mxu0 0.0
  %7232 = vmatpush1.msra.mxu0 0.0
  %7233 = vmatprep.subr.mxu0 0.0
  %7234 = vmatpush1.msra.mxu0 0.0
  %7235 = vmatprep.subr.mxu0 0.0
  %7236 = vmatpush1.msra.mxu0 0.0
  %7237 = vmatprep.subr.mxu0 0.0
  %7238 = vmatpush1.msra.mxu0 0.0
  %7239 = vmatprep.subr.mxu0 0.0
  %7240 = vmatpush1.msra.mxu0 0.0
  %7241 = vmatprep.subr.mxu0 0.0
  %7242 = vmatpush1.msra.mxu0 0.0
  %7243 = vmatprep.subr.mxu0 0.0
  %7244 = vmatpush1.msra.mxu0 0.0
  %7245 = vmatprep.subr.mxu0 0.0
  %7246 = vmatpush1.msra.mxu0 0.0
  %7247 = vmatprep.subr.mxu0 0.0
  %7248 = vmatpush1.msra.mxu0 0.0
  %7249 = vmatprep.subr.mxu0 0.0
  %7250 = vmatpush1.msra.mxu0 0.0
  %7251 = vmatprep.subr.mxu0 0.0
  %7252 = vmatpush1.msra.mxu0 0.0
  %7253 = vmatprep.subr.mxu0 0.0
  %7254 = vmatpush1.msra.mxu0 0.0
  %7255 = vmatprep.subr.mxu0 0.0
  %7256 = vmatpush1.msra.mxu0 0.0
  %7257 = vmatprep.subr.mxu0 0.0
  %7258 = vmatpush1.msra.mxu0 0.0
  %7259 = vmatprep.subr.mxu0 0.0
  %7260 = vmatpush1.msra.mxu0 0.0
  %7261 = vmatprep.mubr.f32.mxu0 0.0
  %7262 = vmatmul.mubr.f32.gmra.mrb[0].mxu0 %v7150
  %v7263 = vpop.f32.mrb[0].mxu0
  %v7264 = vadd.f32 0.0, %v7263
  %v7265 = vpop.f32.mrb[0].mxu0
  %7266 = vmatprep.mubr.f32.mxu0 0.0
  %7267 = vmatmul.mubr.f32.gmra.mrb[0].mxu0 %v7153
  %v7268 = vpop.f32.mrb[0].mxu0
  %v7269 = vadd.f32 0.0, %v7268
  %v7270 = vpop.f32.mrb[0].mxu0
  %7271 = vmatprep.mubr.f32.mxu0 0.0
  %7272 = vmatmul.mubr.f32.gmra.mrb[0].mxu0 %v7156
  %v7273 = vpop.f32.mrb[0].mxu0
  %v7274 = vadd.f32 0.0, %v7273
  %v7275 = vpop.f32.mrb[0].mxu0
  %7276 = vmatprep.mubr.f32.mxu0 0.0
  %7277 = vmatmul.mubr.f32.gmra.mrb[0].mxu0 %v7159
  %v7278 = vpop.f32.mrb[0].mxu0
  %v7279 = vadd.f32 0.0, %v7278
  %v7280 = vpop.f32.mrb[0].mxu0
  %7281 = vmatprep.mubr.f32.mxu0 0.0
  %7282 = vmatmul.mubr.f32.gmra.mrb[0].mxu0 %v7162
  %v7283 = vpop.f32.mrb[0].mxu0
  %v7284 = vadd.f32 0.0, %v7283
  %v7285 = vpop.f32.mrb[0].mxu0
  %7286 = vmatprep.mubr.f32.mxu0 0.0
  %7287 = vmatmul.mubr.f32.gmra.mrb[0].mxu0 %v7165
  %v7288 = vpop.f32.mrb[0].mxu0
  %v7289 = vadd.f32 0.0, %v7288
  %v7290 = vpop.f32.mrb[0].mxu0
  %7291 = vmatprep.mubr.f32.mxu0 0.0
  %7292 = vmatmul.mubr.f32.gmra.mrb[0].mxu0 %v7168
  %v7293 = vpop.f32.mrb[0].mxu0
  %v7294 = vadd.f32 0.0, %v7293
  %v7295 = vpop.f32.mrb[0].mxu0
  %7296 = vmatprep.mubr.f32.mxu0 0.0
  %7297 = vmatmul.mubr.f32.gmra.mrb[0].mxu0 %v7171
  %v7298 = vpop.f32.mrb[0].mxu0
  %v7299 = vadd.f32 0.0, %v7298
  %v7300 = vpop.f32.mrb[0].mxu0
  %7301 = vmatprep.mubr.f32.mxu0 0.0
  %7302 = vmatmul.mubr.f32.gmra.mrb[0].mxu0 %v7174
  %v7303 = vpop.f32.mrb[0].mxu0
  %v7304 = vadd.f32 0.0, %v7303
  %v7305 = vpop.f32.mrb[0].mxu0
  %7306 = vmatprep.mubr.f32.mxu0 0.0
  %7307 = vmatmul.mubr.f32.gmra.mrb[0].mxu0 %v7177
  %v7308 = vpop.f32.mrb[0].mxu0
  %v7309 = vadd.f32 0.0, %v7308
  %v7310 = vpop.f32.mrb[0].mxu0
  %7311 = vmatprep.mubr.f32.mxu0 0.0
  %7312 = vmatmul.mubr.f32.gmra.mrb[0].mxu0 %v7180
  %v7313 = vpop.f32.mrb[0].mxu0
  %v7314 = vadd.f32 0.0, %v7313
  %v7315 = vpop.f32.mrb[0].mxu0
  %7316 = vmatprep.mubr.f32.mxu0 0.0
  %7317 = vmatmul.mubr.f32.gmra.mrb[0].mxu0 %v7183
  %v7318 = vpop.f32.mrb[0].mxu0
  %v7319 = vadd.f32 0.0, %v7318
  %v7320 = vpop.f32.mrb[0].mxu0
  %7321 = vmatprep.mubr.f32.mxu0 0.0
  %7322 = vmatmul.mubr.f32.gmra.mrb[0].mxu0 %v7186
  %v7323 = vpop.f32.mrb[0].mxu0
  %v7324 = vadd.f32 0.0, %v7323
  %v7325 = vpop.f32.mrb[0].mxu0
  %7326 = vmatprep.mubr.f32.mxu0 0.0
  %7327 = vmatmul.mubr.f32.gmra.mrb[0].mxu0 %v7189
  %v7328 = vpop.f32.mrb[0].mxu0
  %v7329 = vadd.f32 0.0, %v7328
  %v7330 = vpop.f32.mrb[0].mxu0
  %7331 = vmatprep.mubr.f32.mxu0 0.0
  %7332 = vmatmul.mubr.f32.gmra.mrb[0].mxu0 %v7192
  %v7333 = vpop.f32.mrb[0].mxu0
  %v7334 = vadd.f32 0.0, %v7333
  %v7335 = vpop.f32.mrb[0].mxu0
  %7336 = vmatprep.mubr.f32.mxu0 0.0
  %7337 = vmatmul.mubr.f32.gmra.mrb[0].mxu0 %v7195
  %v7338 = vpop.f32.mrb[0].mxu0
  %v7339 = vadd.f32 0.0, %v7338
  %v7340 = vpop.f32.mrb[0].mxu0
  %7341 = vdwg.mxu0
  %v7342 = vmul.f32 %v7264, 0.020408163
  %v7343 = vmul.f32 %v7269, 0.020408163
  %v7344 = vmul.f32 %v7274, 0.020408163
  %v7345 = vmul.f32 %v7279, 0.020408163
  %v7346 = vmul.f32 %v7284, 0.020408163
  %v7347 = vmul.f32 %v7289, 0.020408163
  %v7348 = vmul.f32 %v7294, 0.020408163
  %v7349 = vmul.f32 %v7299, 0.020408163
  %v7350 = vmul.f32 %v7304, 0.020408163
  %v7351 = vmul.f32 %v7309, 0.020408163
  %v7352 = vmul.f32 %v7314, 0.020408163
  %v7353 = vmul.f32 %v7319, 0.020408163
  %v7354 = vmul.f32 %v7324, 0.020408163
  %v7355 = vmul.f32 %v7329, 0.020408163
  %v7356 = vmul.f32 %v7334, 0.020408163
  %v7357 = vmul.f32 %v7339, 0.020408163
  %v7358 = vadd.f32 %v7342, 1e-05
  %v7359 = vadd.f32 %v7343, 1e-05
  %v7360 = vadd.f32 %v7344, 1e-05
  %v7361 = vadd.f32 %v7345, 1e-05
  %v7362 = vadd.f32 %v7346, 1e-05
  %v7363 = vadd.f32 %v7347, 1e-05
  %v7364 = vadd.f32 %v7348, 1e-05
  %v7365 = vadd.f32 %v7349, 1e-05
  %v7366 = vadd.f32 %v7350, 1e-05
  %v7367 = vadd.f32 %v7351, 1e-05
  %v7368 = vadd.f32 %v7352, 1e-05
  %v7369 = vadd.f32 %v7353, 1e-05
  %v7370 = vadd.f32 %v7354, 1e-05
  %v7371 = vadd.f32 %v7355, 1e-05
  %v7372 = vadd.f32 %v7356, 1e-05
  %v7373 = vadd.f32 %v7357, 1e-05
  %v7374 = vrsqrt.pop %v7358
  %v7375 = vrsqrt.pop %v7359
  %v7376 = vrsqrt.pop %v7360
  %v7377 = vrsqrt.pop %v7361
  %v7378 = vrsqrt.pop %v7362
  %v7379 = vrsqrt.pop %v7363
  %v7380 = vrsqrt.pop %v7364
  %v7381 = vrsqrt.pop %v7365
  %v7382 = vrsqrt.pop %v7366
  %v7383 = vrsqrt.pop %v7367
  %v7384 = vrsqrt.pop %v7368
  %v7385 = vrsqrt.pop %v7369
  %v7386 = vrsqrt.pop %v7370
  %v7387 = vrsqrt.pop %v7371
  %v7388 = vrsqrt.pop %v7372
  %v7389 = vrsqrt.pop %v7373
  %v7390 = vld [vmem:[%s2 + $0x180] sm:$0xff]
  %v7391 = vld [vmem:[%s2 + $0x188] sm:$0xff]
  %v7392 = vld [vmem:[%s2 + $0x190] sm:$0xff]
  %v7393 = vld [vmem:[%s2 + $0x198] sm:$0xff]
  %v7394 = vld [vmem:[%s2 + $0x1a0] sm:$0xff]
  %v7395 = vld [vmem:[%s2 + $0x1a8] sm:$0xff]
  %v7396 = vld [vmem:[%s2 + $0x1b0] sm:$0xff]
  %v7397 = vld [vmem:[%s2 + $0x1b8] sm:$0xff]
  %v7398 = vld [vmem:[%s2 + $0x1c0] sm:$0xff]
  %v7399 = vld [vmem:[%s2 + $0x1c8] sm:$0xff]
  %v7400 = vld [vmem:[%s2 + $0x1d0] sm:$0xff]
  %v7401 = vld [vmem:[%s2 + $0x1d8] sm:$0xff]
  %v7402 = vld [vmem:[%s2 + $0x1e0] sm:$0xff]
  %v7403 = vld [vmem:[%s2 + $0x1e8] sm:$0xff]
  %v7404 = vld [vmem:[%s2 + $0x1f0] sm:$0xff]
  %v7405 = vld [vmem:[%s2 + $0x1f8] sm:$0xff]
  %7407 = vset.pattern.permute.xlu0 0
  %7408 = vperm.xlu0 %7407, %v7390
  %v7409 = vpop.permute.xlu0 %7408
  %7412 = vset.pattern.permute.xlu0 0
  %7413 = vperm.xlu0 %7412, %v7391
  %v7414 = vpop.permute.xlu0 %7413
  %7417 = vset.pattern.permute.xlu0 0
  %7418 = vperm.xlu0 %7417, %v7392
  %v7419 = vpop.permute.xlu0 %7418
  %7422 = vset.pattern.permute.xlu0 0
  %7423 = vperm.xlu0 %7422, %v7393
  %v7424 = vpop.permute.xlu0 %7423
  %7427 = vset.pattern.permute.xlu0 0
  %7428 = vperm.xlu0 %7427, %v7394
  %v7429 = vpop.permute.xlu0 %7428
  %7432 = vset.pattern.permute.xlu0 0
  %7433 = vperm.xlu0 %7432, %v7395
  %v7434 = vpop.permute.xlu0 %7433
  %7437 = vset.pattern.permute.xlu0 0
  %7438 = vperm.xlu0 %7437, %v7396
  %v7439 = vpop.permute.xlu0 %7438
  %7442 = vset.pattern.permute.xlu0 0
  %7443 = vperm.xlu0 %7442, %v7397
  %v7444 = vpop.permute.xlu0 %7443
  %7447 = vset.pattern.permute.xlu0 0
  %7448 = vperm.xlu0 %7447, %v7398
  %v7449 = vpop.permute.xlu0 %7448
  %7452 = vset.pattern.permute.xlu0 0
  %7453 = vperm.xlu0 %7452, %v7399
  %v7454 = vpop.permute.xlu0 %7453
  %7457 = vset.pattern.permute.xlu0 0
  %7458 = vperm.xlu0 %7457, %v7400
  %v7459 = vpop.permute.xlu0 %7458
  %7462 = vset.pattern.permute.xlu0 0
  %7463 = vperm.xlu0 %7462, %v7401
  %v7464 = vpop.permute.xlu0 %7463
  %7467 = vset.pattern.permute.xlu0 0
  %7468 = vperm.xlu0 %7467, %v7402
  %v7469 = vpop.permute.xlu0 %7468
  %7472 = vset.pattern.permute.xlu0 0
  %7473 = vperm.xlu0 %7472, %v7403
  %v7474 = vpop.permute.xlu0 %7473
  %7477 = vset.pattern.permute.xlu0 0
  %7478 = vperm.xlu0 %7477, %v7404
  %v7479 = vpop.permute.xlu0 %7478
  %7482 = vset.pattern.permute.xlu0 0
  %7483 = vperm.xlu0 %7482, %v7405
  %v7484 = vpop.permute.xlu0 %7483
  %v7486 = vmul.f32 %v7374, %v7409
  %v7487 = vmul.f32 %v7375, %v7414
  %v7488 = vmul.f32 %v7376, %v7419
  %v7489 = vmul.f32 %v7377, %v7424
  %v7490 = vmul.f32 %v7378, %v7429
  %v7491 = vmul.f32 %v7379, %v7434
  %v7492 = vmul.f32 %v7380, %v7439
  %v7493 = vmul.f32 %v7381, %v7444
  %v7494 = vmul.f32 %v7382, %v7449
  %v7495 = vmul.f32 %v7383, %v7454
  %v7496 = vmul.f32 %v7384, %v7459
  %v7497 = vmul.f32 %v7385, %v7464
  %v7498 = vmul.f32 %v7386, %v7469
  %v7499 = vmul.f32 %v7387, %v7474
  %v7500 = vmul.f32 %v7388, %v7479
  %v7501 = vmul.f32 %v7389, %v7484
  %v7502 = vmul.f32 %v7117, %v7486
  %v7503 = vmul.f32 %v7118, %v7487
  %v7504 = vmul.f32 %v7119, %v7488
  %v7505 = vmul.f32 %v7120, %v7489
  %v7506 = vmul.f32 %v7121, %v7490
  %v7507 = vmul.f32 %v7122, %v7491
  %v7508 = vmul.f32 %v7123, %v7492
  %v7509 = vmul.f32 %v7124, %v7493
  %v7510 = vmul.f32 %v7125, %v7494
  %v7511 = vmul.f32 %v7126, %v7495
  %v7512 = vmul.f32 %v7127, %v7496
  %v7513 = vmul.f32 %v7128, %v7497
  %v7514 = vmul.f32 %v7129, %v7498
  %v7515 = vmul.f32 %v7130, %v7499
  %v7516 = vmul.f32 %v7131, %v7500
  %v7517 = vmul.f32 %v7132, %v7501
  %v7518 = vld [vmem:[%s3 + $0x180] sm:$0xff]
  %v7519 = vld [vmem:[%s3 + $0x188] sm:$0xff]
  %v7520 = vld [vmem:[%s3 + $0x190] sm:$0xff]
  %v7521 = vld [vmem:[%s3 + $0x198] sm:$0xff]
  %v7522 = vld [vmem:[%s3 + $0x1a0] sm:$0xff]
  %v7523 = vld [vmem:[%s3 + $0x1a8] sm:$0xff]
  %v7524 = vld [vmem:[%s3 + $0x1b0] sm:$0xff]
  %v7525 = vld [vmem:[%s3 + $0x1b8] sm:$0xff]
  %v7526 = vld [vmem:[%s3 + $0x1c0] sm:$0xff]
  %v7527 = vld [vmem:[%s3 + $0x1c8] sm:$0xff]
  %v7528 = vld [vmem:[%s3 + $0x1d0] sm:$0xff]
  %v7529 = vld [vmem:[%s3 + $0x1d8] sm:$0xff]
  %v7530 = vld [vmem:[%s3 + $0x1e0] sm:$0xff]
  %v7531 = vld [vmem:[%s3 + $0x1e8] sm:$0xff]
  %v7532 = vld [vmem:[%s3 + $0x1f0] sm:$0xff]
  %v7533 = vld [vmem:[%s3 + $0x1f8] sm:$0xff]
  %7535 = vset.pattern.permute.xlu0 0
  %7536 = vperm.xlu0 %7535, %v7518
  %v7537 = vpop.permute.xlu0 %7536
  %7540 = vset.pattern.permute.xlu0 0
  %7541 = vperm.xlu0 %7540, %v7519
  %v7542 = vpop.permute.xlu0 %7541
  %7545 = vset.pattern.permute.xlu0 0
  %7546 = vperm.xlu0 %7545, %v7520
  %v7547 = vpop.permute.xlu0 %7546
  %7550 = vset.pattern.permute.xlu0 0
  %7551 = vperm.xlu0 %7550, %v7521
  %v7552 = vpop.permute.xlu0 %7551
  %7555 = vset.pattern.permute.xlu0 0
  %7556 = vperm.xlu0 %7555, %v7522
  %v7557 = vpop.permute.xlu0 %7556
  %7560 = vset.pattern.permute.xlu0 0
  %7561 = vperm.xlu0 %7560, %v7523
  %v7562 = vpop.permute.xlu0 %7561
  %7565 = vset.pattern.permute.xlu0 0
  %7566 = vperm.xlu0 %7565, %v7524
  %v7567 = vpop.permute.xlu0 %7566
  %7570 = vset.pattern.permute.xlu0 0
  %7571 = vperm.xlu0 %7570, %v7525
  %v7572 = vpop.permute.xlu0 %7571
  %7575 = vset.pattern.permute.xlu0 0
  %7576 = vperm.xlu0 %7575, %v7526
  %v7577 = vpop.permute.xlu0 %7576
  %7580 = vset.pattern.permute.xlu0 0
  %7581 = vperm.xlu0 %7580, %v7527
  %v7582 = vpop.permute.xlu0 %7581
  %7585 = vset.pattern.permute.xlu0 0
  %7586 = vperm.xlu0 %7585, %v7528
  %v7587 = vpop.permute.xlu0 %7586
  %7590 = vset.pattern.permute.xlu0 0
  %7591 = vperm.xlu0 %7590, %v7529
  %v7592 = vpop.permute.xlu0 %7591
  %7595 = vset.pattern.permute.xlu0 0
  %7596 = vperm.xlu0 %7595, %v7530
  %v7597 = vpop.permute.xlu0 %7596
  %7600 = vset.pattern.permute.xlu0 0
  %7601 = vperm.xlu0 %7600, %v7531
  %v7602 = vpop.permute.xlu0 %7601
  %7605 = vset.pattern.permute.xlu0 0
  %7606 = vperm.xlu0 %7605, %v7532
  %v7607 = vpop.permute.xlu0 %7606
  %7610 = vset.pattern.permute.xlu0 0
  %7611 = vperm.xlu0 %7610, %v7533
  %v7612 = vpop.permute.xlu0 %7611
  %v7614 = vadd.f32 %v7502, %v7537
  %v7615 = vadd.f32 %v7503, %v7542
  %v7616 = vadd.f32 %v7504, %v7547
  %v7617 = vadd.f32 %v7505, %v7552
  %v7618 = vadd.f32 %v7506, %v7557
  %v7619 = vadd.f32 %v7507, %v7562
  %v7620 = vadd.f32 %v7508, %v7567
  %v7621 = vadd.f32 %v7509, %v7572
  %v7622 = vadd.f32 %v7510, %v7577
  %v7623 = vadd.f32 %v7511, %v7582
  %v7624 = vadd.f32 %v7512, %v7587
  %v7625 = vadd.f32 %v7513, %v7592
  %v7626 = vadd.f32 %v7514, %v7597
  %v7627 = vadd.f32 %v7515, %v7602
  %v7628 = vadd.f32 %v7516, %v7607
  %v7629 = vadd.f32 %v7517, %v7612
  %7630 = vst.msk [vmem:[%s18 + $0x180] sm:$0xff] %vm908, %v7614
  %7631 = vst.msk [vmem:[%s18 + $0x188] sm:$0xff] %vm908, %v7615
  %7632 = vst.msk [vmem:[%s18 + $0x190] sm:$0xff] %vm908, %v7616
  %7633 = vst.msk [vmem:[%s18 + $0x198] sm:$0xff] %vm908, %v7617
  %7634 = vst.msk [vmem:[%s18 + $0x1a0] sm:$0xff] %vm908, %v7618
  %7635 = vst.msk [vmem:[%s18 + $0x1a8] sm:$0xff] %vm908, %v7619
  %7636 = vst.msk [vmem:[%s18 + $0x1b0] sm:$0xff] %vm908, %v7620
  %7637 = vst.msk [vmem:[%s18 + $0x1b8] sm:$0xff] %vm908, %v7621
  %7638 = vst.msk [vmem:[%s18 + $0x1c0] sm:$0xff] %vm908, %v7622
  %7639 = vst.msk [vmem:[%s18 + $0x1c8] sm:$0xff] %vm908, %v7623
  %7640 = vst.msk [vmem:[%s18 + $0x1d0] sm:$0xff] %vm908, %v7624
  %7641 = vst.msk [vmem:[%s18 + $0x1d8] sm:$0xff] %vm908, %v7625
  %7642 = vst.msk [vmem:[%s18 + $0x1e0] sm:$0xff] %vm908, %v7626
  %7643 = vst.msk [vmem:[%s18 + $0x1e8] sm:$0xff] %vm908, %v7627
  %7644 = vst.msk [vmem:[%s18 + $0x1f0] sm:$0xff] %vm908, %v7628
  %7645 = vst.msk [vmem:[%s18 + $0x1f8] sm:$0xff] %vm908, %v7629
  // Predicated region
  $region104: #{forward.1} parent=0 // pred_check
    _
  $region105: #{forward.1} parent=0 // pred_check_branch
    %7647 = sbr.rel (0) target = $region107
  $region106: #{forward.1} parent=0 // pred_region
    _
  $region107: #{forward.1} parent=0 // pred_fallthru
    _
  // Predicated region
  $region108: #{forward.1} parent=0 // pred_check
    _
  $region109: #{forward.1} parent=0 // pred_check_branch
    %7649 = sbr.rel (0) target = $region111
  $region110: #{forward.1} parent=0 // pred_region
    _
  $region111: #{forward.1} parent=0 // pred_fallthru
    _
  %7650 = vsyncmov [#allocation4]
  %s7651 = vpop.sfrf %7650
  %p7652 = scmp.eq.s32.totalorder %s7651, 0
  %p7653 = pneg %p7652
  %7655 = shalt.err (%p7653)

</llo_original>
